<compile_context>
chip_gen: v5e
topology: v5e:2x2
jax: 0.10.0
libtpu: 0.0.40
codegen_flags: <defaults>
</compile_context>

<pallas_src>
import numpy as np
import jax
import jax.numpy as jnp
from jax import lax
from jax.experimental import pallas as pl
from jax.experimental.pallas import tpu as pltpu

SEQ_LEN = 8
N_FEATURES = 1
EMBED = 32
H_ENC1 = 2 * EMBED   # encoder rnn1 hidden = 64
H_ENC2 = EMBED       # encoder rnn2 hidden = 32
H_DEC1 = EMBED       # decoder rnn1 hidden = 32
H_DEC2 = 2 * EMBED   # decoder rnn2 hidden = 64

HP = 128             # padded hidden width (one full lane group per gate)
GP = 4 * HP          # padded 4-gate width = 512
KE = H_ENC1          # encoder fused-matmul contraction dim (64)
KD = H_DEC2          # decoder fused-matmul contraction dim (64)

assert N_FEATURES == 1, "module's reshapes require n_features == 1"


# ----------------------------- kernel ------------------------------------------------
def _cell(gates, c):
    """LSTM cell pointwise part on 128-lane-aligned gates. gates (1,GP), c (1,HP)."""
    i = jax.nn.sigmoid(gates[:, 0 * HP:1 * HP])
    f = jax.nn.sigmoid(gates[:, 1 * HP:2 * HP])
    g = jnp.tanh(gates[:, 2 * HP:3 * HP])
    o = jax.nn.sigmoid(gates[:, 3 * HP:4 * HP])
    c_new = f * c + i * g            # pad lanes: 0.5*0 + 0.5*0 = 0  -> stay zero
    h_new = o * jnp.tanh(c_new)      # pad lanes: 0.5*tanh(0) = 0    -> stay zero
    return h_new, c_new


def autoencoder_kernel(x_ref, small_ref, enc_rhs, d1_hbm, dec_hbm,
                       out_ref,
                       xw1_scr, h4_scr, d1_scr, dec_scr, dma_sems):
    f32 = jnp.float32

    # -- start decoder-weight DMA immediately; it lands under the encoder loop --------
    d1_cp = pltpu.make_async_copy(d1_hbm, d1_scr, dma_sems.at[0])
    dec_cp = pltpu.make_async_copy(dec_hbm, dec_scr, dma_sems.at[1])
    d1_cp.start()
    dec_cp.start()

    # Small constants slab rows:
    #   0: e1 W_ih gate row   1: e1 bias   2: e2 bias   3: d1 bias   4: d2 bias
    #   5: output weights (cols [0,H_DEC2))   6: output bias at col 0
    e1_wih_v = small_ref[0:1, :]
    e1_b_v = small_ref[1:2, :]
    e2_b_v = small_ref[2:3, :]

    # ---- hoisted encoder input projection: (S,1) * (1,GP) -> (S,GP), done once ------
    xw1_scr[...] = x_ref[...] * e1_wih_v

    zvec = jnp.zeros((1, HP), f32)
    zgate = jnp.zeros((1, GP), f32)

    # ---------------- Encoder: two stacked LSTMs over time (batch = 1) ---------------
    # carry: (h1 @ W_hh(enc1) from previous step, c1, h2, c2)
    def enc_body(t, carry):
        h1w, c1, h2, c2 = carry
        gates1 = xw1_scr[pl.ds(t, 1), :] + h1w + e1_b_v
        h1, c1 = _cell(gates1, c1)
        # One fused MXU call per step: rows [h1_t ; h2_{t-1}], K = 64.
        lhs = jnp.concatenate([h1[:, :KE], h2[:, :KE]], axis=0)          # (2, KE)
        fused = jnp.dot(lhs, enc_rhs[...], preferred_element_type=f32)   # (2, 3*GP)
        h1w_next = fused[0:1, 0:GP]              # h1_t @ W_hh(enc1)  (next-step carry)
        xw2 = fused[0:1, GP:2 * GP]              # h1_t @ W_ih(enc2)
        h2w = fused[1:2, 2 * GP:3 * GP]          # h2_{t-1} @ W_hh(enc2)
        gates2 = xw2 + h2w + e2_b_v
        h2, c2 = _cell(gates2, c2)
        return h1w_next, c1, h2, c2

    _, _, z, _ = lax.fori_loop(0, SEQ_LEN, enc_body,
                               (zgate, zvec, zvec, zvec), unroll=True)
    # z : latent = final h2, (1, HP) with lanes [0, EMBED) real, rest zero.

    # ---------------- Decoder: latent repeated every step, two stacked LSTMs ---------
    d1_cp.wait()
    dec_cp.wait()

    d1_b_v = small_ref[3:4, :]
    d2_b_v = small_ref[4:5, :]
    # decoder rnn1 input is the same latent each step -> fold x@W_ih + bias once.
    zw3 = jnp.dot(z[:, :H_ENC2], d1_scr[...], preferred_element_type=f32) + d1_b_v

    def dec_body(t, carry):
        h3w, c3, h4, c4 = carry
        gates3 = zw3 + h3w
        h3, c3 = _cell(gates3, c3)
        lhs = jnp.concatenate([h3[:, :KD], h4[:, :KD]], axis=0)          # (2, KD)
        fused = jnp.dot(lhs, dec_scr[...], preferred_element_type=f32)   # (2, 3*GP)
        h3w_next = fused[0:1, 0:GP]              # h3_t @ W_hh(dec1)
        xw4 = fused[0:1, GP:2 * GP]              # h3_t @ W_ih(dec2)
        h4w = fused[1:2, 2 * GP:3 * GP]          # h4_{t-1} @ W_hh(dec2)
        gates4 = xw4 + h4w + d2_b_v
        h4, c4 = _cell(gates4, c4)
        h4_scr[pl.ds(t, 1), :] = h4              # lane-dense 128-wide store
        return h3w_next, c3, h4, c4

    lax.fori_loop(0, SEQ_LEN, dec_body, (zgate, zvec, zvec, zvec), unroll=True)

    # ---------------- Output linear layer, once, off the recurrence chain ------------
    ow_v = small_ref[5:6, 0:HP]                  # (1, HP), zero-padded past H_DEC2
    ob_v = small_ref[6:7, 0:1]                   # (1, 1)
    out_ref[...] = jnp.sum(h4_scr[...] * ow_v, axis=-1, keepdims=True) + ob_v


# ----------------------------- parameter packing -------------------------------------
def _pack_gates(m, H):
    """(rows, 4H) -> (rows, GP), placing PyTorch gate k (i,f,g,o) at [k*HP, k*HP+H)."""
    rows = m.shape[0]
    out = jnp.zeros((rows, GP), jnp.float32)
    for k in range(4):
        out = out.at[:, k * HP:k * HP + H].set(m[:, k * H:(k + 1) * H])
    return out


def _pad_rows(m, rows):
    return jnp.zeros((rows, m.shape[1]), jnp.float32).at[:m.shape[0]].set(m)


def pack_params(params):
    enc1, enc2, dec1, dec2, out_w, out_b = params
    e1_wih_raw, e1_whh_raw, e1_bih, e1_bhh = enc1
    e2_wih_raw, e2_whh_raw, e2_bih, e2_bhh = enc2
    d1_wih_raw, d1_whh_raw, d1_bih, d1_bhh = dec1
    d2_wih_raw, d2_whh_raw, d2_bih, d2_bhh = dec2

    # Encoder fused RHS, contraction rows trimmed to KE = H_ENC1 = 64:
    #   [ W_hh(enc1) | W_ih(enc2) | W_hh(enc2) padded to 64 rows ]   -> (64, 3*GP)
    e1_whh = _pack_gates(e1_whh_raw.T, H_ENC1)                       # (64, GP)
    e2_wih = _pack_gates(e2_wih_raw.T, H_ENC2)                       # (64, GP)
    e2_whh = _pad_rows(_pack_gates(e2_whh_raw.T, H_ENC2), KE)        # (64, GP)
    enc_rhs = jnp.concatenate([e1_whh, e2_wih, e2_whh], axis=1)      # (64, 3*GP)

    # Decoder rnn1 input weights, rows trimmed to the latent width (32).
    d1_wih = _pack_gates(d1_wih_raw.T, H_DEC1)                       # (32, GP)

    # Decoder fused RHS, contraction rows KD = H_DEC2 = 64:
    #   [ W_hh(dec1) pad | W_ih(dec2) pad | W_hh(dec2) ]             -> (64, 3*GP)
    d1_whh = _pad_rows(_pack_gates(d1_whh_raw.T, H_DEC1), KD)        # (64, GP)
    d2_wih = _pad_rows(_pack_gates(d2_wih_raw.T, H_DEC2), KD)        # (64, GP)
    d2_whh = _pack_gates(d2_whh_raw.T, H_DEC2)                       # (64, GP)
    dec_rhs = jnp.concatenate([d1_whh, d2_wih, d2_whh], axis=1)      # (64, 3*GP)

    # Small constants slab (single DMA): (8, GP)
    small = jnp.zeros((8, GP), jnp.float32)
    small = small.at[0:1].set(_pack_gates(e1_wih_raw.T, H_ENC1))
    small = small.at[1:2].set(_pack_gates((e1_bih + e1_bhh)[None, :], H_ENC1))
    small = small.at[2:3].set(_pack_gates((e2_bih + e2_bhh)[None, :], H_ENC2))
    small = small.at[3:4].set(_pack_gates((d1_bih + d1_bhh)[None, :], H_DEC1))
    small = small.at[4:5].set(_pack_gates((d2_bih + d2_bhh)[None, :], H_DEC2))
    small = small.at[5, :H_DEC2].set(out_w[0])
    small = small.at[6, 0].set(out_b[0])

    return (small, enc_rhs, d1_wih, dec_rhs)


# ----------------------------- init (PyTorch-style raw weights) ----------------------
def _init_lstm_raw(key, input_size, hidden_size):
    k = 1.0 / np.sqrt(hidden_size)
    k1, k2, k3, k4 = jax.random.split(key, 4)
    w_ih = jax.random.uniform(k1, (4 * hidden_size, input_size), jnp.float32, -k, k)
    w_hh = jax.random.uniform(k2, (4 * hidden_size, hidden_size), jnp.float32, -k, k)
    b_ih = jax.random.uniform(k3, (4 * hidden_size,), jnp.float32, -k, k)
    b_hh = jax.random.uniform(k4, (4 * hidden_size,), jnp.float32, -k, k)
    return (w_ih, w_hh, b_ih, b_hh)


def init_params(key):
    ks = jax.random.split(key, 6)
    enc1 = _init_lstm_raw(ks[0], N_FEATURES, H_ENC1)
    enc2 = _init_lstm_raw(ks[1], H_ENC1, H_ENC2)
    dec1 = _init_lstm_raw(ks[2], EMBED, H_DEC1)
    dec2 = _init_lstm_raw(ks[3], H_DEC1, H_DEC2)
    k = 1.0 / np.sqrt(H_DEC2)
    out_w = jax.random.uniform(ks[4], (N_FEATURES, H_DEC2), jnp.float32, -k, k)
    out_b = jax.random.uniform(ks[5], (N_FEATURES,), jnp.float32, -k, k)
    return (enc1, enc2, dec1, dec2, out_w, out_b)


# ----------------------------- pallas_call wrapper ------------------------------------
@jax.jit
def recurrent_autoencoder(x, packed):
    small, enc_rhs, d1_wih, dec_rhs = packed
    return pl.pallas_call(
        autoencoder_kernel,
        out_shape=jax.ShapeDtypeStruct((SEQ_LEN, N_FEATURES), jnp.float32),
        in_specs=[
            pl.BlockSpec(memory_space=pltpu.MemorySpace.VMEM),   # x
            pl.BlockSpec(memory_space=pltpu.MemorySpace.VMEM),   # small constants slab
            pl.BlockSpec(memory_space=pltpu.MemorySpace.VMEM),   # encoder fused RHS
            pl.BlockSpec(memory_space=pl.ANY),                   # d1_wih  (prefetched in-kernel)
            pl.BlockSpec(memory_space=pl.ANY),                   # dec_rhs (prefetched in-kernel)
        ],
        out_specs=pl.BlockSpec(memory_space=pltpu.MemorySpace.VMEM),
        scratch_shapes=[
            pltpu.VMEM((SEQ_LEN, GP), jnp.float32),      # hoisted x @ W_ih(enc1)
            pltpu.VMEM((SEQ_LEN, HP), jnp.float32),      # h4 sequence (output projection)
            pltpu.VMEM((H_ENC2, GP), jnp.float32),       # d1_wih staging buffer
            pltpu.VMEM((KD, 3 * GP), jnp.float32),       # dec_rhs staging buffer
            pltpu.SemaphoreType.DMA((2,)),
        ],
    )(x, small, enc_rhs, d1_wih, dec_rhs)


# ----------------------------- pure-JAX reference (PyTorch LSTM semantics) ------------
def _lstm_ref(xs, w_ih, w_hh, b_ih, b_hh):
    H = w_hh.shape[1]
    wih_T, whh_T, b = w_ih.T, w_hh.T, (b_ih + b_hh)[None, :]

    def step(carry, x_t):
        h, c = carry
        gates = x_t[None, :] @ wih_T + h @ whh_T + b
        i = jax.nn.sigmoid(gates[:, :H])
        f = jax.nn.sigmoid(gates[:, H:2 * H])
        g = jnp.tanh(gates[:, 2 * H:3 * H])
        o = jax.nn.sigmoid(gates[:, 3 * H:])
        c = f * c + i * g
        h = o * jnp.tanh(c)
        return (h, c), h[0]

    init = (jnp.zeros((1, H), jnp.float32), jnp.zeros((1, H), jnp.float32))
    (h, _), hs = lax.scan(step, init, xs)
    return hs, h


def reference_forward(x, params):
    enc1, enc2, dec1, dec2, ow, ob = params
    hs1, _ = _lstm_ref(x, *enc1)              # (S, 2E)
    _, hN = _lstm_ref(hs1, *enc2)             # (1, E)  = encoder latent
    dec_in = jnp.tile(hN, (SEQ_LEN, 1))       # x.repeat(seq_len, 1) -> (S, E)
    hs3, _ = _lstm_ref(dec_in, *dec1)         # (S, E)
    hs4, _ = _lstm_ref(hs3, *dec2)            # (S, 2E)
    return hs4 @ ow.T + ob[None, :]           # (S, 1)


if __name__ == "__main__":
    key = jax.random.PRNGKey(0)
    kx, kp = jax.random.split(key)
    x = jax.random.normal(kx, (SEQ_LEN, N_FEATURES), jnp.float32)
    params = init_params(kp)
    packed = pack_params(params)

    out = recurrent_autoencoder(x, packed)
    out = jax.block_until_ready(out)

    ref = jax.block_until_ready(reference_forward(x, params))
    assert out.shape == (SEQ_LEN, N_FEATURES)
    np.testing.assert_allclose(np.asarray(out), np.asarray(ref), atol=5e-3, rtol=5e-3)

    print("KERNEL_OK")
</pallas_src>

<mosaic_0001>
module attributes {stable_mosaic.version = 11 : i64} {
  func.func @autoencoder_kernel(%arg0: memref<8x1xf32, #tpu.memory_space<vmem>>, %arg1: memref<8x512xf32, #tpu.memory_space<vmem>>, %arg2: memref<64x1536xf32, #tpu.memory_space<vmem>>, %arg3: memref<32x512xf32, #tpu.memory_space<any>>, %arg4: memref<64x1536xf32, #tpu.memory_space<any>>, %arg5: memref<8x1xf32, #tpu.memory_space<vmem>>, %arg6: memref<8x512xf32, #tpu.memory_space<vmem>>, %arg7: memref<8x128xf32, #tpu.memory_space<vmem>>, %arg8: memref<32x512xf32, #tpu.memory_space<vmem>>, %arg9: memref<64x1536xf32, #tpu.memory_space<vmem>>, %arg10: memref<2x!tpu.dma_semaphore, #tpu.memory_space<semaphore_mem>>) attributes {dimension_semantics = [], scalar_prefetch = 0 : i64, scratch_operands = 5 : i64, tpu.core_type = #tpu.core_type<tc>} {
    %c0_i32 = arith.constant 0 : i32
    %0 = tpu.memref_slice %arg10[%c0_i32] : memref<2x!tpu.dma_semaphore, #tpu.memory_space<semaphore_mem>> -> memref<1x!tpu.dma_semaphore, #tpu.memory_space<semaphore_mem>>
    %1 = tpu.memref_squeeze %0 : memref<1x!tpu.dma_semaphore, #tpu.memory_space<semaphore_mem>> -> memref<!tpu.dma_semaphore, #tpu.memory_space<semaphore_mem>>
    tpu.enqueue_dma source(%arg3 : memref<32x512xf32, #tpu.memory_space<any>>) target(%arg8 : memref<32x512xf32, #tpu.memory_space<vmem>>) target_semaphore(%1 : memref<!tpu.dma_semaphore, #tpu.memory_space<semaphore_mem>>)
    %c1_i32 = arith.constant 1 : i32
    %2 = tpu.memref_slice %arg10[%c1_i32] : memref<2x!tpu.dma_semaphore, #tpu.memory_space<semaphore_mem>> -> memref<1x!tpu.dma_semaphore, #tpu.memory_space<semaphore_mem>>
    %3 = tpu.memref_squeeze %2 : memref<1x!tpu.dma_semaphore, #tpu.memory_space<semaphore_mem>> -> memref<!tpu.dma_semaphore, #tpu.memory_space<semaphore_mem>>
    tpu.enqueue_dma source(%arg4 : memref<64x1536xf32, #tpu.memory_space<any>>) target(%arg9 : memref<64x1536xf32, #tpu.memory_space<vmem>>) target_semaphore(%3 : memref<!tpu.dma_semaphore, #tpu.memory_space<semaphore_mem>>)
    %c0 = arith.constant 0 : index
    %c0_0 = arith.constant 0 : index
    %4 = vector.load %arg1[%c0, %c0_0] : memref<8x512xf32, #tpu.memory_space<vmem>>, vector<1x512xf32>
    %c1 = arith.constant 1 : index
    %c0_1 = arith.constant 0 : index
    %5 = vector.load %arg1[%c1, %c0_1] : memref<8x512xf32, #tpu.memory_space<vmem>>, vector<1x512xf32>
    %c2 = arith.constant 2 : index
    %c0_2 = arith.constant 0 : index
    %6 = vector.load %arg1[%c2, %c0_2] : memref<8x512xf32, #tpu.memory_space<vmem>>, vector<1x512xf32>
    %c0_3 = arith.constant 0 : index
    %c0_4 = arith.constant 0 : index
    %7 = vector.load %arg0[%c0_3, %c0_4] : memref<8x1xf32, #tpu.memory_space<vmem>>, vector<8x1xf32>
    %8 = vector.broadcast %7 : vector<8x1xf32> to vector<8x512xf32>
    %9 = vector.broadcast %4 : vector<1x512xf32> to vector<8x512xf32>
    %10 = arith.mulf %8, %9 : vector<8x512xf32>
    %c0_5 = arith.constant 0 : index
    %c0_6 = arith.constant 0 : index
    %11 = vector.load %arg6[%c0_5, %c0_6] : memref<8x512xf32, #tpu.memory_space<vmem>>, vector<8x512xf32>
    tpu.vector_store %arg6[%c0_5, %c0_6], %10 {strides = array<i32>} : memref<8x512xf32, #tpu.memory_space<vmem>>, vector<8x512xf32>,
    %cst = arith.constant 0.000000e+00 : f32
    %12 = vector.broadcast %cst : f32 to vector<1x128xf32>
    %cst_7 = arith.constant 0.000000e+00 : f32
    %13 = vector.broadcast %cst_7 : f32 to vector<1x512xf32>
    %c0_i32_8 = arith.constant 0 : i32
    %14 = arith.index_cast %c0_i32_8 : i32 to index
    %c0_9 = arith.constant 0 : index
    %15 = vector.load %arg6[%14, %c0_9] : memref<8x512xf32, #tpu.memory_space<vmem>>, vector<1x512xf32>
    %16 = arith.addf %15, %13 : vector<1x512xf32>
    %17 = arith.addf %16, %5 : vector<1x512xf32>
    %18 = vector.extract_strided_slice %17 {offsets = [0, 0], sizes = [1, 128], strides = [1, 1]} : vector<1x512xf32> to vector<1x128xf32>
    %19 = arith.negf %18 : vector<1x128xf32>
    %20 = math.exp %19 : vector<1x128xf32>
    %cst_10 = arith.constant 1.000000e+00 : f32
    %21 = vector.broadcast %cst_10 : f32 to vector<1x128xf32>
    %22 = arith.addf %21, %20 : vector<1x128xf32>
    %23 = arith.divf %21, %22 : vector<1x128xf32>
    %24 = vector.extract_strided_slice %17 {offsets = [0, 128], sizes = [1, 128], strides = [1, 1]} : vector<1x512xf32> to vector<1x128xf32>
    %25 = arith.negf %24 : vector<1x128xf32>
    %26 = math.exp %25 : vector<1x128xf32>
    %cst_11 = arith.constant 1.000000e+00 : f32
    %27 = vector.broadcast %cst_11 : f32 to vector<1x128xf32>
    %28 = arith.addf %27, %26 : vector<1x128xf32>
    %29 = arith.divf %27, %28 : vector<1x128xf32>
    %30 = vector.extract_strided_slice %17 {offsets = [0, 256], sizes = [1, 128], strides = [1, 1]} : vector<1x512xf32> to vector<1x128xf32>
    %31 = math.tanh %30 : vector<1x128xf32>
    %32 = vector.extract_strided_slice %17 {offsets = [0, 384], sizes = [1, 128], strides = [1, 1]} : vector<1x512xf32> to vector<1x128xf32>
    %33 = arith.negf %32 : vector<1x128xf32>
    %34 = math.exp %33 : vector<1x128xf32>
    %cst_12 = arith.constant 1.000000e+00 : f32
    %35 = vector.broadcast %cst_12 : f32 to vector<1x128xf32>
    %36 = arith.addf %35, %34 : vector<1x128xf32>
    %37 = arith.divf %35, %36 : vector<1x128xf32>
    %38 = arith.mulf %29, %12 : vector<1x128xf32>
    %39 = arith.mulf %23, %31 : vector<1x128xf32>
    %40 = arith.addf %38, %39 : vector<1x128xf32>
    %41 = math.tanh %40 : vector<1x128xf32>
    %42 = arith.mulf %37, %41 : vector<1x128xf32>
    %43 = vector.extract_strided_slice %42 {offsets = [0, 0], sizes = [1, 64], strides = [1, 1]} : vector<1x128xf32> to vector<1x64xf32>
    %44 = vector.extract_strided_slice %12 {offsets = [0, 0], sizes = [1, 64], strides = [1, 1]} : vector<1x128xf32> to vector<1x64xf32>
    %45 = tpu.concatenate %43, %44 in 0 : vector<1x64xf32>, vector<1x64xf32> -> vector<2x64xf32>
    %c0_13 = arith.constant 0 : index
    %c0_14 = arith.constant 0 : index
    %46 = vector.load %arg2[%c0_13, %c0_14] : memref<64x1536xf32, #tpu.memory_space<vmem>>, vector<64x1536xf32>
    %cst_15 = arith.constant dense<0.000000e+00> : vector<2x1536xf32>
    %47 = tpu.matmul %45, %46, %cst_15 {dimension_numbers = #tpu.dot_dimension_numbers<[1], [0], [0], [1], [0, 0, 1, 1], [], []>} : vector<2x64xf32>, vector<64x1536xf32>, vector<2x1536xf32> -> vector<2x1536xf32>
    %48 = vector.extract_strided_slice %47 {offsets = [0, 0], sizes = [1, 512], strides = [1, 1]} : vector<2x1536xf32> to vector<1x512xf32>
    %49 = vector.extract_strided_slice %47 {offsets = [0, 512], sizes = [1, 512], strides = [1, 1]} : vector<2x1536xf32> to vector<1x512xf32>
    %50 = vector.extract_strided_slice %47 {offsets = [1, 1024], sizes = [1, 512], strides = [1, 1]} : vector<2x1536xf32> to vector<1x512xf32>
    %51 = arith.addf %49, %50 : vector<1x512xf32>
    %52 = arith.addf %51, %6 : vector<1x512xf32>
    %53 = vector.extract_strided_slice %52 {offsets = [0, 0], sizes = [1, 128], strides = [1, 1]} : vector<1x512xf32> to vector<1x128xf32>
    %54 = arith.negf %53 : vector<1x128xf32>
    %55 = math.exp %54 : vector<1x128xf32>
    %cst_16 = arith.constant 1.000000e+00 : f32
    %56 = vector.broadcast %cst_16 : f32 to vector<1x128xf32>
    %57 = arith.addf %56, %55 : vector<1x128xf32>
    %58 = arith.divf %56, %57 : vector<1x128xf32>
    %59 = vector.extract_strided_slice %52 {offsets = [0, 128], sizes = [1, 128], strides = [1, 1]} : vector<1x512xf32> to vector<1x128xf32>
    %60 = arith.negf %59 : vector<1x128xf32>
    %61 = math.exp %60 : vector<1x128xf32>
    %cst_17 = arith.constant 1.000000e+00 : f32
    %62 = vector.broadcast %cst_17 : f32 to vector<1x128xf32>
    %63 = arith.addf %62, %61 : vector<1x128xf32>
    %64 = arith.divf %62, %63 : vector<1x128xf32>
    %65 = vector.extract_strided_slice %52 {offsets = [0, 256], sizes = [1, 128], strides = [1, 1]} : vector<1x512xf32> to vector<1x128xf32>
    %66 = math.tanh %65 : vector<1x128xf32>
    %67 = vector.extract_strided_slice %52 {offsets = [0, 384], sizes = [1, 128], strides = [1, 1]} : vector<1x512xf32> to vector<1x128xf32>
    %68 = arith.negf %67 : vector<1x128xf32>
    %69 = math.exp %68 : vector<1x128xf32>
    %cst_18 = arith.constant 1.000000e+00 : f32
    %70 = vector.broadcast %cst_18 : f32 to vector<1x128xf32>
    %71 = arith.addf %70, %69 : vector<1x128xf32>
    %72 = arith.divf %70, %71 : vector<1x128xf32>
    %73 = arith.mulf %64, %12 : vector<1x128xf32>
    %74 = arith.mulf %58, %66 : vector<1x128xf32>
    %75 = arith.addf %73, %74 : vector<1x128xf32>
    %76 = math.tanh %75 : vector<1x128xf32>
    %77 = arith.mulf %72, %76 : vector<1x128xf32>
    %c1_i32_19 = arith.constant 1 : i32
    %78 = arith.index_cast %c1_i32_19 : i32 to index
    %c0_20 = arith.constant 0 : index
    %79 = vector.load %arg6[%78, %c0_20] : memref<8x512xf32, #tpu.memory_space<vmem>>, vector<1x512xf32>
    %80 = arith.addf %79, %48 : vector<1x512xf32>
    %81 = arith.addf %80, %5 : vector<1x512xf32>
    %82 = vector.extract_strided_slice %81 {offsets = [0, 0], sizes = [1, 128], strides = [1, 1]} : vector<1x512xf32> to vector<1x128xf32>
    %83 = arith.negf %82 : vector<1x128xf32>
    %84 = math.exp %83 : vector<1x128xf32>
    %cst_21 = arith.constant 1.000000e+00 : f32
    %85 = vector.broadcast %cst_21 : f32 to vector<1x128xf32>
    %86 = arith.addf %85, %84 : vector<1x128xf32>
    %87 = arith.divf %85, %86 : vector<1x128xf32>
    %88 = vector.extract_strided_slice %81 {offsets = [0, 128], sizes = [1, 128], strides = [1, 1]} : vector<1x512xf32> to vector<1x128xf32>
    %89 = arith.negf %88 : vector<1x128xf32>
    %90 = math.exp %89 : vector<1x128xf32>
    %cst_22 = arith.constant 1.000000e+00 : f32
    %91 = vector.broadcast %cst_22 : f32 to vector<1x128xf32>
    %92 = arith.addf %91, %90 : vector<1x128xf32>
    %93 = arith.divf %91, %92 : vector<1x128xf32>
    %94 = vector.extract_strided_slice %81 {offsets = [0, 256], sizes = [1, 128], strides = [1, 1]} : vector<1x512xf32> to vector<1x128xf32>
    %95 = math.tanh %94 : vector<1x128xf32>
    %96 = vector.extract_strided_slice %81 {offsets = [0, 384], sizes = [1, 128], strides = [1, 1]} : vector<1x512xf32> to vector<1x128xf32>
    %97 = arith.negf %96 : vector<1x128xf32>
    %98 = math.exp %97 : vector<1x128xf32>
    %cst_23 = arith.constant 1.000000e+00 : f32
    %99 = vector.broadcast %cst_23 : f32 to vector<1x128xf32>
    %100 = arith.addf %99, %98 : vector<1x128xf32>
    %101 = arith.divf %99, %100 : vector<1x128xf32>
    %102 = arith.mulf %93, %40 : vector<1x128xf32>
    %103 = arith.mulf %87, %95 : vector<1x128xf32>
    %104 = arith.addf %102, %103 : vector<1x128xf32>
    %105 = math.tanh %104 : vector<1x128xf32>
    %106 = arith.mulf %101, %105 : vector<1x128xf32>
    %107 = vector.extract_strided_slice %106 {offsets = [0, 0], sizes = [1, 64], strides = [1, 1]} : vector<1x128xf32> to vector<1x64xf32>
    %108 = vector.extract_strided_slice %77 {offsets = [0, 0], sizes = [1, 64], strides = [1, 1]} : vector<1x128xf32> to vector<1x64xf32>
    %109 = tpu.concatenate %107, %108 in 0 : vector<1x64xf32>, vector<1x64xf32> -> vector<2x64xf32>
    %c0_24 = arith.constant 0 : index
    %c0_25 = arith.constant 0 : index
    %110 = vector.load %arg2[%c0_24, %c0_25] : memref<64x1536xf32, #tpu.memory_space<vmem>>, vector<64x1536xf32>
    %cst_26 = arith.constant dense<0.000000e+00> : vector<2x1536xf32>
    %111 = tpu.matmul %109, %110, %cst_26 {dimension_numbers = #tpu.dot_dimension_numbers<[1], [0], [0], [1], [0, 0, 1, 1], [], []>} : vector<2x64xf32>, vector<64x1536xf32>, vector<2x1536xf32> -> vector<2x1536xf32>
    %112 = vector.extract_strided_slice %111 {offsets = [0, 0], sizes = [1, 512], strides = [1, 1]} : vector<2x1536xf32> to vector<1x512xf32>
    %113 = vector.extract_strided_slice %111 {offsets = [0, 512], sizes = [1, 512], strides = [1, 1]} : vector<2x1536xf32> to vector<1x512xf32>
    %114 = vector.extract_strided_slice %111 {offsets = [1, 1024], sizes = [1, 512], strides = [1, 1]} : vector<2x1536xf32> to vector<1x512xf32>
    %115 = arith.addf %113, %114 : vector<1x512xf32>
    %116 = arith.addf %115, %6 : vector<1x512xf32>
    %117 = vector.extract_strided_slice %116 {offsets = [0, 0], sizes = [1, 128], strides = [1, 1]} : vector<1x512xf32> to vector<1x128xf32>
    %118 = arith.negf %117 : vector<1x128xf32>
    %119 = math.exp %118 : vector<1x128xf32>
    %cst_27 = arith.constant 1.000000e+00 : f32
    %120 = vector.broadcast %cst_27 : f32 to vector<1x128xf32>
    %121 = arith.addf %120, %119 : vector<1x128xf32>
    %122 = arith.divf %120, %121 : vector<1x128xf32>
    %123 = vector.extract_strided_slice %116 {offsets = [0, 128], sizes = [1, 128], strides = [1, 1]} : vector<1x512xf32> to vector<1x128xf32>
    %124 = arith.negf %123 : vector<1x128xf32>
    %125 = math.exp %124 : vector<1x128xf32>
    %cst_28 = arith.constant 1.000000e+00 : f32
    %126 = vector.broadcast %cst_28 : f32 to vector<1x128xf32>
    %127 = arith.addf %126, %125 : vector<1x128xf32>
    %128 = arith.divf %126, %127 : vector<1x128xf32>
    %129 = vector.extract_strided_slice %116 {offsets = [0, 256], sizes = [1, 128], strides = [1, 1]} : vector<1x512xf32> to vector<1x128xf32>
    %130 = math.tanh %129 : vector<1x128xf32>
    %131 = vector.extract_strided_slice %116 {offsets = [0, 384], sizes = [1, 128], strides = [1, 1]} : vector<1x512xf32> to vector<1x128xf32>
    %132 = arith.negf %131 : vector<1x128xf32>
    %133 = math.exp %132 : vector<1x128xf32>
    %cst_29 = arith.constant 1.000000e+00 : f32
    %134 = vector.broadcast %cst_29 : f32 to vector<1x128xf32>
    %135 = arith.addf %134, %133 : vector<1x128xf32>
    %136 = arith.divf %134, %135 : vector<1x128xf32>
    %137 = arith.mulf %128, %75 : vector<1x128xf32>
    %138 = arith.mulf %122, %130 : vector<1x128xf32>
    %139 = arith.addf %137, %138 : vector<1x128xf32>
    %140 = math.tanh %139 : vector<1x128xf32>
    %141 = arith.mulf %136, %140 : vector<1x128xf32>
    %c2_i32 = arith.constant 2 : i32
    %142 = arith.index_cast %c2_i32 : i32 to index
    %c0_30 = arith.constant 0 : index
    %143 = vector.load %arg6[%142, %c0_30] : memref<8x512xf32, #tpu.memory_space<vmem>>, vector<1x512xf32>
    %144 = arith.addf %143, %112 : vector<1x512xf32>
    %145 = arith.addf %144, %5 : vector<1x512xf32>
    %146 = vector.extract_strided_slice %145 {offsets = [0, 0], sizes = [1, 128], strides = [1, 1]} : vector<1x512xf32> to vector<1x128xf32>
    %147 = arith.negf %146 : vector<1x128xf32>
    %148 = math.exp %147 : vector<1x128xf32>
    %cst_31 = arith.constant 1.000000e+00 : f32
    %149 = vector.broadcast %cst_31 : f32 to vector<1x128xf32>
    %150 = arith.addf %149, %148 : vector<1x128xf32>
    %151 = arith.divf %149, %150 : vector<1x128xf32>
    %152 = vector.extract_strided_slice %145 {offsets = [0, 128], sizes = [1, 128], strides = [1, 1]} : vector<1x512xf32> to vector<1x128xf32>
    %153 = arith.negf %152 : vector<1x128xf32>
    %154 = math.exp %153 : vector<1x128xf32>
    %cst_32 = arith.constant 1.000000e+00 : f32
    %155 = vector.broadcast %cst_32 : f32 to vector<1x128xf32>
    %156 = arith.addf %155, %154 : vector<1x128xf32>
    %157 = arith.divf %155, %156 : vector<1x128xf32>
    %158 = vector.extract_strided_slice %145 {offsets = [0, 256], sizes = [1, 128], strides = [1, 1]} : vector<1x512xf32> to vector<1x128xf32>
    %159 = math.tanh %158 : vector<1x128xf32>
    %160 = vector.extract_strided_slice %145 {offsets = [0, 384], sizes = [1, 128], strides = [1, 1]} : vector<1x512xf32> to vector<1x128xf32>
    %161 = arith.negf %160 : vector<1x128xf32>
    %162 = math.exp %161 : vector<1x128xf32>
    %cst_33 = arith.constant 1.000000e+00 : f32
    %163 = vector.broadcast %cst_33 : f32 to vector<1x128xf32>
    %164 = arith.addf %163, %162 : vector<1x128xf32>
    %165 = arith.divf %163, %164 : vector<1x128xf32>
    %166 = arith.mulf %157, %104 : vector<1x128xf32>
    %167 = arith.mulf %151, %159 : vector<1x128xf32>
    %168 = arith.addf %166, %167 : vector<1x128xf32>
    %169 = math.tanh %168 : vector<1x128xf32>
    %170 = arith.mulf %165, %169 : vector<1x128xf32>
    %171 = vector.extract_strided_slice %170 {offsets = [0, 0], sizes = [1, 64], strides = [1, 1]} : vector<1x128xf32> to vector<1x64xf32>
    %172 = vector.extract_strided_slice %141 {offsets = [0, 0], sizes = [1, 64], strides = [1, 1]} : vector<1x128xf32> to vector<1x64xf32>
    %173 = tpu.concatenate %171, %172 in 0 : vector<1x64xf32>, vector<1x64xf32> -> vector<2x64xf32>
    %c0_34 = arith.constant 0 : index
    %c0_35 = arith.constant 0 : index
    %174 = vector.load %arg2[%c0_34, %c0_35] : memref<64x1536xf32, #tpu.memory_space<vmem>>, vector<64x1536xf32>
    %cst_36 = arith.constant dense<0.000000e+00> : vector<2x1536xf32>
    %175 = tpu.matmul %173, %174, %cst_36 {dimension_numbers = #tpu.dot_dimension_numbers<[1], [0], [0], [1], [0, 0, 1, 1], [], []>} : vector<2x64xf32>, vector<64x1536xf32>, vector<2x1536xf32> -> vector<2x1536xf32>
    %176 = vector.extract_strided_slice %175 {offsets = [0, 0], sizes = [1, 512], strides = [1, 1]} : vector<2x1536xf32> to vector<1x512xf32>
    %177 = vector.extract_strided_slice %175 {offsets = [0, 512], sizes = [1, 512], strides = [1, 1]} : vector<2x1536xf32> to vector<1x512xf32>
    %178 = vector.extract_strided_slice %175 {offsets = [1, 1024], sizes = [1, 512], strides = [1, 1]} : vector<2x1536xf32> to vector<1x512xf32>
    %179 = arith.addf %177, %178 : vector<1x512xf32>
    %180 = arith.addf %179, %6 : vector<1x512xf32>
    %181 = vector.extract_strided_slice %180 {offsets = [0, 0], sizes = [1, 128], strides = [1, 1]} : vector<1x512xf32> to vector<1x128xf32>
    %182 = arith.negf %181 : vector<1x128xf32>
    %183 = math.exp %182 : vector<1x128xf32>
    %cst_37 = arith.constant 1.000000e+00 : f32
    %184 = vector.broadcast %cst_37 : f32 to vector<1x128xf32>
    %185 = arith.addf %184, %183 : vector<1x128xf32>
    %186 = arith.divf %184, %185 : vector<1x128xf32>
    %187 = vector.extract_strided_slice %180 {offsets = [0, 128], sizes = [1, 128], strides = [1, 1]} : vector<1x512xf32> to vector<1x128xf32>
    %188 = arith.negf %187 : vector<1x128xf32>
    %189 = math.exp %188 : vector<1x128xf32>
    %cst_38 = arith.constant 1.000000e+00 : f32
    %190 = vector.broadcast %cst_38 : f32 to vector<1x128xf32>
    %191 = arith.addf %190, %189 : vector<1x128xf32>
    %192 = arith.divf %190, %191 : vector<1x128xf32>
    %193 = vector.extract_strided_slice %180 {offsets = [0, 256], sizes = [1, 128], strides = [1, 1]} : vector<1x512xf32> to vector<1x128xf32>
    %194 = math.tanh %193 : vector<1x128xf32>
    %195 = vector.extract_strided_slice %180 {offsets = [0, 384], sizes = [1, 128], strides = [1, 1]} : vector<1x512xf32> to vector<1x128xf32>
    %196 = arith.negf %195 : vector<1x128xf32>
    %197 = math.exp %196 : vector<1x128xf32>
    %cst_39 = arith.constant 1.000000e+00 : f32
    %198 = vector.broadcast %cst_39 : f32 to vector<1x128xf32>
    %199 = arith.addf %198, %197 : vector<1x128xf32>
    %200 = arith.divf %198, %199 : vector<1x128xf32>
    %201 = arith.mulf %192, %139 : vector<1x128xf32>
    %202 = arith.mulf %186, %194 : vector<1x128xf32>
    %203 = arith.addf %201, %202 : vector<1x128xf32>
    %204 = math.tanh %203 : vector<1x128xf32>
    %205 = arith.mulf %200, %204 : vector<1x128xf32>
    %c3_i32 = arith.constant 3 : i32
    %206 = arith.index_cast %c3_i32 : i32 to index
    %c0_40 = arith.constant 0 : index
    %207 = vector.load %arg6[%206, %c0_40] : memref<8x512xf32, #tpu.memory_space<vmem>>, vector<1x512xf32>
    %208 = arith.addf %207, %176 : vector<1x512xf32>
    %209 = arith.addf %208, %5 : vector<1x512xf32>
    %210 = vector.extract_strided_slice %209 {offsets = [0, 0], sizes = [1, 128], strides = [1, 1]} : vector<1x512xf32> to vector<1x128xf32>
    %211 = arith.negf %210 : vector<1x128xf32>
    %212 = math.exp %211 : vector<1x128xf32>
    %cst_41 = arith.constant 1.000000e+00 : f32
    %213 = vector.broadcast %cst_41 : f32 to vector<1x128xf32>
    %214 = arith.addf %213, %212 : vector<1x128xf32>
    %215 = arith.divf %213, %214 : vector<1x128xf32>
    %216 = vector.extract_strided_slice %209 {offsets = [0, 128], sizes = [1, 128], strides = [1, 1]} : vector<1x512xf32> to vector<1x128xf32>
    %217 = arith.negf %216 : vector<1x128xf32>
    %218 = math.exp %217 : vector<1x128xf32>
    %cst_42 = arith.constant 1.000000e+00 : f32
    %219 = vector.broadcast %cst_42 : f32 to vector<1x128xf32>
    %220 = arith.addf %219, %218 : vector<1x128xf32>
    %221 = arith.divf %219, %220 : vector<1x128xf32>
    %222 = vector.extract_strided_slice %209 {offsets = [0, 256], sizes = [1, 128], strides = [1, 1]} : vector<1x512xf32> to vector<1x128xf32>
    %223 = math.tanh %222 : vector<1x128xf32>
    %224 = vector.extract_strided_slice %209 {offsets = [0, 384], sizes = [1, 128], strides = [1, 1]} : vector<1x512xf32> to vector<1x128xf32>
    %225 = arith.negf %224 : vector<1x128xf32>
    %226 = math.exp %225 : vector<1x128xf32>
    %cst_43 = arith.constant 1.000000e+00 : f32
    %227 = vector.broadcast %cst_43 : f32 to vector<1x128xf32>
    %228 = arith.addf %227, %226 : vector<1x128xf32>
    %229 = arith.divf %227, %228 : vector<1x128xf32>
    %230 = arith.mulf %221, %168 : vector<1x128xf32>
    %231 = arith.mulf %215, %223 : vector<1x128xf32>
    %232 = arith.addf %230, %231 : vector<1x128xf32>
    %233 = math.tanh %232 : vector<1x128xf32>
    %234 = arith.mulf %229, %233 : vector<1x128xf32>
    %235 = vector.extract_strided_slice %234 {offsets = [0, 0], sizes = [1, 64], strides = [1, 1]} : vector<1x128xf32> to vector<1x64xf32>
    %236 = vector.extract_strided_slice %205 {offsets = [0, 0], sizes = [1, 64], strides = [1, 1]} : vector<1x128xf32> to vector<1x64xf32>
    %237 = tpu.concatenate %235, %236 in 0 : vector<1x64xf32>, vector<1x64xf32> -> vector<2x64xf32>
    %c0_44 = arith.constant 0 : index
    %c0_45 = arith.constant 0 : index
    %238 = vector.load %arg2[%c0_44, %c0_45] : memref<64x1536xf32, #tpu.memory_space<vmem>>, vector<64x1536xf32>
    %cst_46 = arith.constant dense<0.000000e+00> : vector<2x1536xf32>
    %239 = tpu.matmul %237, %238, %cst_46 {dimension_numbers = #tpu.dot_dimension_numbers<[1], [0], [0], [1], [0, 0, 1, 1], [], []>} : vector<2x64xf32>, vector<64x1536xf32>, vector<2x1536xf32> -> vector<2x1536xf32>
    %240 = vector.extract_strided_slice %239 {offsets = [0, 0], sizes = [1, 512], strides = [1, 1]} : vector<2x1536xf32> to vector<1x512xf32>
    %241 = vector.extract_strided_slice %239 {offsets = [0, 512], sizes = [1, 512], strides = [1, 1]} : vector<2x1536xf32> to vector<1x512xf32>
    %242 = vector.extract_strided_slice %239 {offsets = [1, 1024], sizes = [1, 512], strides = [1, 1]} : vector<2x1536xf32> to vector<1x512xf32>
    %243 = arith.addf %241, %242 : vector<1x512xf32>
    %244 = arith.addf %243, %6 : vector<1x512xf32>
    %245 = vector.extract_strided_slice %244 {offsets = [0, 0], sizes = [1, 128], strides = [1, 1]} : vector<1x512xf32> to vector<1x128xf32>
    %246 = arith.negf %245 : vector<1x128xf32>
    %247 = math.exp %246 : vector<1x128xf32>
    %cst_47 = arith.constant 1.000000e+00 : f32
    %248 = vector.broadcast %cst_47 : f32 to vector<1x128xf32>
    %249 = arith.addf %248, %247 : vector<1x128xf32>
    %250 = arith.divf %248, %249 : vector<1x128xf32>
    %251 = vector.extract_strided_slice %244 {offsets = [0, 128], sizes = [1, 128], strides = [1, 1]} : vector<1x512xf32> to vector<1x128xf32>
    %252 = arith.negf %251 : vector<1x128xf32>
    %253 = math.exp %252 : vector<1x128xf32>
    %cst_48 = arith.constant 1.000000e+00 : f32
    %254 = vector.broadcast %cst_48 : f32 to vector<1x128xf32>
    %255 = arith.addf %254, %253 : vector<1x128xf32>
    %256 = arith.divf %254, %255 : vector<1x128xf32>
    %257 = vector.extract_strided_slice %244 {offsets = [0, 256], sizes = [1, 128], strides = [1, 1]} : vector<1x512xf32> to vector<1x128xf32>
    %258 = math.tanh %257 : vector<1x128xf32>
    %259 = vector.extract_strided_slice %244 {offsets = [0, 384], sizes = [1, 128], strides = [1, 1]} : vector<1x512xf32> to vector<1x128xf32>
    %260 = arith.negf %259 : vector<1x128xf32>
    %261 = math.exp %260 : vector<1x128xf32>
    %cst_49 = arith.constant 1.000000e+00 : f32
    %262 = vector.broadcast %cst_49 : f32 to vector<1x128xf32>
    %263 = arith.addf %262, %261 : vector<1x128xf32>
    %264 = arith.divf %262, %263 : vector<1x128xf32>
    %265 = arith.mulf %256, %203 : vector<1x128xf32>
    %266 = arith.mulf %250, %258 : vector<1x128xf32>
    %267 = arith.addf %265, %266 : vector<1x128xf32>
    %268 = math.tanh %267 : vector<1x128xf32>
    %269 = arith.mulf %264, %268 : vector<1x128xf32>
    %c4_i32 = arith.constant 4 : i32
    %270 = arith.index_cast %c4_i32 : i32 to index
    %c0_50 = arith.constant 0 : index
    %271 = vector.load %arg6[%270, %c0_50] : memref<8x512xf32, #tpu.memory_space<vmem>>, vector<1x512xf32>
    %272 = arith.addf %271, %240 : vector<1x512xf32>
    %273 = arith.addf %272, %5 : vector<1x512xf32>
    %274 = vector.extract_strided_slice %273 {offsets = [0, 0], sizes = [1, 128], strides = [1, 1]} : vector<1x512xf32> to vector<1x128xf32>
    %275 = arith.negf %274 : vector<1x128xf32>
    %276 = math.exp %275 : vector<1x128xf32>
    %cst_51 = arith.constant 1.000000e+00 : f32
    %277 = vector.broadcast %cst_51 : f32 to vector<1x128xf32>
    %278 = arith.addf %277, %276 : vector<1x128xf32>
    %279 = arith.divf %277, %278 : vector<1x128xf32>
    %280 = vector.extract_strided_slice %273 {offsets = [0, 128], sizes = [1, 128], strides = [1, 1]} : vector<1x512xf32> to vector<1x128xf32>
    %281 = arith.negf %280 : vector<1x128xf32>
    %282 = math.exp %281 : vector<1x128xf32>
    %cst_52 = arith.constant 1.000000e+00 : f32
    %283 = vector.broadcast %cst_52 : f32 to vector<1x128xf32>
    %284 = arith.addf %283, %282 : vector<1x128xf32>
    %285 = arith.divf %283, %284 : vector<1x128xf32>
    %286 = vector.extract_strided_slice %273 {offsets = [0, 256], sizes = [1, 128], strides = [1, 1]} : vector<1x512xf32> to vector<1x128xf32>
    %287 = math.tanh %286 : vector<1x128xf32>
    %288 = vector.extract_strided_slice %273 {offsets = [0, 384], sizes = [1, 128], strides = [1, 1]} : vector<1x512xf32> to vector<1x128xf32>
    %289 = arith.negf %288 : vector<1x128xf32>
    %290 = math.exp %289 : vector<1x128xf32>
    %cst_53 = arith.constant 1.000000e+00 : f32
    %291 = vector.broadcast %cst_53 : f32 to vector<1x128xf32>
    %292 = arith.addf %291, %290 : vector<1x128xf32>
    %293 = arith.divf %291, %292 : vector<1x128xf32>
    %294 = arith.mulf %285, %232 : vector<1x128xf32>
    %295 = arith.mulf %279, %287 : vector<1x128xf32>
    %296 = arith.addf %294, %295 : vector<1x128xf32>
    %297 = math.tanh %296 : vector<1x128xf32>
    %298 = arith.mulf %293, %297 : vector<1x128xf32>
    %299 = vector.extract_strided_slice %298 {offsets = [0, 0], sizes = [1, 64], strides = [1, 1]} : vector<1x128xf32> to vector<1x64xf32>
    %300 = vector.extract_strided_slice %269 {offsets = [0, 0], sizes = [1, 64], strides = [1, 1]} : vector<1x128xf32> to vector<1x64xf32>
    %301 = tpu.concatenate %299, %300 in 0 : vector<1x64xf32>, vector<1x64xf32> -> vector<2x64xf32>
    %c0_54 = arith.constant 0 : index
    %c0_55 = arith.constant 0 : index
    %302 = vector.load %arg2[%c0_54, %c0_55] : memref<64x1536xf32, #tpu.memory_space<vmem>>, vector<64x1536xf32>
    %cst_56 = arith.constant dense<0.000000e+00> : vector<2x1536xf32>
    %303 = tpu.matmul %301, %302, %cst_56 {dimension_numbers = #tpu.dot_dimension_numbers<[1], [0], [0], [1], [0, 0, 1, 1], [], []>} : vector<2x64xf32>, vector<64x1536xf32>, vector<2x1536xf32> -> vector<2x1536xf32>
    %304 = vector.extract_strided_slice %303 {offsets = [0, 0], sizes = [1, 512], strides = [1, 1]} : vector<2x1536xf32> to vector<1x512xf32>
    %305 = vector.extract_strided_slice %303 {offsets = [0, 512], sizes = [1, 512], strides = [1, 1]} : vector<2x1536xf32> to vector<1x512xf32>
    %306 = vector.extract_strided_slice %303 {offsets = [1, 1024], sizes = [1, 512], strides = [1, 1]} : vector<2x1536xf32> to vector<1x512xf32>
    %307 = arith.addf %305, %306 : vector<1x512xf32>
    %308 = arith.addf %307, %6 : vector<1x512xf32>
    %309 = vector.extract_strided_slice %308 {offsets = [0, 0], sizes = [1, 128], strides = [1, 1]} : vector<1x512xf32> to vector<1x128xf32>
    %310 = arith.negf %309 : vector<1x128xf32>
    %311 = math.exp %310 : vector<1x128xf32>
    %cst_57 = arith.constant 1.000000e+00 : f32
    %312 = vector.broadcast %cst_57 : f32 to vector<1x128xf32>
    %313 = arith.addf %312, %311 : vector<1x128xf32>
    %314 = arith.divf %312, %313 : vector<1x128xf32>
    %315 = vector.extract_strided_slice %308 {offsets = [0, 128], sizes = [1, 128], strides = [1, 1]} : vector<1x512xf32> to vector<1x128xf32>
    %316 = arith.negf %315 : vector<1x128xf32>
    %317 = math.exp %316 : vector<1x128xf32>
    %cst_58 = arith.constant 1.000000e+00 : f32
    %318 = vector.broadcast %cst_58 : f32 to vector<1x128xf32>
    %319 = arith.addf %318, %317 : vector<1x128xf32>
    %320 = arith.divf %318, %319 : vector<1x128xf32>
    %321 = vector.extract_strided_slice %308 {offsets = [0, 256], sizes = [1, 128], strides = [1, 1]} : vector<1x512xf32> to vector<1x128xf32>
    %322 = math.tanh %321 : vector<1x128xf32>
    %323 = vector.extract_strided_slice %308 {offsets = [0, 384], sizes = [1, 128], strides = [1, 1]} : vector<1x512xf32> to vector<1x128xf32>
    %324 = arith.negf %323 : vector<1x128xf32>
    %325 = math.exp %324 : vector<1x128xf32>
    %cst_59 = arith.constant 1.000000e+00 : f32
    %326 = vector.broadcast %cst_59 : f32 to vector<1x128xf32>
    %327 = arith.addf %326, %325 : vector<1x128xf32>
    %328 = arith.divf %326, %327 : vector<1x128xf32>
    %329 = arith.mulf %320, %267 : vector<1x128xf32>
    %330 = arith.mulf %314, %322 : vector<1x128xf32>
    %331 = arith.addf %329, %330 : vector<1x128xf32>
    %332 = math.tanh %331 : vector<1x128xf32>
    %333 = arith.mulf %328, %332 : vector<1x128xf32>
    %c5_i32 = arith.constant 5 : i32
    %334 = arith.index_cast %c5_i32 : i32 to index
    %c0_60 = arith.constant 0 : index
    %335 = vector.load %arg6[%334, %c0_60] : memref<8x512xf32, #tpu.memory_space<vmem>>, vector<1x512xf32>
    %336 = arith.addf %335, %304 : vector<1x512xf32>
    %337 = arith.addf %336, %5 : vector<1x512xf32>
    %338 = vector.extract_strided_slice %337 {offsets = [0, 0], sizes = [1, 128], strides = [1, 1]} : vector<1x512xf32> to vector<1x128xf32>
    %339 = arith.negf %338 : vector<1x128xf32>
    %340 = math.exp %339 : vector<1x128xf32>
    %cst_61 = arith.constant 1.000000e+00 : f32
    %341 = vector.broadcast %cst_61 : f32 to vector<1x128xf32>
    %342 = arith.addf %341, %340 : vector<1x128xf32>
    %343 = arith.divf %341, %342 : vector<1x128xf32>
    %344 = vector.extract_strided_slice %337 {offsets = [0, 128], sizes = [1, 128], strides = [1, 1]} : vector<1x512xf32> to vector<1x128xf32>
    %345 = arith.negf %344 : vector<1x128xf32>
    %346 = math.exp %345 : vector<1x128xf32>
    %cst_62 = arith.constant 1.000000e+00 : f32
    %347 = vector.broadcast %cst_62 : f32 to vector<1x128xf32>
    %348 = arith.addf %347, %346 : vector<1x128xf32>
    %349 = arith.divf %347, %348 : vector<1x128xf32>
    %350 = vector.extract_strided_slice %337 {offsets = [0, 256], sizes = [1, 128], strides = [1, 1]} : vector<1x512xf32> to vector<1x128xf32>
    %351 = math.tanh %350 : vector<1x128xf32>
    %352 = vector.extract_strided_slice %337 {offsets = [0, 384], sizes = [1, 128], strides = [1, 1]} : vector<1x512xf32> to vector<1x128xf32>
    %353 = arith.negf %352 : vector<1x128xf32>
    %354 = math.exp %353 : vector<1x128xf32>
    %cst_63 = arith.constant 1.000000e+00 : f32
    %355 = vector.broadcast %cst_63 : f32 to vector<1x128xf32>
    %356 = arith.addf %355, %354 : vector<1x128xf32>
    %357 = arith.divf %355, %356 : vector<1x128xf32>
    %358 = arith.mulf %349, %296 : vector<1x128xf32>
    %359 = arith.mulf %343, %351 : vector<1x128xf32>
    %360 = arith.addf %358, %359 : vector<1x128xf32>
    %361 = math.tanh %360 : vector<1x128xf32>
    %362 = arith.mulf %357, %361 : vector<1x128xf32>
    %363 = vector.extract_strided_slice %362 {offsets = [0, 0], sizes = [1, 64], strides = [1, 1]} : vector<1x128xf32> to vector<1x64xf32>
    %364 = vector.extract_strided_slice %333 {offsets = [0, 0], sizes = [1, 64], strides = [1, 1]} : vector<1x128xf32> to vector<1x64xf32>
    %365 = tpu.concatenate %363, %364 in 0 : vector<1x64xf32>, vector<1x64xf32> -> vector<2x64xf32>
    %c0_64 = arith.constant 0 : index
    %c0_65 = arith.constant 0 : index
    %366 = vector.load %arg2[%c0_64, %c0_65] : memref<64x1536xf32, #tpu.memory_space<vmem>>, vector<64x1536xf32>
    %cst_66 = arith.constant dense<0.000000e+00> : vector<2x1536xf32>
    %367 = tpu.matmul %365, %366, %cst_66 {dimension_numbers = #tpu.dot_dimension_numbers<[1], [0], [0], [1], [0, 0, 1, 1], [], []>} : vector<2x64xf32>, vector<64x1536xf32>, vector<2x1536xf32> -> vector<2x1536xf32>
    %368 = vector.extract_strided_slice %367 {offsets = [0, 0], sizes = [1, 512], strides = [1, 1]} : vector<2x1536xf32> to vector<1x512xf32>
    %369 = vector.extract_strided_slice %367 {offsets = [0, 512], sizes = [1, 512], strides = [1, 1]} : vector<2x1536xf32> to vector<1x512xf32>
    %370 = vector.extract_strided_slice %367 {offsets = [1, 1024], sizes = [1, 512], strides = [1, 1]} : vector<2x1536xf32> to vector<1x512xf32>
    %371 = arith.addf %369, %370 : vector<1x512xf32>
    %372 = arith.addf %371, %6 : vector<1x512xf32>
    %373 = vector.extract_strided_slice %372 {offsets = [0, 0], sizes = [1, 128], strides = [1, 1]} : vector<1x512xf32> to vector<1x128xf32>
    %374 = arith.negf %373 : vector<1x128xf32>
    %375 = math.exp %374 : vector<1x128xf32>
    %cst_67 = arith.constant 1.000000e+00 : f32
    %376 = vector.broadcast %cst_67 : f32 to vector<1x128xf32>
    %377 = arith.addf %376, %375 : vector<1x128xf32>
    %378 = arith.divf %376, %377 : vector<1x128xf32>
    %379 = vector.extract_strided_slice %372 {offsets = [0, 128], sizes = [1, 128], strides = [1, 1]} : vector<1x512xf32> to vector<1x128xf32>
    %380 = arith.negf %379 : vector<1x128xf32>
    %381 = math.exp %380 : vector<1x128xf32>
    %cst_68 = arith.constant 1.000000e+00 : f32
    %382 = vector.broadcast %cst_68 : f32 to vector<1x128xf32>
    %383 = arith.addf %382, %381 : vector<1x128xf32>
    %384 = arith.divf %382, %383 : vector<1x128xf32>
    %385 = vector.extract_strided_slice %372 {offsets = [0, 256], sizes = [1, 128], strides = [1, 1]} : vector<1x512xf32> to vector<1x128xf32>
    %386 = math.tanh %385 : vector<1x128xf32>
    %387 = vector.extract_strided_slice %372 {offsets = [0, 384], sizes = [1, 128], strides = [1, 1]} : vector<1x512xf32> to vector<1x128xf32>
    %388 = arith.negf %387 : vector<1x128xf32>
    %389 = math.exp %388 : vector<1x128xf32>
    %cst_69 = arith.constant 1.000000e+00 : f32
    %390 = vector.broadcast %cst_69 : f32 to vector<1x128xf32>
    %391 = arith.addf %390, %389 : vector<1x128xf32>
    %392 = arith.divf %390, %391 : vector<1x128xf32>
    %393 = arith.mulf %384, %331 : vector<1x128xf32>
    %394 = arith.mulf %378, %386 : vector<1x128xf32>
    %395 = arith.addf %393, %394 : vector<1x128xf32>
    %396 = math.tanh %395 : vector<1x128xf32>
    %397 = arith.mulf %392, %396 : vector<1x128xf32>
    %c6_i32 = arith.constant 6 : i32
    %398 = arith.index_cast %c6_i32 : i32 to index
    %c0_70 = arith.constant 0 : index
    %399 = vector.load %arg6[%398, %c0_70] : memref<8x512xf32, #tpu.memory_space<vmem>>, vector<1x512xf32>
    %400 = arith.addf %399, %368 : vector<1x512xf32>
    %401 = arith.addf %400, %5 : vector<1x512xf32>
    %402 = vector.extract_strided_slice %401 {offsets = [0, 0], sizes = [1, 128], strides = [1, 1]} : vector<1x512xf32> to vector<1x128xf32>
    %403 = arith.negf %402 : vector<1x128xf32>
    %404 = math.exp %403 : vector<1x128xf32>
    %cst_71 = arith.constant 1.000000e+00 : f32
    %405 = vector.broadcast %cst_71 : f32 to vector<1x128xf32>
    %406 = arith.addf %405, %404 : vector<1x128xf32>
    %407 = arith.divf %405, %406 : vector<1x128xf32>
    %408 = vector.extract_strided_slice %401 {offsets = [0, 128], sizes = [1, 128], strides = [1, 1]} : vector<1x512xf32> to vector<1x128xf32>
    %409 = arith.negf %408 : vector<1x128xf32>
    %410 = math.exp %409 : vector<1x128xf32>
    %cst_72 = arith.constant 1.000000e+00 : f32
    %411 = vector.broadcast %cst_72 : f32 to vector<1x128xf32>
    %412 = arith.addf %411, %410 : vector<1x128xf32>
    %413 = arith.divf %411, %412 : vector<1x128xf32>
    %414 = vector.extract_strided_slice %401 {offsets = [0, 256], sizes = [1, 128], strides = [1, 1]} : vector<1x512xf32> to vector<1x128xf32>
    %415 = math.tanh %414 : vector<1x128xf32>
    %416 = vector.extract_strided_slice %401 {offsets = [0, 384], sizes = [1, 128], strides = [1, 1]} : vector<1x512xf32> to vector<1x128xf32>
    %417 = arith.negf %416 : vector<1x128xf32>
    %418 = math.exp %417 : vector<1x128xf32>
    %cst_73 = arith.constant 1.000000e+00 : f32
    %419 = vector.broadcast %cst_73 : f32 to vector<1x128xf32>
    %420 = arith.addf %419, %418 : vector<1x128xf32>
    %421 = arith.divf %419, %420 : vector<1x128xf32>
    %422 = arith.mulf %413, %360 : vector<1x128xf32>
    %423 = arith.mulf %407, %415 : vector<1x128xf32>
    %424 = arith.addf %422, %423 : vector<1x128xf32>
    %425 = math.tanh %424 : vector<1x128xf32>
    %426 = arith.mulf %421, %425 : vector<1x128xf32>
    %427 = vector.extract_strided_slice %426 {offsets = [0, 0], sizes = [1, 64], strides = [1, 1]} : vector<1x128xf32> to vector<1x64xf32>
    %428 = vector.extract_strided_slice %397 {offsets = [0, 0], sizes = [1, 64], strides = [1, 1]} : vector<1x128xf32> to vector<1x64xf32>
    %429 = tpu.concatenate %427, %428 in 0 : vector<1x64xf32>, vector<1x64xf32> -> vector<2x64xf32>
    %c0_74 = arith.constant 0 : index
    %c0_75 = arith.constant 0 : index
    %430 = vector.load %arg2[%c0_74, %c0_75] : memref<64x1536xf32, #tpu.memory_space<vmem>>, vector<64x1536xf32>
    %cst_76 = arith.constant dense<0.000000e+00> : vector<2x1536xf32>
    %431 = tpu.matmul %429, %430, %cst_76 {dimension_numbers = #tpu.dot_dimension_numbers<[1], [0], [0], [1], [0, 0, 1, 1], [], []>} : vector<2x64xf32>, vector<64x1536xf32>, vector<2x1536xf32> -> vector<2x1536xf32>
    %432 = vector.extract_strided_slice %431 {offsets = [0, 0], sizes = [1, 512], strides = [1, 1]} : vector<2x1536xf32> to vector<1x512xf32>
    %433 = vector.extract_strided_slice %431 {offsets = [0, 512], sizes = [1, 512], strides = [1, 1]} : vector<2x1536xf32> to vector<1x512xf32>
    %434 = vector.extract_strided_slice %431 {offsets = [1, 1024], sizes = [1, 512], strides = [1, 1]} : vector<2x1536xf32> to vector<1x512xf32>
    %435 = arith.addf %433, %434 : vector<1x512xf32>
    %436 = arith.addf %435, %6 : vector<1x512xf32>
    %437 = vector.extract_strided_slice %436 {offsets = [0, 0], sizes = [1, 128], strides = [1, 1]} : vector<1x512xf32> to vector<1x128xf32>
    %438 = arith.negf %437 : vector<1x128xf32>
    %439 = math.exp %438 : vector<1x128xf32>
    %cst_77 = arith.constant 1.000000e+00 : f32
    %440 = vector.broadcast %cst_77 : f32 to vector<1x128xf32>
    %441 = arith.addf %440, %439 : vector<1x128xf32>
    %442 = arith.divf %440, %441 : vector<1x128xf32>
    %443 = vector.extract_strided_slice %436 {offsets = [0, 128], sizes = [1, 128], strides = [1, 1]} : vector<1x512xf32> to vector<1x128xf32>
    %444 = arith.negf %443 : vector<1x128xf32>
    %445 = math.exp %444 : vector<1x128xf32>
    %cst_78 = arith.constant 1.000000e+00 : f32
    %446 = vector.broadcast %cst_78 : f32 to vector<1x128xf32>
    %447 = arith.addf %446, %445 : vector<1x128xf32>
    %448 = arith.divf %446, %447 : vector<1x128xf32>
    %449 = vector.extract_strided_slice %436 {offsets = [0, 256], sizes = [1, 128], strides = [1, 1]} : vector<1x512xf32> to vector<1x128xf32>
    %450 = math.tanh %449 : vector<1x128xf32>
    %451 = vector.extract_strided_slice %436 {offsets = [0, 384], sizes = [1, 128], strides = [1, 1]} : vector<1x512xf32> to vector<1x128xf32>
    %452 = arith.negf %451 : vector<1x128xf32>
    %453 = math.exp %452 : vector<1x128xf32>
    %cst_79 = arith.constant 1.000000e+00 : f32
    %454 = vector.broadcast %cst_79 : f32 to vector<1x128xf32>
    %455 = arith.addf %454, %453 : vector<1x128xf32>
    %456 = arith.divf %454, %455 : vector<1x128xf32>
    %457 = arith.mulf %448, %395 : vector<1x128xf32>
    %458 = arith.mulf %442, %450 : vector<1x128xf32>
    %459 = arith.addf %457, %458 : vector<1x128xf32>
    %460 = math.tanh %459 : vector<1x128xf32>
    %461 = arith.mulf %456, %460 : vector<1x128xf32>
    %c7_i32 = arith.constant 7 : i32
    %462 = arith.index_cast %c7_i32 : i32 to index
    %c0_80 = arith.constant 0 : index
    %463 = vector.load %arg6[%462, %c0_80] : memref<8x512xf32, #tpu.memory_space<vmem>>, vector<1x512xf32>
    %464 = arith.addf %463, %432 : vector<1x512xf32>
    %465 = arith.addf %464, %5 : vector<1x512xf32>
    %466 = vector.extract_strided_slice %465 {offsets = [0, 0], sizes = [1, 128], strides = [1, 1]} : vector<1x512xf32> to vector<1x128xf32>
    %467 = arith.negf %466 : vector<1x128xf32>
    %468 = math.exp %467 : vector<1x128xf32>
    %cst_81 = arith.constant 1.000000e+00 : f32
    %469 = vector.broadcast %cst_81 : f32 to vector<1x128xf32>
    %470 = arith.addf %469, %468 : vector<1x128xf32>
    %471 = arith.divf %469, %470 : vector<1x128xf32>
    %472 = vector.extract_strided_slice %465 {offsets = [0, 128], sizes = [1, 128], strides = [1, 1]} : vector<1x512xf32> to vector<1x128xf32>
    %473 = arith.negf %472 : vector<1x128xf32>
    %474 = math.exp %473 : vector<1x128xf32>
    %cst_82 = arith.constant 1.000000e+00 : f32
    %475 = vector.broadcast %cst_82 : f32 to vector<1x128xf32>
    %476 = arith.addf %475, %474 : vector<1x128xf32>
    %477 = arith.divf %475, %476 : vector<1x128xf32>
    %478 = vector.extract_strided_slice %465 {offsets = [0, 256], sizes = [1, 128], strides = [1, 1]} : vector<1x512xf32> to vector<1x128xf32>
    %479 = math.tanh %478 : vector<1x128xf32>
    %480 = vector.extract_strided_slice %465 {offsets = [0, 384], sizes = [1, 128], strides = [1, 1]} : vector<1x512xf32> to vector<1x128xf32>
    %481 = arith.negf %480 : vector<1x128xf32>
    %482 = math.exp %481 : vector<1x128xf32>
    %cst_83 = arith.constant 1.000000e+00 : f32
    %483 = vector.broadcast %cst_83 : f32 to vector<1x128xf32>
    %484 = arith.addf %483, %482 : vector<1x128xf32>
    %485 = arith.divf %483, %484 : vector<1x128xf32>
    %486 = arith.mulf %477, %424 : vector<1x128xf32>
    %487 = arith.mulf %471, %479 : vector<1x128xf32>
    %488 = arith.addf %486, %487 : vector<1x128xf32>
    %489 = math.tanh %488 : vector<1x128xf32>
    %490 = arith.mulf %485, %489 : vector<1x128xf32>
    %491 = vector.extract_strided_slice %490 {offsets = [0, 0], sizes = [1, 64], strides = [1, 1]} : vector<1x128xf32> to vector<1x64xf32>
    %492 = vector.extract_strided_slice %461 {offsets = [0, 0], sizes = [1, 64], strides = [1, 1]} : vector<1x128xf32> to vector<1x64xf32>
    %493 = tpu.concatenate %491, %492 in 0 : vector<1x64xf32>, vector<1x64xf32> -> vector<2x64xf32>
    %c0_84 = arith.constant 0 : index
    %c0_85 = arith.constant 0 : index
    %494 = vector.load %arg2[%c0_84, %c0_85] : memref<64x1536xf32, #tpu.memory_space<vmem>>, vector<64x1536xf32>
    %cst_86 = arith.constant dense<0.000000e+00> : vector<2x1536xf32>
    %495 = tpu.matmul %493, %494, %cst_86 {dimension_numbers = #tpu.dot_dimension_numbers<[1], [0], [0], [1], [0, 0, 1, 1], [], []>} : vector<2x64xf32>, vector<64x1536xf32>, vector<2x1536xf32> -> vector<2x1536xf32>
    %496 = vector.extract_strided_slice %495 {offsets = [0, 0], sizes = [1, 512], strides = [1, 1]} : vector<2x1536xf32> to vector<1x512xf32>
    %497 = vector.extract_strided_slice %495 {offsets = [0, 512], sizes = [1, 512], strides = [1, 1]} : vector<2x1536xf32> to vector<1x512xf32>
    %498 = vector.extract_strided_slice %495 {offsets = [1, 1024], sizes = [1, 512], strides = [1, 1]} : vector<2x1536xf32> to vector<1x512xf32>
    %499 = arith.addf %497, %498 : vector<1x512xf32>
    %500 = arith.addf %499, %6 : vector<1x512xf32>
    %501 = vector.extract_strided_slice %500 {offsets = [0, 0], sizes = [1, 128], strides = [1, 1]} : vector<1x512xf32> to vector<1x128xf32>
    %502 = arith.negf %501 : vector<1x128xf32>
    %503 = math.exp %502 : vector<1x128xf32>
    %cst_87 = arith.constant 1.000000e+00 : f32
    %504 = vector.broadcast %cst_87 : f32 to vector<1x128xf32>
    %505 = arith.addf %504, %503 : vector<1x128xf32>
    %506 = arith.divf %504, %505 : vector<1x128xf32>
    %507 = vector.extract_strided_slice %500 {offsets = [0, 128], sizes = [1, 128], strides = [1, 1]} : vector<1x512xf32> to vector<1x128xf32>
    %508 = arith.negf %507 : vector<1x128xf32>
    %509 = math.exp %508 : vector<1x128xf32>
    %cst_88 = arith.constant 1.000000e+00 : f32
    %510 = vector.broadcast %cst_88 : f32 to vector<1x128xf32>
    %511 = arith.addf %510, %509 : vector<1x128xf32>
    %512 = arith.divf %510, %511 : vector<1x128xf32>
    %513 = vector.extract_strided_slice %500 {offsets = [0, 256], sizes = [1, 128], strides = [1, 1]} : vector<1x512xf32> to vector<1x128xf32>
    %514 = math.tanh %513 : vector<1x128xf32>
    %515 = vector.extract_strided_slice %500 {offsets = [0, 384], sizes = [1, 128], strides = [1, 1]} : vector<1x512xf32> to vector<1x128xf32>
    %516 = arith.negf %515 : vector<1x128xf32>
    %517 = math.exp %516 : vector<1x128xf32>
    %cst_89 = arith.constant 1.000000e+00 : f32
    %518 = vector.broadcast %cst_89 : f32 to vector<1x128xf32>
    %519 = arith.addf %518, %517 : vector<1x128xf32>
    %520 = arith.divf %518, %519 : vector<1x128xf32>
    %521 = arith.mulf %512, %459 : vector<1x128xf32>
    %522 = arith.mulf %506, %514 : vector<1x128xf32>
    %523 = arith.addf %521, %522 : vector<1x128xf32>
    %524 = math.tanh %523 : vector<1x128xf32>
    %525 = arith.mulf %520, %524 : vector<1x128xf32>
    %c8_i32 = arith.constant 8 : i32
    %c0_i32_90 = arith.constant 0 : i32
    %526 = tpu.memref_slice %arg10[%c0_i32_90] : memref<2x!tpu.dma_semaphore, #tpu.memory_space<semaphore_mem>> -> memref<1x!tpu.dma_semaphore, #tpu.memory_space<semaphore_mem>>
    %527 = tpu.memref_squeeze %526 : memref<1x!tpu.dma_semaphore, #tpu.memory_space<semaphore_mem>> -> memref<!tpu.dma_semaphore, #tpu.memory_space<semaphore_mem>>
    tpu.wait_dma2 semaphore(%527 : memref<!tpu.dma_semaphore, #tpu.memory_space<semaphore_mem>>) src(%arg3 : memref<32x512xf32, #tpu.memory_space<any>>) dst(%arg8 : memref<32x512xf32, #tpu.memory_space<vmem>>)
    %c1_i32_91 = arith.constant 1 : i32
    %528 = tpu.memref_slice %arg10[%c1_i32_91] : memref<2x!tpu.dma_semaphore, #tpu.memory_space<semaphore_mem>> -> memref<1x!tpu.dma_semaphore, #tpu.memory_space<semaphore_mem>>
    %529 = tpu.memref_squeeze %528 : memref<1x!tpu.dma_semaphore, #tpu.memory_space<semaphore_mem>> -> memref<!tpu.dma_semaphore, #tpu.memory_space<semaphore_mem>>
    tpu.wait_dma2 semaphore(%529 : memref<!tpu.dma_semaphore, #tpu.memory_space<semaphore_mem>>) src(%arg4 : memref<64x1536xf32, #tpu.memory_space<any>>) dst(%arg9 : memref<64x1536xf32, #tpu.memory_space<vmem>>)
    %c3 = arith.constant 3 : index
    %c0_92 = arith.constant 0 : index
    %530 = vector.load %arg1[%c3, %c0_92] : memref<8x512xf32, #tpu.memory_space<vmem>>, vector<1x512xf32>
    %c4 = arith.constant 4 : index
    %c0_93 = arith.constant 0 : index
    %531 = vector.load %arg1[%c4, %c0_93] : memref<8x512xf32, #tpu.memory_space<vmem>>, vector<1x512xf32>
    %532 = vector.extract_strided_slice %525 {offsets = [0, 0], sizes = [1, 32], strides = [1, 1]} : vector<1x128xf32> to vector<1x32xf32>
    %c0_94 = arith.constant 0 : index
    %c0_95 = arith.constant 0 : index
    %533 = vector.load %arg8[%c0_94, %c0_95] : memref<32x512xf32, #tpu.memory_space<vmem>>, vector<32x512xf32>
    %cst_96 = arith.constant dense<0.000000e+00> : vector<1x512xf32>
    %534 = tpu.matmul %532, %533, %cst_96 {dimension_numbers = #tpu.dot_dimension_numbers<[1], [0], [0], [1], [0, 0, 1, 1], [], []>} : vector<1x32xf32>, vector<32x512xf32>, vector<1x512xf32> -> vector<1x512xf32>
    %535 = arith.addf %534, %530 : vector<1x512xf32>
    %c0_i32_97 = arith.constant 0 : i32
    %536 = arith.addf %535, %13 : vector<1x512xf32>
    %537 = vector.extract_strided_slice %536 {offsets = [0, 0], sizes = [1, 128], strides = [1, 1]} : vector<1x512xf32> to vector<1x128xf32>
    %538 = arith.negf %537 : vector<1x128xf32>
    %539 = math.exp %538 : vector<1x128xf32>
    %cst_98 = arith.constant 1.000000e+00 : f32
    %540 = vector.broadcast %cst_98 : f32 to vector<1x128xf32>
    %541 = arith.addf %540, %539 : vector<1x128xf32>
    %542 = arith.divf %540, %541 : vector<1x128xf32>
    %543 = vector.extract_strided_slice %536 {offsets = [0, 128], sizes = [1, 128], strides = [1, 1]} : vector<1x512xf32> to vector<1x128xf32>
    %544 = arith.negf %543 : vector<1x128xf32>
    %545 = math.exp %544 : vector<1x128xf32>
    %cst_99 = arith.constant 1.000000e+00 : f32
    %546 = vector.broadcast %cst_99 : f32 to vector<1x128xf32>
    %547 = arith.addf %546, %545 : vector<1x128xf32>
    %548 = arith.divf %546, %547 : vector<1x128xf32>
    %549 = vector.extract_strided_slice %536 {offsets = [0, 256], sizes = [1, 128], strides = [1, 1]} : vector<1x512xf32> to vector<1x128xf32>
    %550 = math.tanh %549 : vector<1x128xf32>
    %551 = vector.extract_strided_slice %536 {offsets = [0, 384], sizes = [1, 128], strides = [1, 1]} : vector<1x512xf32> to vector<1x128xf32>
    %552 = arith.negf %551 : vector<1x128xf32>
    %553 = math.exp %552 : vector<1x128xf32>
    %cst_100 = arith.constant 1.000000e+00 : f32
    %554 = vector.broadcast %cst_100 : f32 to vector<1x128xf32>
    %555 = arith.addf %554, %553 : vector<1x128xf32>
    %556 = arith.divf %554, %555 : vector<1x128xf32>
    %557 = arith.mulf %548, %12 : vector<1x128xf32>
    %558 = arith.mulf %542, %550 : vector<1x128xf32>
    %559 = arith.addf %557, %558 : vector<1x128xf32>
    %560 = math.tanh %559 : vector<1x128xf32>
    %561 = arith.mulf %556, %560 : vector<1x128xf32>
    %562 = vector.extract_strided_slice %561 {offsets = [0, 0], sizes = [1, 64], strides = [1, 1]} : vector<1x128xf32> to vector<1x64xf32>
    %563 = vector.extract_strided_slice %12 {offsets = [0, 0], sizes = [1, 64], strides = [1, 1]} : vector<1x128xf32> to vector<1x64xf32>
    %564 = tpu.concatenate %562, %563 in 0 : vector<1x64xf32>, vector<1x64xf32> -> vector<2x64xf32>
    %c0_101 = arith.constant 0 : index
    %c0_102 = arith.constant 0 : index
    %565 = vector.load %arg9[%c0_101, %c0_102] : memref<64x1536xf32, #tpu.memory_space<vmem>>, vector<64x1536xf32>
    %cst_103 = arith.constant dense<0.000000e+00> : vector<2x1536xf32>
    %566 = tpu.matmul %564, %565, %cst_103 {dimension_numbers = #tpu.dot_dimension_numbers<[1], [0], [0], [1], [0, 0, 1, 1], [], []>} : vector<2x64xf32>, vector<64x1536xf32>, vector<2x1536xf32> -> vector<2x1536xf32>
    %567 = vector.extract_strided_slice %566 {offsets = [0, 0], sizes = [1, 512], strides = [1, 1]} : vector<2x1536xf32> to vector<1x512xf32>
    %568 = vector.extract_strided_slice %566 {offsets = [0, 512], sizes = [1, 512], strides = [1, 1]} : vector<2x1536xf32> to vector<1x512xf32>
    %569 = vector.extract_strided_slice %566 {offsets = [1, 1024], sizes = [1, 512], strides = [1, 1]} : vector<2x1536xf32> to vector<1x512xf32>
    %570 = arith.addf %568, %569 : vector<1x512xf32>
    %571 = arith.addf %570, %531 : vector<1x512xf32>
    %572 = vector.extract_strided_slice %571 {offsets = [0, 0], sizes = [1, 128], strides = [1, 1]} : vector<1x512xf32> to vector<1x128xf32>
    %573 = arith.negf %572 : vector<1x128xf32>
    %574 = math.exp %573 : vector<1x128xf32>
    %cst_104 = arith.constant 1.000000e+00 : f32
    %575 = vector.broadcast %cst_104 : f32 to vector<1x128xf32>
    %576 = arith.addf %575, %574 : vector<1x128xf32>
    %577 = arith.divf %575, %576 : vector<1x128xf32>
    %578 = vector.extract_strided_slice %571 {offsets = [0, 128], sizes = [1, 128], strides = [1, 1]} : vector<1x512xf32> to vector<1x128xf32>
    %579 = arith.negf %578 : vector<1x128xf32>
    %580 = math.exp %579 : vector<1x128xf32>
    %cst_105 = arith.constant 1.000000e+00 : f32
    %581 = vector.broadcast %cst_105 : f32 to vector<1x128xf32>
    %582 = arith.addf %581, %580 : vector<1x128xf32>
    %583 = arith.divf %581, %582 : vector<1x128xf32>
    %584 = vector.extract_strided_slice %571 {offsets = [0, 256], sizes = [1, 128], strides = [1, 1]} : vector<1x512xf32> to vector<1x128xf32>
    %585 = math.tanh %584 : vector<1x128xf32>
    %586 = vector.extract_strided_slice %571 {offsets = [0, 384], sizes = [1, 128], strides = [1, 1]} : vector<1x512xf32> to vector<1x128xf32>
    %587 = arith.negf %586 : vector<1x128xf32>
    %588 = math.exp %587 : vector<1x128xf32>
    %cst_106 = arith.constant 1.000000e+00 : f32
    %589 = vector.broadcast %cst_106 : f32 to vector<1x128xf32>
    %590 = arith.addf %589, %588 : vector<1x128xf32>
    %591 = arith.divf %589, %590 : vector<1x128xf32>
    %592 = arith.mulf %583, %12 : vector<1x128xf32>
    %593 = arith.mulf %577, %585 : vector<1x128xf32>
    %594 = arith.addf %592, %593 : vector<1x128xf32>
    %595 = math.tanh %594 : vector<1x128xf32>
    %596 = arith.mulf %591, %595 : vector<1x128xf32>
    %597 = arith.index_cast %c0_i32_97 : i32 to index
    %c0_107 = arith.constant 0 : index
    %598 = vector.load %arg7[%597, %c0_107] : memref<8x128xf32, #tpu.memory_space<vmem>>, vector<1x128xf32>
    tpu.vector_store %arg7[%597, %c0_107], %596 {strides = array<i32>} : memref<8x128xf32, #tpu.memory_space<vmem>>, vector<1x128xf32>,
    %c1_i32_108 = arith.constant 1 : i32
    %599 = arith.addf %535, %567 : vector<1x512xf32>
    %600 = vector.extract_strided_slice %599 {offsets = [0, 0], sizes = [1, 128], strides = [1, 1]} : vector<1x512xf32> to vector<1x128xf32>
    %601 = arith.negf %600 : vector<1x128xf32>
    %602 = math.exp %601 : vector<1x128xf32>
    %cst_109 = arith.constant 1.000000e+00 : f32
    %603 = vector.broadcast %cst_109 : f32 to vector<1x128xf32>
    %604 = arith.addf %603, %602 : vector<1x128xf32>
    %605 = arith.divf %603, %604 : vector<1x128xf32>
    %606 = vector.extract_strided_slice %599 {offsets = [0, 128], sizes = [1, 128], strides = [1, 1]} : vector<1x512xf32> to vector<1x128xf32>
    %607 = arith.negf %606 : vector<1x128xf32>
    %608 = math.exp %607 : vector<1x128xf32>
    %cst_110 = arith.constant 1.000000e+00 : f32
    %609 = vector.broadcast %cst_110 : f32 to vector<1x128xf32>
    %610 = arith.addf %609, %608 : vector<1x128xf32>
    %611 = arith.divf %609, %610 : vector<1x128xf32>
    %612 = vector.extract_strided_slice %599 {offsets = [0, 256], sizes = [1, 128], strides = [1, 1]} : vector<1x512xf32> to vector<1x128xf32>
    %613 = math.tanh %612 : vector<1x128xf32>
    %614 = vector.extract_strided_slice %599 {offsets = [0, 384], sizes = [1, 128], strides = [1, 1]} : vector<1x512xf32> to vector<1x128xf32>
    %615 = arith.negf %614 : vector<1x128xf32>
    %616 = math.exp %615 : vector<1x128xf32>
    %cst_111 = arith.constant 1.000000e+00 : f32
    %617 = vector.broadcast %cst_111 : f32 to vector<1x128xf32>
    %618 = arith.addf %617, %616 : vector<1x128xf32>
    %619 = arith.divf %617, %618 : vector<1x128xf32>
    %620 = arith.mulf %611, %559 : vector<1x128xf32>
    %621 = arith.mulf %605, %613 : vector<1x128xf32>
    %622 = arith.addf %620, %621 : vector<1x128xf32>
    %623 = math.tanh %622 : vector<1x128xf32>
    %624 = arith.mulf %619, %623 : vector<1x128xf32>
    %625 = vector.extract_strided_slice %624 {offsets = [0, 0], sizes = [1, 64], strides = [1, 1]} : vector<1x128xf32> to vector<1x64xf32>
    %626 = vector.extract_strided_slice %596 {offsets = [0, 0], sizes = [1, 64], strides = [1, 1]} : vector<1x128xf32> to vector<1x64xf32>
    %627 = tpu.concatenate %625, %626 in 0 : vector<1x64xf32>, vector<1x64xf32> -> vector<2x64xf32>
    %c0_112 = arith.constant 0 : index
    %c0_113 = arith.constant 0 : index
    %628 = vector.load %arg9[%c0_112, %c0_113] : memref<64x1536xf32, #tpu.memory_space<vmem>>, vector<64x1536xf32>
    %cst_114 = arith.constant dense<0.000000e+00> : vector<2x1536xf32>
    %629 = tpu.matmul %627, %628, %cst_114 {dimension_numbers = #tpu.dot_dimension_numbers<[1], [0], [0], [1], [0, 0, 1, 1], [], []>} : vector<2x64xf32>, vector<64x1536xf32>, vector<2x1536xf32> -> vector<2x1536xf32>
    %630 = vector.extract_strided_slice %629 {offsets = [0, 0], sizes = [1, 512], strides = [1, 1]} : vector<2x1536xf32> to vector<1x512xf32>
    %631 = vector.extract_strided_slice %629 {offsets = [0, 512], sizes = [1, 512], strides = [1, 1]} : vector<2x1536xf32> to vector<1x512xf32>
    %632 = vector.extract_strided_slice %629 {offsets = [1, 1024], sizes = [1, 512], strides = [1, 1]} : vector<2x1536xf32> to vector<1x512xf32>
    %633 = arith.addf %631, %632 : vector<1x512xf32>
    %634 = arith.addf %633, %531 : vector<1x512xf32>
    %635 = vector.extract_strided_slice %634 {offsets = [0, 0], sizes = [1, 128], strides = [1, 1]} : vector<1x512xf32> to vector<1x128xf32>
    %636 = arith.negf %635 : vector<1x128xf32>
    %637 = math.exp %636 : vector<1x128xf32>
    %cst_115 = arith.constant 1.000000e+00 : f32
    %638 = vector.broadcast %cst_115 : f32 to vector<1x128xf32>
    %639 = arith.addf %638, %637 : vector<1x128xf32>
    %640 = arith.divf %638, %639 : vector<1x128xf32>
    %641 = vector.extract_strided_slice %634 {offsets = [0, 128], sizes = [1, 128], strides = [1, 1]} : vector<1x512xf32> to vector<1x128xf32>
    %642 = arith.negf %641 : vector<1x128xf32>
    %643 = math.exp %642 : vector<1x128xf32>
    %cst_116 = arith.constant 1.000000e+00 : f32
    %644 = vector.broadcast %cst_116 : f32 to vector<1x128xf32>
    %645 = arith.addf %644, %643 : vector<1x128xf32>
    %646 = arith.divf %644, %645 : vector<1x128xf32>
    %647 = vector.extract_strided_slice %634 {offsets = [0, 256], sizes = [1, 128], strides = [1, 1]} : vector<1x512xf32> to vector<1x128xf32>
    %648 = math.tanh %647 : vector<1x128xf32>
    %649 = vector.extract_strided_slice %634 {offsets = [0, 384], sizes = [1, 128], strides = [1, 1]} : vector<1x512xf32> to vector<1x128xf32>
    %650 = arith.negf %649 : vector<1x128xf32>
    %651 = math.exp %650 : vector<1x128xf32>
    %cst_117 = arith.constant 1.000000e+00 : f32
    %652 = vector.broadcast %cst_117 : f32 to vector<1x128xf32>
    %653 = arith.addf %652, %651 : vector<1x128xf32>
    %654 = arith.divf %652, %653 : vector<1x128xf32>
    %655 = arith.mulf %646, %594 : vector<1x128xf32>
    %656 = arith.mulf %640, %648 : vector<1x128xf32>
    %657 = arith.addf %655, %656 : vector<1x128xf32>
    %658 = math.tanh %657 : vector<1x128xf32>
    %659 = arith.mulf %654, %658 : vector<1x128xf32>
    %660 = arith.index_cast %c1_i32_108 : i32 to index
    %c0_118 = arith.constant 0 : index
    %661 = vector.load %arg7[%660, %c0_118] : memref<8x128xf32, #tpu.memory_space<vmem>>, vector<1x128xf32>
    tpu.vector_store %arg7[%660, %c0_118], %659 {strides = array<i32>} : memref<8x128xf32, #tpu.memory_space<vmem>>, vector<1x128xf32>,
    %c2_i32_119 = arith.constant 2 : i32
    %662 = arith.addf %535, %630 : vector<1x512xf32>
    %663 = vector.extract_strided_slice %662 {offsets = [0, 0], sizes = [1, 128], strides = [1, 1]} : vector<1x512xf32> to vector<1x128xf32>
    %664 = arith.negf %663 : vector<1x128xf32>
    %665 = math.exp %664 : vector<1x128xf32>
    %cst_120 = arith.constant 1.000000e+00 : f32
    %666 = vector.broadcast %cst_120 : f32 to vector<1x128xf32>
    %667 = arith.addf %666, %665 : vector<1x128xf32>
    %668 = arith.divf %666, %667 : vector<1x128xf32>
    %669 = vector.extract_strided_slice %662 {offsets = [0, 128], sizes = [1, 128], strides = [1, 1]} : vector<1x512xf32> to vector<1x128xf32>
    %670 = arith.negf %669 : vector<1x128xf32>
    %671 = math.exp %670 : vector<1x128xf32>
    %cst_121 = arith.constant 1.000000e+00 : f32
    %672 = vector.broadcast %cst_121 : f32 to vector<1x128xf32>
    %673 = arith.addf %672, %671 : vector<1x128xf32>
    %674 = arith.divf %672, %673 : vector<1x128xf32>
    %675 = vector.extract_strided_slice %662 {offsets = [0, 256], sizes = [1, 128], strides = [1, 1]} : vector<1x512xf32> to vector<1x128xf32>
    %676 = math.tanh %675 : vector<1x128xf32>
    %677 = vector.extract_strided_slice %662 {offsets = [0, 384], sizes = [1, 128], strides = [1, 1]} : vector<1x512xf32> to vector<1x128xf32>
    %678 = arith.negf %677 : vector<1x128xf32>
    %679 = math.exp %678 : vector<1x128xf32>
    %cst_122 = arith.constant 1.000000e+00 : f32
    %680 = vector.broadcast %cst_122 : f32 to vector<1x128xf32>
    %681 = arith.addf %680, %679 : vector<1x128xf32>
    %682 = arith.divf %680, %681 : vector<1x128xf32>
    %683 = arith.mulf %674, %622 : vector<1x128xf32>
    %684 = arith.mulf %668, %676 : vector<1x128xf32>
    %685 = arith.addf %683, %684 : vector<1x128xf32>
    %686 = math.tanh %685 : vector<1x128xf32>
    %687 = arith.mulf %682, %686 : vector<1x128xf32>
    %688 = vector.extract_strided_slice %687 {offsets = [0, 0], sizes = [1, 64], strides = [1, 1]} : vector<1x128xf32> to vector<1x64xf32>
    %689 = vector.extract_strided_slice %659 {offsets = [0, 0], sizes = [1, 64], strides = [1, 1]} : vector<1x128xf32> to vector<1x64xf32>
    %690 = tpu.concatenate %688, %689 in 0 : vector<1x64xf32>, vector<1x64xf32> -> vector<2x64xf32>
    %c0_123 = arith.constant 0 : index
    %c0_124 = arith.constant 0 : index
    %691 = vector.load %arg9[%c0_123, %c0_124] : memref<64x1536xf32, #tpu.memory_space<vmem>>, vector<64x1536xf32>
    %cst_125 = arith.constant dense<0.000000e+00> : vector<2x1536xf32>
    %692 = tpu.matmul %690, %691, %cst_125 {dimension_numbers = #tpu.dot_dimension_numbers<[1], [0], [0], [1], [0, 0, 1, 1], [], []>} : vector<2x64xf32>, vector<64x1536xf32>, vector<2x1536xf32> -> vector<2x1536xf32>
    %693 = vector.extract_strided_slice %692 {offsets = [0, 0], sizes = [1, 512], strides = [1, 1]} : vector<2x1536xf32> to vector<1x512xf32>
    %694 = vector.extract_strided_slice %692 {offsets = [0, 512], sizes = [1, 512], strides = [1, 1]} : vector<2x1536xf32> to vector<1x512xf32>
    %695 = vector.extract_strided_slice %692 {offsets = [1, 1024], sizes = [1, 512], strides = [1, 1]} : vector<2x1536xf32> to vector<1x512xf32>
    %696 = arith.addf %694, %695 : vector<1x512xf32>
    %697 = arith.addf %696, %531 : vector<1x512xf32>
    %698 = vector.extract_strided_slice %697 {offsets = [0, 0], sizes = [1, 128], strides = [1, 1]} : vector<1x512xf32> to vector<1x128xf32>
    %699 = arith.negf %698 : vector<1x128xf32>
    %700 = math.exp %699 : vector<1x128xf32>
    %cst_126 = arith.constant 1.000000e+00 : f32
    %701 = vector.broadcast %cst_126 : f32 to vector<1x128xf32>
    %702 = arith.addf %701, %700 : vector<1x128xf32>
    %703 = arith.divf %701, %702 : vector<1x128xf32>
    %704 = vector.extract_strided_slice %697 {offsets = [0, 128], sizes = [1, 128], strides = [1, 1]} : vector<1x512xf32> to vector<1x128xf32>
    %705 = arith.negf %704 : vector<1x128xf32>
    %706 = math.exp %705 : vector<1x128xf32>
    %cst_127 = arith.constant 1.000000e+00 : f32
    %707 = vector.broadcast %cst_127 : f32 to vector<1x128xf32>
    %708 = arith.addf %707, %706 : vector<1x128xf32>
    %709 = arith.divf %707, %708 : vector<1x128xf32>
    %710 = vector.extract_strided_slice %697 {offsets = [0, 256], sizes = [1, 128], strides = [1, 1]} : vector<1x512xf32> to vector<1x128xf32>
    %711 = math.tanh %710 : vector<1x128xf32>
    %712 = vector.extract_strided_slice %697 {offsets = [0, 384], sizes = [1, 128], strides = [1, 1]} : vector<1x512xf32> to vector<1x128xf32>
    %713 = arith.negf %712 : vector<1x128xf32>
    %714 = math.exp %713 : vector<1x128xf32>
    %cst_128 = arith.constant 1.000000e+00 : f32
    %715 = vector.broadcast %cst_128 : f32 to vector<1x128xf32>
    %716 = arith.addf %715, %714 : vector<1x128xf32>
    %717 = arith.divf %715, %716 : vector<1x128xf32>
    %718 = arith.mulf %709, %657 : vector<1x128xf32>
    %719 = arith.mulf %703, %711 : vector<1x128xf32>
    %720 = arith.addf %718, %719 : vector<1x128xf32>
    %721 = math.tanh %720 : vector<1x128xf32>
    %722 = arith.mulf %717, %721 : vector<1x128xf32>
    %723 = arith.index_cast %c2_i32_119 : i32 to index
    %c0_129 = arith.constant 0 : index
    %724 = vector.load %arg7[%723, %c0_129] : memref<8x128xf32, #tpu.memory_space<vmem>>, vector<1x128xf32>
    tpu.vector_store %arg7[%723, %c0_129], %722 {strides = array<i32>} : memref<8x128xf32, #tpu.memory_space<vmem>>, vector<1x128xf32>,
    %c3_i32_130 = arith.constant 3 : i32
    %725 = arith.addf %535, %693 : vector<1x512xf32>
    %726 = vector.extract_strided_slice %725 {offsets = [0, 0], sizes = [1, 128], strides = [1, 1]} : vector<1x512xf32> to vector<1x128xf32>
    %727 = arith.negf %726 : vector<1x128xf32>
    %728 = math.exp %727 : vector<1x128xf32>
    %cst_131 = arith.constant 1.000000e+00 : f32
    %729 = vector.broadcast %cst_131 : f32 to vector<1x128xf32>
    %730 = arith.addf %729, %728 : vector<1x128xf32>
    %731 = arith.divf %729, %730 : vector<1x128xf32>
    %732 = vector.extract_strided_slice %725 {offsets = [0, 128], sizes = [1, 128], strides = [1, 1]} : vector<1x512xf32> to vector<1x128xf32>
    %733 = arith.negf %732 : vector<1x128xf32>
    %734 = math.exp %733 : vector<1x128xf32>
    %cst_132 = arith.constant 1.000000e+00 : f32
    %735 = vector.broadcast %cst_132 : f32 to vector<1x128xf32>
    %736 = arith.addf %735, %734 : vector<1x128xf32>
    %737 = arith.divf %735, %736 : vector<1x128xf32>
    %738 = vector.extract_strided_slice %725 {offsets = [0, 256], sizes = [1, 128], strides = [1, 1]} : vector<1x512xf32> to vector<1x128xf32>
    %739 = math.tanh %738 : vector<1x128xf32>
    %740 = vector.extract_strided_slice %725 {offsets = [0, 384], sizes = [1, 128], strides = [1, 1]} : vector<1x512xf32> to vector<1x128xf32>
    %741 = arith.negf %740 : vector<1x128xf32>
    %742 = math.exp %741 : vector<1x128xf32>
    %cst_133 = arith.constant 1.000000e+00 : f32
    %743 = vector.broadcast %cst_133 : f32 to vector<1x128xf32>
    %744 = arith.addf %743, %742 : vector<1x128xf32>
    %745 = arith.divf %743, %744 : vector<1x128xf32>
    %746 = arith.mulf %737, %685 : vector<1x128xf32>
    %747 = arith.mulf %731, %739 : vector<1x128xf32>
    %748 = arith.addf %746, %747 : vector<1x128xf32>
    %749 = math.tanh %748 : vector<1x128xf32>
    %750 = arith.mulf %745, %749 : vector<1x128xf32>
    %751 = vector.extract_strided_slice %750 {offsets = [0, 0], sizes = [1, 64], strides = [1, 1]} : vector<1x128xf32> to vector<1x64xf32>
    %752 = vector.extract_strided_slice %722 {offsets = [0, 0], sizes = [1, 64], strides = [1, 1]} : vector<1x128xf32> to vector<1x64xf32>
    %753 = tpu.concatenate %751, %752 in 0 : vector<1x64xf32>, vector<1x64xf32> -> vector<2x64xf32>
    %c0_134 = arith.constant 0 : index
    %c0_135 = arith.constant 0 : index
    %754 = vector.load %arg9[%c0_134, %c0_135] : memref<64x1536xf32, #tpu.memory_space<vmem>>, vector<64x1536xf32>
    %cst_136 = arith.constant dense<0.000000e+00> : vector<2x1536xf32>
    %755 = tpu.matmul %753, %754, %cst_136 {dimension_numbers = #tpu.dot_dimension_numbers<[1], [0], [0], [1], [0, 0, 1, 1], [], []>} : vector<2x64xf32>, vector<64x1536xf32>, vector<2x1536xf32> -> vector<2x1536xf32>
    %756 = vector.extract_strided_slice %755 {offsets = [0, 0], sizes = [1, 512], strides = [1, 1]} : vector<2x1536xf32> to vector<1x512xf32>
    %757 = vector.extract_strided_slice %755 {offsets = [0, 512], sizes = [1, 512], strides = [1, 1]} : vector<2x1536xf32> to vector<1x512xf32>
    %758 = vector.extract_strided_slice %755 {offsets = [1, 1024], sizes = [1, 512], strides = [1, 1]} : vector<2x1536xf32> to vector<1x512xf32>
    %759 = arith.addf %757, %758 : vector<1x512xf32>
    %760 = arith.addf %759, %531 : vector<1x512xf32>
    %761 = vector.extract_strided_slice %760 {offsets = [0, 0], sizes = [1, 128], strides = [1, 1]} : vector<1x512xf32> to vector<1x128xf32>
    %762 = arith.negf %761 : vector<1x128xf32>
    %763 = math.exp %762 : vector<1x128xf32>
    %cst_137 = arith.constant 1.000000e+00 : f32
    %764 = vector.broadcast %cst_137 : f32 to vector<1x128xf32>
    %765 = arith.addf %764, %763 : vector<1x128xf32>
    %766 = arith.divf %764, %765 : vector<1x128xf32>
    %767 = vector.extract_strided_slice %760 {offsets = [0, 128], sizes = [1, 128], strides = [1, 1]} : vector<1x512xf32> to vector<1x128xf32>
    %768 = arith.negf %767 : vector<1x128xf32>
    %769 = math.exp %768 : vector<1x128xf32>
    %cst_138 = arith.constant 1.000000e+00 : f32
    %770 = vector.broadcast %cst_138 : f32 to vector<1x128xf32>
    %771 = arith.addf %770, %769 : vector<1x128xf32>
    %772 = arith.divf %770, %771 : vector<1x128xf32>
    %773 = vector.extract_strided_slice %760 {offsets = [0, 256], sizes = [1, 128], strides = [1, 1]} : vector<1x512xf32> to vector<1x128xf32>
    %774 = math.tanh %773 : vector<1x128xf32>
    %775 = vector.extract_strided_slice %760 {offsets = [0, 384], sizes = [1, 128], strides = [1, 1]} : vector<1x512xf32> to vector<1x128xf32>
    %776 = arith.negf %775 : vector<1x128xf32>
    %777 = math.exp %776 : vector<1x128xf32>
    %cst_139 = arith.constant 1.000000e+00 : f32
    %778 = vector.broadcast %cst_139 : f32 to vector<1x128xf32>
    %779 = arith.addf %778, %777 : vector<1x128xf32>
    %780 = arith.divf %778, %779 : vector<1x128xf32>
    %781 = arith.mulf %772, %720 : vector<1x128xf32>
    %782 = arith.mulf %766, %774 : vector<1x128xf32>
    %783 = arith.addf %781, %782 : vector<1x128xf32>
    %784 = math.tanh %783 : vector<1x128xf32>
    %785 = arith.mulf %780, %784 : vector<1x128xf32>
    %786 = arith.index_cast %c3_i32_130 : i32 to index
    %c0_140 = arith.constant 0 : index
    %787 = vector.load %arg7[%786, %c0_140] : memref<8x128xf32, #tpu.memory_space<vmem>>, vector<1x128xf32>
    tpu.vector_store %arg7[%786, %c0_140], %785 {strides = array<i32>} : memref<8x128xf32, #tpu.memory_space<vmem>>, vector<1x128xf32>,
    %c4_i32_141 = arith.constant 4 : i32
    %788 = arith.addf %535, %756 : vector<1x512xf32>
    %789 = vector.extract_strided_slice %788 {offsets = [0, 0], sizes = [1, 128], strides = [1, 1]} : vector<1x512xf32> to vector<1x128xf32>
    %790 = arith.negf %789 : vector<1x128xf32>
    %791 = math.exp %790 : vector<1x128xf32>
    %cst_142 = arith.constant 1.000000e+00 : f32
    %792 = vector.broadcast %cst_142 : f32 to vector<1x128xf32>
    %793 = arith.addf %792, %791 : vector<1x128xf32>
    %794 = arith.divf %792, %793 : vector<1x128xf32>
    %795 = vector.extract_strided_slice %788 {offsets = [0, 128], sizes = [1, 128], strides = [1, 1]} : vector<1x512xf32> to vector<1x128xf32>
    %796 = arith.negf %795 : vector<1x128xf32>
    %797 = math.exp %796 : vector<1x128xf32>
    %cst_143 = arith.constant 1.000000e+00 : f32
    %798 = vector.broadcast %cst_143 : f32 to vector<1x128xf32>
    %799 = arith.addf %798, %797 : vector<1x128xf32>
    %800 = arith.divf %798, %799 : vector<1x128xf32>
    %801 = vector.extract_strided_slice %788 {offsets = [0, 256], sizes = [1, 128], strides = [1, 1]} : vector<1x512xf32> to vector<1x128xf32>
    %802 = math.tanh %801 : vector<1x128xf32>
    %803 = vector.extract_strided_slice %788 {offsets = [0, 384], sizes = [1, 128], strides = [1, 1]} : vector<1x512xf32> to vector<1x128xf32>
    %804 = arith.negf %803 : vector<1x128xf32>
    %805 = math.exp %804 : vector<1x128xf32>
    %cst_144 = arith.constant 1.000000e+00 : f32
    %806 = vector.broadcast %cst_144 : f32 to vector<1x128xf32>
    %807 = arith.addf %806, %805 : vector<1x128xf32>
    %808 = arith.divf %806, %807 : vector<1x128xf32>
    %809 = arith.mulf %800, %748 : vector<1x128xf32>
    %810 = arith.mulf %794, %802 : vector<1x128xf32>
    %811 = arith.addf %809, %810 : vector<1x128xf32>
    %812 = math.tanh %811 : vector<1x128xf32>
    %813 = arith.mulf %808, %812 : vector<1x128xf32>
    %814 = vector.extract_strided_slice %813 {offsets = [0, 0], sizes = [1, 64], strides = [1, 1]} : vector<1x128xf32> to vector<1x64xf32>
    %815 = vector.extract_strided_slice %785 {offsets = [0, 0], sizes = [1, 64], strides = [1, 1]} : vector<1x128xf32> to vector<1x64xf32>
    %816 = tpu.concatenate %814, %815 in 0 : vector<1x64xf32>, vector<1x64xf32> -> vector<2x64xf32>
    %c0_145 = arith.constant 0 : index
    %c0_146 = arith.constant 0 : index
    %817 = vector.load %arg9[%c0_145, %c0_146] : memref<64x1536xf32, #tpu.memory_space<vmem>>, vector<64x1536xf32>
    %cst_147 = arith.constant dense<0.000000e+00> : vector<2x1536xf32>
    %818 = tpu.matmul %816, %817, %cst_147 {dimension_numbers = #tpu.dot_dimension_numbers<[1], [0], [0], [1], [0, 0, 1, 1], [], []>} : vector<2x64xf32>, vector<64x1536xf32>, vector<2x1536xf32> -> vector<2x1536xf32>
    %819 = vector.extract_strided_slice %818 {offsets = [0, 0], sizes = [1, 512], strides = [1, 1]} : vector<2x1536xf32> to vector<1x512xf32>
    %820 = vector.extract_strided_slice %818 {offsets = [0, 512], sizes = [1, 512], strides = [1, 1]} : vector<2x1536xf32> to vector<1x512xf32>
    %821 = vector.extract_strided_slice %818 {offsets = [1, 1024], sizes = [1, 512], strides = [1, 1]} : vector<2x1536xf32> to vector<1x512xf32>
    %822 = arith.addf %820, %821 : vector<1x512xf32>
    %823 = arith.addf %822, %531 : vector<1x512xf32>
    %824 = vector.extract_strided_slice %823 {offsets = [0, 0], sizes = [1, 128], strides = [1, 1]} : vector<1x512xf32> to vector<1x128xf32>
    %825 = arith.negf %824 : vector<1x128xf32>
    %826 = math.exp %825 : vector<1x128xf32>
    %cst_148 = arith.constant 1.000000e+00 : f32
    %827 = vector.broadcast %cst_148 : f32 to vector<1x128xf32>
    %828 = arith.addf %827, %826 : vector<1x128xf32>
    %829 = arith.divf %827, %828 : vector<1x128xf32>
    %830 = vector.extract_strided_slice %823 {offsets = [0, 128], sizes = [1, 128], strides = [1, 1]} : vector<1x512xf32> to vector<1x128xf32>
    %831 = arith.negf %830 : vector<1x128xf32>
    %832 = math.exp %831 : vector<1x128xf32>
    %cst_149 = arith.constant 1.000000e+00 : f32
    %833 = vector.broadcast %cst_149 : f32 to vector<1x128xf32>
    %834 = arith.addf %833, %832 : vector<1x128xf32>
    %835 = arith.divf %833, %834 : vector<1x128xf32>
    %836 = vector.extract_strided_slice %823 {offsets = [0, 256], sizes = [1, 128], strides = [1, 1]} : vector<1x512xf32> to vector<1x128xf32>
    %837 = math.tanh %836 : vector<1x128xf32>
    %838 = vector.extract_strided_slice %823 {offsets = [0, 384], sizes = [1, 128], strides = [1, 1]} : vector<1x512xf32> to vector<1x128xf32>
    %839 = arith.negf %838 : vector<1x128xf32>
    %840 = math.exp %839 : vector<1x128xf32>
    %cst_150 = arith.constant 1.000000e+00 : f32
    %841 = vector.broadcast %cst_150 : f32 to vector<1x128xf32>
    %842 = arith.addf %841, %840 : vector<1x128xf32>
    %843 = arith.divf %841, %842 : vector<1x128xf32>
    %844 = arith.mulf %835, %783 : vector<1x128xf32>
    %845 = arith.mulf %829, %837 : vector<1x128xf32>
    %846 = arith.addf %844, %845 : vector<1x128xf32>
    %847 = math.tanh %846 : vector<1x128xf32>
    %848 = arith.mulf %843, %847 : vector<1x128xf32>
    %849 = arith.index_cast %c4_i32_141 : i32 to index
    %c0_151 = arith.constant 0 : index
    %850 = vector.load %arg7[%849, %c0_151] : memref<8x128xf32, #tpu.memory_space<vmem>>, vector<1x128xf32>
    tpu.vector_store %arg7[%849, %c0_151], %848 {strides = array<i32>} : memref<8x128xf32, #tpu.memory_space<vmem>>, vector<1x128xf32>,
    %c5_i32_152 = arith.constant 5 : i32
    %851 = arith.addf %535, %819 : vector<1x512xf32>
    %852 = vector.extract_strided_slice %851 {offsets = [0, 0], sizes = [1, 128], strides = [1, 1]} : vector<1x512xf32> to vector<1x128xf32>
    %853 = arith.negf %852 : vector<1x128xf32>
    %854 = math.exp %853 : vector<1x128xf32>
    %cst_153 = arith.constant 1.000000e+00 : f32
    %855 = vector.broadcast %cst_153 : f32 to vector<1x128xf32>
    %856 = arith.addf %855, %854 : vector<1x128xf32>
    %857 = arith.divf %855, %856 : vector<1x128xf32>
    %858 = vector.extract_strided_slice %851 {offsets = [0, 128], sizes = [1, 128], strides = [1, 1]} : vector<1x512xf32> to vector<1x128xf32>
    %859 = arith.negf %858 : vector<1x128xf32>
    %860 = math.exp %859 : vector<1x128xf32>
    %cst_154 = arith.constant 1.000000e+00 : f32
    %861 = vector.broadcast %cst_154 : f32 to vector<1x128xf32>
    %862 = arith.addf %861, %860 : vector<1x128xf32>
    %863 = arith.divf %861, %862 : vector<1x128xf32>
    %864 = vector.extract_strided_slice %851 {offsets = [0, 256], sizes = [1, 128], strides = [1, 1]} : vector<1x512xf32> to vector<1x128xf32>
    %865 = math.tanh %864 : vector<1x128xf32>
    %866 = vector.extract_strided_slice %851 {offsets = [0, 384], sizes = [1, 128], strides = [1, 1]} : vector<1x512xf32> to vector<1x128xf32>
    %867 = arith.negf %866 : vector<1x128xf32>
    %868 = math.exp %867 : vector<1x128xf32>
    %cst_155 = arith.constant 1.000000e+00 : f32
    %869 = vector.broadcast %cst_155 : f32 to vector<1x128xf32>
    %870 = arith.addf %869, %868 : vector<1x128xf32>
    %871 = arith.divf %869, %870 : vector<1x128xf32>
    %872 = arith.mulf %863, %811 : vector<1x128xf32>
    %873 = arith.mulf %857, %865 : vector<1x128xf32>
    %874 = arith.addf %872, %873 : vector<1x128xf32>
    %875 = math.tanh %874 : vector<1x128xf32>
    %876 = arith.mulf %871, %875 : vector<1x128xf32>
    %877 = vector.extract_strided_slice %876 {offsets = [0, 0], sizes = [1, 64], strides = [1, 1]} : vector<1x128xf32> to vector<1x64xf32>
    %878 = vector.extract_strided_slice %848 {offsets = [0, 0], sizes = [1, 64], strides = [1, 1]} : vector<1x128xf32> to vector<1x64xf32>
    %879 = tpu.concatenate %877, %878 in 0 : vector<1x64xf32>, vector<1x64xf32> -> vector<2x64xf32>
    %c0_156 = arith.constant 0 : index
    %c0_157 = arith.constant 0 : index
    %880 = vector.load %arg9[%c0_156, %c0_157] : memref<64x1536xf32, #tpu.memory_space<vmem>>, vector<64x1536xf32>
    %cst_158 = arith.constant dense<0.000000e+00> : vector<2x1536xf32>
    %881 = tpu.matmul %879, %880, %cst_158 {dimension_numbers = #tpu.dot_dimension_numbers<[1], [0], [0], [1], [0, 0, 1, 1], [], []>} : vector<2x64xf32>, vector<64x1536xf32>, vector<2x1536xf32> -> vector<2x1536xf32>
    %882 = vector.extract_strided_slice %881 {offsets = [0, 0], sizes = [1, 512], strides = [1, 1]} : vector<2x1536xf32> to vector<1x512xf32>
    %883 = vector.extract_strided_slice %881 {offsets = [0, 512], sizes = [1, 512], strides = [1, 1]} : vector<2x1536xf32> to vector<1x512xf32>
    %884 = vector.extract_strided_slice %881 {offsets = [1, 1024], sizes = [1, 512], strides = [1, 1]} : vector<2x1536xf32> to vector<1x512xf32>
    %885 = arith.addf %883, %884 : vector<1x512xf32>
    %886 = arith.addf %885, %531 : vector<1x512xf32>
    %887 = vector.extract_strided_slice %886 {offsets = [0, 0], sizes = [1, 128], strides = [1, 1]} : vector<1x512xf32> to vector<1x128xf32>
    %888 = arith.negf %887 : vector<1x128xf32>
    %889 = math.exp %888 : vector<1x128xf32>
    %cst_159 = arith.constant 1.000000e+00 : f32
    %890 = vector.broadcast %cst_159 : f32 to vector<1x128xf32>
    %891 = arith.addf %890, %889 : vector<1x128xf32>
    %892 = arith.divf %890, %891 : vector<1x128xf32>
    %893 = vector.extract_strided_slice %886 {offsets = [0, 128], sizes = [1, 128], strides = [1, 1]} : vector<1x512xf32> to vector<1x128xf32>
    %894 = arith.negf %893 : vector<1x128xf32>
    %895 = math.exp %894 : vector<1x128xf32>
    %cst_160 = arith.constant 1.000000e+00 : f32
    %896 = vector.broadcast %cst_160 : f32 to vector<1x128xf32>
    %897 = arith.addf %896, %895 : vector<1x128xf32>
    %898 = arith.divf %896, %897 : vector<1x128xf32>
    %899 = vector.extract_strided_slice %886 {offsets = [0, 256], sizes = [1, 128], strides = [1, 1]} : vector<1x512xf32> to vector<1x128xf32>
    %900 = math.tanh %899 : vector<1x128xf32>
    %901 = vector.extract_strided_slice %886 {offsets = [0, 384], sizes = [1, 128], strides = [1, 1]} : vector<1x512xf32> to vector<1x128xf32>
    %902 = arith.negf %901 : vector<1x128xf32>
    %903 = math.exp %902 : vector<1x128xf32>
    %cst_161 = arith.constant 1.000000e+00 : f32
    %904 = vector.broadcast %cst_161 : f32 to vector<1x128xf32>
    %905 = arith.addf %904, %903 : vector<1x128xf32>
    %906 = arith.divf %904, %905 : vector<1x128xf32>
    %907 = arith.mulf %898, %846 : vector<1x128xf32>
    %908 = arith.mulf %892, %900 : vector<1x128xf32>
    %909 = arith.addf %907, %908 : vector<1x128xf32>
    %910 = math.tanh %909 : vector<1x128xf32>
    %911 = arith.mulf %906, %910 : vector<1x128xf32>
    %912 = arith.index_cast %c5_i32_152 : i32 to index
    %c0_162 = arith.constant 0 : index
    %913 = vector.load %arg7[%912, %c0_162] : memref<8x128xf32, #tpu.memory_space<vmem>>, vector<1x128xf32>
    tpu.vector_store %arg7[%912, %c0_162], %911 {strides = array<i32>} : memref<8x128xf32, #tpu.memory_space<vmem>>, vector<1x128xf32>,
    %c6_i32_163 = arith.constant 6 : i32
    %914 = arith.addf %535, %882 : vector<1x512xf32>
    %915 = vector.extract_strided_slice %914 {offsets = [0, 0], sizes = [1, 128], strides = [1, 1]} : vector<1x512xf32> to vector<1x128xf32>
    %916 = arith.negf %915 : vector<1x128xf32>
    %917 = math.exp %916 : vector<1x128xf32>
    %cst_164 = arith.constant 1.000000e+00 : f32
    %918 = vector.broadcast %cst_164 : f32 to vector<1x128xf32>
    %919 = arith.addf %918, %917 : vector<1x128xf32>
    %920 = arith.divf %918, %919 : vector<1x128xf32>
    %921 = vector.extract_strided_slice %914 {offsets = [0, 128], sizes = [1, 128], strides = [1, 1]} : vector<1x512xf32> to vector<1x128xf32>
    %922 = arith.negf %921 : vector<1x128xf32>
    %923 = math.exp %922 : vector<1x128xf32>
    %cst_165 = arith.constant 1.000000e+00 : f32
    %924 = vector.broadcast %cst_165 : f32 to vector<1x128xf32>
    %925 = arith.addf %924, %923 : vector<1x128xf32>
    %926 = arith.divf %924, %925 : vector<1x128xf32>
    %927 = vector.extract_strided_slice %914 {offsets = [0, 256], sizes = [1, 128], strides = [1, 1]} : vector<1x512xf32> to vector<1x128xf32>
    %928 = math.tanh %927 : vector<1x128xf32>
    %929 = vector.extract_strided_slice %914 {offsets = [0, 384], sizes = [1, 128], strides = [1, 1]} : vector<1x512xf32> to vector<1x128xf32>
    %930 = arith.negf %929 : vector<1x128xf32>
    %931 = math.exp %930 : vector<1x128xf32>
    %cst_166 = arith.constant 1.000000e+00 : f32
    %932 = vector.broadcast %cst_166 : f32 to vector<1x128xf32>
    %933 = arith.addf %932, %931 : vector<1x128xf32>
    %934 = arith.divf %932, %933 : vector<1x128xf32>
    %935 = arith.mulf %926, %874 : vector<1x128xf32>
    %936 = arith.mulf %920, %928 : vector<1x128xf32>
    %937 = arith.addf %935, %936 : vector<1x128xf32>
    %938 = math.tanh %937 : vector<1x128xf32>
    %939 = arith.mulf %934, %938 : vector<1x128xf32>
    %940 = vector.extract_strided_slice %939 {offsets = [0, 0], sizes = [1, 64], strides = [1, 1]} : vector<1x128xf32> to vector<1x64xf32>
    %941 = vector.extract_strided_slice %911 {offsets = [0, 0], sizes = [1, 64], strides = [1, 1]} : vector<1x128xf32> to vector<1x64xf32>
    %942 = tpu.concatenate %940, %941 in 0 : vector<1x64xf32>, vector<1x64xf32> -> vector<2x64xf32>
    %c0_167 = arith.constant 0 : index
    %c0_168 = arith.constant 0 : index
    %943 = vector.load %arg9[%c0_167, %c0_168] : memref<64x1536xf32, #tpu.memory_space<vmem>>, vector<64x1536xf32>
    %cst_169 = arith.constant dense<0.000000e+00> : vector<2x1536xf32>
    %944 = tpu.matmul %942, %943, %cst_169 {dimension_numbers = #tpu.dot_dimension_numbers<[1], [0], [0], [1], [0, 0, 1, 1], [], []>} : vector<2x64xf32>, vector<64x1536xf32>, vector<2x1536xf32> -> vector<2x1536xf32>
    %945 = vector.extract_strided_slice %944 {offsets = [0, 0], sizes = [1, 512], strides = [1, 1]} : vector<2x1536xf32> to vector<1x512xf32>
    %946 = vector.extract_strided_slice %944 {offsets = [0, 512], sizes = [1, 512], strides = [1, 1]} : vector<2x1536xf32> to vector<1x512xf32>
    %947 = vector.extract_strided_slice %944 {offsets = [1, 1024], sizes = [1, 512], strides = [1, 1]} : vector<2x1536xf32> to vector<1x512xf32>
    %948 = arith.addf %946, %947 : vector<1x512xf32>
    %949 = arith.addf %948, %531 : vector<1x512xf32>
    %950 = vector.extract_strided_slice %949 {offsets = [0, 0], sizes = [1, 128], strides = [1, 1]} : vector<1x512xf32> to vector<1x128xf32>
    %951 = arith.negf %950 : vector<1x128xf32>
    %952 = math.exp %951 : vector<1x128xf32>
    %cst_170 = arith.constant 1.000000e+00 : f32
    %953 = vector.broadcast %cst_170 : f32 to vector<1x128xf32>
    %954 = arith.addf %953, %952 : vector<1x128xf32>
    %955 = arith.divf %953, %954 : vector<1x128xf32>
    %956 = vector.extract_strided_slice %949 {offsets = [0, 128], sizes = [1, 128], strides = [1, 1]} : vector<1x512xf32> to vector<1x128xf32>
    %957 = arith.negf %956 : vector<1x128xf32>
    %958 = math.exp %957 : vector<1x128xf32>
    %cst_171 = arith.constant 1.000000e+00 : f32
    %959 = vector.broadcast %cst_171 : f32 to vector<1x128xf32>
    %960 = arith.addf %959, %958 : vector<1x128xf32>
    %961 = arith.divf %959, %960 : vector<1x128xf32>
    %962 = vector.extract_strided_slice %949 {offsets = [0, 256], sizes = [1, 128], strides = [1, 1]} : vector<1x512xf32> to vector<1x128xf32>
    %963 = math.tanh %962 : vector<1x128xf32>
    %964 = vector.extract_strided_slice %949 {offsets = [0, 384], sizes = [1, 128], strides = [1, 1]} : vector<1x512xf32> to vector<1x128xf32>
    %965 = arith.negf %964 : vector<1x128xf32>
    %966 = math.exp %965 : vector<1x128xf32>
    %cst_172 = arith.constant 1.000000e+00 : f32
    %967 = vector.broadcast %cst_172 : f32 to vector<1x128xf32>
    %968 = arith.addf %967, %966 : vector<1x128xf32>
    %969 = arith.divf %967, %968 : vector<1x128xf32>
    %970 = arith.mulf %961, %909 : vector<1x128xf32>
    %971 = arith.mulf %955, %963 : vector<1x128xf32>
    %972 = arith.addf %970, %971 : vector<1x128xf32>
    %973 = math.tanh %972 : vector<1x128xf32>
    %974 = arith.mulf %969, %973 : vector<1x128xf32>
    %975 = arith.index_cast %c6_i32_163 : i32 to index
    %c0_173 = arith.constant 0 : index
    %976 = vector.load %arg7[%975, %c0_173] : memref<8x128xf32, #tpu.memory_space<vmem>>, vector<1x128xf32>
    tpu.vector_store %arg7[%975, %c0_173], %974 {strides = array<i32>} : memref<8x128xf32, #tpu.memory_space<vmem>>, vector<1x128xf32>,
    %c7_i32_174 = arith.constant 7 : i32
    %977 = arith.addf %535, %945 : vector<1x512xf32>
    %978 = vector.extract_strided_slice %977 {offsets = [0, 0], sizes = [1, 128], strides = [1, 1]} : vector<1x512xf32> to vector<1x128xf32>
    %979 = arith.negf %978 : vector<1x128xf32>
    %980 = math.exp %979 : vector<1x128xf32>
    %cst_175 = arith.constant 1.000000e+00 : f32
    %981 = vector.broadcast %cst_175 : f32 to vector<1x128xf32>
    %982 = arith.addf %981, %980 : vector<1x128xf32>
    %983 = arith.divf %981, %982 : vector<1x128xf32>
    %984 = vector.extract_strided_slice %977 {offsets = [0, 128], sizes = [1, 128], strides = [1, 1]} : vector<1x512xf32> to vector<1x128xf32>
    %985 = arith.negf %984 : vector<1x128xf32>
    %986 = math.exp %985 : vector<1x128xf32>
    %cst_176 = arith.constant 1.000000e+00 : f32
    %987 = vector.broadcast %cst_176 : f32 to vector<1x128xf32>
    %988 = arith.addf %987, %986 : vector<1x128xf32>
    %989 = arith.divf %987, %988 : vector<1x128xf32>
    %990 = vector.extract_strided_slice %977 {offsets = [0, 256], sizes = [1, 128], strides = [1, 1]} : vector<1x512xf32> to vector<1x128xf32>
    %991 = math.tanh %990 : vector<1x128xf32>
    %992 = vector.extract_strided_slice %977 {offsets = [0, 384], sizes = [1, 128], strides = [1, 1]} : vector<1x512xf32> to vector<1x128xf32>
    %993 = arith.negf %992 : vector<1x128xf32>
    %994 = math.exp %993 : vector<1x128xf32>
    %cst_177 = arith.constant 1.000000e+00 : f32
    %995 = vector.broadcast %cst_177 : f32 to vector<1x128xf32>
    %996 = arith.addf %995, %994 : vector<1x128xf32>
    %997 = arith.divf %995, %996 : vector<1x128xf32>
    %998 = arith.mulf %989, %937 : vector<1x128xf32>
    %999 = arith.mulf %983, %991 : vector<1x128xf32>
    %1000 = arith.addf %998, %999 : vector<1x128xf32>
    %1001 = math.tanh %1000 : vector<1x128xf32>
    %1002 = arith.mulf %997, %1001 : vector<1x128xf32>
    %1003 = vector.extract_strided_slice %1002 {offsets = [0, 0], sizes = [1, 64], strides = [1, 1]} : vector<1x128xf32> to vector<1x64xf32>
    %1004 = vector.extract_strided_slice %974 {offsets = [0, 0], sizes = [1, 64], strides = [1, 1]} : vector<1x128xf32> to vector<1x64xf32>
    %1005 = tpu.concatenate %1003, %1004 in 0 : vector<1x64xf32>, vector<1x64xf32> -> vector<2x64xf32>
    %c0_178 = arith.constant 0 : index
    %c0_179 = arith.constant 0 : index
    %1006 = vector.load %arg9[%c0_178, %c0_179] : memref<64x1536xf32, #tpu.memory_space<vmem>>, vector<64x1536xf32>
    %cst_180 = arith.constant dense<0.000000e+00> : vector<2x1536xf32>
    %1007 = tpu.matmul %1005, %1006, %cst_180 {dimension_numbers = #tpu.dot_dimension_numbers<[1], [0], [0], [1], [0, 0, 1, 1], [], []>} : vector<2x64xf32>, vector<64x1536xf32>, vector<2x1536xf32> -> vector<2x1536xf32>
    %1008 = vector.extract_strided_slice %1007 {offsets = [0, 0], sizes = [1, 512], strides = [1, 1]} : vector<2x1536xf32> to vector<1x512xf32>
    %1009 = vector.extract_strided_slice %1007 {offsets = [0, 512], sizes = [1, 512], strides = [1, 1]} : vector<2x1536xf32> to vector<1x512xf32>
    %1010 = vector.extract_strided_slice %1007 {offsets = [1, 1024], sizes = [1, 512], strides = [1, 1]} : vector<2x1536xf32> to vector<1x512xf32>
    %1011 = arith.addf %1009, %1010 : vector<1x512xf32>
    %1012 = arith.addf %1011, %531 : vector<1x512xf32>
    %1013 = vector.extract_strided_slice %1012 {offsets = [0, 0], sizes = [1, 128], strides = [1, 1]} : vector<1x512xf32> to vector<1x128xf32>
    %1014 = arith.negf %1013 : vector<1x128xf32>
    %1015 = math.exp %1014 : vector<1x128xf32>
    %cst_181 = arith.constant 1.000000e+00 : f32
    %1016 = vector.broadcast %cst_181 : f32 to vector<1x128xf32>
    %1017 = arith.addf %1016, %1015 : vector<1x128xf32>
    %1018 = arith.divf %1016, %1017 : vector<1x128xf32>
    %1019 = vector.extract_strided_slice %1012 {offsets = [0, 128], sizes = [1, 128], strides = [1, 1]} : vector<1x512xf32> to vector<1x128xf32>
    %1020 = arith.negf %1019 : vector<1x128xf32>
    %1021 = math.exp %1020 : vector<1x128xf32>
    %cst_182 = arith.constant 1.000000e+00 : f32
    %1022 = vector.broadcast %cst_182 : f32 to vector<1x128xf32>
    %1023 = arith.addf %1022, %1021 : vector<1x128xf32>
    %1024 = arith.divf %1022, %1023 : vector<1x128xf32>
    %1025 = vector.extract_strided_slice %1012 {offsets = [0, 256], sizes = [1, 128], strides = [1, 1]} : vector<1x512xf32> to vector<1x128xf32>
    %1026 = math.tanh %1025 : vector<1x128xf32>
    %1027 = vector.extract_strided_slice %1012 {offsets = [0, 384], sizes = [1, 128], strides = [1, 1]} : vector<1x512xf32> to vector<1x128xf32>
    %1028 = arith.negf %1027 : vector<1x128xf32>
    %1029 = math.exp %1028 : vector<1x128xf32>
    %cst_183 = arith.constant 1.000000e+00 : f32
    %1030 = vector.broadcast %cst_183 : f32 to vector<1x128xf32>
    %1031 = arith.addf %1030, %1029 : vector<1x128xf32>
    %1032 = arith.divf %1030, %1031 : vector<1x128xf32>
    %1033 = arith.mulf %1024, %972 : vector<1x128xf32>
    %1034 = arith.mulf %1018, %1026 : vector<1x128xf32>
    %1035 = arith.addf %1033, %1034 : vector<1x128xf32>
    %1036 = math.tanh %1035 : vector<1x128xf32>
    %1037 = arith.mulf %1032, %1036 : vector<1x128xf32>
    %1038 = arith.index_cast %c7_i32_174 : i32 to index
    %c0_184 = arith.constant 0 : index
    %1039 = vector.load %arg7[%1038, %c0_184] : memref<8x128xf32, #tpu.memory_space<vmem>>, vector<1x128xf32>
    tpu.vector_store %arg7[%1038, %c0_184], %1037 {strides = array<i32>} : memref<8x128xf32, #tpu.memory_space<vmem>>, vector<1x128xf32>,
    %c8_i32_185 = arith.constant 8 : i32
    %c5 = arith.constant 5 : index
    %c0_186 = arith.constant 0 : index
    %1040 = vector.load %arg1[%c5, %c0_186] : memref<8x512xf32, #tpu.memory_space<vmem>>, vector<1x128xf32>
    %c6 = arith.constant 6 : index
    %c0_187 = arith.constant 0 : index
    %1041 = vector.load %arg1[%c6, %c0_187] : memref<8x512xf32, #tpu.memory_space<vmem>>, vector<1x1xf32>
    %c0_188 = arith.constant 0 : index
    %c0_189 = arith.constant 0 : index
    %1042 = vector.load %arg7[%c0_188, %c0_189] : memref<8x128xf32, #tpu.memory_space<vmem>>, vector<8x128xf32>
    %1043 = vector.broadcast %1040 : vector<1x128xf32> to vector<8x128xf32>
    %1044 = arith.mulf %1042, %1043 : vector<8x128xf32>
    %cst_190 = arith.constant dense<0.000000e+00> : vector<8xf32>
    %1045 = vector.multi_reduction <add>, %1044, %cst_190 [1] : vector<8x128xf32> to vector<8xf32>
    %1046 = vector.shape_cast %1045 : vector<8xf32> to vector<8x1xf32>
    %1047 = vector.broadcast %1041 : vector<1x1xf32> to vector<8x1xf32>
    %1048 = arith.addf %1046, %1047 : vector<8x1xf32>
    %c0_191 = arith.constant 0 : index
    %c0_192 = arith.constant 0 : index
    %1049 = vector.load %arg5[%c0_191, %c0_192] : memref<8x1xf32, #tpu.memory_space<vmem>>, vector<8x1xf32>
    tpu.vector_store %arg5[%c0_191, %c0_192], %1048 {strides = array<i32>} : memref<8x1xf32, #tpu.memory_space<vmem>>, vector<8x1xf32>,
    return
  }
}

</mosaic_0001>

<llo_original>
// kernel: recurrent_autoencoder.1
$region0: #{recurrent_autoencoder.1}
  #allocation0 [shape = 'u32[]', space=smem, size = 0x4, offset = 0x4, fixed_abs, tag = 'smem constant byte address 0x4 - core index']
  #allocation1 [shape = 'u32[72,128]{1,0:T(1,128)}', space=vmem, size = 0x9000, scoped, tag = 'internal scratch']
  #allocation2 [shape = 'f32[8,512]{1,0:T(8,128)}', space=vmem, size = 0x4000, scoped, tag = 'scratch operand']
  #allocation3 [shape = 'f32[8,128]{1,0:T(8,128)}', space=vmem, size = 0x1000, scoped, tag = 'scratch operand']
  #allocation4 [shape = 'f32[32,512]{1,0:T(8,128)}', space=vmem, size = 0x10000, scoped, tag = 'scratch operand']
  #allocation5 [shape = 'f32[64,1536]{1,0:T(8,128)}', space=vmem, size = 0x60000, scoped, tag = 'scratch operand']
  #allocation6 [shape = 's32[2]{0}', space=sflag, size = 0x8, scoped, tag = 'scratch operand']
  #allocation11 [shape = 's32[]', space=sflag, size = 0x4, offset = 0, fixed_abs, tag = 'sflag constant byte address 0x0 - dummy sync flag']
  #allocation12 [shape = 's32[]', space=sflag, size = 0x4, offset = 0, fixed_abs, tag = 'sflag constant byte address 0x0 - dummy sync flag']
  #allocation13 [shape = 'u32[]', space=smem, size = 0x4, offset = 0x44, fixed_abs, tag = 'smem constant byte address 0x44 - assertion arg 0']
  #allocation14 [shape = 'u32[]', space=smem, size = 0x4, offset = 0x48, fixed_abs, tag = 'smem constant byte address 0x48 - assertion arg 1']
  #allocation15 [shape = 's32[]', space=sflag, size = 0x4, offset = 0, fixed_abs, tag = 'sflag constant byte address 0x0 - dummy sync flag']
  #allocation16 [shape = 's32[]', space=sflag, size = 0x4, offset = 0, fixed_abs, tag = 'sflag constant byte address 0x0 - dummy sync flag']
  %s0 = inlined_call_operand.vmem [shape: f32[8,1], index: 0, kind: input, shape index: {}]
  %s1 = inlined_call_operand.hbm [shape: f32[8,512], index: 1, kind: input, shape index: {}]
  %s2 = inlined_call_operand.hbm [shape: f32[64,1536], index: 2, kind: input, shape index: {}]
  %s3 = inlined_call_operand.hbm [shape: f32[32,512], index: 3, kind: input, shape index: {}]
  %s4 = inlined_call_operand.hbm [shape: f32[64,1536], index: 4, kind: input, shape index: {}]
  %s5 = inlined_call_operand.vmem [shape: f32[8,1], index: 5, kind: output, shape index: {}]
  %s6 = sld [smem:[#allocation0]]
  $region38: #{recurrent_autoencoder.1} parent=0
    _
  %s8 = ssub.s32 1, %s6
  %s9 = scalar_select 0, %s8, %s6
  $region1: #{recurrent_autoencoder.1} parent=0
    #allocation7 [shape = 'u8[16384]{0}', space=vmem, size = 0x4000, scoped, tag = 'input window, operand 1, single buffered']
    #allocation8 [shape = 's32[1]{0}', space=sflag, size = 0x4, scoped, tag = 'scoped memory for recurrent_autoencoder.1']
    #allocation9 [shape = 'u8[393216]{0}', space=vmem, size = 0x60000, scoped, tag = 'input window, operand 2, single buffered']
    #allocation10 [shape = 's32[1]{0}', space=sflag, size = 0x4, scoped, tag = 'scoped memory for recurrent_autoencoder.1']
    %10 = vsyncpa [#allocation8], 0
    %11 = vsyncpa [#allocation10], 0
    // Predicated region
    $region2: #{recurrent_autoencoder.1} parent=1 // pred_check
      _
    $region3: #{recurrent_autoencoder.1} parent=1 // pred_check_branch
      %13 = sbr.rel (0) target = $region5
    $region4: #{recurrent_autoencoder.1} parent=1 // pred_region
      _
    $region5: #{recurrent_autoencoder.1} parent=1 // pred_fallthru
      _
    // Predicated region
    $region6: #{recurrent_autoencoder.1} parent=1 // pred_check
      _
    $region7: #{recurrent_autoencoder.1} parent=1 // pred_check_branch
      %15 = sbr.rel (0) target = $region9
    $region8: #{recurrent_autoencoder.1} parent=1 // pred_region
      %17 = vsyncadd [#allocation8], 0
      %s19 = sshll.u32 %s1, 4
      %s20 = int_to_ptr.hbm [resolvable:$true] %s19
      %s21 = sshll.u32 [#allocation7], 4
      %s22 = int_to_ptr.vmem [resolvable:$true] %s21
      %24 = dma.hbm_to_vmem [thread:$0]  %s20, 512, %s22, [#allocation8]
    $region9: #{recurrent_autoencoder.1} parent=1 // pred_fallthru
      _
    // Predicated region
    $region10: #{recurrent_autoencoder.1} parent=1 // pred_check
      _
    $region11: #{recurrent_autoencoder.1} parent=1 // pred_check_branch
      %26 = sbr.rel (0) target = $region13
    $region12: #{recurrent_autoencoder.1} parent=1 // pred_region
      %28 = vsyncadd [#allocation10], 0
      %s29 = sshll.u32 %s2, 4
      %s30 = int_to_ptr.hbm [resolvable:$true] %s29
      %s31 = sshll.u32 [#allocation9], 4
      %s32 = int_to_ptr.vmem [resolvable:$true] %s31
      %37 = dma.hbm_to_vmem [thread:$0]  %s30, 12288, %s32, [#allocation10], 1536, 1536, 96
    $region13: #{recurrent_autoencoder.1} parent=1 // pred_fallthru
      _
    // Predicated region
    $region14: #{recurrent_autoencoder.1} parent=1 // pred_check
      _
    $region15: #{recurrent_autoencoder.1} parent=1 // pred_check_branch
      %39 = sbr.rel (0) target = $region17
    $region16: #{recurrent_autoencoder.1} parent=1 // pred_region
      %41 = dma.done [#allocation8], 512
    $region17: #{recurrent_autoencoder.1} parent=1 // pred_fallthru
      _
    // Predicated region
    $region18: #{recurrent_autoencoder.1} parent=1 // pred_check
      _
    $region19: #{recurrent_autoencoder.1} parent=1 // pred_check_branch
      %43 = sbr.rel (0) target = $region21
    $region20: #{recurrent_autoencoder.1} parent=1 // pred_region
      %45 = dma.done [#allocation10], 12288
    $region21: #{recurrent_autoencoder.1} parent=1 // pred_fallthru
      _
    // Predicated region
    $region22: #{recurrent_autoencoder.1} parent=1 // pred_check
      _
    $region23: #{recurrent_autoencoder.1} parent=1 // pred_check_branch
      %47 = sbr.rel target = $region25
    $region24: #{recurrent_autoencoder.1} parent=1 // pred_region
      %48 = sst [smem:[#allocation13]] [#allocation12]
      %49 = sst [smem:[#allocation14]] [#allocation11]
    $region25: #{recurrent_autoencoder.1} parent=1 // pred_fallthru
      _
    %51 = shalt.err (0)
    %s53 = sshll.u32 %s3, 4
    %s54 = int_to_ptr.hbm [resolvable:$true] %s53
    %s55 = sshll.u32 [#allocation4], 4
    %s56 = int_to_ptr.vmem [resolvable:$true] %s55
    %58 = dma.hbm_to_vmem [thread:$0]  %s54, 2048, %s56, [#allocation6]
    %s59 = scalar_lea.sflag [#allocation6], 1
    // Predicated region
    $region26: #{recurrent_autoencoder.1} parent=1 // pred_check
      _
    $region27: #{recurrent_autoencoder.1} parent=1 // pred_check_branch
      %61 = sbr.rel target = $region29
    $region28: #{recurrent_autoencoder.1} parent=1 // pred_region
      %62 = sst [smem:[#allocation13]] [#allocation16]
      %63 = sst [smem:[#allocation14]] [#allocation15]
    $region29: #{recurrent_autoencoder.1} parent=1 // pred_fallthru
      _
    %65 = shalt.err (0)
    %s67 = sshll.u32 %s4, 4
    %s68 = int_to_ptr.hbm [resolvable:$true] %s67
    %s69 = sshll.u32 [#allocation5], 4
    %s70 = int_to_ptr.vmem [resolvable:$true] %s69
    %72 = dma.hbm_to_vmem [thread:$0]  %s68, 12288, %s70, %s59
    %v73 = vld [vmem:[#allocation7] ss:$8 sm:$0xf]
    %s74 = scalar_lea.vmem [#allocation7], 1
    %v75 = vld [vmem:[%s74] ss:$8 sm:$0xf]
    %s76 = scalar_lea.vmem [#allocation7], 2
    %v77 = vld [vmem:[%s76] ss:$8 sm:$0xf]
    %v78 = vld [vmem:[%s0] sm:$0xff]
    %80 = vset.pattern.permute.xlu0 0
    %81 = vperm.xlu0 %80, %v78
    %v82 = vpop.permute.xlu0 %81
    %v85 = vperm.slane %v73, 0
    %v86 = vperm.slane %v73, 1
    %v87 = vperm.slane %v73, 2
    %v88 = vperm.slane %v73, 3
    %v93 = vmul.f32 %v82, %v85
    %v94 = vmul.f32 %v82, %v86
    %v95 = vmul.f32 %v82, %v87
    %v96 = vmul.f32 %v82, %v88
    %97 = vst [vmem:[#allocation2] sm:$0xff] %v93
    %98 = vst [vmem:[#allocation2 + $0x8] sm:$0xff] %v94
    %99 = vst [vmem:[#allocation2 + $0x10] sm:$0xff] %v95
    %100 = vst [vmem:[#allocation2 + $0x18] sm:$0xff] %v96
    %v101 = vld [vmem:[#allocation2] ss:$8 sm:$0xf]
    %v102 = vadd.f32 %v101, 0.0
    %v103 = vadd.f32 %v102, %v75
    %v104 = vxor.u32 %v103, 2147483648
    %v105 = vmul.f32 %v104, 1.442695
    %v106 = vpow.pop %v105
    %v107 = vadd.f32 %v106, 1.0
    %v108 = vrcp.pop %v107
    %v109 = vmul.f32 %v107, %v108
    %v110 = vsub.f32 1.0, %v109
    %v111 = vmul.f32 %v108, %v110
    %v112 = vadd.f32 %v108, %v111
    %vm113 = vweird.f32 %v107
    %vm114 = vweird.f32 %v108
    %vm115 = vmor %vm113, %vm114
    %v116 = vsel %vm115, %v108, %v112
    %v117 = vand.u32 2147483647, %v107
    %vm118 = vcmp.eq.f32.partialorder %v117, 8.507059e+37
    %v119 = vand.u32 %v107, 2147483648
    %v120 = vor.u32 1.1754944e-38, %v119
    %v121 = vsel %vm118, %v120, %v116
    %v122 = vmul.f32 1.0, %v121
    %v124 = vrot.slane %v103, 1
    %v126 = vxor.u32 %v124, 2147483648
    %v127 = vmul.f32 %v126, 1.442695
    %v128 = vpow.pop %v127
    %v129 = vadd.f32 %v128, 1.0
    %v130 = vrcp.pop %v129
    %v131 = vmul.f32 %v129, %v130
    %v132 = vsub.f32 1.0, %v131
    %v133 = vmul.f32 %v130, %v132
    %v134 = vadd.f32 %v130, %v133
    %vm135 = vweird.f32 %v129
    %vm136 = vweird.f32 %v130
    %vm137 = vmor %vm135, %vm136
    %v138 = vsel %vm137, %v130, %v134
    %v139 = vand.u32 2147483647, %v129
    %vm140 = vcmp.eq.f32.partialorder %v139, 8.507059e+37
    %v141 = vand.u32 %v129, 2147483648
    %v142 = vor.u32 1.1754944e-38, %v141
    %v143 = vsel %vm140, %v142, %v138
    %v144 = vmul.f32 1.0, %v143
    %v145 = vrot.slane %v103, 2
    %v147 = vtanh.pop %v145
    %v148 = vrot.slane %v103, 3
    %v150 = vxor.u32 %v148, 2147483648
    %v151 = vmul.f32 %v150, 1.442695
    %v152 = vpow.pop %v151
    %v153 = vadd.f32 %v152, 1.0
    %v154 = vrcp.pop %v153
    %v155 = vmul.f32 %v153, %v154
    %v156 = vsub.f32 1.0, %v155
    %v157 = vmul.f32 %v154, %v156
    %v158 = vadd.f32 %v154, %v157
    %vm159 = vweird.f32 %v153
    %vm160 = vweird.f32 %v154
    %vm161 = vmor %vm159, %vm160
    %v162 = vsel %vm161, %v154, %v158
    %v163 = vand.u32 2147483647, %v153
    %vm164 = vcmp.eq.f32.partialorder %v163, 8.507059e+37
    %v165 = vand.u32 %v153, 2147483648
    %v166 = vor.u32 1.1754944e-38, %v165
    %v167 = vsel %vm164, %v166, %v162
    %v168 = vmul.f32 1.0, %v167
    %v169 = vmul.f32 %v144, 0.0
    %v170 = vmul.f32 %v122, %v147
    %v171 = vadd.f32 %v169, %v170
    %v172 = vtanh.pop %v171
    %v173 = vmul.f32 %v168, %v172
    %vm174 = vcmask 1040384
    %v175 = vsel %vm174, %v173, 0.0
    %v176 = vld [vmem:[#allocation9] sm:$0xff]
    %v177 = vld [vmem:[#allocation9 + $0x8] sm:$0xff]
    %v178 = vld [vmem:[#allocation9 + $0x10] sm:$0xff]
    %v179 = vld [vmem:[#allocation9 + $0x18] sm:$0xff]
    %v180 = vld [vmem:[#allocation9 + $0x20] sm:$0xff]
    %v181 = vld [vmem:[#allocation9 + $0x28] sm:$0xff]
    %v182 = vld [vmem:[#allocation9 + $0x30] sm:$0xff]
    %v183 = vld [vmem:[#allocation9 + $0x38] sm:$0xff]
    %v184 = vld [vmem:[#allocation9 + $0x40] sm:$0xff]
    %v185 = vld [vmem:[#allocation9 + $0x48] sm:$0xff]
    %v186 = vld [vmem:[#allocation9 + $0x50] sm:$0xff]
    %v187 = vld [vmem:[#allocation9 + $0x58] sm:$0xff]
    %v188 = vld [vmem:[#allocation9 + $0x60] sm:$0xff]
    %v189 = vld [vmem:[#allocation9 + $0x68] sm:$0xff]
    %v190 = vld [vmem:[#allocation9 + $0x70] sm:$0xff]
    %v191 = vld [vmem:[#allocation9 + $0x78] sm:$0xff]
    %v192 = vld [vmem:[#allocation9 + $0x80] sm:$0xff]
    %v193 = vld [vmem:[#allocation9 + $0x88] sm:$0xff]
    %v194 = vld [vmem:[#allocation9 + $0x90] sm:$0xff]
    %v195 = vld [vmem:[#allocation9 + $0x98] sm:$0xff]
    %v196 = vld [vmem:[#allocation9 + $0xa0] sm:$0xff]
    %v197 = vld [vmem:[#allocation9 + $0xa8] sm:$0xff]
    %v198 = vld [vmem:[#allocation9 + $0xb0] sm:$0xff]
    %v199 = vld [vmem:[#allocation9 + $0xb8] sm:$0xff]
    %v200 = vld [vmem:[#allocation9 + $0xc0] sm:$0xff]
    %v201 = vld [vmem:[#allocation9 + $0xc8] sm:$0xff]
    %v202 = vld [vmem:[#allocation9 + $0xd0] sm:$0xff]
    %v203 = vld [vmem:[#allocation9 + $0xd8] sm:$0xff]
    %v204 = vld [vmem:[#allocation9 + $0xe0] sm:$0xff]
    %v205 = vld [vmem:[#allocation9 + $0xe8] sm:$0xff]
    %v206 = vld [vmem:[#allocation9 + $0xf0] sm:$0xff]
    %v207 = vld [vmem:[#allocation9 + $0xf8] sm:$0xff]
    %v208 = vld [vmem:[#allocation9 + $0x100] sm:$0xff]
    %v209 = vld [vmem:[#allocation9 + $0x108] sm:$0xff]
    %v210 = vld [vmem:[#allocation9 + $0x110] sm:$0xff]
    %v211 = vld [vmem:[#allocation9 + $0x118] sm:$0xff]
    %v212 = vld [vmem:[#allocation9 + $0x120] sm:$0xff]
    %v213 = vld [vmem:[#allocation9 + $0x128] sm:$0xff]
    %v214 = vld [vmem:[#allocation9 + $0x130] sm:$0xff]
    %v215 = vld [vmem:[#allocation9 + $0x138] sm:$0xff]
    %v216 = vld [vmem:[#allocation9 + $0x140] sm:$0xff]
    %v217 = vld [vmem:[#allocation9 + $0x148] sm:$0xff]
    %v218 = vld [vmem:[#allocation9 + $0x150] sm:$0xff]
    %v219 = vld [vmem:[#allocation9 + $0x158] sm:$0xff]
    %v220 = vld [vmem:[#allocation9 + $0x160] sm:$0xff]
    %v221 = vld [vmem:[#allocation9 + $0x168] sm:$0xff]
    %v222 = vld [vmem:[#allocation9 + $0x170] sm:$0xff]
    %v223 = vld [vmem:[#allocation9 + $0x178] sm:$0xff]
    %v224 = vld [vmem:[#allocation9 + $0x180] sm:$0xff]
    %v225 = vld [vmem:[#allocation9 + $0x188] sm:$0xff]
    %v226 = vld [vmem:[#allocation9 + $0x190] sm:$0xff]
    %v227 = vld [vmem:[#allocation9 + $0x198] sm:$0xff]
    %v228 = vld [vmem:[#allocation9 + $0x1a0] sm:$0xff]
    %v229 = vld [vmem:[#allocation9 + $0x1a8] sm:$0xff]
    %v230 = vld [vmem:[#allocation9 + $0x1b0] sm:$0xff]
    %v231 = vld [vmem:[#allocation9 + $0x1b8] sm:$0xff]
    %v232 = vld [vmem:[#allocation9 + $0x1c0] sm:$0xff]
    %v233 = vld [vmem:[#allocation9 + $0x1c8] sm:$0xff]
    %v234 = vld [vmem:[#allocation9 + $0x1d0] sm:$0xff]
    %v235 = vld [vmem:[#allocation9 + $0x1d8] sm:$0xff]
    %v236 = vld [vmem:[#allocation9 + $0x1e0] sm:$0xff]
    %v237 = vld [vmem:[#allocation9 + $0x1e8] sm:$0xff]
    %v238 = vld [vmem:[#allocation9 + $0x1f0] sm:$0xff]
    %v239 = vld [vmem:[#allocation9 + $0x1f8] sm:$0xff]
    %v240 = vld [vmem:[#allocation9 + $0x200] sm:$0xff]
    %v241 = vld [vmem:[#allocation9 + $0x208] sm:$0xff]
    %v242 = vld [vmem:[#allocation9 + $0x210] sm:$0xff]
    %v243 = vld [vmem:[#allocation9 + $0x218] sm:$0xff]
    %v244 = vld [vmem:[#allocation9 + $0x220] sm:$0xff]
    %v245 = vld [vmem:[#allocation9 + $0x228] sm:$0xff]
    %v246 = vld [vmem:[#allocation9 + $0x230] sm:$0xff]
    %v247 = vld [vmem:[#allocation9 + $0x238] sm:$0xff]
    %v248 = vld [vmem:[#allocation9 + $0x240] sm:$0xff]
    %v249 = vld [vmem:[#allocation9 + $0x248] sm:$0xff]
    %v250 = vld [vmem:[#allocation9 + $0x250] sm:$0xff]
    %v251 = vld [vmem:[#allocation9 + $0x258] sm:$0xff]
    %v252 = vld [vmem:[#allocation9 + $0x260] sm:$0xff]
    %v253 = vld [vmem:[#allocation9 + $0x268] sm:$0xff]
    %v254 = vld [vmem:[#allocation9 + $0x270] sm:$0xff]
    %v255 = vld [vmem:[#allocation9 + $0x278] sm:$0xff]
    %v256 = vld [vmem:[#allocation9 + $0x280] sm:$0xff]
    %v257 = vld [vmem:[#allocation9 + $0x288] sm:$0xff]
    %v258 = vld [vmem:[#allocation9 + $0x290] sm:$0xff]
    %v259 = vld [vmem:[#allocation9 + $0x298] sm:$0xff]
    %v260 = vld [vmem:[#allocation9 + $0x2a0] sm:$0xff]
    %v261 = vld [vmem:[#allocation9 + $0x2a8] sm:$0xff]
    %v262 = vld [vmem:[#allocation9 + $0x2b0] sm:$0xff]
    %v263 = vld [vmem:[#allocation9 + $0x2b8] sm:$0xff]
    %v264 = vld [vmem:[#allocation9 + $0x2c0] sm:$0xff]
    %v265 = vld [vmem:[#allocation9 + $0x2c8] sm:$0xff]
    %v266 = vld [vmem:[#allocation9 + $0x2d0] sm:$0xff]
    %v267 = vld [vmem:[#allocation9 + $0x2d8] sm:$0xff]
    %v268 = vld [vmem:[#allocation9 + $0x2e0] sm:$0xff]
    %v269 = vld [vmem:[#allocation9 + $0x2e8] sm:$0xff]
    %v270 = vld [vmem:[#allocation9 + $0x2f0] sm:$0xff]
    %v271 = vld [vmem:[#allocation9 + $0x2f8] sm:$0xff]
    %vm272 = vcmask 523264
    %v274 = vsel %vm272, %v175, 0
    %276 = vmatpush.msra.mxu0 0.0
    %277 = vmatpush.msra.mxu0 0.0
    %278 = vmatpush.msra.mxu0 0.0
    %279 = vmatpush.msra.mxu0 0.0
    %280 = vmatpush.msra.mxu0 0.0
    %281 = vmatpush.msra.mxu0 0.0
    %282 = vmatpush.msra.mxu0 0.0
    %283 = vmatpush.msra.mxu0 0.0
    %284 = vmatpush.msra.mxu0 %v260
    %285 = vmatpush.msra.mxu0 %v248
    %286 = vmatpush.msra.mxu0 %v236
    %287 = vmatpush.msra.mxu0 %v224
    %288 = vmatpush.msra.mxu0 %v212
    %289 = vmatpush.msra.mxu0 %v200
    %290 = vmatpush.msra.mxu0 %v188
    %291 = vmatpush.msra.mxu0 %v176
    %292 = vmatmul.f32.gmra.mxu0 %v274
    %v293 = vpop.f32.mrf.mxu0
    %v294 = vadd.f32 0.0, %v293
    %295 = vdwg.mxu0
    %296 = vmatpush.msra.mxu0 0.0
    %297 = vmatpush.msra.mxu0 0.0
    %298 = vmatpush.msra.mxu0 0.0
    %299 = vmatpush.msra.mxu0 0.0
    %300 = vmatpush.msra.mxu0 0.0
    %301 = vmatpush.msra.mxu0 0.0
    %302 = vmatpush.msra.mxu0 0.0
    %303 = vmatpush.msra.mxu0 0.0
    %304 = vmatpush.msra.mxu0 %v261
    %305 = vmatpush.msra.mxu0 %v249
    %306 = vmatpush.msra.mxu0 %v237
    %307 = vmatpush.msra.mxu0 %v225
    %308 = vmatpush.msra.mxu0 %v213
    %309 = vmatpush.msra.mxu0 %v201
    %310 = vmatpush.msra.mxu0 %v189
    %311 = vmatpush.msra.mxu0 %v177
    %312 = vmatmul.f32.gmra.mxu0 %v274
    %v313 = vpop.f32.mrf.mxu0
    %v314 = vadd.f32 0.0, %v313
    %315 = vdwg.mxu0
    %316 = vmatpush.msra.mxu0 0.0
    %317 = vmatpush.msra.mxu0 0.0
    %318 = vmatpush.msra.mxu0 0.0
    %319 = vmatpush.msra.mxu0 0.0
    %320 = vmatpush.msra.mxu0 0.0
    %321 = vmatpush.msra.mxu0 0.0
    %322 = vmatpush.msra.mxu0 0.0
    %323 = vmatpush.msra.mxu0 0.0
    %324 = vmatpush.msra.mxu0 %v262
    %325 = vmatpush.msra.mxu0 %v250
    %326 = vmatpush.msra.mxu0 %v238
    %327 = vmatpush.msra.mxu0 %v226
    %328 = vmatpush.msra.mxu0 %v214
    %329 = vmatpush.msra.mxu0 %v202
    %330 = vmatpush.msra.mxu0 %v190
    %331 = vmatpush.msra.mxu0 %v178
    %332 = vmatmul.f32.gmra.mxu0 %v274
    %v333 = vpop.f32.mrf.mxu0
    %v334 = vadd.f32 0.0, %v333
    %335 = vdwg.mxu0
    %336 = vmatpush.msra.mxu0 0.0
    %337 = vmatpush.msra.mxu0 0.0
    %338 = vmatpush.msra.mxu0 0.0
    %339 = vmatpush.msra.mxu0 0.0
    %340 = vmatpush.msra.mxu0 0.0
    %341 = vmatpush.msra.mxu0 0.0
    %342 = vmatpush.msra.mxu0 0.0
    %343 = vmatpush.msra.mxu0 0.0
    %344 = vmatpush.msra.mxu0 %v263
    %345 = vmatpush.msra.mxu0 %v251
    %346 = vmatpush.msra.mxu0 %v239
    %347 = vmatpush.msra.mxu0 %v227
    %348 = vmatpush.msra.mxu0 %v215
    %349 = vmatpush.msra.mxu0 %v203
    %350 = vmatpush.msra.mxu0 %v191
    %351 = vmatpush.msra.mxu0 %v179
    %352 = vmatmul.f32.gmra.mxu0 %v274
    %v353 = vpop.f32.mrf.mxu0
    %v354 = vadd.f32 0.0, %v353
    %355 = vdwg.mxu0
    %356 = vmatpush.msra.mxu0 0.0
    %357 = vmatpush.msra.mxu0 0.0
    %358 = vmatpush.msra.mxu0 0.0
    %359 = vmatpush.msra.mxu0 0.0
    %360 = vmatpush.msra.mxu0 0.0
    %361 = vmatpush.msra.mxu0 0.0
    %362 = vmatpush.msra.mxu0 0.0
    %363 = vmatpush.msra.mxu0 0.0
    %364 = vmatpush.msra.mxu0 %v264
    %365 = vmatpush.msra.mxu0 %v252
    %366 = vmatpush.msra.mxu0 %v240
    %367 = vmatpush.msra.mxu0 %v228
    %368 = vmatpush.msra.mxu0 %v216
    %369 = vmatpush.msra.mxu0 %v204
    %370 = vmatpush.msra.mxu0 %v192
    %371 = vmatpush.msra.mxu0 %v180
    %372 = vmatmul.f32.gmra.mxu0 %v274
    %v373 = vpop.f32.mrf.mxu0
    %v374 = vadd.f32 0.0, %v373
    %375 = vdwg.mxu0
    %376 = vmatpush.msra.mxu0 0.0
    %377 = vmatpush.msra.mxu0 0.0
    %378 = vmatpush.msra.mxu0 0.0
    %379 = vmatpush.msra.mxu0 0.0
    %380 = vmatpush.msra.mxu0 0.0
    %381 = vmatpush.msra.mxu0 0.0
    %382 = vmatpush.msra.mxu0 0.0
    %383 = vmatpush.msra.mxu0 0.0
    %384 = vmatpush.msra.mxu0 %v265
    %385 = vmatpush.msra.mxu0 %v253
    %386 = vmatpush.msra.mxu0 %v241
    %387 = vmatpush.msra.mxu0 %v229
    %388 = vmatpush.msra.mxu0 %v217
    %389 = vmatpush.msra.mxu0 %v205
    %390 = vmatpush.msra.mxu0 %v193
    %391 = vmatpush.msra.mxu0 %v181
    %392 = vmatmul.f32.gmra.mxu0 %v274
    %v393 = vpop.f32.mrf.mxu0
    %v394 = vadd.f32 0.0, %v393
    %395 = vdwg.mxu0
    %396 = vmatpush.msra.mxu0 0.0
    %397 = vmatpush.msra.mxu0 0.0
    %398 = vmatpush.msra.mxu0 0.0
    %399 = vmatpush.msra.mxu0 0.0
    %400 = vmatpush.msra.mxu0 0.0
    %401 = vmatpush.msra.mxu0 0.0
    %402 = vmatpush.msra.mxu0 0.0
    %403 = vmatpush.msra.mxu0 0.0
    %404 = vmatpush.msra.mxu0 %v266
    %405 = vmatpush.msra.mxu0 %v254
    %406 = vmatpush.msra.mxu0 %v242
    %407 = vmatpush.msra.mxu0 %v230
    %408 = vmatpush.msra.mxu0 %v218
    %409 = vmatpush.msra.mxu0 %v206
    %410 = vmatpush.msra.mxu0 %v194
    %411 = vmatpush.msra.mxu0 %v182
    %412 = vmatmul.f32.gmra.mxu0 %v274
    %v413 = vpop.f32.mrf.mxu0
    %v414 = vadd.f32 0.0, %v413
    %415 = vdwg.mxu0
    %416 = vmatpush.msra.mxu0 0.0
    %417 = vmatpush.msra.mxu0 0.0
    %418 = vmatpush.msra.mxu0 0.0
    %419 = vmatpush.msra.mxu0 0.0
    %420 = vmatpush.msra.mxu0 0.0
    %421 = vmatpush.msra.mxu0 0.0
    %422 = vmatpush.msra.mxu0 0.0
    %423 = vmatpush.msra.mxu0 0.0
    %424 = vmatpush.msra.mxu0 %v267
    %425 = vmatpush.msra.mxu0 %v255
    %426 = vmatpush.msra.mxu0 %v243
    %427 = vmatpush.msra.mxu0 %v231
    %428 = vmatpush.msra.mxu0 %v219
    %429 = vmatpush.msra.mxu0 %v207
    %430 = vmatpush.msra.mxu0 %v195
    %431 = vmatpush.msra.mxu0 %v183
    %432 = vmatmul.f32.gmra.mxu0 %v274
    %v433 = vpop.f32.mrf.mxu0
    %v434 = vadd.f32 0.0, %v433
    %435 = vdwg.mxu0
    %436 = vmatpush.msra.mxu0 0.0
    %437 = vmatpush.msra.mxu0 0.0
    %438 = vmatpush.msra.mxu0 0.0
    %439 = vmatpush.msra.mxu0 0.0
    %440 = vmatpush.msra.mxu0 0.0
    %441 = vmatpush.msra.mxu0 0.0
    %442 = vmatpush.msra.mxu0 0.0
    %443 = vmatpush.msra.mxu0 0.0
    %444 = vmatpush.msra.mxu0 %v268
    %445 = vmatpush.msra.mxu0 %v256
    %446 = vmatpush.msra.mxu0 %v244
    %447 = vmatpush.msra.mxu0 %v232
    %448 = vmatpush.msra.mxu0 %v220
    %449 = vmatpush.msra.mxu0 %v208
    %450 = vmatpush.msra.mxu0 %v196
    %451 = vmatpush.msra.mxu0 %v184
    %452 = vmatmul.f32.gmra.mxu0 %v274
    %v453 = vpop.f32.mrf.mxu0
    %v454 = vadd.f32 0.0, %v453
    %455 = vdwg.mxu0
    %456 = vmatpush.msra.mxu0 0.0
    %457 = vmatpush.msra.mxu0 0.0
    %458 = vmatpush.msra.mxu0 0.0
    %459 = vmatpush.msra.mxu0 0.0
    %460 = vmatpush.msra.mxu0 0.0
    %461 = vmatpush.msra.mxu0 0.0
    %462 = vmatpush.msra.mxu0 0.0
    %463 = vmatpush.msra.mxu0 0.0
    %464 = vmatpush.msra.mxu0 %v269
    %465 = vmatpush.msra.mxu0 %v257
    %466 = vmatpush.msra.mxu0 %v245
    %467 = vmatpush.msra.mxu0 %v233
    %468 = vmatpush.msra.mxu0 %v221
    %469 = vmatpush.msra.mxu0 %v209
    %470 = vmatpush.msra.mxu0 %v197
    %471 = vmatpush.msra.mxu0 %v185
    %472 = vmatmul.f32.gmra.mxu0 %v274
    %v473 = vpop.f32.mrf.mxu0
    %v474 = vadd.f32 0.0, %v473
    %475 = vdwg.mxu0
    %476 = vmatpush.msra.mxu0 0.0
    %477 = vmatpush.msra.mxu0 0.0
    %478 = vmatpush.msra.mxu0 0.0
    %479 = vmatpush.msra.mxu0 0.0
    %480 = vmatpush.msra.mxu0 0.0
    %481 = vmatpush.msra.mxu0 0.0
    %482 = vmatpush.msra.mxu0 0.0
    %483 = vmatpush.msra.mxu0 0.0
    %484 = vmatpush.msra.mxu0 %v270
    %485 = vmatpush.msra.mxu0 %v258
    %486 = vmatpush.msra.mxu0 %v246
    %487 = vmatpush.msra.mxu0 %v234
    %488 = vmatpush.msra.mxu0 %v222
    %489 = vmatpush.msra.mxu0 %v210
    %490 = vmatpush.msra.mxu0 %v198
    %491 = vmatpush.msra.mxu0 %v186
    %492 = vmatmul.f32.gmra.mxu0 %v274
    %v493 = vpop.f32.mrf.mxu0
    %v494 = vadd.f32 0.0, %v493
    %495 = vdwg.mxu0
    %496 = vmatpush.msra.mxu0 0.0
    %497 = vmatpush.msra.mxu0 0.0
    %498 = vmatpush.msra.mxu0 0.0
    %499 = vmatpush.msra.mxu0 0.0
    %500 = vmatpush.msra.mxu0 0.0
    %501 = vmatpush.msra.mxu0 0.0
    %502 = vmatpush.msra.mxu0 0.0
    %503 = vmatpush.msra.mxu0 0.0
    %504 = vmatpush.msra.mxu0 %v271
    %505 = vmatpush.msra.mxu0 %v259
    %506 = vmatpush.msra.mxu0 %v247
    %507 = vmatpush.msra.mxu0 %v235
    %508 = vmatpush.msra.mxu0 %v223
    %509 = vmatpush.msra.mxu0 %v211
    %510 = vmatpush.msra.mxu0 %v199
    %511 = vmatpush.msra.mxu0 %v187
    %512 = vmatmul.f32.gmra.mxu0 %v274
    %v513 = vpop.f32.mrf.mxu0
    %v514 = vadd.f32 0.0, %v513
    %515 = vdwg.mxu0
    %v520 = vrot.slane %v454, 1
    %v521 = vrot.slane %v474, 1
    %v522 = vrot.slane %v494, 1
    %v523 = vrot.slane %v514, 1
    %v528 = vadd.f32 %v374, %v520
    %v529 = vadd.f32 %v394, %v521
    %v530 = vadd.f32 %v414, %v522
    %v531 = vadd.f32 %v434, %v523
    %v533 = vperm.slane %v77, 0
    %v534 = vperm.slane %v77, 1
    %v535 = vperm.slane %v77, 2
    %v536 = vperm.slane %v77, 3
    %v541 = vadd.f32 %v528, %v533
    %v542 = vadd.f32 %v529, %v534
    %v543 = vadd.f32 %v530, %v535
    %v544 = vadd.f32 %v531, %v536
    %v545 = vxor.u32 %v541, 2147483648
    %v546 = vmul.f32 %v545, 1.442695
    %v547 = vpow.pop %v546
    %v548 = vadd.f32 %v547, 1.0
    %v549 = vrcp.pop %v548
    %v550 = vmul.f32 %v548, %v549
    %v551 = vsub.f32 1.0, %v550
    %v552 = vmul.f32 %v549, %v551
    %v553 = vadd.f32 %v549, %v552
    %vm554 = vweird.f32 %v548
    %vm555 = vweird.f32 %v549
    %vm556 = vmor %vm554, %vm555
    %v557 = vsel %vm556, %v549, %v553
    %v558 = vand.u32 2147483647, %v548
    %vm559 = vcmp.eq.f32.partialorder %v558, 8.507059e+37
    %v560 = vand.u32 %v548, 2147483648
    %v561 = vor.u32 1.1754944e-38, %v560
    %v562 = vsel %vm559, %v561, %v557
    %v563 = vmul.f32 1.0, %v562
    %v564 = vxor.u32 %v542, 2147483648
    %v565 = vmul.f32 %v564, 1.442695
    %v566 = vpow.pop %v565
    %v567 = vadd.f32 %v566, 1.0
    %v568 = vrcp.pop %v567
    %v569 = vmul.f32 %v567, %v568
    %v570 = vsub.f32 1.0, %v569
    %v571 = vmul.f32 %v568, %v570
    %v572 = vadd.f32 %v568, %v571
    %vm573 = vweird.f32 %v567
    %vm574 = vweird.f32 %v568
    %vm575 = vmor %vm573, %vm574
    %v576 = vsel %vm575, %v568, %v572
    %v577 = vand.u32 2147483647, %v567
    %vm578 = vcmp.eq.f32.partialorder %v577, 8.507059e+37
    %v579 = vand.u32 %v567, 2147483648
    %v580 = vor.u32 1.1754944e-38, %v579
    %v581 = vsel %vm578, %v580, %v576
    %v582 = vmul.f32 1.0, %v581
    %v583 = vtanh.pop %v543
    %v584 = vxor.u32 %v544, 2147483648
    %v585 = vmul.f32 %v584, 1.442695
    %v586 = vpow.pop %v585
    %v587 = vadd.f32 %v586, 1.0
    %v588 = vrcp.pop %v587
    %v589 = vmul.f32 %v587, %v588
    %v590 = vsub.f32 1.0, %v589
    %v591 = vmul.f32 %v588, %v590
    %v592 = vadd.f32 %v588, %v591
    %vm593 = vweird.f32 %v587
    %vm594 = vweird.f32 %v588
    %vm595 = vmor %vm593, %vm594
    %v596 = vsel %vm595, %v588, %v592
    %v597 = vand.u32 2147483647, %v587
    %vm598 = vcmp.eq.f32.partialorder %v597, 8.507059e+37
    %v599 = vand.u32 %v587, 2147483648
    %v600 = vor.u32 1.1754944e-38, %v599
    %v601 = vsel %vm598, %v600, %v596
    %v602 = vmul.f32 1.0, %v601
    %v603 = vmul.f32 %v582, 0.0
    %v604 = vmul.f32 %v563, %v583
    %v605 = vadd.f32 %v603, %v604
    %v606 = vtanh.pop %v605
    %v607 = vmul.f32 %v602, %v606
    %s608 = scalar_lea.vmem [#allocation2], 1
    %v609 = vld [vmem:[%s608] ss:$8 sm:$0xf]
    %v614 = vrot.slane %v314, 7
    %v615 = vrot.slane %v334, 6
    %v616 = vrot.slane %v354, 5
    %v617 = vsel %vm174, %v294, %v614
    %vm618 = vcmask 1042434
    %v619 = vsel %vm618, %v615, %v616
    %vm620 = vcmask 1041408
    %v621 = vsel %vm620, %v617, %v619
    %v623 = vadd.f32 %v609, %v621
    %v624 = vadd.f32 %v623, %v75
    %v625 = vxor.u32 %v624, 2147483648
    %v626 = vmul.f32 %v625, 1.442695
    %v627 = vpow.pop %v626
    %v628 = vadd.f32 %v627, 1.0
    %v629 = vrcp.pop %v628
    %v630 = vmul.f32 %v628, %v629
    %v631 = vsub.f32 1.0, %v630
    %v632 = vmul.f32 %v629, %v631
    %v633 = vadd.f32 %v629, %v632
    %vm634 = vweird.f32 %v628
    %vm635 = vweird.f32 %v629
    %vm636 = vmor %vm634, %vm635
    %v637 = vsel %vm636, %v629, %v633
    %v638 = vand.u32 2147483647, %v628
    %vm639 = vcmp.eq.f32.partialorder %v638, 8.507059e+37
    %v640 = vand.u32 %v628, 2147483648
    %v641 = vor.u32 1.1754944e-38, %v640
    %v642 = vsel %vm639, %v641, %v637
    %v643 = vmul.f32 1.0, %v642
    %v645 = vrot.slane %v624, 1
    %v647 = vxor.u32 %v645, 2147483648
    %v648 = vmul.f32 %v647, 1.442695
    %v649 = vpow.pop %v648
    %v650 = vadd.f32 %v649, 1.0
    %v651 = vrcp.pop %v650
    %v652 = vmul.f32 %v650, %v651
    %v653 = vsub.f32 1.0, %v652
    %v654 = vmul.f32 %v651, %v653
    %v655 = vadd.f32 %v651, %v654
    %vm656 = vweird.f32 %v650
    %vm657 = vweird.f32 %v651
    %vm658 = vmor %vm656, %vm657
    %v659 = vsel %vm658, %v651, %v655
    %v660 = vand.u32 2147483647, %v650
    %vm661 = vcmp.eq.f32.partialorder %v660, 8.507059e+37
    %v662 = vand.u32 %v650, 2147483648
    %v663 = vor.u32 1.1754944e-38, %v662
    %v664 = vsel %vm661, %v663, %v659
    %v665 = vmul.f32 1.0, %v664
    %v666 = vrot.slane %v624, 2
    %v668 = vtanh.pop %v666
    %v669 = vrot.slane %v624, 3
    %v671 = vxor.u32 %v669, 2147483648
    %v672 = vmul.f32 %v671, 1.442695
    %v673 = vpow.pop %v672
    %v674 = vadd.f32 %v673, 1.0
    %v675 = vrcp.pop %v674
    %v676 = vmul.f32 %v674, %v675
    %v677 = vsub.f32 1.0, %v676
    %v678 = vmul.f32 %v675, %v677
    %v679 = vadd.f32 %v675, %v678
    %vm680 = vweird.f32 %v674
    %vm681 = vweird.f32 %v675
    %vm682 = vmor %vm680, %vm681
    %v683 = vsel %vm682, %v675, %v679
    %v684 = vand.u32 2147483647, %v674
    %vm685 = vcmp.eq.f32.partialorder %v684, 8.507059e+37
    %v686 = vand.u32 %v674, 2147483648
    %v687 = vor.u32 1.1754944e-38, %v686
    %v688 = vsel %vm685, %v687, %v683
    %v689 = vmul.f32 1.0, %v688
    %v690 = vmul.f32 %v665, %v171
    %v691 = vmul.f32 %v643, %v668
    %v692 = vadd.f32 %v690, %v691
    %v693 = vtanh.pop %v692
    %v694 = vmul.f32 %v689, %v693
    %v696 = vrot.slane %v607, 7
    %v698 = vsel %vm174, %v694, %v696
    %v700 = vsel %vm272, %v698, 0
    %702 = vmatpush.msra.mxu0 0.0
    %703 = vmatpush.msra.mxu0 0.0
    %704 = vmatpush.msra.mxu0 0.0
    %705 = vmatpush.msra.mxu0 0.0
    %706 = vmatpush.msra.mxu0 0.0
    %707 = vmatpush.msra.mxu0 0.0
    %708 = vmatpush.msra.mxu0 0.0
    %709 = vmatpush.msra.mxu0 0.0
    %710 = vmatpush.msra.mxu0 %v260
    %711 = vmatpush.msra.mxu0 %v248
    %712 = vmatpush.msra.mxu0 %v236
    %713 = vmatpush.msra.mxu0 %v224
    %714 = vmatpush.msra.mxu0 %v212
    %715 = vmatpush.msra.mxu0 %v200
    %716 = vmatpush.msra.mxu0 %v188
    %717 = vmatpush.msra.mxu0 %v176
    %718 = vmatmul.f32.gmra.mxu0 %v700
    %v719 = vpop.f32.mrf.mxu0
    %v720 = vadd.f32 0.0, %v719
    %721 = vdwg.mxu0
    %722 = vmatpush.msra.mxu0 0.0
    %723 = vmatpush.msra.mxu0 0.0
    %724 = vmatpush.msra.mxu0 0.0
    %725 = vmatpush.msra.mxu0 0.0
    %726 = vmatpush.msra.mxu0 0.0
    %727 = vmatpush.msra.mxu0 0.0
    %728 = vmatpush.msra.mxu0 0.0
    %729 = vmatpush.msra.mxu0 0.0
    %730 = vmatpush.msra.mxu0 %v261
    %731 = vmatpush.msra.mxu0 %v249
    %732 = vmatpush.msra.mxu0 %v237
    %733 = vmatpush.msra.mxu0 %v225
    %734 = vmatpush.msra.mxu0 %v213
    %735 = vmatpush.msra.mxu0 %v201
    %736 = vmatpush.msra.mxu0 %v189
    %737 = vmatpush.msra.mxu0 %v177
    %738 = vmatmul.f32.gmra.mxu0 %v700
    %v739 = vpop.f32.mrf.mxu0
    %v740 = vadd.f32 0.0, %v739
    %741 = vdwg.mxu0
    %742 = vmatpush.msra.mxu0 0.0
    %743 = vmatpush.msra.mxu0 0.0
    %744 = vmatpush.msra.mxu0 0.0
    %745 = vmatpush.msra.mxu0 0.0
    %746 = vmatpush.msra.mxu0 0.0
    %747 = vmatpush.msra.mxu0 0.0
    %748 = vmatpush.msra.mxu0 0.0
    %749 = vmatpush.msra.mxu0 0.0
    %750 = vmatpush.msra.mxu0 %v262
    %751 = vmatpush.msra.mxu0 %v250
    %752 = vmatpush.msra.mxu0 %v238
    %753 = vmatpush.msra.mxu0 %v226
    %754 = vmatpush.msra.mxu0 %v214
    %755 = vmatpush.msra.mxu0 %v202
    %756 = vmatpush.msra.mxu0 %v190
    %757 = vmatpush.msra.mxu0 %v178
    %758 = vmatmul.f32.gmra.mxu0 %v700
    %v759 = vpop.f32.mrf.mxu0
    %v760 = vadd.f32 0.0, %v759
    %761 = vdwg.mxu0
    %762 = vmatpush.msra.mxu0 0.0
    %763 = vmatpush.msra.mxu0 0.0
    %764 = vmatpush.msra.mxu0 0.0
    %765 = vmatpush.msra.mxu0 0.0
    %766 = vmatpush.msra.mxu0 0.0
    %767 = vmatpush.msra.mxu0 0.0
    %768 = vmatpush.msra.mxu0 0.0
    %769 = vmatpush.msra.mxu0 0.0
    %770 = vmatpush.msra.mxu0 %v263
    %771 = vmatpush.msra.mxu0 %v251
    %772 = vmatpush.msra.mxu0 %v239
    %773 = vmatpush.msra.mxu0 %v227
    %774 = vmatpush.msra.mxu0 %v215
    %775 = vmatpush.msra.mxu0 %v203
    %776 = vmatpush.msra.mxu0 %v191
    %777 = vmatpush.msra.mxu0 %v179
    %778 = vmatmul.f32.gmra.mxu0 %v700
    %v779 = vpop.f32.mrf.mxu0
    %v780 = vadd.f32 0.0, %v779
    %781 = vdwg.mxu0
    %782 = vmatpush.msra.mxu0 0.0
    %783 = vmatpush.msra.mxu0 0.0
    %784 = vmatpush.msra.mxu0 0.0
    %785 = vmatpush.msra.mxu0 0.0
    %786 = vmatpush.msra.mxu0 0.0
    %787 = vmatpush.msra.mxu0 0.0
    %788 = vmatpush.msra.mxu0 0.0
    %789 = vmatpush.msra.mxu0 0.0
    %790 = vmatpush.msra.mxu0 %v264
    %791 = vmatpush.msra.mxu0 %v252
    %792 = vmatpush.msra.mxu0 %v240
    %793 = vmatpush.msra.mxu0 %v228
    %794 = vmatpush.msra.mxu0 %v216
    %795 = vmatpush.msra.mxu0 %v204
    %796 = vmatpush.msra.mxu0 %v192
    %797 = vmatpush.msra.mxu0 %v180
    %798 = vmatmul.f32.gmra.mxu0 %v700
    %v799 = vpop.f32.mrf.mxu0
    %v800 = vadd.f32 0.0, %v799
    %801 = vdwg.mxu0
    %802 = vmatpush.msra.mxu0 0.0
    %803 = vmatpush.msra.mxu0 0.0
    %804 = vmatpush.msra.mxu0 0.0
    %805 = vmatpush.msra.mxu0 0.0
    %806 = vmatpush.msra.mxu0 0.0
    %807 = vmatpush.msra.mxu0 0.0
    %808 = vmatpush.msra.mxu0 0.0
    %809 = vmatpush.msra.mxu0 0.0
    %810 = vmatpush.msra.mxu0 %v265
    %811 = vmatpush.msra.mxu0 %v253
    %812 = vmatpush.msra.mxu0 %v241
    %813 = vmatpush.msra.mxu0 %v229
    %814 = vmatpush.msra.mxu0 %v217
    %815 = vmatpush.msra.mxu0 %v205
    %816 = vmatpush.msra.mxu0 %v193
    %817 = vmatpush.msra.mxu0 %v181
    %818 = vmatmul.f32.gmra.mxu0 %v700
    %v819 = vpop.f32.mrf.mxu0
    %v820 = vadd.f32 0.0, %v819
    %821 = vdwg.mxu0
    %822 = vmatpush.msra.mxu0 0.0
    %823 = vmatpush.msra.mxu0 0.0
    %824 = vmatpush.msra.mxu0 0.0
    %825 = vmatpush.msra.mxu0 0.0
    %826 = vmatpush.msra.mxu0 0.0
    %827 = vmatpush.msra.mxu0 0.0
    %828 = vmatpush.msra.mxu0 0.0
    %829 = vmatpush.msra.mxu0 0.0
    %830 = vmatpush.msra.mxu0 %v266
    %831 = vmatpush.msra.mxu0 %v254
    %832 = vmatpush.msra.mxu0 %v242
    %833 = vmatpush.msra.mxu0 %v230
    %834 = vmatpush.msra.mxu0 %v218
    %835 = vmatpush.msra.mxu0 %v206
    %836 = vmatpush.msra.mxu0 %v194
    %837 = vmatpush.msra.mxu0 %v182
    %838 = vmatmul.f32.gmra.mxu0 %v700
    %v839 = vpop.f32.mrf.mxu0
    %v840 = vadd.f32 0.0, %v839
    %841 = vdwg.mxu0
    %842 = vmatpush.msra.mxu0 0.0
    %843 = vmatpush.msra.mxu0 0.0
    %844 = vmatpush.msra.mxu0 0.0
    %845 = vmatpush.msra.mxu0 0.0
    %846 = vmatpush.msra.mxu0 0.0
    %847 = vmatpush.msra.mxu0 0.0
    %848 = vmatpush.msra.mxu0 0.0
    %849 = vmatpush.msra.mxu0 0.0
    %850 = vmatpush.msra.mxu0 %v267
    %851 = vmatpush.msra.mxu0 %v255
    %852 = vmatpush.msra.mxu0 %v243
    %853 = vmatpush.msra.mxu0 %v231
    %854 = vmatpush.msra.mxu0 %v219
    %855 = vmatpush.msra.mxu0 %v207
    %856 = vmatpush.msra.mxu0 %v195
    %857 = vmatpush.msra.mxu0 %v183
    %858 = vmatmul.f32.gmra.mxu0 %v700
    %v859 = vpop.f32.mrf.mxu0
    %v860 = vadd.f32 0.0, %v859
    %861 = vdwg.mxu0
    %862 = vmatpush.msra.mxu0 0.0
    %863 = vmatpush.msra.mxu0 0.0
    %864 = vmatpush.msra.mxu0 0.0
    %865 = vmatpush.msra.mxu0 0.0
    %866 = vmatpush.msra.mxu0 0.0
    %867 = vmatpush.msra.mxu0 0.0
    %868 = vmatpush.msra.mxu0 0.0
    %869 = vmatpush.msra.mxu0 0.0
    %870 = vmatpush.msra.mxu0 %v268
    %871 = vmatpush.msra.mxu0 %v256
    %872 = vmatpush.msra.mxu0 %v244
    %873 = vmatpush.msra.mxu0 %v232
    %874 = vmatpush.msra.mxu0 %v220
    %875 = vmatpush.msra.mxu0 %v208
    %876 = vmatpush.msra.mxu0 %v196
    %877 = vmatpush.msra.mxu0 %v184
    %878 = vmatmul.f32.gmra.mxu0 %v700
    %v879 = vpop.f32.mrf.mxu0
    %v880 = vadd.f32 0.0, %v879
    %881 = vdwg.mxu0
    %882 = vmatpush.msra.mxu0 0.0
    %883 = vmatpush.msra.mxu0 0.0
    %884 = vmatpush.msra.mxu0 0.0
    %885 = vmatpush.msra.mxu0 0.0
    %886 = vmatpush.msra.mxu0 0.0
    %887 = vmatpush.msra.mxu0 0.0
    %888 = vmatpush.msra.mxu0 0.0
    %889 = vmatpush.msra.mxu0 0.0
    %890 = vmatpush.msra.mxu0 %v269
    %891 = vmatpush.msra.mxu0 %v257
    %892 = vmatpush.msra.mxu0 %v245
    %893 = vmatpush.msra.mxu0 %v233
    %894 = vmatpush.msra.mxu0 %v221
    %895 = vmatpush.msra.mxu0 %v209
    %896 = vmatpush.msra.mxu0 %v197
    %897 = vmatpush.msra.mxu0 %v185
    %898 = vmatmul.f32.gmra.mxu0 %v700
    %v899 = vpop.f32.mrf.mxu0
    %v900 = vadd.f32 0.0, %v899
    %901 = vdwg.mxu0
    %902 = vmatpush.msra.mxu0 0.0
    %903 = vmatpush.msra.mxu0 0.0
    %904 = vmatpush.msra.mxu0 0.0
    %905 = vmatpush.msra.mxu0 0.0
    %906 = vmatpush.msra.mxu0 0.0
    %907 = vmatpush.msra.mxu0 0.0
    %908 = vmatpush.msra.mxu0 0.0
    %909 = vmatpush.msra.mxu0 0.0
    %910 = vmatpush.msra.mxu0 %v270
    %911 = vmatpush.msra.mxu0 %v258
    %912 = vmatpush.msra.mxu0 %v246
    %913 = vmatpush.msra.mxu0 %v234
    %914 = vmatpush.msra.mxu0 %v222
    %915 = vmatpush.msra.mxu0 %v210
    %916 = vmatpush.msra.mxu0 %v198
    %917 = vmatpush.msra.mxu0 %v186
    %918 = vmatmul.f32.gmra.mxu0 %v700
    %v919 = vpop.f32.mrf.mxu0
    %v920 = vadd.f32 0.0, %v919
    %921 = vdwg.mxu0
    %922 = vmatpush.msra.mxu0 0.0
    %923 = vmatpush.msra.mxu0 0.0
    %924 = vmatpush.msra.mxu0 0.0
    %925 = vmatpush.msra.mxu0 0.0
    %926 = vmatpush.msra.mxu0 0.0
    %927 = vmatpush.msra.mxu0 0.0
    %928 = vmatpush.msra.mxu0 0.0
    %929 = vmatpush.msra.mxu0 0.0
    %930 = vmatpush.msra.mxu0 %v271
    %931 = vmatpush.msra.mxu0 %v259
    %932 = vmatpush.msra.mxu0 %v247
    %933 = vmatpush.msra.mxu0 %v235
    %934 = vmatpush.msra.mxu0 %v223
    %935 = vmatpush.msra.mxu0 %v211
    %936 = vmatpush.msra.mxu0 %v199
    %937 = vmatpush.msra.mxu0 %v187
    %938 = vmatmul.f32.gmra.mxu0 %v700
    %v939 = vpop.f32.mrf.mxu0
    %v940 = vadd.f32 0.0, %v939
    %941 = vdwg.mxu0
    %v946 = vrot.slane %v880, 1
    %v947 = vrot.slane %v900, 1
    %v948 = vrot.slane %v920, 1
    %v949 = vrot.slane %v940, 1
    %v954 = vadd.f32 %v800, %v946
    %v955 = vadd.f32 %v820, %v947
    %v956 = vadd.f32 %v840, %v948
    %v957 = vadd.f32 %v860, %v949
    %v958 = vadd.f32 %v954, %v533
    %v959 = vadd.f32 %v955, %v534
    %v960 = vadd.f32 %v956, %v535
    %v961 = vadd.f32 %v957, %v536
    %v962 = vxor.u32 %v958, 2147483648
    %v963 = vmul.f32 %v962, 1.442695
    %v964 = vpow.pop %v963
    %v965 = vadd.f32 %v964, 1.0
    %v966 = vrcp.pop %v965
    %v967 = vmul.f32 %v965, %v966
    %v968 = vsub.f32 1.0, %v967
    %v969 = vmul.f32 %v966, %v968
    %v970 = vadd.f32 %v966, %v969
    %vm971 = vweird.f32 %v965
    %vm972 = vweird.f32 %v966
    %vm973 = vmor %vm971, %vm972
    %v974 = vsel %vm973, %v966, %v970
    %v975 = vand.u32 2147483647, %v965
    %vm976 = vcmp.eq.f32.partialorder %v975, 8.507059e+37
    %v977 = vand.u32 %v965, 2147483648
    %v978 = vor.u32 1.1754944e-38, %v977
    %v979 = vsel %vm976, %v978, %v974
    %v980 = vmul.f32 1.0, %v979
    %v981 = vxor.u32 %v959, 2147483648
    %v982 = vmul.f32 %v981, 1.442695
    %v983 = vpow.pop %v982
    %v984 = vadd.f32 %v983, 1.0
    %v985 = vrcp.pop %v984
    %v986 = vmul.f32 %v984, %v985
    %v987 = vsub.f32 1.0, %v986
    %v988 = vmul.f32 %v985, %v987
    %v989 = vadd.f32 %v985, %v988
    %vm990 = vweird.f32 %v984
    %vm991 = vweird.f32 %v985
    %vm992 = vmor %vm990, %vm991
    %v993 = vsel %vm992, %v985, %v989
    %v994 = vand.u32 2147483647, %v984
    %vm995 = vcmp.eq.f32.partialorder %v994, 8.507059e+37
    %v996 = vand.u32 %v984, 2147483648
    %v997 = vor.u32 1.1754944e-38, %v996
    %v998 = vsel %vm995, %v997, %v993
    %v999 = vmul.f32 1.0, %v998
    %v1000 = vtanh.pop %v960
    %v1001 = vxor.u32 %v961, 2147483648
    %v1002 = vmul.f32 %v1001, 1.442695
    %v1003 = vpow.pop %v1002
    %v1004 = vadd.f32 %v1003, 1.0
    %v1005 = vrcp.pop %v1004
    %v1006 = vmul.f32 %v1004, %v1005
    %v1007 = vsub.f32 1.0, %v1006
    %v1008 = vmul.f32 %v1005, %v1007
    %v1009 = vadd.f32 %v1005, %v1008
    %vm1010 = vweird.f32 %v1004
    %vm1011 = vweird.f32 %v1005
    %vm1012 = vmor %vm1010, %vm1011
    %v1013 = vsel %vm1012, %v1005, %v1009
    %v1014 = vand.u32 2147483647, %v1004
    %vm1015 = vcmp.eq.f32.partialorder %v1014, 8.507059e+37
    %v1016 = vand.u32 %v1004, 2147483648
    %v1017 = vor.u32 1.1754944e-38, %v1016
    %v1018 = vsel %vm1015, %v1017, %v1013
    %v1019 = vmul.f32 1.0, %v1018
    %v1020 = vmul.f32 %v999, %v605
    %v1021 = vmul.f32 %v980, %v1000
    %v1022 = vadd.f32 %v1020, %v1021
    %v1023 = vtanh.pop %v1022
    %v1024 = vmul.f32 %v1019, %v1023
    %s1025 = scalar_lea.vmem [#allocation2], 2
    %v1026 = vld [vmem:[%s1025] ss:$8 sm:$0xf]
    %v1031 = vrot.slane %v740, 7
    %v1032 = vrot.slane %v760, 6
    %v1033 = vrot.slane %v780, 5
    %v1034 = vsel %vm174, %v720, %v1031
    %v1035 = vsel %vm618, %v1032, %v1033
    %v1036 = vsel %vm620, %v1034, %v1035
    %v1038 = vadd.f32 %v1026, %v1036
    %v1039 = vadd.f32 %v1038, %v75
    %v1040 = vxor.u32 %v1039, 2147483648
    %v1041 = vmul.f32 %v1040, 1.442695
    %v1042 = vpow.pop %v1041
    %v1043 = vadd.f32 %v1042, 1.0
    %v1044 = vrcp.pop %v1043
    %v1045 = vmul.f32 %v1043, %v1044
    %v1046 = vsub.f32 1.0, %v1045
    %v1047 = vmul.f32 %v1044, %v1046
    %v1048 = vadd.f32 %v1044, %v1047
    %vm1049 = vweird.f32 %v1043
    %vm1050 = vweird.f32 %v1044
    %vm1051 = vmor %vm1049, %vm1050
    %v1052 = vsel %vm1051, %v1044, %v1048
    %v1053 = vand.u32 2147483647, %v1043
    %vm1054 = vcmp.eq.f32.partialorder %v1053, 8.507059e+37
    %v1055 = vand.u32 %v1043, 2147483648
    %v1056 = vor.u32 1.1754944e-38, %v1055
    %v1057 = vsel %vm1054, %v1056, %v1052
    %v1058 = vmul.f32 1.0, %v1057
    %v1060 = vrot.slane %v1039, 1
    %v1062 = vxor.u32 %v1060, 2147483648
    %v1063 = vmul.f32 %v1062, 1.442695
    %v1064 = vpow.pop %v1063
    %v1065 = vadd.f32 %v1064, 1.0
    %v1066 = vrcp.pop %v1065
    %v1067 = vmul.f32 %v1065, %v1066
    %v1068 = vsub.f32 1.0, %v1067
    %v1069 = vmul.f32 %v1066, %v1068
    %v1070 = vadd.f32 %v1066, %v1069
    %vm1071 = vweird.f32 %v1065
    %vm1072 = vweird.f32 %v1066
    %vm1073 = vmor %vm1071, %vm1072
    %v1074 = vsel %vm1073, %v1066, %v1070
    %v1075 = vand.u32 2147483647, %v1065
    %vm1076 = vcmp.eq.f32.partialorder %v1075, 8.507059e+37
    %v1077 = vand.u32 %v1065, 2147483648
    %v1078 = vor.u32 1.1754944e-38, %v1077
    %v1079 = vsel %vm1076, %v1078, %v1074
    %v1080 = vmul.f32 1.0, %v1079
    %v1081 = vrot.slane %v1039, 2
    %v1083 = vtanh.pop %v1081
    %v1084 = vrot.slane %v1039, 3
    %v1086 = vxor.u32 %v1084, 2147483648
    %v1087 = vmul.f32 %v1086, 1.442695
    %v1088 = vpow.pop %v1087
    %v1089 = vadd.f32 %v1088, 1.0
    %v1090 = vrcp.pop %v1089
    %v1091 = vmul.f32 %v1089, %v1090
    %v1092 = vsub.f32 1.0, %v1091
    %v1093 = vmul.f32 %v1090, %v1092
    %v1094 = vadd.f32 %v1090, %v1093
    %vm1095 = vweird.f32 %v1089
    %vm1096 = vweird.f32 %v1090
    %vm1097 = vmor %vm1095, %vm1096
    %v1098 = vsel %vm1097, %v1090, %v1094
    %v1099 = vand.u32 2147483647, %v1089
    %vm1100 = vcmp.eq.f32.partialorder %v1099, 8.507059e+37
    %v1101 = vand.u32 %v1089, 2147483648
    %v1102 = vor.u32 1.1754944e-38, %v1101
    %v1103 = vsel %vm1100, %v1102, %v1098
    %v1104 = vmul.f32 1.0, %v1103
    %v1105 = vmul.f32 %v1080, %v692
    %v1106 = vmul.f32 %v1058, %v1083
    %v1107 = vadd.f32 %v1105, %v1106
    %v1108 = vtanh.pop %v1107
    %v1109 = vmul.f32 %v1104, %v1108
    %v1111 = vrot.slane %v1024, 7
    %v1113 = vsel %vm174, %v1109, %v1111
    %v1115 = vsel %vm272, %v1113, 0
    %1117 = vmatpush.msra.mxu0 0.0
    %1118 = vmatpush.msra.mxu0 0.0
    %1119 = vmatpush.msra.mxu0 0.0
    %1120 = vmatpush.msra.mxu0 0.0
    %1121 = vmatpush.msra.mxu0 0.0
    %1122 = vmatpush.msra.mxu0 0.0
    %1123 = vmatpush.msra.mxu0 0.0
    %1124 = vmatpush.msra.mxu0 0.0
    %1125 = vmatpush.msra.mxu0 %v260
    %1126 = vmatpush.msra.mxu0 %v248
    %1127 = vmatpush.msra.mxu0 %v236
    %1128 = vmatpush.msra.mxu0 %v224
    %1129 = vmatpush.msra.mxu0 %v212
    %1130 = vmatpush.msra.mxu0 %v200
    %1131 = vmatpush.msra.mxu0 %v188
    %1132 = vmatpush.msra.mxu0 %v176
    %1133 = vmatmul.f32.gmra.mxu0 %v1115
    %v1134 = vpop.f32.mrf.mxu0
    %v1135 = vadd.f32 0.0, %v1134
    %1136 = vdwg.mxu0
    %1137 = vmatpush.msra.mxu0 0.0
    %1138 = vmatpush.msra.mxu0 0.0
    %1139 = vmatpush.msra.mxu0 0.0
    %1140 = vmatpush.msra.mxu0 0.0
    %1141 = vmatpush.msra.mxu0 0.0
    %1142 = vmatpush.msra.mxu0 0.0
    %1143 = vmatpush.msra.mxu0 0.0
    %1144 = vmatpush.msra.mxu0 0.0
    %1145 = vmatpush.msra.mxu0 %v261
    %1146 = vmatpush.msra.mxu0 %v249
    %1147 = vmatpush.msra.mxu0 %v237
    %1148 = vmatpush.msra.mxu0 %v225
    %1149 = vmatpush.msra.mxu0 %v213
    %1150 = vmatpush.msra.mxu0 %v201
    %1151 = vmatpush.msra.mxu0 %v189
    %1152 = vmatpush.msra.mxu0 %v177
    %1153 = vmatmul.f32.gmra.mxu0 %v1115
    %v1154 = vpop.f32.mrf.mxu0
    %v1155 = vadd.f32 0.0, %v1154
    %1156 = vdwg.mxu0
    %1157 = vmatpush.msra.mxu0 0.0
    %1158 = vmatpush.msra.mxu0 0.0
    %1159 = vmatpush.msra.mxu0 0.0
    %1160 = vmatpush.msra.mxu0 0.0
    %1161 = vmatpush.msra.mxu0 0.0
    %1162 = vmatpush.msra.mxu0 0.0
    %1163 = vmatpush.msra.mxu0 0.0
    %1164 = vmatpush.msra.mxu0 0.0
    %1165 = vmatpush.msra.mxu0 %v262
    %1166 = vmatpush.msra.mxu0 %v250
    %1167 = vmatpush.msra.mxu0 %v238
    %1168 = vmatpush.msra.mxu0 %v226
    %1169 = vmatpush.msra.mxu0 %v214
    %1170 = vmatpush.msra.mxu0 %v202
    %1171 = vmatpush.msra.mxu0 %v190
    %1172 = vmatpush.msra.mxu0 %v178
    %1173 = vmatmul.f32.gmra.mxu0 %v1115
    %v1174 = vpop.f32.mrf.mxu0
    %v1175 = vadd.f32 0.0, %v1174
    %1176 = vdwg.mxu0
    %1177 = vmatpush.msra.mxu0 0.0
    %1178 = vmatpush.msra.mxu0 0.0
    %1179 = vmatpush.msra.mxu0 0.0
    %1180 = vmatpush.msra.mxu0 0.0
    %1181 = vmatpush.msra.mxu0 0.0
    %1182 = vmatpush.msra.mxu0 0.0
    %1183 = vmatpush.msra.mxu0 0.0
    %1184 = vmatpush.msra.mxu0 0.0
    %1185 = vmatpush.msra.mxu0 %v263
    %1186 = vmatpush.msra.mxu0 %v251
    %1187 = vmatpush.msra.mxu0 %v239
    %1188 = vmatpush.msra.mxu0 %v227
    %1189 = vmatpush.msra.mxu0 %v215
    %1190 = vmatpush.msra.mxu0 %v203
    %1191 = vmatpush.msra.mxu0 %v191
    %1192 = vmatpush.msra.mxu0 %v179
    %1193 = vmatmul.f32.gmra.mxu0 %v1115
    %v1194 = vpop.f32.mrf.mxu0
    %v1195 = vadd.f32 0.0, %v1194
    %1196 = vdwg.mxu0
    %1197 = vmatpush.msra.mxu0 0.0
    %1198 = vmatpush.msra.mxu0 0.0
    %1199 = vmatpush.msra.mxu0 0.0
    %1200 = vmatpush.msra.mxu0 0.0
    %1201 = vmatpush.msra.mxu0 0.0
    %1202 = vmatpush.msra.mxu0 0.0
    %1203 = vmatpush.msra.mxu0 0.0
    %1204 = vmatpush.msra.mxu0 0.0
    %1205 = vmatpush.msra.mxu0 %v264
    %1206 = vmatpush.msra.mxu0 %v252
    %1207 = vmatpush.msra.mxu0 %v240
    %1208 = vmatpush.msra.mxu0 %v228
    %1209 = vmatpush.msra.mxu0 %v216
    %1210 = vmatpush.msra.mxu0 %v204
    %1211 = vmatpush.msra.mxu0 %v192
    %1212 = vmatpush.msra.mxu0 %v180
    %1213 = vmatmul.f32.gmra.mxu0 %v1115
    %v1214 = vpop.f32.mrf.mxu0
    %v1215 = vadd.f32 0.0, %v1214
    %1216 = vdwg.mxu0
    %1217 = vmatpush.msra.mxu0 0.0
    %1218 = vmatpush.msra.mxu0 0.0
    %1219 = vmatpush.msra.mxu0 0.0
    %1220 = vmatpush.msra.mxu0 0.0
    %1221 = vmatpush.msra.mxu0 0.0
    %1222 = vmatpush.msra.mxu0 0.0
    %1223 = vmatpush.msra.mxu0 0.0
    %1224 = vmatpush.msra.mxu0 0.0
    %1225 = vmatpush.msra.mxu0 %v265
    %1226 = vmatpush.msra.mxu0 %v253
    %1227 = vmatpush.msra.mxu0 %v241
    %1228 = vmatpush.msra.mxu0 %v229
    %1229 = vmatpush.msra.mxu0 %v217
    %1230 = vmatpush.msra.mxu0 %v205
    %1231 = vmatpush.msra.mxu0 %v193
    %1232 = vmatpush.msra.mxu0 %v181
    %1233 = vmatmul.f32.gmra.mxu0 %v1115
    %v1234 = vpop.f32.mrf.mxu0
    %v1235 = vadd.f32 0.0, %v1234
    %1236 = vdwg.mxu0
    %1237 = vmatpush.msra.mxu0 0.0
    %1238 = vmatpush.msra.mxu0 0.0
    %1239 = vmatpush.msra.mxu0 0.0
    %1240 = vmatpush.msra.mxu0 0.0
    %1241 = vmatpush.msra.mxu0 0.0
    %1242 = vmatpush.msra.mxu0 0.0
    %1243 = vmatpush.msra.mxu0 0.0
    %1244 = vmatpush.msra.mxu0 0.0
    %1245 = vmatpush.msra.mxu0 %v266
    %1246 = vmatpush.msra.mxu0 %v254
    %1247 = vmatpush.msra.mxu0 %v242
    %1248 = vmatpush.msra.mxu0 %v230
    %1249 = vmatpush.msra.mxu0 %v218
    %1250 = vmatpush.msra.mxu0 %v206
    %1251 = vmatpush.msra.mxu0 %v194
    %1252 = vmatpush.msra.mxu0 %v182
    %1253 = vmatmul.f32.gmra.mxu0 %v1115
    %v1254 = vpop.f32.mrf.mxu0
    %v1255 = vadd.f32 0.0, %v1254
    %1256 = vdwg.mxu0
    %1257 = vmatpush.msra.mxu0 0.0
    %1258 = vmatpush.msra.mxu0 0.0
    %1259 = vmatpush.msra.mxu0 0.0
    %1260 = vmatpush.msra.mxu0 0.0
    %1261 = vmatpush.msra.mxu0 0.0
    %1262 = vmatpush.msra.mxu0 0.0
    %1263 = vmatpush.msra.mxu0 0.0
    %1264 = vmatpush.msra.mxu0 0.0
    %1265 = vmatpush.msra.mxu0 %v267
    %1266 = vmatpush.msra.mxu0 %v255
    %1267 = vmatpush.msra.mxu0 %v243
    %1268 = vmatpush.msra.mxu0 %v231
    %1269 = vmatpush.msra.mxu0 %v219
    %1270 = vmatpush.msra.mxu0 %v207
    %1271 = vmatpush.msra.mxu0 %v195
    %1272 = vmatpush.msra.mxu0 %v183
    %1273 = vmatmul.f32.gmra.mxu0 %v1115
    %v1274 = vpop.f32.mrf.mxu0
    %v1275 = vadd.f32 0.0, %v1274
    %1276 = vdwg.mxu0
    %1277 = vmatpush.msra.mxu0 0.0
    %1278 = vmatpush.msra.mxu0 0.0
    %1279 = vmatpush.msra.mxu0 0.0
    %1280 = vmatpush.msra.mxu0 0.0
    %1281 = vmatpush.msra.mxu0 0.0
    %1282 = vmatpush.msra.mxu0 0.0
    %1283 = vmatpush.msra.mxu0 0.0
    %1284 = vmatpush.msra.mxu0 0.0
    %1285 = vmatpush.msra.mxu0 %v268
    %1286 = vmatpush.msra.mxu0 %v256
    %1287 = vmatpush.msra.mxu0 %v244
    %1288 = vmatpush.msra.mxu0 %v232
    %1289 = vmatpush.msra.mxu0 %v220
    %1290 = vmatpush.msra.mxu0 %v208
    %1291 = vmatpush.msra.mxu0 %v196
    %1292 = vmatpush.msra.mxu0 %v184
    %1293 = vmatmul.f32.gmra.mxu0 %v1115
    %v1294 = vpop.f32.mrf.mxu0
    %v1295 = vadd.f32 0.0, %v1294
    %1296 = vdwg.mxu0
    %1297 = vmatpush.msra.mxu0 0.0
    %1298 = vmatpush.msra.mxu0 0.0
    %1299 = vmatpush.msra.mxu0 0.0
    %1300 = vmatpush.msra.mxu0 0.0
    %1301 = vmatpush.msra.mxu0 0.0
    %1302 = vmatpush.msra.mxu0 0.0
    %1303 = vmatpush.msra.mxu0 0.0
    %1304 = vmatpush.msra.mxu0 0.0
    %1305 = vmatpush.msra.mxu0 %v269
    %1306 = vmatpush.msra.mxu0 %v257
    %1307 = vmatpush.msra.mxu0 %v245
    %1308 = vmatpush.msra.mxu0 %v233
    %1309 = vmatpush.msra.mxu0 %v221
    %1310 = vmatpush.msra.mxu0 %v209
    %1311 = vmatpush.msra.mxu0 %v197
    %1312 = vmatpush.msra.mxu0 %v185
    %1313 = vmatmul.f32.gmra.mxu0 %v1115
    %v1314 = vpop.f32.mrf.mxu0
    %v1315 = vadd.f32 0.0, %v1314
    %1316 = vdwg.mxu0
    %1317 = vmatpush.msra.mxu0 0.0
    %1318 = vmatpush.msra.mxu0 0.0
    %1319 = vmatpush.msra.mxu0 0.0
    %1320 = vmatpush.msra.mxu0 0.0
    %1321 = vmatpush.msra.mxu0 0.0
    %1322 = vmatpush.msra.mxu0 0.0
    %1323 = vmatpush.msra.mxu0 0.0
    %1324 = vmatpush.msra.mxu0 0.0
    %1325 = vmatpush.msra.mxu0 %v270
    %1326 = vmatpush.msra.mxu0 %v258
    %1327 = vmatpush.msra.mxu0 %v246
    %1328 = vmatpush.msra.mxu0 %v234
    %1329 = vmatpush.msra.mxu0 %v222
    %1330 = vmatpush.msra.mxu0 %v210
    %1331 = vmatpush.msra.mxu0 %v198
    %1332 = vmatpush.msra.mxu0 %v186
    %1333 = vmatmul.f32.gmra.mxu0 %v1115
    %v1334 = vpop.f32.mrf.mxu0
    %v1335 = vadd.f32 0.0, %v1334
    %1336 = vdwg.mxu0
    %1337 = vmatpush.msra.mxu0 0.0
    %1338 = vmatpush.msra.mxu0 0.0
    %1339 = vmatpush.msra.mxu0 0.0
    %1340 = vmatpush.msra.mxu0 0.0
    %1341 = vmatpush.msra.mxu0 0.0
    %1342 = vmatpush.msra.mxu0 0.0
    %1343 = vmatpush.msra.mxu0 0.0
    %1344 = vmatpush.msra.mxu0 0.0
    %1345 = vmatpush.msra.mxu0 %v271
    %1346 = vmatpush.msra.mxu0 %v259
    %1347 = vmatpush.msra.mxu0 %v247
    %1348 = vmatpush.msra.mxu0 %v235
    %1349 = vmatpush.msra.mxu0 %v223
    %1350 = vmatpush.msra.mxu0 %v211
    %1351 = vmatpush.msra.mxu0 %v199
    %1352 = vmatpush.msra.mxu0 %v187
    %1353 = vmatmul.f32.gmra.mxu0 %v1115
    %v1354 = vpop.f32.mrf.mxu0
    %v1355 = vadd.f32 0.0, %v1354
    %1356 = vdwg.mxu0
    %v1361 = vrot.slane %v1295, 1
    %v1362 = vrot.slane %v1315, 1
    %v1363 = vrot.slane %v1335, 1
    %v1364 = vrot.slane %v1355, 1
    %v1369 = vadd.f32 %v1215, %v1361
    %v1370 = vadd.f32 %v1235, %v1362
    %v1371 = vadd.f32 %v1255, %v1363
    %v1372 = vadd.f32 %v1275, %v1364
    %v1373 = vadd.f32 %v1369, %v533
    %v1374 = vadd.f32 %v1370, %v534
    %v1375 = vadd.f32 %v1371, %v535
    %v1376 = vadd.f32 %v1372, %v536
    %v1377 = vxor.u32 %v1373, 2147483648
    %v1378 = vmul.f32 %v1377, 1.442695
    %v1379 = vpow.pop %v1378
    %v1380 = vadd.f32 %v1379, 1.0
    %v1381 = vrcp.pop %v1380
    %v1382 = vmul.f32 %v1380, %v1381
    %v1383 = vsub.f32 1.0, %v1382
    %v1384 = vmul.f32 %v1381, %v1383
    %v1385 = vadd.f32 %v1381, %v1384
    %vm1386 = vweird.f32 %v1380
    %vm1387 = vweird.f32 %v1381
    %vm1388 = vmor %vm1386, %vm1387
    %v1389 = vsel %vm1388, %v1381, %v1385
    %v1390 = vand.u32 2147483647, %v1380
    %vm1391 = vcmp.eq.f32.partialorder %v1390, 8.507059e+37
    %v1392 = vand.u32 %v1380, 2147483648
    %v1393 = vor.u32 1.1754944e-38, %v1392
    %v1394 = vsel %vm1391, %v1393, %v1389
    %v1395 = vmul.f32 1.0, %v1394
    %v1396 = vxor.u32 %v1374, 2147483648
    %v1397 = vmul.f32 %v1396, 1.442695
    %v1398 = vpow.pop %v1397
    %v1399 = vadd.f32 %v1398, 1.0
    %v1400 = vrcp.pop %v1399
    %v1401 = vmul.f32 %v1399, %v1400
    %v1402 = vsub.f32 1.0, %v1401
    %v1403 = vmul.f32 %v1400, %v1402
    %v1404 = vadd.f32 %v1400, %v1403
    %vm1405 = vweird.f32 %v1399
    %vm1406 = vweird.f32 %v1400
    %vm1407 = vmor %vm1405, %vm1406
    %v1408 = vsel %vm1407, %v1400, %v1404
    %v1409 = vand.u32 2147483647, %v1399
    %vm1410 = vcmp.eq.f32.partialorder %v1409, 8.507059e+37
    %v1411 = vand.u32 %v1399, 2147483648
    %v1412 = vor.u32 1.1754944e-38, %v1411
    %v1413 = vsel %vm1410, %v1412, %v1408
    %v1414 = vmul.f32 1.0, %v1413
    %v1415 = vtanh.pop %v1375
    %v1416 = vxor.u32 %v1376, 2147483648
    %v1417 = vmul.f32 %v1416, 1.442695
    %v1418 = vpow.pop %v1417
    %v1419 = vadd.f32 %v1418, 1.0
    %v1420 = vrcp.pop %v1419
    %v1421 = vmul.f32 %v1419, %v1420
    %v1422 = vsub.f32 1.0, %v1421
    %v1423 = vmul.f32 %v1420, %v1422
    %v1424 = vadd.f32 %v1420, %v1423
    %vm1425 = vweird.f32 %v1419
    %vm1426 = vweird.f32 %v1420
    %vm1427 = vmor %vm1425, %vm1426
    %v1428 = vsel %vm1427, %v1420, %v1424
    %v1429 = vand.u32 2147483647, %v1419
    %vm1430 = vcmp.eq.f32.partialorder %v1429, 8.507059e+37
    %v1431 = vand.u32 %v1419, 2147483648
    %v1432 = vor.u32 1.1754944e-38, %v1431
    %v1433 = vsel %vm1430, %v1432, %v1428
    %v1434 = vmul.f32 1.0, %v1433
    %v1435 = vmul.f32 %v1414, %v1022
    %v1436 = vmul.f32 %v1395, %v1415
    %v1437 = vadd.f32 %v1435, %v1436
    %v1438 = vtanh.pop %v1437
    %v1439 = vmul.f32 %v1434, %v1438
    %s1440 = scalar_lea.vmem [#allocation2], 3
    %v1441 = vld [vmem:[%s1440] ss:$8 sm:$0xf]
    %v1446 = vrot.slane %v1155, 7
    %v1447 = vrot.slane %v1175, 6
    %v1448 = vrot.slane %v1195, 5
    %v1449 = vsel %vm174, %v1135, %v1446
    %v1450 = vsel %vm618, %v1447, %v1448
    %v1451 = vsel %vm620, %v1449, %v1450
    %v1453 = vadd.f32 %v1441, %v1451
    %v1454 = vadd.f32 %v1453, %v75
    %v1455 = vxor.u32 %v1454, 2147483648
    %v1456 = vmul.f32 %v1455, 1.442695
    %v1457 = vpow.pop %v1456
    %v1458 = vadd.f32 %v1457, 1.0
    %v1459 = vrcp.pop %v1458
    %v1460 = vmul.f32 %v1458, %v1459
    %v1461 = vsub.f32 1.0, %v1460
    %v1462 = vmul.f32 %v1459, %v1461
    %v1463 = vadd.f32 %v1459, %v1462
    %vm1464 = vweird.f32 %v1458
    %vm1465 = vweird.f32 %v1459
    %vm1466 = vmor %vm1464, %vm1465
    %v1467 = vsel %vm1466, %v1459, %v1463
    %v1468 = vand.u32 2147483647, %v1458
    %vm1469 = vcmp.eq.f32.partialorder %v1468, 8.507059e+37
    %v1470 = vand.u32 %v1458, 2147483648
    %v1471 = vor.u32 1.1754944e-38, %v1470
    %v1472 = vsel %vm1469, %v1471, %v1467
    %v1473 = vmul.f32 1.0, %v1472
    %v1475 = vrot.slane %v1454, 1
    %v1477 = vxor.u32 %v1475, 2147483648
    %v1478 = vmul.f32 %v1477, 1.442695
    %v1479 = vpow.pop %v1478
    %v1480 = vadd.f32 %v1479, 1.0
    %v1481 = vrcp.pop %v1480
    %v1482 = vmul.f32 %v1480, %v1481
    %v1483 = vsub.f32 1.0, %v1482
    %v1484 = vmul.f32 %v1481, %v1483
    %v1485 = vadd.f32 %v1481, %v1484
    %vm1486 = vweird.f32 %v1480
    %vm1487 = vweird.f32 %v1481
    %vm1488 = vmor %vm1486, %vm1487
    %v1489 = vsel %vm1488, %v1481, %v1485
    %v1490 = vand.u32 2147483647, %v1480
    %vm1491 = vcmp.eq.f32.partialorder %v1490, 8.507059e+37
    %v1492 = vand.u32 %v1480, 2147483648
    %v1493 = vor.u32 1.1754944e-38, %v1492
    %v1494 = vsel %vm1491, %v1493, %v1489
    %v1495 = vmul.f32 1.0, %v1494
    %v1496 = vrot.slane %v1454, 2
    %v1498 = vtanh.pop %v1496
    %v1499 = vrot.slane %v1454, 3
    %v1501 = vxor.u32 %v1499, 2147483648
    %v1502 = vmul.f32 %v1501, 1.442695
    %v1503 = vpow.pop %v1502
    %v1504 = vadd.f32 %v1503, 1.0
    %v1505 = vrcp.pop %v1504
    %v1506 = vmul.f32 %v1504, %v1505
    %v1507 = vsub.f32 1.0, %v1506
    %v1508 = vmul.f32 %v1505, %v1507
    %v1509 = vadd.f32 %v1505, %v1508
    %vm1510 = vweird.f32 %v1504
    %vm1511 = vweird.f32 %v1505
    %vm1512 = vmor %vm1510, %vm1511
    %v1513 = vsel %vm1512, %v1505, %v1509
    %v1514 = vand.u32 2147483647, %v1504
    %vm1515 = vcmp.eq.f32.partialorder %v1514, 8.507059e+37
    %v1516 = vand.u32 %v1504, 2147483648
    %v1517 = vor.u32 1.1754944e-38, %v1516
    %v1518 = vsel %vm1515, %v1517, %v1513
    %v1519 = vmul.f32 1.0, %v1518
    %v1520 = vmul.f32 %v1495, %v1107
    %v1521 = vmul.f32 %v1473, %v1498
    %v1522 = vadd.f32 %v1520, %v1521
    %v1523 = vtanh.pop %v1522
    %v1524 = vmul.f32 %v1519, %v1523
    %v1526 = vrot.slane %v1439, 7
    %v1528 = vsel %vm174, %v1524, %v1526
    %v1530 = vsel %vm272, %v1528, 0
    %1532 = vmatpush.msra.mxu0 0.0
    %1533 = vmatpush.msra.mxu0 0.0
    %1534 = vmatpush.msra.mxu0 0.0
    %1535 = vmatpush.msra.mxu0 0.0
    %1536 = vmatpush.msra.mxu0 0.0
    %1537 = vmatpush.msra.mxu0 0.0
    %1538 = vmatpush.msra.mxu0 0.0
    %1539 = vmatpush.msra.mxu0 0.0
    %1540 = vmatpush.msra.mxu0 %v260
    %1541 = vmatpush.msra.mxu0 %v248
    %1542 = vmatpush.msra.mxu0 %v236
    %1543 = vmatpush.msra.mxu0 %v224
    %1544 = vmatpush.msra.mxu0 %v212
    %1545 = vmatpush.msra.mxu0 %v200
    %1546 = vmatpush.msra.mxu0 %v188
    %1547 = vmatpush.msra.mxu0 %v176
    %1548 = vmatmul.f32.gmra.mxu0 %v1530
    %v1549 = vpop.f32.mrf.mxu0
    %v1550 = vadd.f32 0.0, %v1549
    %1551 = vdwg.mxu0
    %1552 = vmatpush.msra.mxu0 0.0
    %1553 = vmatpush.msra.mxu0 0.0
    %1554 = vmatpush.msra.mxu0 0.0
    %1555 = vmatpush.msra.mxu0 0.0
    %1556 = vmatpush.msra.mxu0 0.0
    %1557 = vmatpush.msra.mxu0 0.0
    %1558 = vmatpush.msra.mxu0 0.0
    %1559 = vmatpush.msra.mxu0 0.0
    %1560 = vmatpush.msra.mxu0 %v261
    %1561 = vmatpush.msra.mxu0 %v249
    %1562 = vmatpush.msra.mxu0 %v237
    %1563 = vmatpush.msra.mxu0 %v225
    %1564 = vmatpush.msra.mxu0 %v213
    %1565 = vmatpush.msra.mxu0 %v201
    %1566 = vmatpush.msra.mxu0 %v189
    %1567 = vmatpush.msra.mxu0 %v177
    %1568 = vmatmul.f32.gmra.mxu0 %v1530
    %v1569 = vpop.f32.mrf.mxu0
    %v1570 = vadd.f32 0.0, %v1569
    %1571 = vdwg.mxu0
    %1572 = vmatpush.msra.mxu0 0.0
    %1573 = vmatpush.msra.mxu0 0.0
    %1574 = vmatpush.msra.mxu0 0.0
    %1575 = vmatpush.msra.mxu0 0.0
    %1576 = vmatpush.msra.mxu0 0.0
    %1577 = vmatpush.msra.mxu0 0.0
    %1578 = vmatpush.msra.mxu0 0.0
    %1579 = vmatpush.msra.mxu0 0.0
    %1580 = vmatpush.msra.mxu0 %v262
    %1581 = vmatpush.msra.mxu0 %v250
    %1582 = vmatpush.msra.mxu0 %v238
    %1583 = vmatpush.msra.mxu0 %v226
    %1584 = vmatpush.msra.mxu0 %v214
    %1585 = vmatpush.msra.mxu0 %v202
    %1586 = vmatpush.msra.mxu0 %v190
    %1587 = vmatpush.msra.mxu0 %v178
    %1588 = vmatmul.f32.gmra.mxu0 %v1530
    %v1589 = vpop.f32.mrf.mxu0
    %v1590 = vadd.f32 0.0, %v1589
    %1591 = vdwg.mxu0
    %1592 = vmatpush.msra.mxu0 0.0
    %1593 = vmatpush.msra.mxu0 0.0
    %1594 = vmatpush.msra.mxu0 0.0
    %1595 = vmatpush.msra.mxu0 0.0
    %1596 = vmatpush.msra.mxu0 0.0
    %1597 = vmatpush.msra.mxu0 0.0
    %1598 = vmatpush.msra.mxu0 0.0
    %1599 = vmatpush.msra.mxu0 0.0
    %1600 = vmatpush.msra.mxu0 %v263
    %1601 = vmatpush.msra.mxu0 %v251
    %1602 = vmatpush.msra.mxu0 %v239
    %1603 = vmatpush.msra.mxu0 %v227
    %1604 = vmatpush.msra.mxu0 %v215
    %1605 = vmatpush.msra.mxu0 %v203
    %1606 = vmatpush.msra.mxu0 %v191
    %1607 = vmatpush.msra.mxu0 %v179
    %1608 = vmatmul.f32.gmra.mxu0 %v1530
    %v1609 = vpop.f32.mrf.mxu0
    %v1610 = vadd.f32 0.0, %v1609
    %1611 = vdwg.mxu0
    %1612 = vmatpush.msra.mxu0 0.0
    %1613 = vmatpush.msra.mxu0 0.0
    %1614 = vmatpush.msra.mxu0 0.0
    %1615 = vmatpush.msra.mxu0 0.0
    %1616 = vmatpush.msra.mxu0 0.0
    %1617 = vmatpush.msra.mxu0 0.0
    %1618 = vmatpush.msra.mxu0 0.0
    %1619 = vmatpush.msra.mxu0 0.0
    %1620 = vmatpush.msra.mxu0 %v264
    %1621 = vmatpush.msra.mxu0 %v252
    %1622 = vmatpush.msra.mxu0 %v240
    %1623 = vmatpush.msra.mxu0 %v228
    %1624 = vmatpush.msra.mxu0 %v216
    %1625 = vmatpush.msra.mxu0 %v204
    %1626 = vmatpush.msra.mxu0 %v192
    %1627 = vmatpush.msra.mxu0 %v180
    %1628 = vmatmul.f32.gmra.mxu0 %v1530
    %v1629 = vpop.f32.mrf.mxu0
    %v1630 = vadd.f32 0.0, %v1629
    %1631 = vdwg.mxu0
    %1632 = vmatpush.msra.mxu0 0.0
    %1633 = vmatpush.msra.mxu0 0.0
    %1634 = vmatpush.msra.mxu0 0.0
    %1635 = vmatpush.msra.mxu0 0.0
    %1636 = vmatpush.msra.mxu0 0.0
    %1637 = vmatpush.msra.mxu0 0.0
    %1638 = vmatpush.msra.mxu0 0.0
    %1639 = vmatpush.msra.mxu0 0.0
    %1640 = vmatpush.msra.mxu0 %v265
    %1641 = vmatpush.msra.mxu0 %v253
    %1642 = vmatpush.msra.mxu0 %v241
    %1643 = vmatpush.msra.mxu0 %v229
    %1644 = vmatpush.msra.mxu0 %v217
    %1645 = vmatpush.msra.mxu0 %v205
    %1646 = vmatpush.msra.mxu0 %v193
    %1647 = vmatpush.msra.mxu0 %v181
    %1648 = vmatmul.f32.gmra.mxu0 %v1530
    %v1649 = vpop.f32.mrf.mxu0
    %v1650 = vadd.f32 0.0, %v1649
    %1651 = vdwg.mxu0
    %1652 = vmatpush.msra.mxu0 0.0
    %1653 = vmatpush.msra.mxu0 0.0
    %1654 = vmatpush.msra.mxu0 0.0
    %1655 = vmatpush.msra.mxu0 0.0
    %1656 = vmatpush.msra.mxu0 0.0
    %1657 = vmatpush.msra.mxu0 0.0
    %1658 = vmatpush.msra.mxu0 0.0
    %1659 = vmatpush.msra.mxu0 0.0
    %1660 = vmatpush.msra.mxu0 %v266
    %1661 = vmatpush.msra.mxu0 %v254
    %1662 = vmatpush.msra.mxu0 %v242
    %1663 = vmatpush.msra.mxu0 %v230
    %1664 = vmatpush.msra.mxu0 %v218
    %1665 = vmatpush.msra.mxu0 %v206
    %1666 = vmatpush.msra.mxu0 %v194
    %1667 = vmatpush.msra.mxu0 %v182
    %1668 = vmatmul.f32.gmra.mxu0 %v1530
    %v1669 = vpop.f32.mrf.mxu0
    %v1670 = vadd.f32 0.0, %v1669
    %1671 = vdwg.mxu0
    %1672 = vmatpush.msra.mxu0 0.0
    %1673 = vmatpush.msra.mxu0 0.0
    %1674 = vmatpush.msra.mxu0 0.0
    %1675 = vmatpush.msra.mxu0 0.0
    %1676 = vmatpush.msra.mxu0 0.0
    %1677 = vmatpush.msra.mxu0 0.0
    %1678 = vmatpush.msra.mxu0 0.0
    %1679 = vmatpush.msra.mxu0 0.0
    %1680 = vmatpush.msra.mxu0 %v267
    %1681 = vmatpush.msra.mxu0 %v255
    %1682 = vmatpush.msra.mxu0 %v243
    %1683 = vmatpush.msra.mxu0 %v231
    %1684 = vmatpush.msra.mxu0 %v219
    %1685 = vmatpush.msra.mxu0 %v207
    %1686 = vmatpush.msra.mxu0 %v195
    %1687 = vmatpush.msra.mxu0 %v183
    %1688 = vmatmul.f32.gmra.mxu0 %v1530
    %v1689 = vpop.f32.mrf.mxu0
    %v1690 = vadd.f32 0.0, %v1689
    %1691 = vdwg.mxu0
    %1692 = vmatpush.msra.mxu0 0.0
    %1693 = vmatpush.msra.mxu0 0.0
    %1694 = vmatpush.msra.mxu0 0.0
    %1695 = vmatpush.msra.mxu0 0.0
    %1696 = vmatpush.msra.mxu0 0.0
    %1697 = vmatpush.msra.mxu0 0.0
    %1698 = vmatpush.msra.mxu0 0.0
    %1699 = vmatpush.msra.mxu0 0.0
    %1700 = vmatpush.msra.mxu0 %v268
    %1701 = vmatpush.msra.mxu0 %v256
    %1702 = vmatpush.msra.mxu0 %v244
    %1703 = vmatpush.msra.mxu0 %v232
    %1704 = vmatpush.msra.mxu0 %v220
    %1705 = vmatpush.msra.mxu0 %v208
    %1706 = vmatpush.msra.mxu0 %v196
    %1707 = vmatpush.msra.mxu0 %v184
    %1708 = vmatmul.f32.gmra.mxu0 %v1530
    %v1709 = vpop.f32.mrf.mxu0
    %v1710 = vadd.f32 0.0, %v1709
    %1711 = vdwg.mxu0
    %1712 = vmatpush.msra.mxu0 0.0
    %1713 = vmatpush.msra.mxu0 0.0
    %1714 = vmatpush.msra.mxu0 0.0
    %1715 = vmatpush.msra.mxu0 0.0
    %1716 = vmatpush.msra.mxu0 0.0
    %1717 = vmatpush.msra.mxu0 0.0
    %1718 = vmatpush.msra.mxu0 0.0
    %1719 = vmatpush.msra.mxu0 0.0
    %1720 = vmatpush.msra.mxu0 %v269
    %1721 = vmatpush.msra.mxu0 %v257
    %1722 = vmatpush.msra.mxu0 %v245
    %1723 = vmatpush.msra.mxu0 %v233
    %1724 = vmatpush.msra.mxu0 %v221
    %1725 = vmatpush.msra.mxu0 %v209
    %1726 = vmatpush.msra.mxu0 %v197
    %1727 = vmatpush.msra.mxu0 %v185
    %1728 = vmatmul.f32.gmra.mxu0 %v1530
    %v1729 = vpop.f32.mrf.mxu0
    %v1730 = vadd.f32 0.0, %v1729
    %1731 = vdwg.mxu0
    %1732 = vmatpush.msra.mxu0 0.0
    %1733 = vmatpush.msra.mxu0 0.0
    %1734 = vmatpush.msra.mxu0 0.0
    %1735 = vmatpush.msra.mxu0 0.0
    %1736 = vmatpush.msra.mxu0 0.0
    %1737 = vmatpush.msra.mxu0 0.0
    %1738 = vmatpush.msra.mxu0 0.0
    %1739 = vmatpush.msra.mxu0 0.0
    %1740 = vmatpush.msra.mxu0 %v270
    %1741 = vmatpush.msra.mxu0 %v258
    %1742 = vmatpush.msra.mxu0 %v246
    %1743 = vmatpush.msra.mxu0 %v234
    %1744 = vmatpush.msra.mxu0 %v222
    %1745 = vmatpush.msra.mxu0 %v210
    %1746 = vmatpush.msra.mxu0 %v198
    %1747 = vmatpush.msra.mxu0 %v186
    %1748 = vmatmul.f32.gmra.mxu0 %v1530
    %v1749 = vpop.f32.mrf.mxu0
    %v1750 = vadd.f32 0.0, %v1749
    %1751 = vdwg.mxu0
    %1752 = vmatpush.msra.mxu0 0.0
    %1753 = vmatpush.msra.mxu0 0.0
    %1754 = vmatpush.msra.mxu0 0.0
    %1755 = vmatpush.msra.mxu0 0.0
    %1756 = vmatpush.msra.mxu0 0.0
    %1757 = vmatpush.msra.mxu0 0.0
    %1758 = vmatpush.msra.mxu0 0.0
    %1759 = vmatpush.msra.mxu0 0.0
    %1760 = vmatpush.msra.mxu0 %v271
    %1761 = vmatpush.msra.mxu0 %v259
    %1762 = vmatpush.msra.mxu0 %v247
    %1763 = vmatpush.msra.mxu0 %v235
    %1764 = vmatpush.msra.mxu0 %v223
    %1765 = vmatpush.msra.mxu0 %v211
    %1766 = vmatpush.msra.mxu0 %v199
    %1767 = vmatpush.msra.mxu0 %v187
    %1768 = vmatmul.f32.gmra.mxu0 %v1530
    %v1769 = vpop.f32.mrf.mxu0
    %v1770 = vadd.f32 0.0, %v1769
    %1771 = vdwg.mxu0
    %v1776 = vrot.slane %v1710, 1
    %v1777 = vrot.slane %v1730, 1
    %v1778 = vrot.slane %v1750, 1
    %v1779 = vrot.slane %v1770, 1
    %v1784 = vadd.f32 %v1630, %v1776
    %v1785 = vadd.f32 %v1650, %v1777
    %v1786 = vadd.f32 %v1670, %v1778
    %v1787 = vadd.f32 %v1690, %v1779
    %v1788 = vadd.f32 %v1784, %v533
    %v1789 = vadd.f32 %v1785, %v534
    %v1790 = vadd.f32 %v1786, %v535
    %v1791 = vadd.f32 %v1787, %v536
    %v1792 = vxor.u32 %v1788, 2147483648
    %v1793 = vmul.f32 %v1792, 1.442695
    %v1794 = vpow.pop %v1793
    %v1795 = vadd.f32 %v1794, 1.0
    %v1796 = vrcp.pop %v1795
    %v1797 = vmul.f32 %v1795, %v1796
    %v1798 = vsub.f32 1.0, %v1797
    %v1799 = vmul.f32 %v1796, %v1798
    %v1800 = vadd.f32 %v1796, %v1799
    %vm1801 = vweird.f32 %v1795
    %vm1802 = vweird.f32 %v1796
    %vm1803 = vmor %vm1801, %vm1802
    %v1804 = vsel %vm1803, %v1796, %v1800
    %v1805 = vand.u32 2147483647, %v1795
    %vm1806 = vcmp.eq.f32.partialorder %v1805, 8.507059e+37
    %v1807 = vand.u32 %v1795, 2147483648
    %v1808 = vor.u32 1.1754944e-38, %v1807
    %v1809 = vsel %vm1806, %v1808, %v1804
    %v1810 = vmul.f32 1.0, %v1809
    %v1811 = vxor.u32 %v1789, 2147483648
    %v1812 = vmul.f32 %v1811, 1.442695
    %v1813 = vpow.pop %v1812
    %v1814 = vadd.f32 %v1813, 1.0
    %v1815 = vrcp.pop %v1814
    %v1816 = vmul.f32 %v1814, %v1815
    %v1817 = vsub.f32 1.0, %v1816
    %v1818 = vmul.f32 %v1815, %v1817
    %v1819 = vadd.f32 %v1815, %v1818
    %vm1820 = vweird.f32 %v1814
    %vm1821 = vweird.f32 %v1815
    %vm1822 = vmor %vm1820, %vm1821
    %v1823 = vsel %vm1822, %v1815, %v1819
    %v1824 = vand.u32 2147483647, %v1814
    %vm1825 = vcmp.eq.f32.partialorder %v1824, 8.507059e+37
    %v1826 = vand.u32 %v1814, 2147483648
    %v1827 = vor.u32 1.1754944e-38, %v1826
    %v1828 = vsel %vm1825, %v1827, %v1823
    %v1829 = vmul.f32 1.0, %v1828
    %v1830 = vtanh.pop %v1790
    %v1831 = vxor.u32 %v1791, 2147483648
    %v1832 = vmul.f32 %v1831, 1.442695
    %v1833 = vpow.pop %v1832
    %v1834 = vadd.f32 %v1833, 1.0
    %v1835 = vrcp.pop %v1834
    %v1836 = vmul.f32 %v1834, %v1835
    %v1837 = vsub.f32 1.0, %v1836
    %v1838 = vmul.f32 %v1835, %v1837
    %v1839 = vadd.f32 %v1835, %v1838
    %vm1840 = vweird.f32 %v1834
    %vm1841 = vweird.f32 %v1835
    %vm1842 = vmor %vm1840, %vm1841
    %v1843 = vsel %vm1842, %v1835, %v1839
    %v1844 = vand.u32 2147483647, %v1834
    %vm1845 = vcmp.eq.f32.partialorder %v1844, 8.507059e+37
    %v1846 = vand.u32 %v1834, 2147483648
    %v1847 = vor.u32 1.1754944e-38, %v1846
    %v1848 = vsel %vm1845, %v1847, %v1843
    %v1849 = vmul.f32 1.0, %v1848
    %v1850 = vmul.f32 %v1829, %v1437
    %v1851 = vmul.f32 %v1810, %v1830
    %v1852 = vadd.f32 %v1850, %v1851
    %v1853 = vtanh.pop %v1852
    %v1854 = vmul.f32 %v1849, %v1853
    %s1855 = scalar_lea.vmem [#allocation2], 4
    %v1856 = vld [vmem:[%s1855] ss:$8 sm:$0xf]
    %v1861 = vrot.slane %v1570, 7
    %v1862 = vrot.slane %v1590, 6
    %v1863 = vrot.slane %v1610, 5
    %v1864 = vsel %vm174, %v1550, %v1861
    %v1865 = vsel %vm618, %v1862, %v1863
    %v1866 = vsel %vm620, %v1864, %v1865
    %v1868 = vadd.f32 %v1856, %v1866
    %v1869 = vadd.f32 %v1868, %v75
    %v1870 = vxor.u32 %v1869, 2147483648
    %v1871 = vmul.f32 %v1870, 1.442695
    %v1872 = vpow.pop %v1871
    %v1873 = vadd.f32 %v1872, 1.0
    %v1874 = vrcp.pop %v1873
    %v1875 = vmul.f32 %v1873, %v1874
    %v1876 = vsub.f32 1.0, %v1875
    %v1877 = vmul.f32 %v1874, %v1876
    %v1878 = vadd.f32 %v1874, %v1877
    %vm1879 = vweird.f32 %v1873
    %vm1880 = vweird.f32 %v1874
    %vm1881 = vmor %vm1879, %vm1880
    %v1882 = vsel %vm1881, %v1874, %v1878
    %v1883 = vand.u32 2147483647, %v1873
    %vm1884 = vcmp.eq.f32.partialorder %v1883, 8.507059e+37
    %v1885 = vand.u32 %v1873, 2147483648
    %v1886 = vor.u32 1.1754944e-38, %v1885
    %v1887 = vsel %vm1884, %v1886, %v1882
    %v1888 = vmul.f32 1.0, %v1887
    %v1890 = vrot.slane %v1869, 1
    %v1892 = vxor.u32 %v1890, 2147483648
    %v1893 = vmul.f32 %v1892, 1.442695
    %v1894 = vpow.pop %v1893
    %v1895 = vadd.f32 %v1894, 1.0
    %v1896 = vrcp.pop %v1895
    %v1897 = vmul.f32 %v1895, %v1896
    %v1898 = vsub.f32 1.0, %v1897
    %v1899 = vmul.f32 %v1896, %v1898
    %v1900 = vadd.f32 %v1896, %v1899
    %vm1901 = vweird.f32 %v1895
    %vm1902 = vweird.f32 %v1896
    %vm1903 = vmor %vm1901, %vm1902
    %v1904 = vsel %vm1903, %v1896, %v1900
    %v1905 = vand.u32 2147483647, %v1895
    %vm1906 = vcmp.eq.f32.partialorder %v1905, 8.507059e+37
    %v1907 = vand.u32 %v1895, 2147483648
    %v1908 = vor.u32 1.1754944e-38, %v1907
    %v1909 = vsel %vm1906, %v1908, %v1904
    %v1910 = vmul.f32 1.0, %v1909
    %v1911 = vrot.slane %v1869, 2
    %v1913 = vtanh.pop %v1911
    %v1914 = vrot.slane %v1869, 3
    %v1916 = vxor.u32 %v1914, 2147483648
    %v1917 = vmul.f32 %v1916, 1.442695
    %v1918 = vpow.pop %v1917
    %v1919 = vadd.f32 %v1918, 1.0
    %v1920 = vrcp.pop %v1919
    %v1921 = vmul.f32 %v1919, %v1920
    %v1922 = vsub.f32 1.0, %v1921
    %v1923 = vmul.f32 %v1920, %v1922
    %v1924 = vadd.f32 %v1920, %v1923
    %vm1925 = vweird.f32 %v1919
    %vm1926 = vweird.f32 %v1920
    %vm1927 = vmor %vm1925, %vm1926
    %v1928 = vsel %vm1927, %v1920, %v1924
    %v1929 = vand.u32 2147483647, %v1919
    %vm1930 = vcmp.eq.f32.partialorder %v1929, 8.507059e+37
    %v1931 = vand.u32 %v1919, 2147483648
    %v1932 = vor.u32 1.1754944e-38, %v1931
    %v1933 = vsel %vm1930, %v1932, %v1928
    %v1934 = vmul.f32 1.0, %v1933
    %v1935 = vmul.f32 %v1910, %v1522
    %v1936 = vmul.f32 %v1888, %v1913
    %v1937 = vadd.f32 %v1935, %v1936
    %v1938 = vtanh.pop %v1937
    %v1939 = vmul.f32 %v1934, %v1938
    %v1941 = vrot.slane %v1854, 7
    %v1943 = vsel %vm174, %v1939, %v1941
    %v1945 = vsel %vm272, %v1943, 0
    %1947 = vmatpush.msra.mxu0 0.0
    %1948 = vmatpush.msra.mxu0 0.0
    %1949 = vmatpush.msra.mxu0 0.0
    %1950 = vmatpush.msra.mxu0 0.0
    %1951 = vmatpush.msra.mxu0 0.0
    %1952 = vmatpush.msra.mxu0 0.0
    %1953 = vmatpush.msra.mxu0 0.0
    %1954 = vmatpush.msra.mxu0 0.0
    %1955 = vmatpush.msra.mxu0 %v260
    %1956 = vmatpush.msra.mxu0 %v248
    %1957 = vmatpush.msra.mxu0 %v236
    %1958 = vmatpush.msra.mxu0 %v224
    %1959 = vmatpush.msra.mxu0 %v212
    %1960 = vmatpush.msra.mxu0 %v200
    %1961 = vmatpush.msra.mxu0 %v188
    %1962 = vmatpush.msra.mxu0 %v176
    %1963 = vmatmul.f32.gmra.mxu0 %v1945
    %v1964 = vpop.f32.mrf.mxu0
    %v1965 = vadd.f32 0.0, %v1964
    %1966 = vdwg.mxu0
    %1967 = vmatpush.msra.mxu0 0.0
    %1968 = vmatpush.msra.mxu0 0.0
    %1969 = vmatpush.msra.mxu0 0.0
    %1970 = vmatpush.msra.mxu0 0.0
    %1971 = vmatpush.msra.mxu0 0.0
    %1972 = vmatpush.msra.mxu0 0.0
    %1973 = vmatpush.msra.mxu0 0.0
    %1974 = vmatpush.msra.mxu0 0.0
    %1975 = vmatpush.msra.mxu0 %v261
    %1976 = vmatpush.msra.mxu0 %v249
    %1977 = vmatpush.msra.mxu0 %v237
    %1978 = vmatpush.msra.mxu0 %v225
    %1979 = vmatpush.msra.mxu0 %v213
    %1980 = vmatpush.msra.mxu0 %v201
    %1981 = vmatpush.msra.mxu0 %v189
    %1982 = vmatpush.msra.mxu0 %v177
    %1983 = vmatmul.f32.gmra.mxu0 %v1945
    %v1984 = vpop.f32.mrf.mxu0
    %v1985 = vadd.f32 0.0, %v1984
    %1986 = vdwg.mxu0
    %1987 = vmatpush.msra.mxu0 0.0
    %1988 = vmatpush.msra.mxu0 0.0
    %1989 = vmatpush.msra.mxu0 0.0
    %1990 = vmatpush.msra.mxu0 0.0
    %1991 = vmatpush.msra.mxu0 0.0
    %1992 = vmatpush.msra.mxu0 0.0
    %1993 = vmatpush.msra.mxu0 0.0
    %1994 = vmatpush.msra.mxu0 0.0
    %1995 = vmatpush.msra.mxu0 %v262
    %1996 = vmatpush.msra.mxu0 %v250
    %1997 = vmatpush.msra.mxu0 %v238
    %1998 = vmatpush.msra.mxu0 %v226
    %1999 = vmatpush.msra.mxu0 %v214
    %2000 = vmatpush.msra.mxu0 %v202
    %2001 = vmatpush.msra.mxu0 %v190
    %2002 = vmatpush.msra.mxu0 %v178
    %2003 = vmatmul.f32.gmra.mxu0 %v1945
    %v2004 = vpop.f32.mrf.mxu0
    %v2005 = vadd.f32 0.0, %v2004
    %2006 = vdwg.mxu0
    %2007 = vmatpush.msra.mxu0 0.0
    %2008 = vmatpush.msra.mxu0 0.0
    %2009 = vmatpush.msra.mxu0 0.0
    %2010 = vmatpush.msra.mxu0 0.0
    %2011 = vmatpush.msra.mxu0 0.0
    %2012 = vmatpush.msra.mxu0 0.0
    %2013 = vmatpush.msra.mxu0 0.0
    %2014 = vmatpush.msra.mxu0 0.0
    %2015 = vmatpush.msra.mxu0 %v263
    %2016 = vmatpush.msra.mxu0 %v251
    %2017 = vmatpush.msra.mxu0 %v239
    %2018 = vmatpush.msra.mxu0 %v227
    %2019 = vmatpush.msra.mxu0 %v215
    %2020 = vmatpush.msra.mxu0 %v203
    %2021 = vmatpush.msra.mxu0 %v191
    %2022 = vmatpush.msra.mxu0 %v179
    %2023 = vmatmul.f32.gmra.mxu0 %v1945
    %v2024 = vpop.f32.mrf.mxu0
    %v2025 = vadd.f32 0.0, %v2024
    %2026 = vdwg.mxu0
    %2027 = vmatpush.msra.mxu0 0.0
    %2028 = vmatpush.msra.mxu0 0.0
    %2029 = vmatpush.msra.mxu0 0.0
    %2030 = vmatpush.msra.mxu0 0.0
    %2031 = vmatpush.msra.mxu0 0.0
    %2032 = vmatpush.msra.mxu0 0.0
    %2033 = vmatpush.msra.mxu0 0.0
    %2034 = vmatpush.msra.mxu0 0.0
    %2035 = vmatpush.msra.mxu0 %v264
    %2036 = vmatpush.msra.mxu0 %v252
    %2037 = vmatpush.msra.mxu0 %v240
    %2038 = vmatpush.msra.mxu0 %v228
    %2039 = vmatpush.msra.mxu0 %v216
    %2040 = vmatpush.msra.mxu0 %v204
    %2041 = vmatpush.msra.mxu0 %v192
    %2042 = vmatpush.msra.mxu0 %v180
    %2043 = vmatmul.f32.gmra.mxu0 %v1945
    %v2044 = vpop.f32.mrf.mxu0
    %v2045 = vadd.f32 0.0, %v2044
    %2046 = vdwg.mxu0
    %2047 = vmatpush.msra.mxu0 0.0
    %2048 = vmatpush.msra.mxu0 0.0
    %2049 = vmatpush.msra.mxu0 0.0
    %2050 = vmatpush.msra.mxu0 0.0
    %2051 = vmatpush.msra.mxu0 0.0
    %2052 = vmatpush.msra.mxu0 0.0
    %2053 = vmatpush.msra.mxu0 0.0
    %2054 = vmatpush.msra.mxu0 0.0
    %2055 = vmatpush.msra.mxu0 %v265
    %2056 = vmatpush.msra.mxu0 %v253
    %2057 = vmatpush.msra.mxu0 %v241
    %2058 = vmatpush.msra.mxu0 %v229
    %2059 = vmatpush.msra.mxu0 %v217
    %2060 = vmatpush.msra.mxu0 %v205
    %2061 = vmatpush.msra.mxu0 %v193
    %2062 = vmatpush.msra.mxu0 %v181
    %2063 = vmatmul.f32.gmra.mxu0 %v1945
    %v2064 = vpop.f32.mrf.mxu0
    %v2065 = vadd.f32 0.0, %v2064
    %2066 = vdwg.mxu0
    %2067 = vmatpush.msra.mxu0 0.0
    %2068 = vmatpush.msra.mxu0 0.0
    %2069 = vmatpush.msra.mxu0 0.0
    %2070 = vmatpush.msra.mxu0 0.0
    %2071 = vmatpush.msra.mxu0 0.0
    %2072 = vmatpush.msra.mxu0 0.0
    %2073 = vmatpush.msra.mxu0 0.0
    %2074 = vmatpush.msra.mxu0 0.0
    %2075 = vmatpush.msra.mxu0 %v266
    %2076 = vmatpush.msra.mxu0 %v254
    %2077 = vmatpush.msra.mxu0 %v242
    %2078 = vmatpush.msra.mxu0 %v230
    %2079 = vmatpush.msra.mxu0 %v218
    %2080 = vmatpush.msra.mxu0 %v206
    %2081 = vmatpush.msra.mxu0 %v194
    %2082 = vmatpush.msra.mxu0 %v182
    %2083 = vmatmul.f32.gmra.mxu0 %v1945
    %v2084 = vpop.f32.mrf.mxu0
    %v2085 = vadd.f32 0.0, %v2084
    %2086 = vdwg.mxu0
    %2087 = vmatpush.msra.mxu0 0.0
    %2088 = vmatpush.msra.mxu0 0.0
    %2089 = vmatpush.msra.mxu0 0.0
    %2090 = vmatpush.msra.mxu0 0.0
    %2091 = vmatpush.msra.mxu0 0.0
    %2092 = vmatpush.msra.mxu0 0.0
    %2093 = vmatpush.msra.mxu0 0.0
    %2094 = vmatpush.msra.mxu0 0.0
    %2095 = vmatpush.msra.mxu0 %v267
    %2096 = vmatpush.msra.mxu0 %v255
    %2097 = vmatpush.msra.mxu0 %v243
    %2098 = vmatpush.msra.mxu0 %v231
    %2099 = vmatpush.msra.mxu0 %v219
    %2100 = vmatpush.msra.mxu0 %v207
    %2101 = vmatpush.msra.mxu0 %v195
    %2102 = vmatpush.msra.mxu0 %v183
    %2103 = vmatmul.f32.gmra.mxu0 %v1945
    %v2104 = vpop.f32.mrf.mxu0
    %v2105 = vadd.f32 0.0, %v2104
    %2106 = vdwg.mxu0
    %2107 = vmatpush.msra.mxu0 0.0
    %2108 = vmatpush.msra.mxu0 0.0
    %2109 = vmatpush.msra.mxu0 0.0
    %2110 = vmatpush.msra.mxu0 0.0
    %2111 = vmatpush.msra.mxu0 0.0
    %2112 = vmatpush.msra.mxu0 0.0
    %2113 = vmatpush.msra.mxu0 0.0
    %2114 = vmatpush.msra.mxu0 0.0
    %2115 = vmatpush.msra.mxu0 %v268
    %2116 = vmatpush.msra.mxu0 %v256
    %2117 = vmatpush.msra.mxu0 %v244
    %2118 = vmatpush.msra.mxu0 %v232
    %2119 = vmatpush.msra.mxu0 %v220
    %2120 = vmatpush.msra.mxu0 %v208
    %2121 = vmatpush.msra.mxu0 %v196
    %2122 = vmatpush.msra.mxu0 %v184
    %2123 = vmatmul.f32.gmra.mxu0 %v1945
    %v2124 = vpop.f32.mrf.mxu0
    %v2125 = vadd.f32 0.0, %v2124
    %2126 = vdwg.mxu0
    %2127 = vmatpush.msra.mxu0 0.0
    %2128 = vmatpush.msra.mxu0 0.0
    %2129 = vmatpush.msra.mxu0 0.0
    %2130 = vmatpush.msra.mxu0 0.0
    %2131 = vmatpush.msra.mxu0 0.0
    %2132 = vmatpush.msra.mxu0 0.0
    %2133 = vmatpush.msra.mxu0 0.0
    %2134 = vmatpush.msra.mxu0 0.0
    %2135 = vmatpush.msra.mxu0 %v269
    %2136 = vmatpush.msra.mxu0 %v257
    %2137 = vmatpush.msra.mxu0 %v245
    %2138 = vmatpush.msra.mxu0 %v233
    %2139 = vmatpush.msra.mxu0 %v221
    %2140 = vmatpush.msra.mxu0 %v209
    %2141 = vmatpush.msra.mxu0 %v197
    %2142 = vmatpush.msra.mxu0 %v185
    %2143 = vmatmul.f32.gmra.mxu0 %v1945
    %v2144 = vpop.f32.mrf.mxu0
    %v2145 = vadd.f32 0.0, %v2144
    %2146 = vdwg.mxu0
    %2147 = vmatpush.msra.mxu0 0.0
    %2148 = vmatpush.msra.mxu0 0.0
    %2149 = vmatpush.msra.mxu0 0.0
    %2150 = vmatpush.msra.mxu0 0.0
    %2151 = vmatpush.msra.mxu0 0.0
    %2152 = vmatpush.msra.mxu0 0.0
    %2153 = vmatpush.msra.mxu0 0.0
    %2154 = vmatpush.msra.mxu0 0.0
    %2155 = vmatpush.msra.mxu0 %v270
    %2156 = vmatpush.msra.mxu0 %v258
    %2157 = vmatpush.msra.mxu0 %v246
    %2158 = vmatpush.msra.mxu0 %v234
    %2159 = vmatpush.msra.mxu0 %v222
    %2160 = vmatpush.msra.mxu0 %v210
    %2161 = vmatpush.msra.mxu0 %v198
    %2162 = vmatpush.msra.mxu0 %v186
    %2163 = vmatmul.f32.gmra.mxu0 %v1945
    %v2164 = vpop.f32.mrf.mxu0
    %v2165 = vadd.f32 0.0, %v2164
    %2166 = vdwg.mxu0
    %2167 = vmatpush.msra.mxu0 0.0
    %2168 = vmatpush.msra.mxu0 0.0
    %2169 = vmatpush.msra.mxu0 0.0
    %2170 = vmatpush.msra.mxu0 0.0
    %2171 = vmatpush.msra.mxu0 0.0
    %2172 = vmatpush.msra.mxu0 0.0
    %2173 = vmatpush.msra.mxu0 0.0
    %2174 = vmatpush.msra.mxu0 0.0
    %2175 = vmatpush.msra.mxu0 %v271
    %2176 = vmatpush.msra.mxu0 %v259
    %2177 = vmatpush.msra.mxu0 %v247
    %2178 = vmatpush.msra.mxu0 %v235
    %2179 = vmatpush.msra.mxu0 %v223
    %2180 = vmatpush.msra.mxu0 %v211
    %2181 = vmatpush.msra.mxu0 %v199
    %2182 = vmatpush.msra.mxu0 %v187
    %2183 = vmatmul.f32.gmra.mxu0 %v1945
    %v2184 = vpop.f32.mrf.mxu0
    %v2185 = vadd.f32 0.0, %v2184
    %2186 = vdwg.mxu0
    %v2191 = vrot.slane %v2125, 1
    %v2192 = vrot.slane %v2145, 1
    %v2193 = vrot.slane %v2165, 1
    %v2194 = vrot.slane %v2185, 1
    %v2199 = vadd.f32 %v2045, %v2191
    %v2200 = vadd.f32 %v2065, %v2192
    %v2201 = vadd.f32 %v2085, %v2193
    %v2202 = vadd.f32 %v2105, %v2194
    %v2203 = vadd.f32 %v2199, %v533
    %v2204 = vadd.f32 %v2200, %v534
    %v2205 = vadd.f32 %v2201, %v535
    %v2206 = vadd.f32 %v2202, %v536
    %v2207 = vxor.u32 %v2203, 2147483648
    %v2208 = vmul.f32 %v2207, 1.442695
    %v2209 = vpow.pop %v2208
    %v2210 = vadd.f32 %v2209, 1.0
    %v2211 = vrcp.pop %v2210
    %v2212 = vmul.f32 %v2210, %v2211
    %v2213 = vsub.f32 1.0, %v2212
    %v2214 = vmul.f32 %v2211, %v2213
    %v2215 = vadd.f32 %v2211, %v2214
    %vm2216 = vweird.f32 %v2210
    %vm2217 = vweird.f32 %v2211
    %vm2218 = vmor %vm2216, %vm2217
    %v2219 = vsel %vm2218, %v2211, %v2215
    %v2220 = vand.u32 2147483647, %v2210
    %vm2221 = vcmp.eq.f32.partialorder %v2220, 8.507059e+37
    %v2222 = vand.u32 %v2210, 2147483648
    %v2223 = vor.u32 1.1754944e-38, %v2222
    %v2224 = vsel %vm2221, %v2223, %v2219
    %v2225 = vmul.f32 1.0, %v2224
    %v2226 = vxor.u32 %v2204, 2147483648
    %v2227 = vmul.f32 %v2226, 1.442695
    %v2228 = vpow.pop %v2227
    %v2229 = vadd.f32 %v2228, 1.0
    %v2230 = vrcp.pop %v2229
    %v2231 = vmul.f32 %v2229, %v2230
    %v2232 = vsub.f32 1.0, %v2231
    %v2233 = vmul.f32 %v2230, %v2232
    %v2234 = vadd.f32 %v2230, %v2233
    %vm2235 = vweird.f32 %v2229
    %vm2236 = vweird.f32 %v2230
    %vm2237 = vmor %vm2235, %vm2236
    %v2238 = vsel %vm2237, %v2230, %v2234
    %v2239 = vand.u32 2147483647, %v2229
    %vm2240 = vcmp.eq.f32.partialorder %v2239, 8.507059e+37
    %v2241 = vand.u32 %v2229, 2147483648
    %v2242 = vor.u32 1.1754944e-38, %v2241
    %v2243 = vsel %vm2240, %v2242, %v2238
    %v2244 = vmul.f32 1.0, %v2243
    %v2245 = vtanh.pop %v2205
    %v2246 = vxor.u32 %v2206, 2147483648
    %v2247 = vmul.f32 %v2246, 1.442695
    %v2248 = vpow.pop %v2247
    %v2249 = vadd.f32 %v2248, 1.0
    %v2250 = vrcp.pop %v2249
    %v2251 = vmul.f32 %v2249, %v2250
    %v2252 = vsub.f32 1.0, %v2251
    %v2253 = vmul.f32 %v2250, %v2252
    %v2254 = vadd.f32 %v2250, %v2253
    %vm2255 = vweird.f32 %v2249
    %vm2256 = vweird.f32 %v2250
    %vm2257 = vmor %vm2255, %vm2256
    %v2258 = vsel %vm2257, %v2250, %v2254
    %v2259 = vand.u32 2147483647, %v2249
    %vm2260 = vcmp.eq.f32.partialorder %v2259, 8.507059e+37
    %v2261 = vand.u32 %v2249, 2147483648
    %v2262 = vor.u32 1.1754944e-38, %v2261
    %v2263 = vsel %vm2260, %v2262, %v2258
    %v2264 = vmul.f32 1.0, %v2263
    %v2265 = vmul.f32 %v2244, %v1852
    %v2266 = vmul.f32 %v2225, %v2245
    %v2267 = vadd.f32 %v2265, %v2266
    %v2268 = vtanh.pop %v2267
    %v2269 = vmul.f32 %v2264, %v2268
    %s2270 = scalar_lea.vmem [#allocation2], 5
    %v2271 = vld [vmem:[%s2270] ss:$8 sm:$0xf]
    %v2276 = vrot.slane %v1985, 7
    %v2277 = vrot.slane %v2005, 6
    %v2278 = vrot.slane %v2025, 5
    %v2279 = vsel %vm174, %v1965, %v2276
    %v2280 = vsel %vm618, %v2277, %v2278
    %v2281 = vsel %vm620, %v2279, %v2280
    %v2283 = vadd.f32 %v2271, %v2281
    %v2284 = vadd.f32 %v2283, %v75
    %v2285 = vxor.u32 %v2284, 2147483648
    %v2286 = vmul.f32 %v2285, 1.442695
    %v2287 = vpow.pop %v2286
    %v2288 = vadd.f32 %v2287, 1.0
    %v2289 = vrcp.pop %v2288
    %v2290 = vmul.f32 %v2288, %v2289
    %v2291 = vsub.f32 1.0, %v2290
    %v2292 = vmul.f32 %v2289, %v2291
    %v2293 = vadd.f32 %v2289, %v2292
    %vm2294 = vweird.f32 %v2288
    %vm2295 = vweird.f32 %v2289
    %vm2296 = vmor %vm2294, %vm2295
    %v2297 = vsel %vm2296, %v2289, %v2293
    %v2298 = vand.u32 2147483647, %v2288
    %vm2299 = vcmp.eq.f32.partialorder %v2298, 8.507059e+37
    %v2300 = vand.u32 %v2288, 2147483648
    %v2301 = vor.u32 1.1754944e-38, %v2300
    %v2302 = vsel %vm2299, %v2301, %v2297
    %v2303 = vmul.f32 1.0, %v2302
    %v2305 = vrot.slane %v2284, 1
    %v2307 = vxor.u32 %v2305, 2147483648
    %v2308 = vmul.f32 %v2307, 1.442695
    %v2309 = vpow.pop %v2308
    %v2310 = vadd.f32 %v2309, 1.0
    %v2311 = vrcp.pop %v2310
    %v2312 = vmul.f32 %v2310, %v2311
    %v2313 = vsub.f32 1.0, %v2312
    %v2314 = vmul.f32 %v2311, %v2313
    %v2315 = vadd.f32 %v2311, %v2314
    %vm2316 = vweird.f32 %v2310
    %vm2317 = vweird.f32 %v2311
    %vm2318 = vmor %vm2316, %vm2317
    %v2319 = vsel %vm2318, %v2311, %v2315
    %v2320 = vand.u32 2147483647, %v2310
    %vm2321 = vcmp.eq.f32.partialorder %v2320, 8.507059e+37
    %v2322 = vand.u32 %v2310, 2147483648
    %v2323 = vor.u32 1.1754944e-38, %v2322
    %v2324 = vsel %vm2321, %v2323, %v2319
    %v2325 = vmul.f32 1.0, %v2324
    %v2326 = vrot.slane %v2284, 2
    %v2328 = vtanh.pop %v2326
    %v2329 = vrot.slane %v2284, 3
    %v2331 = vxor.u32 %v2329, 2147483648
    %v2332 = vmul.f32 %v2331, 1.442695
    %v2333 = vpow.pop %v2332
    %v2334 = vadd.f32 %v2333, 1.0
    %v2335 = vrcp.pop %v2334
    %v2336 = vmul.f32 %v2334, %v2335
    %v2337 = vsub.f32 1.0, %v2336
    %v2338 = vmul.f32 %v2335, %v2337
    %v2339 = vadd.f32 %v2335, %v2338
    %vm2340 = vweird.f32 %v2334
    %vm2341 = vweird.f32 %v2335
    %vm2342 = vmor %vm2340, %vm2341
    %v2343 = vsel %vm2342, %v2335, %v2339
    %v2344 = vand.u32 2147483647, %v2334
    %vm2345 = vcmp.eq.f32.partialorder %v2344, 8.507059e+37
    %v2346 = vand.u32 %v2334, 2147483648
    %v2347 = vor.u32 1.1754944e-38, %v2346
    %v2348 = vsel %vm2345, %v2347, %v2343
    %v2349 = vmul.f32 1.0, %v2348
    %v2350 = vmul.f32 %v2325, %v1937
    %v2351 = vmul.f32 %v2303, %v2328
    %v2352 = vadd.f32 %v2350, %v2351
    %v2353 = vtanh.pop %v2352
    %v2354 = vmul.f32 %v2349, %v2353
    %v2356 = vrot.slane %v2269, 7
    %v2358 = vsel %vm174, %v2354, %v2356
    %v2360 = vsel %vm272, %v2358, 0
    %2362 = vmatpush.msra.mxu0 0.0
    %2363 = vmatpush.msra.mxu0 0.0
    %2364 = vmatpush.msra.mxu0 0.0
    %2365 = vmatpush.msra.mxu0 0.0
    %2366 = vmatpush.msra.mxu0 0.0
    %2367 = vmatpush.msra.mxu0 0.0
    %2368 = vmatpush.msra.mxu0 0.0
    %2369 = vmatpush.msra.mxu0 0.0
    %2370 = vmatpush.msra.mxu0 %v260
    %2371 = vmatpush.msra.mxu0 %v248
    %2372 = vmatpush.msra.mxu0 %v236
    %2373 = vmatpush.msra.mxu0 %v224
    %2374 = vmatpush.msra.mxu0 %v212
    %2375 = vmatpush.msra.mxu0 %v200
    %2376 = vmatpush.msra.mxu0 %v188
    %2377 = vmatpush.msra.mxu0 %v176
    %2378 = vmatmul.f32.gmra.mxu0 %v2360
    %v2379 = vpop.f32.mrf.mxu0
    %v2380 = vadd.f32 0.0, %v2379
    %2381 = vdwg.mxu0
    %2382 = vmatpush.msra.mxu0 0.0
    %2383 = vmatpush.msra.mxu0 0.0
    %2384 = vmatpush.msra.mxu0 0.0
    %2385 = vmatpush.msra.mxu0 0.0
    %2386 = vmatpush.msra.mxu0 0.0
    %2387 = vmatpush.msra.mxu0 0.0
    %2388 = vmatpush.msra.mxu0 0.0
    %2389 = vmatpush.msra.mxu0 0.0
    %2390 = vmatpush.msra.mxu0 %v261
    %2391 = vmatpush.msra.mxu0 %v249
    %2392 = vmatpush.msra.mxu0 %v237
    %2393 = vmatpush.msra.mxu0 %v225
    %2394 = vmatpush.msra.mxu0 %v213
    %2395 = vmatpush.msra.mxu0 %v201
    %2396 = vmatpush.msra.mxu0 %v189
    %2397 = vmatpush.msra.mxu0 %v177
    %2398 = vmatmul.f32.gmra.mxu0 %v2360
    %v2399 = vpop.f32.mrf.mxu0
    %v2400 = vadd.f32 0.0, %v2399
    %2401 = vdwg.mxu0
    %2402 = vmatpush.msra.mxu0 0.0
    %2403 = vmatpush.msra.mxu0 0.0
    %2404 = vmatpush.msra.mxu0 0.0
    %2405 = vmatpush.msra.mxu0 0.0
    %2406 = vmatpush.msra.mxu0 0.0
    %2407 = vmatpush.msra.mxu0 0.0
    %2408 = vmatpush.msra.mxu0 0.0
    %2409 = vmatpush.msra.mxu0 0.0
    %2410 = vmatpush.msra.mxu0 %v262
    %2411 = vmatpush.msra.mxu0 %v250
    %2412 = vmatpush.msra.mxu0 %v238
    %2413 = vmatpush.msra.mxu0 %v226
    %2414 = vmatpush.msra.mxu0 %v214
    %2415 = vmatpush.msra.mxu0 %v202
    %2416 = vmatpush.msra.mxu0 %v190
    %2417 = vmatpush.msra.mxu0 %v178
    %2418 = vmatmul.f32.gmra.mxu0 %v2360
    %v2419 = vpop.f32.mrf.mxu0
    %v2420 = vadd.f32 0.0, %v2419
    %2421 = vdwg.mxu0
    %2422 = vmatpush.msra.mxu0 0.0
    %2423 = vmatpush.msra.mxu0 0.0
    %2424 = vmatpush.msra.mxu0 0.0
    %2425 = vmatpush.msra.mxu0 0.0
    %2426 = vmatpush.msra.mxu0 0.0
    %2427 = vmatpush.msra.mxu0 0.0
    %2428 = vmatpush.msra.mxu0 0.0
    %2429 = vmatpush.msra.mxu0 0.0
    %2430 = vmatpush.msra.mxu0 %v263
    %2431 = vmatpush.msra.mxu0 %v251
    %2432 = vmatpush.msra.mxu0 %v239
    %2433 = vmatpush.msra.mxu0 %v227
    %2434 = vmatpush.msra.mxu0 %v215
    %2435 = vmatpush.msra.mxu0 %v203
    %2436 = vmatpush.msra.mxu0 %v191
    %2437 = vmatpush.msra.mxu0 %v179
    %2438 = vmatmul.f32.gmra.mxu0 %v2360
    %v2439 = vpop.f32.mrf.mxu0
    %v2440 = vadd.f32 0.0, %v2439
    %2441 = vdwg.mxu0
    %2442 = vmatpush.msra.mxu0 0.0
    %2443 = vmatpush.msra.mxu0 0.0
    %2444 = vmatpush.msra.mxu0 0.0
    %2445 = vmatpush.msra.mxu0 0.0
    %2446 = vmatpush.msra.mxu0 0.0
    %2447 = vmatpush.msra.mxu0 0.0
    %2448 = vmatpush.msra.mxu0 0.0
    %2449 = vmatpush.msra.mxu0 0.0
    %2450 = vmatpush.msra.mxu0 %v264
    %2451 = vmatpush.msra.mxu0 %v252
    %2452 = vmatpush.msra.mxu0 %v240
    %2453 = vmatpush.msra.mxu0 %v228
    %2454 = vmatpush.msra.mxu0 %v216
    %2455 = vmatpush.msra.mxu0 %v204
    %2456 = vmatpush.msra.mxu0 %v192
    %2457 = vmatpush.msra.mxu0 %v180
    %2458 = vmatmul.f32.gmra.mxu0 %v2360
    %v2459 = vpop.f32.mrf.mxu0
    %v2460 = vadd.f32 0.0, %v2459
    %2461 = vdwg.mxu0
    %2462 = vmatpush.msra.mxu0 0.0
    %2463 = vmatpush.msra.mxu0 0.0
    %2464 = vmatpush.msra.mxu0 0.0
    %2465 = vmatpush.msra.mxu0 0.0
    %2466 = vmatpush.msra.mxu0 0.0
    %2467 = vmatpush.msra.mxu0 0.0
    %2468 = vmatpush.msra.mxu0 0.0
    %2469 = vmatpush.msra.mxu0 0.0
    %2470 = vmatpush.msra.mxu0 %v265
    %2471 = vmatpush.msra.mxu0 %v253
    %2472 = vmatpush.msra.mxu0 %v241
    %2473 = vmatpush.msra.mxu0 %v229
    %2474 = vmatpush.msra.mxu0 %v217
    %2475 = vmatpush.msra.mxu0 %v205
    %2476 = vmatpush.msra.mxu0 %v193
    %2477 = vmatpush.msra.mxu0 %v181
    %2478 = vmatmul.f32.gmra.mxu0 %v2360
    %v2479 = vpop.f32.mrf.mxu0
    %v2480 = vadd.f32 0.0, %v2479
    %2481 = vdwg.mxu0
    %2482 = vmatpush.msra.mxu0 0.0
    %2483 = vmatpush.msra.mxu0 0.0
    %2484 = vmatpush.msra.mxu0 0.0
    %2485 = vmatpush.msra.mxu0 0.0
    %2486 = vmatpush.msra.mxu0 0.0
    %2487 = vmatpush.msra.mxu0 0.0
    %2488 = vmatpush.msra.mxu0 0.0
    %2489 = vmatpush.msra.mxu0 0.0
    %2490 = vmatpush.msra.mxu0 %v266
    %2491 = vmatpush.msra.mxu0 %v254
    %2492 = vmatpush.msra.mxu0 %v242
    %2493 = vmatpush.msra.mxu0 %v230
    %2494 = vmatpush.msra.mxu0 %v218
    %2495 = vmatpush.msra.mxu0 %v206
    %2496 = vmatpush.msra.mxu0 %v194
    %2497 = vmatpush.msra.mxu0 %v182
    %2498 = vmatmul.f32.gmra.mxu0 %v2360
    %v2499 = vpop.f32.mrf.mxu0
    %v2500 = vadd.f32 0.0, %v2499
    %2501 = vdwg.mxu0
    %2502 = vmatpush.msra.mxu0 0.0
    %2503 = vmatpush.msra.mxu0 0.0
    %2504 = vmatpush.msra.mxu0 0.0
    %2505 = vmatpush.msra.mxu0 0.0
    %2506 = vmatpush.msra.mxu0 0.0
    %2507 = vmatpush.msra.mxu0 0.0
    %2508 = vmatpush.msra.mxu0 0.0
    %2509 = vmatpush.msra.mxu0 0.0
    %2510 = vmatpush.msra.mxu0 %v267
    %2511 = vmatpush.msra.mxu0 %v255
    %2512 = vmatpush.msra.mxu0 %v243
    %2513 = vmatpush.msra.mxu0 %v231
    %2514 = vmatpush.msra.mxu0 %v219
    %2515 = vmatpush.msra.mxu0 %v207
    %2516 = vmatpush.msra.mxu0 %v195
    %2517 = vmatpush.msra.mxu0 %v183
    %2518 = vmatmul.f32.gmra.mxu0 %v2360
    %v2519 = vpop.f32.mrf.mxu0
    %v2520 = vadd.f32 0.0, %v2519
    %2521 = vdwg.mxu0
    %2522 = vmatpush.msra.mxu0 0.0
    %2523 = vmatpush.msra.mxu0 0.0
    %2524 = vmatpush.msra.mxu0 0.0
    %2525 = vmatpush.msra.mxu0 0.0
    %2526 = vmatpush.msra.mxu0 0.0
    %2527 = vmatpush.msra.mxu0 0.0
    %2528 = vmatpush.msra.mxu0 0.0
    %2529 = vmatpush.msra.mxu0 0.0
    %2530 = vmatpush.msra.mxu0 %v268
    %2531 = vmatpush.msra.mxu0 %v256
    %2532 = vmatpush.msra.mxu0 %v244
    %2533 = vmatpush.msra.mxu0 %v232
    %2534 = vmatpush.msra.mxu0 %v220
    %2535 = vmatpush.msra.mxu0 %v208
    %2536 = vmatpush.msra.mxu0 %v196
    %2537 = vmatpush.msra.mxu0 %v184
    %2538 = vmatmul.f32.gmra.mxu0 %v2360
    %v2539 = vpop.f32.mrf.mxu0
    %v2540 = vadd.f32 0.0, %v2539
    %2541 = vdwg.mxu0
    %2542 = vmatpush.msra.mxu0 0.0
    %2543 = vmatpush.msra.mxu0 0.0
    %2544 = vmatpush.msra.mxu0 0.0
    %2545 = vmatpush.msra.mxu0 0.0
    %2546 = vmatpush.msra.mxu0 0.0
    %2547 = vmatpush.msra.mxu0 0.0
    %2548 = vmatpush.msra.mxu0 0.0
    %2549 = vmatpush.msra.mxu0 0.0
    %2550 = vmatpush.msra.mxu0 %v269
    %2551 = vmatpush.msra.mxu0 %v257
    %2552 = vmatpush.msra.mxu0 %v245
    %2553 = vmatpush.msra.mxu0 %v233
    %2554 = vmatpush.msra.mxu0 %v221
    %2555 = vmatpush.msra.mxu0 %v209
    %2556 = vmatpush.msra.mxu0 %v197
    %2557 = vmatpush.msra.mxu0 %v185
    %2558 = vmatmul.f32.gmra.mxu0 %v2360
    %v2559 = vpop.f32.mrf.mxu0
    %v2560 = vadd.f32 0.0, %v2559
    %2561 = vdwg.mxu0
    %2562 = vmatpush.msra.mxu0 0.0
    %2563 = vmatpush.msra.mxu0 0.0
    %2564 = vmatpush.msra.mxu0 0.0
    %2565 = vmatpush.msra.mxu0 0.0
    %2566 = vmatpush.msra.mxu0 0.0
    %2567 = vmatpush.msra.mxu0 0.0
    %2568 = vmatpush.msra.mxu0 0.0
    %2569 = vmatpush.msra.mxu0 0.0
    %2570 = vmatpush.msra.mxu0 %v270
    %2571 = vmatpush.msra.mxu0 %v258
    %2572 = vmatpush.msra.mxu0 %v246
    %2573 = vmatpush.msra.mxu0 %v234
    %2574 = vmatpush.msra.mxu0 %v222
    %2575 = vmatpush.msra.mxu0 %v210
    %2576 = vmatpush.msra.mxu0 %v198
    %2577 = vmatpush.msra.mxu0 %v186
    %2578 = vmatmul.f32.gmra.mxu0 %v2360
    %v2579 = vpop.f32.mrf.mxu0
    %v2580 = vadd.f32 0.0, %v2579
    %2581 = vdwg.mxu0
    %2582 = vmatpush.msra.mxu0 0.0
    %2583 = vmatpush.msra.mxu0 0.0
    %2584 = vmatpush.msra.mxu0 0.0
    %2585 = vmatpush.msra.mxu0 0.0
    %2586 = vmatpush.msra.mxu0 0.0
    %2587 = vmatpush.msra.mxu0 0.0
    %2588 = vmatpush.msra.mxu0 0.0
    %2589 = vmatpush.msra.mxu0 0.0
    %2590 = vmatpush.msra.mxu0 %v271
    %2591 = vmatpush.msra.mxu0 %v259
    %2592 = vmatpush.msra.mxu0 %v247
    %2593 = vmatpush.msra.mxu0 %v235
    %2594 = vmatpush.msra.mxu0 %v223
    %2595 = vmatpush.msra.mxu0 %v211
    %2596 = vmatpush.msra.mxu0 %v199
    %2597 = vmatpush.msra.mxu0 %v187
    %2598 = vmatmul.f32.gmra.mxu0 %v2360
    %v2599 = vpop.f32.mrf.mxu0
    %v2600 = vadd.f32 0.0, %v2599
    %2601 = vdwg.mxu0
    %v2606 = vrot.slane %v2540, 1
    %v2607 = vrot.slane %v2560, 1
    %v2608 = vrot.slane %v2580, 1
    %v2609 = vrot.slane %v2600, 1
    %v2614 = vadd.f32 %v2460, %v2606
    %v2615 = vadd.f32 %v2480, %v2607
    %v2616 = vadd.f32 %v2500, %v2608
    %v2617 = vadd.f32 %v2520, %v2609
    %v2618 = vadd.f32 %v2614, %v533
    %v2619 = vadd.f32 %v2615, %v534
    %v2620 = vadd.f32 %v2616, %v535
    %v2621 = vadd.f32 %v2617, %v536
    %v2622 = vxor.u32 %v2618, 2147483648
    %v2623 = vmul.f32 %v2622, 1.442695
    %v2624 = vpow.pop %v2623
    %v2625 = vadd.f32 %v2624, 1.0
    %v2626 = vrcp.pop %v2625
    %v2627 = vmul.f32 %v2625, %v2626
    %v2628 = vsub.f32 1.0, %v2627
    %v2629 = vmul.f32 %v2626, %v2628
    %v2630 = vadd.f32 %v2626, %v2629
    %vm2631 = vweird.f32 %v2625
    %vm2632 = vweird.f32 %v2626
    %vm2633 = vmor %vm2631, %vm2632
    %v2634 = vsel %vm2633, %v2626, %v2630
    %v2635 = vand.u32 2147483647, %v2625
    %vm2636 = vcmp.eq.f32.partialorder %v2635, 8.507059e+37
    %v2637 = vand.u32 %v2625, 2147483648
    %v2638 = vor.u32 1.1754944e-38, %v2637
    %v2639 = vsel %vm2636, %v2638, %v2634
    %v2640 = vmul.f32 1.0, %v2639
    %v2641 = vxor.u32 %v2619, 2147483648
    %v2642 = vmul.f32 %v2641, 1.442695
    %v2643 = vpow.pop %v2642
    %v2644 = vadd.f32 %v2643, 1.0
    %v2645 = vrcp.pop %v2644
    %v2646 = vmul.f32 %v2644, %v2645
    %v2647 = vsub.f32 1.0, %v2646
    %v2648 = vmul.f32 %v2645, %v2647
    %v2649 = vadd.f32 %v2645, %v2648
    %vm2650 = vweird.f32 %v2644
    %vm2651 = vweird.f32 %v2645
    %vm2652 = vmor %vm2650, %vm2651
    %v2653 = vsel %vm2652, %v2645, %v2649
    %v2654 = vand.u32 2147483647, %v2644
    %vm2655 = vcmp.eq.f32.partialorder %v2654, 8.507059e+37
    %v2656 = vand.u32 %v2644, 2147483648
    %v2657 = vor.u32 1.1754944e-38, %v2656
    %v2658 = vsel %vm2655, %v2657, %v2653
    %v2659 = vmul.f32 1.0, %v2658
    %v2660 = vtanh.pop %v2620
    %v2661 = vxor.u32 %v2621, 2147483648
    %v2662 = vmul.f32 %v2661, 1.442695
    %v2663 = vpow.pop %v2662
    %v2664 = vadd.f32 %v2663, 1.0
    %v2665 = vrcp.pop %v2664
    %v2666 = vmul.f32 %v2664, %v2665
    %v2667 = vsub.f32 1.0, %v2666
    %v2668 = vmul.f32 %v2665, %v2667
    %v2669 = vadd.f32 %v2665, %v2668
    %vm2670 = vweird.f32 %v2664
    %vm2671 = vweird.f32 %v2665
    %vm2672 = vmor %vm2670, %vm2671
    %v2673 = vsel %vm2672, %v2665, %v2669
    %v2674 = vand.u32 2147483647, %v2664
    %vm2675 = vcmp.eq.f32.partialorder %v2674, 8.507059e+37
    %v2676 = vand.u32 %v2664, 2147483648
    %v2677 = vor.u32 1.1754944e-38, %v2676
    %v2678 = vsel %vm2675, %v2677, %v2673
    %v2679 = vmul.f32 1.0, %v2678
    %v2680 = vmul.f32 %v2659, %v2267
    %v2681 = vmul.f32 %v2640, %v2660
    %v2682 = vadd.f32 %v2680, %v2681
    %v2683 = vtanh.pop %v2682
    %v2684 = vmul.f32 %v2679, %v2683
    %s2685 = scalar_lea.vmem [#allocation2], 6
    %v2686 = vld [vmem:[%s2685] ss:$8 sm:$0xf]
    %v2691 = vrot.slane %v2400, 7
    %v2692 = vrot.slane %v2420, 6
    %v2693 = vrot.slane %v2440, 5
    %v2694 = vsel %vm174, %v2380, %v2691
    %v2695 = vsel %vm618, %v2692, %v2693
    %v2696 = vsel %vm620, %v2694, %v2695
    %v2698 = vadd.f32 %v2686, %v2696
    %v2699 = vadd.f32 %v2698, %v75
    %v2700 = vxor.u32 %v2699, 2147483648
    %v2701 = vmul.f32 %v2700, 1.442695
    %v2702 = vpow.pop %v2701
    %v2703 = vadd.f32 %v2702, 1.0
    %v2704 = vrcp.pop %v2703
    %v2705 = vmul.f32 %v2703, %v2704
    %v2706 = vsub.f32 1.0, %v2705
    %v2707 = vmul.f32 %v2704, %v2706
    %v2708 = vadd.f32 %v2704, %v2707
    %vm2709 = vweird.f32 %v2703
    %vm2710 = vweird.f32 %v2704
    %vm2711 = vmor %vm2709, %vm2710
    %v2712 = vsel %vm2711, %v2704, %v2708
    %v2713 = vand.u32 2147483647, %v2703
    %vm2714 = vcmp.eq.f32.partialorder %v2713, 8.507059e+37
    %v2715 = vand.u32 %v2703, 2147483648
    %v2716 = vor.u32 1.1754944e-38, %v2715
    %v2717 = vsel %vm2714, %v2716, %v2712
    %v2718 = vmul.f32 1.0, %v2717
    %v2720 = vrot.slane %v2699, 1
    %v2722 = vxor.u32 %v2720, 2147483648
    %v2723 = vmul.f32 %v2722, 1.442695
    %v2724 = vpow.pop %v2723
    %v2725 = vadd.f32 %v2724, 1.0
    %v2726 = vrcp.pop %v2725
    %v2727 = vmul.f32 %v2725, %v2726
    %v2728 = vsub.f32 1.0, %v2727
    %v2729 = vmul.f32 %v2726, %v2728
    %v2730 = vadd.f32 %v2726, %v2729
    %vm2731 = vweird.f32 %v2725
    %vm2732 = vweird.f32 %v2726
    %vm2733 = vmor %vm2731, %vm2732
    %v2734 = vsel %vm2733, %v2726, %v2730
    %v2735 = vand.u32 2147483647, %v2725
    %vm2736 = vcmp.eq.f32.partialorder %v2735, 8.507059e+37
    %v2737 = vand.u32 %v2725, 2147483648
    %v2738 = vor.u32 1.1754944e-38, %v2737
    %v2739 = vsel %vm2736, %v2738, %v2734
    %v2740 = vmul.f32 1.0, %v2739
    %v2741 = vrot.slane %v2699, 2
    %v2743 = vtanh.pop %v2741
    %v2744 = vrot.slane %v2699, 3
    %v2746 = vxor.u32 %v2744, 2147483648
    %v2747 = vmul.f32 %v2746, 1.442695
    %v2748 = vpow.pop %v2747
    %v2749 = vadd.f32 %v2748, 1.0
    %v2750 = vrcp.pop %v2749
    %v2751 = vmul.f32 %v2749, %v2750
    %v2752 = vsub.f32 1.0, %v2751
    %v2753 = vmul.f32 %v2750, %v2752
    %v2754 = vadd.f32 %v2750, %v2753
    %vm2755 = vweird.f32 %v2749
    %vm2756 = vweird.f32 %v2750
    %vm2757 = vmor %vm2755, %vm2756
    %v2758 = vsel %vm2757, %v2750, %v2754
    %v2759 = vand.u32 2147483647, %v2749
    %vm2760 = vcmp.eq.f32.partialorder %v2759, 8.507059e+37
    %v2761 = vand.u32 %v2749, 2147483648
    %v2762 = vor.u32 1.1754944e-38, %v2761
    %v2763 = vsel %vm2760, %v2762, %v2758
    %v2764 = vmul.f32 1.0, %v2763
    %v2765 = vmul.f32 %v2740, %v2352
    %v2766 = vmul.f32 %v2718, %v2743
    %v2767 = vadd.f32 %v2765, %v2766
    %v2768 = vtanh.pop %v2767
    %v2769 = vmul.f32 %v2764, %v2768
    %v2771 = vrot.slane %v2684, 7
    %v2773 = vsel %vm174, %v2769, %v2771
    %v2775 = vsel %vm272, %v2773, 0
    %2777 = vmatpush.msra.mxu0 0.0
    %2778 = vmatpush.msra.mxu0 0.0
    %2779 = vmatpush.msra.mxu0 0.0
    %2780 = vmatpush.msra.mxu0 0.0
    %2781 = vmatpush.msra.mxu0 0.0
    %2782 = vmatpush.msra.mxu0 0.0
    %2783 = vmatpush.msra.mxu0 0.0
    %2784 = vmatpush.msra.mxu0 0.0
    %2785 = vmatpush.msra.mxu0 %v260
    %2786 = vmatpush.msra.mxu0 %v248
    %2787 = vmatpush.msra.mxu0 %v236
    %2788 = vmatpush.msra.mxu0 %v224
    %2789 = vmatpush.msra.mxu0 %v212
    %2790 = vmatpush.msra.mxu0 %v200
    %2791 = vmatpush.msra.mxu0 %v188
    %2792 = vmatpush.msra.mxu0 %v176
    %2793 = vmatmul.f32.gmra.mxu0 %v2775
    %v2794 = vpop.f32.mrf.mxu0
    %v2795 = vadd.f32 0.0, %v2794
    %2796 = vdwg.mxu0
    %2797 = vmatpush.msra.mxu0 0.0
    %2798 = vmatpush.msra.mxu0 0.0
    %2799 = vmatpush.msra.mxu0 0.0
    %2800 = vmatpush.msra.mxu0 0.0
    %2801 = vmatpush.msra.mxu0 0.0
    %2802 = vmatpush.msra.mxu0 0.0
    %2803 = vmatpush.msra.mxu0 0.0
    %2804 = vmatpush.msra.mxu0 0.0
    %2805 = vmatpush.msra.mxu0 %v261
    %2806 = vmatpush.msra.mxu0 %v249
    %2807 = vmatpush.msra.mxu0 %v237
    %2808 = vmatpush.msra.mxu0 %v225
    %2809 = vmatpush.msra.mxu0 %v213
    %2810 = vmatpush.msra.mxu0 %v201
    %2811 = vmatpush.msra.mxu0 %v189
    %2812 = vmatpush.msra.mxu0 %v177
    %2813 = vmatmul.f32.gmra.mxu0 %v2775
    %v2814 = vpop.f32.mrf.mxu0
    %v2815 = vadd.f32 0.0, %v2814
    %2816 = vdwg.mxu0
    %2817 = vmatpush.msra.mxu0 0.0
    %2818 = vmatpush.msra.mxu0 0.0
    %2819 = vmatpush.msra.mxu0 0.0
    %2820 = vmatpush.msra.mxu0 0.0
    %2821 = vmatpush.msra.mxu0 0.0
    %2822 = vmatpush.msra.mxu0 0.0
    %2823 = vmatpush.msra.mxu0 0.0
    %2824 = vmatpush.msra.mxu0 0.0
    %2825 = vmatpush.msra.mxu0 %v262
    %2826 = vmatpush.msra.mxu0 %v250
    %2827 = vmatpush.msra.mxu0 %v238
    %2828 = vmatpush.msra.mxu0 %v226
    %2829 = vmatpush.msra.mxu0 %v214
    %2830 = vmatpush.msra.mxu0 %v202
    %2831 = vmatpush.msra.mxu0 %v190
    %2832 = vmatpush.msra.mxu0 %v178
    %2833 = vmatmul.f32.gmra.mxu0 %v2775
    %v2834 = vpop.f32.mrf.mxu0
    %v2835 = vadd.f32 0.0, %v2834
    %2836 = vdwg.mxu0
    %2837 = vmatpush.msra.mxu0 0.0
    %2838 = vmatpush.msra.mxu0 0.0
    %2839 = vmatpush.msra.mxu0 0.0
    %2840 = vmatpush.msra.mxu0 0.0
    %2841 = vmatpush.msra.mxu0 0.0
    %2842 = vmatpush.msra.mxu0 0.0
    %2843 = vmatpush.msra.mxu0 0.0
    %2844 = vmatpush.msra.mxu0 0.0
    %2845 = vmatpush.msra.mxu0 %v263
    %2846 = vmatpush.msra.mxu0 %v251
    %2847 = vmatpush.msra.mxu0 %v239
    %2848 = vmatpush.msra.mxu0 %v227
    %2849 = vmatpush.msra.mxu0 %v215
    %2850 = vmatpush.msra.mxu0 %v203
    %2851 = vmatpush.msra.mxu0 %v191
    %2852 = vmatpush.msra.mxu0 %v179
    %2853 = vmatmul.f32.gmra.mxu0 %v2775
    %v2854 = vpop.f32.mrf.mxu0
    %v2855 = vadd.f32 0.0, %v2854
    %2856 = vdwg.mxu0
    %2857 = vmatpush.msra.mxu0 0.0
    %2858 = vmatpush.msra.mxu0 0.0
    %2859 = vmatpush.msra.mxu0 0.0
    %2860 = vmatpush.msra.mxu0 0.0
    %2861 = vmatpush.msra.mxu0 0.0
    %2862 = vmatpush.msra.mxu0 0.0
    %2863 = vmatpush.msra.mxu0 0.0
    %2864 = vmatpush.msra.mxu0 0.0
    %2865 = vmatpush.msra.mxu0 %v264
    %2866 = vmatpush.msra.mxu0 %v252
    %2867 = vmatpush.msra.mxu0 %v240
    %2868 = vmatpush.msra.mxu0 %v228
    %2869 = vmatpush.msra.mxu0 %v216
    %2870 = vmatpush.msra.mxu0 %v204
    %2871 = vmatpush.msra.mxu0 %v192
    %2872 = vmatpush.msra.mxu0 %v180
    %2873 = vmatmul.f32.gmra.mxu0 %v2775
    %v2874 = vpop.f32.mrf.mxu0
    %v2875 = vadd.f32 0.0, %v2874
    %2876 = vdwg.mxu0
    %2877 = vmatpush.msra.mxu0 0.0
    %2878 = vmatpush.msra.mxu0 0.0
    %2879 = vmatpush.msra.mxu0 0.0
    %2880 = vmatpush.msra.mxu0 0.0
    %2881 = vmatpush.msra.mxu0 0.0
    %2882 = vmatpush.msra.mxu0 0.0
    %2883 = vmatpush.msra.mxu0 0.0
    %2884 = vmatpush.msra.mxu0 0.0
    %2885 = vmatpush.msra.mxu0 %v265
    %2886 = vmatpush.msra.mxu0 %v253
    %2887 = vmatpush.msra.mxu0 %v241
    %2888 = vmatpush.msra.mxu0 %v229
    %2889 = vmatpush.msra.mxu0 %v217
    %2890 = vmatpush.msra.mxu0 %v205
    %2891 = vmatpush.msra.mxu0 %v193
    %2892 = vmatpush.msra.mxu0 %v181
    %2893 = vmatmul.f32.gmra.mxu0 %v2775
    %v2894 = vpop.f32.mrf.mxu0
    %v2895 = vadd.f32 0.0, %v2894
    %2896 = vdwg.mxu0
    %2897 = vmatpush.msra.mxu0 0.0
    %2898 = vmatpush.msra.mxu0 0.0
    %2899 = vmatpush.msra.mxu0 0.0
    %2900 = vmatpush.msra.mxu0 0.0
    %2901 = vmatpush.msra.mxu0 0.0
    %2902 = vmatpush.msra.mxu0 0.0
    %2903 = vmatpush.msra.mxu0 0.0
    %2904 = vmatpush.msra.mxu0 0.0
    %2905 = vmatpush.msra.mxu0 %v266
    %2906 = vmatpush.msra.mxu0 %v254
    %2907 = vmatpush.msra.mxu0 %v242
    %2908 = vmatpush.msra.mxu0 %v230
    %2909 = vmatpush.msra.mxu0 %v218
    %2910 = vmatpush.msra.mxu0 %v206
    %2911 = vmatpush.msra.mxu0 %v194
    %2912 = vmatpush.msra.mxu0 %v182
    %2913 = vmatmul.f32.gmra.mxu0 %v2775
    %v2914 = vpop.f32.mrf.mxu0
    %v2915 = vadd.f32 0.0, %v2914
    %2916 = vdwg.mxu0
    %2917 = vmatpush.msra.mxu0 0.0
    %2918 = vmatpush.msra.mxu0 0.0
    %2919 = vmatpush.msra.mxu0 0.0
    %2920 = vmatpush.msra.mxu0 0.0
    %2921 = vmatpush.msra.mxu0 0.0
    %2922 = vmatpush.msra.mxu0 0.0
    %2923 = vmatpush.msra.mxu0 0.0
    %2924 = vmatpush.msra.mxu0 0.0
    %2925 = vmatpush.msra.mxu0 %v267
    %2926 = vmatpush.msra.mxu0 %v255
    %2927 = vmatpush.msra.mxu0 %v243
    %2928 = vmatpush.msra.mxu0 %v231
    %2929 = vmatpush.msra.mxu0 %v219
    %2930 = vmatpush.msra.mxu0 %v207
    %2931 = vmatpush.msra.mxu0 %v195
    %2932 = vmatpush.msra.mxu0 %v183
    %2933 = vmatmul.f32.gmra.mxu0 %v2775
    %v2934 = vpop.f32.mrf.mxu0
    %v2935 = vadd.f32 0.0, %v2934
    %2936 = vdwg.mxu0
    %2937 = vmatpush.msra.mxu0 0.0
    %2938 = vmatpush.msra.mxu0 0.0
    %2939 = vmatpush.msra.mxu0 0.0
    %2940 = vmatpush.msra.mxu0 0.0
    %2941 = vmatpush.msra.mxu0 0.0
    %2942 = vmatpush.msra.mxu0 0.0
    %2943 = vmatpush.msra.mxu0 0.0
    %2944 = vmatpush.msra.mxu0 0.0
    %2945 = vmatpush.msra.mxu0 %v268
    %2946 = vmatpush.msra.mxu0 %v256
    %2947 = vmatpush.msra.mxu0 %v244
    %2948 = vmatpush.msra.mxu0 %v232
    %2949 = vmatpush.msra.mxu0 %v220
    %2950 = vmatpush.msra.mxu0 %v208
    %2951 = vmatpush.msra.mxu0 %v196
    %2952 = vmatpush.msra.mxu0 %v184
    %2953 = vmatmul.f32.gmra.mxu0 %v2775
    %v2954 = vpop.f32.mrf.mxu0
    %v2955 = vadd.f32 0.0, %v2954
    %2956 = vdwg.mxu0
    %2957 = vmatpush.msra.mxu0 0.0
    %2958 = vmatpush.msra.mxu0 0.0
    %2959 = vmatpush.msra.mxu0 0.0
    %2960 = vmatpush.msra.mxu0 0.0
    %2961 = vmatpush.msra.mxu0 0.0
    %2962 = vmatpush.msra.mxu0 0.0
    %2963 = vmatpush.msra.mxu0 0.0
    %2964 = vmatpush.msra.mxu0 0.0
    %2965 = vmatpush.msra.mxu0 %v269
    %2966 = vmatpush.msra.mxu0 %v257
    %2967 = vmatpush.msra.mxu0 %v245
    %2968 = vmatpush.msra.mxu0 %v233
    %2969 = vmatpush.msra.mxu0 %v221
    %2970 = vmatpush.msra.mxu0 %v209
    %2971 = vmatpush.msra.mxu0 %v197
    %2972 = vmatpush.msra.mxu0 %v185
    %2973 = vmatmul.f32.gmra.mxu0 %v2775
    %v2974 = vpop.f32.mrf.mxu0
    %v2975 = vadd.f32 0.0, %v2974
    %2976 = vdwg.mxu0
    %2977 = vmatpush.msra.mxu0 0.0
    %2978 = vmatpush.msra.mxu0 0.0
    %2979 = vmatpush.msra.mxu0 0.0
    %2980 = vmatpush.msra.mxu0 0.0
    %2981 = vmatpush.msra.mxu0 0.0
    %2982 = vmatpush.msra.mxu0 0.0
    %2983 = vmatpush.msra.mxu0 0.0
    %2984 = vmatpush.msra.mxu0 0.0
    %2985 = vmatpush.msra.mxu0 %v270
    %2986 = vmatpush.msra.mxu0 %v258
    %2987 = vmatpush.msra.mxu0 %v246
    %2988 = vmatpush.msra.mxu0 %v234
    %2989 = vmatpush.msra.mxu0 %v222
    %2990 = vmatpush.msra.mxu0 %v210
    %2991 = vmatpush.msra.mxu0 %v198
    %2992 = vmatpush.msra.mxu0 %v186
    %2993 = vmatmul.f32.gmra.mxu0 %v2775
    %v2994 = vpop.f32.mrf.mxu0
    %v2995 = vadd.f32 0.0, %v2994
    %2996 = vdwg.mxu0
    %2997 = vmatpush.msra.mxu0 0.0
    %2998 = vmatpush.msra.mxu0 0.0
    %2999 = vmatpush.msra.mxu0 0.0
    %3000 = vmatpush.msra.mxu0 0.0
    %3001 = vmatpush.msra.mxu0 0.0
    %3002 = vmatpush.msra.mxu0 0.0
    %3003 = vmatpush.msra.mxu0 0.0
    %3004 = vmatpush.msra.mxu0 0.0
    %3005 = vmatpush.msra.mxu0 %v271
    %3006 = vmatpush.msra.mxu0 %v259
    %3007 = vmatpush.msra.mxu0 %v247
    %3008 = vmatpush.msra.mxu0 %v235
    %3009 = vmatpush.msra.mxu0 %v223
    %3010 = vmatpush.msra.mxu0 %v211
    %3011 = vmatpush.msra.mxu0 %v199
    %3012 = vmatpush.msra.mxu0 %v187
    %3013 = vmatmul.f32.gmra.mxu0 %v2775
    %v3014 = vpop.f32.mrf.mxu0
    %v3015 = vadd.f32 0.0, %v3014
    %3016 = vdwg.mxu0
    %v3021 = vrot.slane %v2955, 1
    %v3022 = vrot.slane %v2975, 1
    %v3023 = vrot.slane %v2995, 1
    %v3024 = vrot.slane %v3015, 1
    %v3029 = vadd.f32 %v2875, %v3021
    %v3030 = vadd.f32 %v2895, %v3022
    %v3031 = vadd.f32 %v2915, %v3023
    %v3032 = vadd.f32 %v2935, %v3024
    %v3033 = vadd.f32 %v3029, %v533
    %v3034 = vadd.f32 %v3030, %v534
    %v3035 = vadd.f32 %v3031, %v535
    %v3036 = vadd.f32 %v3032, %v536
    %v3037 = vxor.u32 %v3033, 2147483648
    %v3038 = vmul.f32 %v3037, 1.442695
    %v3039 = vpow.pop %v3038
    %v3040 = vadd.f32 %v3039, 1.0
    %v3041 = vrcp.pop %v3040
    %v3042 = vmul.f32 %v3040, %v3041
    %v3043 = vsub.f32 1.0, %v3042
    %v3044 = vmul.f32 %v3041, %v3043
    %v3045 = vadd.f32 %v3041, %v3044
    %vm3046 = vweird.f32 %v3040
    %vm3047 = vweird.f32 %v3041
    %vm3048 = vmor %vm3046, %vm3047
    %v3049 = vsel %vm3048, %v3041, %v3045
    %v3050 = vand.u32 2147483647, %v3040
    %vm3051 = vcmp.eq.f32.partialorder %v3050, 8.507059e+37
    %v3052 = vand.u32 %v3040, 2147483648
    %v3053 = vor.u32 1.1754944e-38, %v3052
    %v3054 = vsel %vm3051, %v3053, %v3049
    %v3055 = vmul.f32 1.0, %v3054
    %v3056 = vxor.u32 %v3034, 2147483648
    %v3057 = vmul.f32 %v3056, 1.442695
    %v3058 = vpow.pop %v3057
    %v3059 = vadd.f32 %v3058, 1.0
    %v3060 = vrcp.pop %v3059
    %v3061 = vmul.f32 %v3059, %v3060
    %v3062 = vsub.f32 1.0, %v3061
    %v3063 = vmul.f32 %v3060, %v3062
    %v3064 = vadd.f32 %v3060, %v3063
    %vm3065 = vweird.f32 %v3059
    %vm3066 = vweird.f32 %v3060
    %vm3067 = vmor %vm3065, %vm3066
    %v3068 = vsel %vm3067, %v3060, %v3064
    %v3069 = vand.u32 2147483647, %v3059
    %vm3070 = vcmp.eq.f32.partialorder %v3069, 8.507059e+37
    %v3071 = vand.u32 %v3059, 2147483648
    %v3072 = vor.u32 1.1754944e-38, %v3071
    %v3073 = vsel %vm3070, %v3072, %v3068
    %v3074 = vmul.f32 1.0, %v3073
    %v3075 = vtanh.pop %v3035
    %v3076 = vxor.u32 %v3036, 2147483648
    %v3077 = vmul.f32 %v3076, 1.442695
    %v3078 = vpow.pop %v3077
    %v3079 = vadd.f32 %v3078, 1.0
    %v3080 = vrcp.pop %v3079
    %v3081 = vmul.f32 %v3079, %v3080
    %v3082 = vsub.f32 1.0, %v3081
    %v3083 = vmul.f32 %v3080, %v3082
    %v3084 = vadd.f32 %v3080, %v3083
    %vm3085 = vweird.f32 %v3079
    %vm3086 = vweird.f32 %v3080
    %vm3087 = vmor %vm3085, %vm3086
    %v3088 = vsel %vm3087, %v3080, %v3084
    %v3089 = vand.u32 2147483647, %v3079
    %vm3090 = vcmp.eq.f32.partialorder %v3089, 8.507059e+37
    %v3091 = vand.u32 %v3079, 2147483648
    %v3092 = vor.u32 1.1754944e-38, %v3091
    %v3093 = vsel %vm3090, %v3092, %v3088
    %v3094 = vmul.f32 1.0, %v3093
    %v3095 = vmul.f32 %v3074, %v2682
    %v3096 = vmul.f32 %v3055, %v3075
    %v3097 = vadd.f32 %v3095, %v3096
    %v3098 = vtanh.pop %v3097
    %v3099 = vmul.f32 %v3094, %v3098
    %s3100 = scalar_lea.vmem [#allocation2], 7
    %v3101 = vld [vmem:[%s3100] ss:$8 sm:$0xf]
    %v3106 = vrot.slane %v2815, 7
    %v3107 = vrot.slane %v2835, 6
    %v3108 = vrot.slane %v2855, 5
    %v3109 = vsel %vm174, %v2795, %v3106
    %v3110 = vsel %vm618, %v3107, %v3108
    %v3111 = vsel %vm620, %v3109, %v3110
    %v3113 = vadd.f32 %v3101, %v3111
    %v3114 = vadd.f32 %v3113, %v75
    %v3115 = vxor.u32 %v3114, 2147483648
    %v3116 = vmul.f32 %v3115, 1.442695
    %v3117 = vpow.pop %v3116
    %v3118 = vadd.f32 %v3117, 1.0
    %v3119 = vrcp.pop %v3118
    %v3120 = vmul.f32 %v3118, %v3119
    %v3121 = vsub.f32 1.0, %v3120
    %v3122 = vmul.f32 %v3119, %v3121
    %v3123 = vadd.f32 %v3119, %v3122
    %vm3124 = vweird.f32 %v3118
    %vm3125 = vweird.f32 %v3119
    %vm3126 = vmor %vm3124, %vm3125
    %v3127 = vsel %vm3126, %v3119, %v3123
    %v3128 = vand.u32 2147483647, %v3118
    %vm3129 = vcmp.eq.f32.partialorder %v3128, 8.507059e+37
    %v3130 = vand.u32 %v3118, 2147483648
    %v3131 = vor.u32 1.1754944e-38, %v3130
    %v3132 = vsel %vm3129, %v3131, %v3127
    %v3133 = vmul.f32 1.0, %v3132
    %v3135 = vrot.slane %v3114, 1
    %v3137 = vxor.u32 %v3135, 2147483648
    %v3138 = vmul.f32 %v3137, 1.442695
    %v3139 = vpow.pop %v3138
    %v3140 = vadd.f32 %v3139, 1.0
    %v3141 = vrcp.pop %v3140
    %v3142 = vmul.f32 %v3140, %v3141
    %v3143 = vsub.f32 1.0, %v3142
    %v3144 = vmul.f32 %v3141, %v3143
    %v3145 = vadd.f32 %v3141, %v3144
    %vm3146 = vweird.f32 %v3140
    %vm3147 = vweird.f32 %v3141
    %vm3148 = vmor %vm3146, %vm3147
    %v3149 = vsel %vm3148, %v3141, %v3145
    %v3150 = vand.u32 2147483647, %v3140
    %vm3151 = vcmp.eq.f32.partialorder %v3150, 8.507059e+37
    %v3152 = vand.u32 %v3140, 2147483648
    %v3153 = vor.u32 1.1754944e-38, %v3152
    %v3154 = vsel %vm3151, %v3153, %v3149
    %v3155 = vmul.f32 1.0, %v3154
    %v3156 = vrot.slane %v3114, 2
    %v3158 = vtanh.pop %v3156
    %v3159 = vrot.slane %v3114, 3
    %v3161 = vxor.u32 %v3159, 2147483648
    %v3162 = vmul.f32 %v3161, 1.442695
    %v3163 = vpow.pop %v3162
    %v3164 = vadd.f32 %v3163, 1.0
    %v3165 = vrcp.pop %v3164
    %v3166 = vmul.f32 %v3164, %v3165
    %v3167 = vsub.f32 1.0, %v3166
    %v3168 = vmul.f32 %v3165, %v3167
    %v3169 = vadd.f32 %v3165, %v3168
    %vm3170 = vweird.f32 %v3164
    %vm3171 = vweird.f32 %v3165
    %vm3172 = vmor %vm3170, %vm3171
    %v3173 = vsel %vm3172, %v3165, %v3169
    %v3174 = vand.u32 2147483647, %v3164
    %vm3175 = vcmp.eq.f32.partialorder %v3174, 8.507059e+37
    %v3176 = vand.u32 %v3164, 2147483648
    %v3177 = vor.u32 1.1754944e-38, %v3176
    %v3178 = vsel %vm3175, %v3177, %v3173
    %v3179 = vmul.f32 1.0, %v3178
    %v3180 = vmul.f32 %v3155, %v2767
    %v3181 = vmul.f32 %v3133, %v3158
    %v3182 = vadd.f32 %v3180, %v3181
    %v3183 = vtanh.pop %v3182
    %v3184 = vmul.f32 %v3179, %v3183
    %v3186 = vrot.slane %v3099, 7
    %v3188 = vsel %vm174, %v3184, %v3186
    %v3190 = vsel %vm272, %v3188, 0
    %3192 = vmatpush.msra.mxu0 0.0
    %3193 = vmatpush.msra.mxu0 0.0
    %3194 = vmatpush.msra.mxu0 0.0
    %3195 = vmatpush.msra.mxu0 0.0
    %3196 = vmatpush.msra.mxu0 0.0
    %3197 = vmatpush.msra.mxu0 0.0
    %3198 = vmatpush.msra.mxu0 0.0
    %3199 = vmatpush.msra.mxu0 0.0
    %3200 = vmatpush.msra.mxu0 %v264
    %3201 = vmatpush.msra.mxu0 %v252
    %3202 = vmatpush.msra.mxu0 %v240
    %3203 = vmatpush.msra.mxu0 %v228
    %3204 = vmatpush.msra.mxu0 %v216
    %3205 = vmatpush.msra.mxu0 %v204
    %3206 = vmatpush.msra.mxu0 %v192
    %3207 = vmatpush.msra.mxu0 %v180
    %3208 = vmatmul.f32.gmra.mxu0 %v3190
    %v3209 = vpop.f32.mrf.mxu0
    %v3210 = vadd.f32 0.0, %v3209
    %3211 = vdwg.mxu0
    %3212 = vmatpush.msra.mxu0 0.0
    %3213 = vmatpush.msra.mxu0 0.0
    %3214 = vmatpush.msra.mxu0 0.0
    %3215 = vmatpush.msra.mxu0 0.0
    %3216 = vmatpush.msra.mxu0 0.0
    %3217 = vmatpush.msra.mxu0 0.0
    %3218 = vmatpush.msra.mxu0 0.0
    %3219 = vmatpush.msra.mxu0 0.0
    %3220 = vmatpush.msra.mxu0 %v265
    %3221 = vmatpush.msra.mxu0 %v253
    %3222 = vmatpush.msra.mxu0 %v241
    %3223 = vmatpush.msra.mxu0 %v229
    %3224 = vmatpush.msra.mxu0 %v217
    %3225 = vmatpush.msra.mxu0 %v205
    %3226 = vmatpush.msra.mxu0 %v193
    %3227 = vmatpush.msra.mxu0 %v181
    %3228 = vmatmul.f32.gmra.mxu0 %v3190
    %v3229 = vpop.f32.mrf.mxu0
    %v3230 = vadd.f32 0.0, %v3229
    %3231 = vdwg.mxu0
    %3232 = vmatpush.msra.mxu0 0.0
    %3233 = vmatpush.msra.mxu0 0.0
    %3234 = vmatpush.msra.mxu0 0.0
    %3235 = vmatpush.msra.mxu0 0.0
    %3236 = vmatpush.msra.mxu0 0.0
    %3237 = vmatpush.msra.mxu0 0.0
    %3238 = vmatpush.msra.mxu0 0.0
    %3239 = vmatpush.msra.mxu0 0.0
    %3240 = vmatpush.msra.mxu0 %v266
    %3241 = vmatpush.msra.mxu0 %v254
    %3242 = vmatpush.msra.mxu0 %v242
    %3243 = vmatpush.msra.mxu0 %v230
    %3244 = vmatpush.msra.mxu0 %v218
    %3245 = vmatpush.msra.mxu0 %v206
    %3246 = vmatpush.msra.mxu0 %v194
    %3247 = vmatpush.msra.mxu0 %v182
    %3248 = vmatmul.f32.gmra.mxu0 %v3190
    %v3249 = vpop.f32.mrf.mxu0
    %v3250 = vadd.f32 0.0, %v3249
    %3251 = vdwg.mxu0
    %3252 = vmatpush.msra.mxu0 0.0
    %3253 = vmatpush.msra.mxu0 0.0
    %3254 = vmatpush.msra.mxu0 0.0
    %3255 = vmatpush.msra.mxu0 0.0
    %3256 = vmatpush.msra.mxu0 0.0
    %3257 = vmatpush.msra.mxu0 0.0
    %3258 = vmatpush.msra.mxu0 0.0
    %3259 = vmatpush.msra.mxu0 0.0
    %3260 = vmatpush.msra.mxu0 %v267
    %3261 = vmatpush.msra.mxu0 %v255
    %3262 = vmatpush.msra.mxu0 %v243
    %3263 = vmatpush.msra.mxu0 %v231
    %3264 = vmatpush.msra.mxu0 %v219
    %3265 = vmatpush.msra.mxu0 %v207
    %3266 = vmatpush.msra.mxu0 %v195
    %3267 = vmatpush.msra.mxu0 %v183
    %3268 = vmatmul.f32.gmra.mxu0 %v3190
    %v3269 = vpop.f32.mrf.mxu0
    %v3270 = vadd.f32 0.0, %v3269
    %3271 = vdwg.mxu0
    %3272 = vmatpush.msra.mxu0 0.0
    %3273 = vmatpush.msra.mxu0 0.0
    %3274 = vmatpush.msra.mxu0 0.0
    %3275 = vmatpush.msra.mxu0 0.0
    %3276 = vmatpush.msra.mxu0 0.0
    %3277 = vmatpush.msra.mxu0 0.0
    %3278 = vmatpush.msra.mxu0 0.0
    %3279 = vmatpush.msra.mxu0 0.0
    %3280 = vmatpush.msra.mxu0 %v268
    %3281 = vmatpush.msra.mxu0 %v256
    %3282 = vmatpush.msra.mxu0 %v244
    %3283 = vmatpush.msra.mxu0 %v232
    %3284 = vmatpush.msra.mxu0 %v220
    %3285 = vmatpush.msra.mxu0 %v208
    %3286 = vmatpush.msra.mxu0 %v196
    %3287 = vmatpush.msra.mxu0 %v184
    %3288 = vmatmul.f32.gmra.mxu0 %v3190
    %v3289 = vpop.f32.mrf.mxu0
    %v3290 = vadd.f32 0.0, %v3289
    %3291 = vdwg.mxu0
    %3292 = vmatpush.msra.mxu0 0.0
    %3293 = vmatpush.msra.mxu0 0.0
    %3294 = vmatpush.msra.mxu0 0.0
    %3295 = vmatpush.msra.mxu0 0.0
    %3296 = vmatpush.msra.mxu0 0.0
    %3297 = vmatpush.msra.mxu0 0.0
    %3298 = vmatpush.msra.mxu0 0.0
    %3299 = vmatpush.msra.mxu0 0.0
    %3300 = vmatpush.msra.mxu0 %v269
    %3301 = vmatpush.msra.mxu0 %v257
    %3302 = vmatpush.msra.mxu0 %v245
    %3303 = vmatpush.msra.mxu0 %v233
    %3304 = vmatpush.msra.mxu0 %v221
    %3305 = vmatpush.msra.mxu0 %v209
    %3306 = vmatpush.msra.mxu0 %v197
    %3307 = vmatpush.msra.mxu0 %v185
    %3308 = vmatmul.f32.gmra.mxu0 %v3190
    %v3309 = vpop.f32.mrf.mxu0
    %v3310 = vadd.f32 0.0, %v3309
    %3311 = vdwg.mxu0
    %3312 = vmatpush.msra.mxu0 0.0
    %3313 = vmatpush.msra.mxu0 0.0
    %3314 = vmatpush.msra.mxu0 0.0
    %3315 = vmatpush.msra.mxu0 0.0
    %3316 = vmatpush.msra.mxu0 0.0
    %3317 = vmatpush.msra.mxu0 0.0
    %3318 = vmatpush.msra.mxu0 0.0
    %3319 = vmatpush.msra.mxu0 0.0
    %3320 = vmatpush.msra.mxu0 %v270
    %3321 = vmatpush.msra.mxu0 %v258
    %3322 = vmatpush.msra.mxu0 %v246
    %3323 = vmatpush.msra.mxu0 %v234
    %3324 = vmatpush.msra.mxu0 %v222
    %3325 = vmatpush.msra.mxu0 %v210
    %3326 = vmatpush.msra.mxu0 %v198
    %3327 = vmatpush.msra.mxu0 %v186
    %3328 = vmatmul.f32.gmra.mxu0 %v3190
    %v3329 = vpop.f32.mrf.mxu0
    %v3330 = vadd.f32 0.0, %v3329
    %3331 = vdwg.mxu0
    %3332 = vmatpush.msra.mxu0 0.0
    %3333 = vmatpush.msra.mxu0 0.0
    %3334 = vmatpush.msra.mxu0 0.0
    %3335 = vmatpush.msra.mxu0 0.0
    %3336 = vmatpush.msra.mxu0 0.0
    %3337 = vmatpush.msra.mxu0 0.0
    %3338 = vmatpush.msra.mxu0 0.0
    %3339 = vmatpush.msra.mxu0 0.0
    %3340 = vmatpush.msra.mxu0 %v271
    %3341 = vmatpush.msra.mxu0 %v259
    %3342 = vmatpush.msra.mxu0 %v247
    %3343 = vmatpush.msra.mxu0 %v235
    %3344 = vmatpush.msra.mxu0 %v223
    %3345 = vmatpush.msra.mxu0 %v211
    %3346 = vmatpush.msra.mxu0 %v199
    %3347 = vmatpush.msra.mxu0 %v187
    %3348 = vmatmul.f32.gmra.mxu0 %v3190
    %v3349 = vpop.f32.mrf.mxu0
    %v3350 = vadd.f32 0.0, %v3349
    %3351 = vdwg.mxu0
    %v3356 = vrot.slane %v3290, 1
    %v3357 = vrot.slane %v3310, 1
    %v3358 = vrot.slane %v3330, 1
    %v3359 = vrot.slane %v3350, 1
    %v3364 = vadd.f32 %v3210, %v3356
    %v3365 = vadd.f32 %v3230, %v3357
    %v3366 = vadd.f32 %v3250, %v3358
    %v3367 = vadd.f32 %v3270, %v3359
    %v3368 = vadd.f32 %v3364, %v533
    %v3369 = vadd.f32 %v3365, %v534
    %v3370 = vadd.f32 %v3366, %v535
    %v3371 = vadd.f32 %v3367, %v536
    %v3372 = vxor.u32 %v3368, 2147483648
    %v3373 = vmul.f32 %v3372, 1.442695
    %v3374 = vpow.pop %v3373
    %v3375 = vadd.f32 %v3374, 1.0
    %v3376 = vrcp.pop %v3375
    %v3377 = vmul.f32 %v3375, %v3376
    %v3378 = vsub.f32 1.0, %v3377
    %v3379 = vmul.f32 %v3376, %v3378
    %v3380 = vadd.f32 %v3376, %v3379
    %vm3381 = vweird.f32 %v3375
    %vm3382 = vweird.f32 %v3376
    %vm3383 = vmor %vm3381, %vm3382
    %v3384 = vsel %vm3383, %v3376, %v3380
    %v3385 = vand.u32 2147483647, %v3375
    %vm3386 = vcmp.eq.f32.partialorder %v3385, 8.507059e+37
    %v3387 = vand.u32 %v3375, 2147483648
    %v3388 = vor.u32 1.1754944e-38, %v3387
    %v3389 = vsel %vm3386, %v3388, %v3384
    %v3390 = vmul.f32 1.0, %v3389
    %v3391 = vxor.u32 %v3369, 2147483648
    %v3392 = vmul.f32 %v3391, 1.442695
    %v3393 = vpow.pop %v3392
    %v3394 = vadd.f32 %v3393, 1.0
    %v3395 = vrcp.pop %v3394
    %v3396 = vmul.f32 %v3394, %v3395
    %v3397 = vsub.f32 1.0, %v3396
    %v3398 = vmul.f32 %v3395, %v3397
    %v3399 = vadd.f32 %v3395, %v3398
    %vm3400 = vweird.f32 %v3394
    %vm3401 = vweird.f32 %v3395
    %vm3402 = vmor %vm3400, %vm3401
    %v3403 = vsel %vm3402, %v3395, %v3399
    %v3404 = vand.u32 2147483647, %v3394
    %vm3405 = vcmp.eq.f32.partialorder %v3404, 8.507059e+37
    %v3406 = vand.u32 %v3394, 2147483648
    %v3407 = vor.u32 1.1754944e-38, %v3406
    %v3408 = vsel %vm3405, %v3407, %v3403
    %v3409 = vmul.f32 1.0, %v3408
    %v3410 = vtanh.pop %v3370
    %v3411 = vxor.u32 %v3371, 2147483648
    %v3412 = vmul.f32 %v3411, 1.442695
    %v3413 = vpow.pop %v3412
    %v3414 = vadd.f32 %v3413, 1.0
    %v3415 = vrcp.pop %v3414
    %v3416 = vmul.f32 %v3414, %v3415
    %v3417 = vsub.f32 1.0, %v3416
    %v3418 = vmul.f32 %v3415, %v3417
    %v3419 = vadd.f32 %v3415, %v3418
    %vm3420 = vweird.f32 %v3414
    %vm3421 = vweird.f32 %v3415
    %vm3422 = vmor %vm3420, %vm3421
    %v3423 = vsel %vm3422, %v3415, %v3419
    %v3424 = vand.u32 2147483647, %v3414
    %vm3425 = vcmp.eq.f32.partialorder %v3424, 8.507059e+37
    %v3426 = vand.u32 %v3414, 2147483648
    %v3427 = vor.u32 1.1754944e-38, %v3426
    %v3428 = vsel %vm3425, %v3427, %v3423
    %v3429 = vmul.f32 1.0, %v3428
    %v3430 = vmul.f32 %v3409, %v3097
    %v3431 = vmul.f32 %v3390, %v3410
    %v3432 = vadd.f32 %v3430, %v3431
    %v3433 = vtanh.pop %v3432
    %v3434 = vmul.f32 %v3429, %v3433
    %s3435 = smul.u32 8, 4
    %s3436 = smul.u32 %s3435, 4
    %s3437 = sshll.u32 %s3436, 4
    %3438 = dma.done [#allocation6], %s3437
    %s3439 = smul.u32 8, 8
    %s3440 = smul.u32 %s3439, 12
    %s3441 = sshll.u32 %s3440, 4
    %3442 = dma.done %s59, %s3441
    %s3443 = scalar_lea.vmem [#allocation7], 3
    %v3444 = vld [vmem:[%s3443] ss:$8 sm:$0xf]
    %s3445 = scalar_lea.vmem [#allocation7], 4
    %v3446 = vld [vmem:[%s3445] ss:$8 sm:$0xf]
    %v3447 = vld [vmem:[#allocation4] sm:$0xff]
    %v3448 = vld [vmem:[#allocation4 + $0x8] sm:$0xff]
    %v3449 = vld [vmem:[#allocation4 + $0x10] sm:$0xff]
    %v3450 = vld [vmem:[#allocation4 + $0x18] sm:$0xff]
    %v3451 = vld [vmem:[#allocation4 + $0x20] sm:$0xff]
    %v3452 = vld [vmem:[#allocation4 + $0x28] sm:$0xff]
    %v3453 = vld [vmem:[#allocation4 + $0x30] sm:$0xff]
    %v3454 = vld [vmem:[#allocation4 + $0x38] sm:$0xff]
    %v3455 = vld [vmem:[#allocation4 + $0x40] sm:$0xff]
    %v3456 = vld [vmem:[#allocation4 + $0x48] sm:$0xff]
    %v3457 = vld [vmem:[#allocation4 + $0x50] sm:$0xff]
    %v3458 = vld [vmem:[#allocation4 + $0x58] sm:$0xff]
    %v3459 = vld [vmem:[#allocation4 + $0x60] sm:$0xff]
    %v3460 = vld [vmem:[#allocation4 + $0x68] sm:$0xff]
    %v3461 = vld [vmem:[#allocation4 + $0x70] sm:$0xff]
    %v3462 = vld [vmem:[#allocation4 + $0x78] sm:$0xff]
    %v3464 = vperm.slane %v3444, 0
    %v3465 = vperm.slane %v3444, 1
    %v3466 = vperm.slane %v3444, 2
    %v3467 = vperm.slane %v3444, 3
    %vm3472 = vcmask 261120
    %v3474 = vsel %vm3472, %v3434, 0
    %3476 = vmatpush.msra.mxu0 0.0
    %3477 = vmatpush.msra.mxu0 0.0
    %3478 = vmatpush.msra.mxu0 0.0
    %3479 = vmatpush.msra.mxu0 0.0
    %3480 = vmatpush.msra.mxu0 0.0
    %3481 = vmatpush.msra.mxu0 0.0
    %3482 = vmatpush.msra.mxu0 0.0
    %3483 = vmatpush.msra.mxu0 0.0
    %3484 = vmatpush.msra.mxu0 0.0
    %3485 = vmatpush.msra.mxu0 0.0
    %3486 = vmatpush.msra.mxu0 0.0
    %3487 = vmatpush.msra.mxu0 0.0
    %3488 = vmatpush.msra.mxu0 %v3459
    %3489 = vmatpush.msra.mxu0 %v3455
    %3490 = vmatpush.msra.mxu0 %v3451
    %3491 = vmatpush.msra.mxu0 %v3447
    %3492 = vmatmul.f32.gmra.mxu0 %v3474
    %v3493 = vpop.f32.mrf.mxu0
    %v3494 = vadd.f32 %v3464, %v3493
    %3495 = vdwg.mxu0
    %3496 = vmatpush.msra.mxu0 0.0
    %3497 = vmatpush.msra.mxu0 0.0
    %3498 = vmatpush.msra.mxu0 0.0
    %3499 = vmatpush.msra.mxu0 0.0
    %3500 = vmatpush.msra.mxu0 0.0
    %3501 = vmatpush.msra.mxu0 0.0
    %3502 = vmatpush.msra.mxu0 0.0
    %3503 = vmatpush.msra.mxu0 0.0
    %3504 = vmatpush.msra.mxu0 0.0
    %3505 = vmatpush.msra.mxu0 0.0
    %3506 = vmatpush.msra.mxu0 0.0
    %3507 = vmatpush.msra.mxu0 0.0
    %3508 = vmatpush.msra.mxu0 %v3460
    %3509 = vmatpush.msra.mxu0 %v3456
    %3510 = vmatpush.msra.mxu0 %v3452
    %3511 = vmatpush.msra.mxu0 %v3448
    %3512 = vmatmul.f32.gmra.mxu0 %v3474
    %v3513 = vpop.f32.mrf.mxu0
    %v3514 = vadd.f32 %v3465, %v3513
    %3515 = vdwg.mxu0
    %3516 = vmatpush.msra.mxu0 0.0
    %3517 = vmatpush.msra.mxu0 0.0
    %3518 = vmatpush.msra.mxu0 0.0
    %3519 = vmatpush.msra.mxu0 0.0
    %3520 = vmatpush.msra.mxu0 0.0
    %3521 = vmatpush.msra.mxu0 0.0
    %3522 = vmatpush.msra.mxu0 0.0
    %3523 = vmatpush.msra.mxu0 0.0
    %3524 = vmatpush.msra.mxu0 0.0
    %3525 = vmatpush.msra.mxu0 0.0
    %3526 = vmatpush.msra.mxu0 0.0
    %3527 = vmatpush.msra.mxu0 0.0
    %3528 = vmatpush.msra.mxu0 %v3461
    %3529 = vmatpush.msra.mxu0 %v3457
    %3530 = vmatpush.msra.mxu0 %v3453
    %3531 = vmatpush.msra.mxu0 %v3449
    %3532 = vmatmul.f32.gmra.mxu0 %v3474
    %v3533 = vpop.f32.mrf.mxu0
    %v3534 = vadd.f32 %v3466, %v3533
    %3535 = vdwg.mxu0
    %3536 = vmatpush.msra.mxu0 0.0
    %3537 = vmatpush.msra.mxu0 0.0
    %3538 = vmatpush.msra.mxu0 0.0
    %3539 = vmatpush.msra.mxu0 0.0
    %3540 = vmatpush.msra.mxu0 0.0
    %3541 = vmatpush.msra.mxu0 0.0
    %3542 = vmatpush.msra.mxu0 0.0
    %3543 = vmatpush.msra.mxu0 0.0
    %3544 = vmatpush.msra.mxu0 0.0
    %3545 = vmatpush.msra.mxu0 0.0
    %3546 = vmatpush.msra.mxu0 0.0
    %3547 = vmatpush.msra.mxu0 0.0
    %3548 = vmatpush.msra.mxu0 %v3462
    %3549 = vmatpush.msra.mxu0 %v3458
    %3550 = vmatpush.msra.mxu0 %v3454
    %3551 = vmatpush.msra.mxu0 %v3450
    %3552 = vmatmul.f32.gmra.mxu0 %v3474
    %v3553 = vpop.f32.mrf.mxu0
    %v3554 = vadd.f32 %v3467, %v3553
    %3555 = vdwg.mxu0
    %v3556 = vadd.f32 %v3494, 0.0
    %v3557 = vadd.f32 %v3514, 0.0
    %v3558 = vadd.f32 %v3534, 0.0
    %v3559 = vadd.f32 %v3554, 0.0
    %v3560 = vxor.u32 %v3556, 2147483648
    %v3561 = vmul.f32 %v3560, 1.442695
    %v3562 = vpow.pop %v3561
    %v3563 = vadd.f32 %v3562, 1.0
    %v3564 = vrcp.pop %v3563
    %v3565 = vmul.f32 %v3563, %v3564
    %v3566 = vsub.f32 1.0, %v3565
    %v3567 = vmul.f32 %v3564, %v3566
    %v3568 = vadd.f32 %v3564, %v3567
    %vm3569 = vweird.f32 %v3563
    %vm3570 = vweird.f32 %v3564
    %vm3571 = vmor %vm3569, %vm3570
    %v3572 = vsel %vm3571, %v3564, %v3568
    %v3573 = vand.u32 2147483647, %v3563
    %vm3574 = vcmp.eq.f32.partialorder %v3573, 8.507059e+37
    %v3575 = vand.u32 %v3563, 2147483648
    %v3576 = vor.u32 1.1754944e-38, %v3575
    %v3577 = vsel %vm3574, %v3576, %v3572
    %v3578 = vmul.f32 1.0, %v3577
    %v3579 = vxor.u32 %v3557, 2147483648
    %v3580 = vmul.f32 %v3579, 1.442695
    %v3581 = vpow.pop %v3580
    %v3582 = vadd.f32 %v3581, 1.0
    %v3583 = vrcp.pop %v3582
    %v3584 = vmul.f32 %v3582, %v3583
    %v3585 = vsub.f32 1.0, %v3584
    %v3586 = vmul.f32 %v3583, %v3585
    %v3587 = vadd.f32 %v3583, %v3586
    %vm3588 = vweird.f32 %v3582
    %vm3589 = vweird.f32 %v3583
    %vm3590 = vmor %vm3588, %vm3589
    %v3591 = vsel %vm3590, %v3583, %v3587
    %v3592 = vand.u32 2147483647, %v3582
    %vm3593 = vcmp.eq.f32.partialorder %v3592, 8.507059e+37
    %v3594 = vand.u32 %v3582, 2147483648
    %v3595 = vor.u32 1.1754944e-38, %v3594
    %v3596 = vsel %vm3593, %v3595, %v3591
    %v3597 = vmul.f32 1.0, %v3596
    %v3598 = vtanh.pop %v3558
    %v3599 = vxor.u32 %v3559, 2147483648
    %v3600 = vmul.f32 %v3599, 1.442695
    %v3601 = vpow.pop %v3600
    %v3602 = vadd.f32 %v3601, 1.0
    %v3603 = vrcp.pop %v3602
    %v3604 = vmul.f32 %v3602, %v3603
    %v3605 = vsub.f32 1.0, %v3604
    %v3606 = vmul.f32 %v3603, %v3605
    %v3607 = vadd.f32 %v3603, %v3606
    %vm3608 = vweird.f32 %v3602
    %vm3609 = vweird.f32 %v3603
    %vm3610 = vmor %vm3608, %vm3609
    %v3611 = vsel %vm3610, %v3603, %v3607
    %v3612 = vand.u32 2147483647, %v3602
    %vm3613 = vcmp.eq.f32.partialorder %v3612, 8.507059e+37
    %v3614 = vand.u32 %v3602, 2147483648
    %v3615 = vor.u32 1.1754944e-38, %v3614
    %v3616 = vsel %vm3613, %v3615, %v3611
    %v3617 = vmul.f32 1.0, %v3616
    %v3618 = vmul.f32 %v3597, 0.0
    %v3619 = vmul.f32 %v3578, %v3598
    %v3620 = vadd.f32 %v3618, %v3619
    %v3621 = vtanh.pop %v3620
    %v3622 = vmul.f32 %v3617, %v3621
    %v3623 = vsel %vm174, %v3622, 0.0
    %v3624 = vld [vmem:[#allocation5] sm:$0xff]
    %v3625 = vld [vmem:[#allocation5 + $0x8] sm:$0xff]
    %v3626 = vld [vmem:[#allocation5 + $0x10] sm:$0xff]
    %v3627 = vld [vmem:[#allocation5 + $0x18] sm:$0xff]
    %v3628 = vld [vmem:[#allocation5 + $0x20] sm:$0xff]
    %v3629 = vld [vmem:[#allocation5 + $0x28] sm:$0xff]
    %v3630 = vld [vmem:[#allocation5 + $0x30] sm:$0xff]
    %v3631 = vld [vmem:[#allocation5 + $0x38] sm:$0xff]
    %v3632 = vld [vmem:[#allocation5 + $0x40] sm:$0xff]
    %v3633 = vld [vmem:[#allocation5 + $0x48] sm:$0xff]
    %v3634 = vld [vmem:[#allocation5 + $0x50] sm:$0xff]
    %v3635 = vld [vmem:[#allocation5 + $0x58] sm:$0xff]
    %v3636 = vld [vmem:[#allocation5 + $0x60] sm:$0xff]
    %v3637 = vld [vmem:[#allocation5 + $0x68] sm:$0xff]
    %v3638 = vld [vmem:[#allocation5 + $0x70] sm:$0xff]
    %v3639 = vld [vmem:[#allocation5 + $0x78] sm:$0xff]
    %v3640 = vld [vmem:[#allocation5 + $0x80] sm:$0xff]
    %v3641 = vld [vmem:[#allocation5 + $0x88] sm:$0xff]
    %v3642 = vld [vmem:[#allocation5 + $0x90] sm:$0xff]
    %v3643 = vld [vmem:[#allocation5 + $0x98] sm:$0xff]
    %v3644 = vld [vmem:[#allocation5 + $0xa0] sm:$0xff]
    %v3645 = vld [vmem:[#allocation5 + $0xa8] sm:$0xff]
    %v3646 = vld [vmem:[#allocation5 + $0xb0] sm:$0xff]
    %v3647 = vld [vmem:[#allocation5 + $0xb8] sm:$0xff]
    %v3648 = vld [vmem:[#allocation5 + $0xc0] sm:$0xff]
    %v3649 = vld [vmem:[#allocation5 + $0xc8] sm:$0xff]
    %v3650 = vld [vmem:[#allocation5 + $0xd0] sm:$0xff]
    %v3651 = vld [vmem:[#allocation5 + $0xd8] sm:$0xff]
    %v3652 = vld [vmem:[#allocation5 + $0xe0] sm:$0xff]
    %v3653 = vld [vmem:[#allocation5 + $0xe8] sm:$0xff]
    %v3654 = vld [vmem:[#allocation5 + $0xf0] sm:$0xff]
    %v3655 = vld [vmem:[#allocation5 + $0xf8] sm:$0xff]
    %v3656 = vld [vmem:[#allocation5 + $0x100] sm:$0xff]
    %v3657 = vld [vmem:[#allocation5 + $0x108] sm:$0xff]
    %v3658 = vld [vmem:[#allocation5 + $0x110] sm:$0xff]
    %v3659 = vld [vmem:[#allocation5 + $0x118] sm:$0xff]
    %v3660 = vld [vmem:[#allocation5 + $0x120] sm:$0xff]
    %v3661 = vld [vmem:[#allocation5 + $0x128] sm:$0xff]
    %v3662 = vld [vmem:[#allocation5 + $0x130] sm:$0xff]
    %v3663 = vld [vmem:[#allocation5 + $0x138] sm:$0xff]
    %v3664 = vld [vmem:[#allocation5 + $0x140] sm:$0xff]
    %v3665 = vld [vmem:[#allocation5 + $0x148] sm:$0xff]
    %v3666 = vld [vmem:[#allocation5 + $0x150] sm:$0xff]
    %v3667 = vld [vmem:[#allocation5 + $0x158] sm:$0xff]
    %v3668 = vld [vmem:[#allocation5 + $0x160] sm:$0xff]
    %v3669 = vld [vmem:[#allocation5 + $0x168] sm:$0xff]
    %v3670 = vld [vmem:[#allocation5 + $0x170] sm:$0xff]
    %v3671 = vld [vmem:[#allocation5 + $0x178] sm:$0xff]
    %v3672 = vld [vmem:[#allocation5 + $0x180] sm:$0xff]
    %v3673 = vld [vmem:[#allocation5 + $0x188] sm:$0xff]
    %v3674 = vld [vmem:[#allocation5 + $0x190] sm:$0xff]
    %v3675 = vld [vmem:[#allocation5 + $0x198] sm:$0xff]
    %v3676 = vld [vmem:[#allocation5 + $0x1a0] sm:$0xff]
    %v3677 = vld [vmem:[#allocation5 + $0x1a8] sm:$0xff]
    %v3678 = vld [vmem:[#allocation5 + $0x1b0] sm:$0xff]
    %v3679 = vld [vmem:[#allocation5 + $0x1b8] sm:$0xff]
    %v3680 = vld [vmem:[#allocation5 + $0x1c0] sm:$0xff]
    %v3681 = vld [vmem:[#allocation5 + $0x1c8] sm:$0xff]
    %v3682 = vld [vmem:[#allocation5 + $0x1d0] sm:$0xff]
    %v3683 = vld [vmem:[#allocation5 + $0x1d8] sm:$0xff]
    %v3684 = vld [vmem:[#allocation5 + $0x1e0] sm:$0xff]
    %v3685 = vld [vmem:[#allocation5 + $0x1e8] sm:$0xff]
    %v3686 = vld [vmem:[#allocation5 + $0x1f0] sm:$0xff]
    %v3687 = vld [vmem:[#allocation5 + $0x1f8] sm:$0xff]
    %v3688 = vld [vmem:[#allocation5 + $0x200] sm:$0xff]
    %v3689 = vld [vmem:[#allocation5 + $0x208] sm:$0xff]
    %v3690 = vld [vmem:[#allocation5 + $0x210] sm:$0xff]
    %v3691 = vld [vmem:[#allocation5 + $0x218] sm:$0xff]
    %v3692 = vld [vmem:[#allocation5 + $0x220] sm:$0xff]
    %v3693 = vld [vmem:[#allocation5 + $0x228] sm:$0xff]
    %v3694 = vld [vmem:[#allocation5 + $0x230] sm:$0xff]
    %v3695 = vld [vmem:[#allocation5 + $0x238] sm:$0xff]
    %v3696 = vld [vmem:[#allocation5 + $0x240] sm:$0xff]
    %v3697 = vld [vmem:[#allocation5 + $0x248] sm:$0xff]
    %v3698 = vld [vmem:[#allocation5 + $0x250] sm:$0xff]
    %v3699 = vld [vmem:[#allocation5 + $0x258] sm:$0xff]
    %v3700 = vld [vmem:[#allocation5 + $0x260] sm:$0xff]
    %v3701 = vld [vmem:[#allocation5 + $0x268] sm:$0xff]
    %v3702 = vld [vmem:[#allocation5 + $0x270] sm:$0xff]
    %v3703 = vld [vmem:[#allocation5 + $0x278] sm:$0xff]
    %v3704 = vld [vmem:[#allocation5 + $0x280] sm:$0xff]
    %v3705 = vld [vmem:[#allocation5 + $0x288] sm:$0xff]
    %v3706 = vld [vmem:[#allocation5 + $0x290] sm:$0xff]
    %v3707 = vld [vmem:[#allocation5 + $0x298] sm:$0xff]
    %v3708 = vld [vmem:[#allocation5 + $0x2a0] sm:$0xff]
    %v3709 = vld [vmem:[#allocation5 + $0x2a8] sm:$0xff]
    %v3710 = vld [vmem:[#allocation5 + $0x2b0] sm:$0xff]
    %v3711 = vld [vmem:[#allocation5 + $0x2b8] sm:$0xff]
    %v3712 = vld [vmem:[#allocation5 + $0x2c0] sm:$0xff]
    %v3713 = vld [vmem:[#allocation5 + $0x2c8] sm:$0xff]
    %v3714 = vld [vmem:[#allocation5 + $0x2d0] sm:$0xff]
    %v3715 = vld [vmem:[#allocation5 + $0x2d8] sm:$0xff]
    %v3716 = vld [vmem:[#allocation5 + $0x2e0] sm:$0xff]
    %v3717 = vld [vmem:[#allocation5 + $0x2e8] sm:$0xff]
    %v3718 = vld [vmem:[#allocation5 + $0x2f0] sm:$0xff]
    %v3719 = vld [vmem:[#allocation5 + $0x2f8] sm:$0xff]
    %v3721 = vsel %vm272, %v3623, 0
    %3723 = vmatpush.msra.mxu0 0.0
    %3724 = vmatpush.msra.mxu0 0.0
    %3725 = vmatpush.msra.mxu0 0.0
    %3726 = vmatpush.msra.mxu0 0.0
    %3727 = vmatpush.msra.mxu0 0.0
    %3728 = vmatpush.msra.mxu0 0.0
    %3729 = vmatpush.msra.mxu0 0.0
    %3730 = vmatpush.msra.mxu0 0.0
    %3731 = vmatpush.msra.mxu0 %v3708
    %3732 = vmatpush.msra.mxu0 %v3696
    %3733 = vmatpush.msra.mxu0 %v3684
    %3734 = vmatpush.msra.mxu0 %v3672
    %3735 = vmatpush.msra.mxu0 %v3660
    %3736 = vmatpush.msra.mxu0 %v3648
    %3737 = vmatpush.msra.mxu0 %v3636
    %3738 = vmatpush.msra.mxu0 %v3624
    %3739 = vmatmul.f32.gmra.mxu0 %v3721
    %v3740 = vpop.f32.mrf.mxu0
    %v3741 = vadd.f32 0.0, %v3740
    %3742 = vdwg.mxu0
    %3743 = vmatpush.msra.mxu0 0.0
    %3744 = vmatpush.msra.mxu0 0.0
    %3745 = vmatpush.msra.mxu0 0.0
    %3746 = vmatpush.msra.mxu0 0.0
    %3747 = vmatpush.msra.mxu0 0.0
    %3748 = vmatpush.msra.mxu0 0.0
    %3749 = vmatpush.msra.mxu0 0.0
    %3750 = vmatpush.msra.mxu0 0.0
    %3751 = vmatpush.msra.mxu0 %v3709
    %3752 = vmatpush.msra.mxu0 %v3697
    %3753 = vmatpush.msra.mxu0 %v3685
    %3754 = vmatpush.msra.mxu0 %v3673
    %3755 = vmatpush.msra.mxu0 %v3661
    %3756 = vmatpush.msra.mxu0 %v3649
    %3757 = vmatpush.msra.mxu0 %v3637
    %3758 = vmatpush.msra.mxu0 %v3625
    %3759 = vmatmul.f32.gmra.mxu0 %v3721
    %v3760 = vpop.f32.mrf.mxu0
    %v3761 = vadd.f32 0.0, %v3760
    %3762 = vdwg.mxu0
    %3763 = vmatpush.msra.mxu0 0.0
    %3764 = vmatpush.msra.mxu0 0.0
    %3765 = vmatpush.msra.mxu0 0.0
    %3766 = vmatpush.msra.mxu0 0.0
    %3767 = vmatpush.msra.mxu0 0.0
    %3768 = vmatpush.msra.mxu0 0.0
    %3769 = vmatpush.msra.mxu0 0.0
    %3770 = vmatpush.msra.mxu0 0.0
    %3771 = vmatpush.msra.mxu0 %v3710
    %3772 = vmatpush.msra.mxu0 %v3698
    %3773 = vmatpush.msra.mxu0 %v3686
    %3774 = vmatpush.msra.mxu0 %v3674
    %3775 = vmatpush.msra.mxu0 %v3662
    %3776 = vmatpush.msra.mxu0 %v3650
    %3777 = vmatpush.msra.mxu0 %v3638
    %3778 = vmatpush.msra.mxu0 %v3626
    %3779 = vmatmul.f32.gmra.mxu0 %v3721
    %v3780 = vpop.f32.mrf.mxu0
    %v3781 = vadd.f32 0.0, %v3780
    %3782 = vdwg.mxu0
    %3783 = vmatpush.msra.mxu0 0.0
    %3784 = vmatpush.msra.mxu0 0.0
    %3785 = vmatpush.msra.mxu0 0.0
    %3786 = vmatpush.msra.mxu0 0.0
    %3787 = vmatpush.msra.mxu0 0.0
    %3788 = vmatpush.msra.mxu0 0.0
    %3789 = vmatpush.msra.mxu0 0.0
    %3790 = vmatpush.msra.mxu0 0.0
    %3791 = vmatpush.msra.mxu0 %v3711
    %3792 = vmatpush.msra.mxu0 %v3699
    %3793 = vmatpush.msra.mxu0 %v3687
    %3794 = vmatpush.msra.mxu0 %v3675
    %3795 = vmatpush.msra.mxu0 %v3663
    %3796 = vmatpush.msra.mxu0 %v3651
    %3797 = vmatpush.msra.mxu0 %v3639
    %3798 = vmatpush.msra.mxu0 %v3627
    %3799 = vmatmul.f32.gmra.mxu0 %v3721
    %v3800 = vpop.f32.mrf.mxu0
    %v3801 = vadd.f32 0.0, %v3800
    %3802 = vdwg.mxu0
    %3803 = vmatpush.msra.mxu0 0.0
    %3804 = vmatpush.msra.mxu0 0.0
    %3805 = vmatpush.msra.mxu0 0.0
    %3806 = vmatpush.msra.mxu0 0.0
    %3807 = vmatpush.msra.mxu0 0.0
    %3808 = vmatpush.msra.mxu0 0.0
    %3809 = vmatpush.msra.mxu0 0.0
    %3810 = vmatpush.msra.mxu0 0.0
    %3811 = vmatpush.msra.mxu0 %v3712
    %3812 = vmatpush.msra.mxu0 %v3700
    %3813 = vmatpush.msra.mxu0 %v3688
    %3814 = vmatpush.msra.mxu0 %v3676
    %3815 = vmatpush.msra.mxu0 %v3664
    %3816 = vmatpush.msra.mxu0 %v3652
    %3817 = vmatpush.msra.mxu0 %v3640
    %3818 = vmatpush.msra.mxu0 %v3628
    %3819 = vmatmul.f32.gmra.mxu0 %v3721
    %v3820 = vpop.f32.mrf.mxu0
    %v3821 = vadd.f32 0.0, %v3820
    %3822 = vdwg.mxu0
    %3823 = vmatpush.msra.mxu0 0.0
    %3824 = vmatpush.msra.mxu0 0.0
    %3825 = vmatpush.msra.mxu0 0.0
    %3826 = vmatpush.msra.mxu0 0.0
    %3827 = vmatpush.msra.mxu0 0.0
    %3828 = vmatpush.msra.mxu0 0.0
    %3829 = vmatpush.msra.mxu0 0.0
    %3830 = vmatpush.msra.mxu0 0.0
    %3831 = vmatpush.msra.mxu0 %v3713
    %3832 = vmatpush.msra.mxu0 %v3701
    %3833 = vmatpush.msra.mxu0 %v3689
    %3834 = vmatpush.msra.mxu0 %v3677
    %3835 = vmatpush.msra.mxu0 %v3665
    %3836 = vmatpush.msra.mxu0 %v3653
    %3837 = vmatpush.msra.mxu0 %v3641
    %3838 = vmatpush.msra.mxu0 %v3629
    %3839 = vmatmul.f32.gmra.mxu0 %v3721
    %v3840 = vpop.f32.mrf.mxu0
    %v3841 = vadd.f32 0.0, %v3840
    %3842 = vdwg.mxu0
    %3843 = vmatpush.msra.mxu0 0.0
    %3844 = vmatpush.msra.mxu0 0.0
    %3845 = vmatpush.msra.mxu0 0.0
    %3846 = vmatpush.msra.mxu0 0.0
    %3847 = vmatpush.msra.mxu0 0.0
    %3848 = vmatpush.msra.mxu0 0.0
    %3849 = vmatpush.msra.mxu0 0.0
    %3850 = vmatpush.msra.mxu0 0.0
    %3851 = vmatpush.msra.mxu0 %v3714
    %3852 = vmatpush.msra.mxu0 %v3702
    %3853 = vmatpush.msra.mxu0 %v3690
    %3854 = vmatpush.msra.mxu0 %v3678
    %3855 = vmatpush.msra.mxu0 %v3666
    %3856 = vmatpush.msra.mxu0 %v3654
    %3857 = vmatpush.msra.mxu0 %v3642
    %3858 = vmatpush.msra.mxu0 %v3630
    %3859 = vmatmul.f32.gmra.mxu0 %v3721
    %v3860 = vpop.f32.mrf.mxu0
    %v3861 = vadd.f32 0.0, %v3860
    %3862 = vdwg.mxu0
    %3863 = vmatpush.msra.mxu0 0.0
    %3864 = vmatpush.msra.mxu0 0.0
    %3865 = vmatpush.msra.mxu0 0.0
    %3866 = vmatpush.msra.mxu0 0.0
    %3867 = vmatpush.msra.mxu0 0.0
    %3868 = vmatpush.msra.mxu0 0.0
    %3869 = vmatpush.msra.mxu0 0.0
    %3870 = vmatpush.msra.mxu0 0.0
    %3871 = vmatpush.msra.mxu0 %v3715
    %3872 = vmatpush.msra.mxu0 %v3703
    %3873 = vmatpush.msra.mxu0 %v3691
    %3874 = vmatpush.msra.mxu0 %v3679
    %3875 = vmatpush.msra.mxu0 %v3667
    %3876 = vmatpush.msra.mxu0 %v3655
    %3877 = vmatpush.msra.mxu0 %v3643
    %3878 = vmatpush.msra.mxu0 %v3631
    %3879 = vmatmul.f32.gmra.mxu0 %v3721
    %v3880 = vpop.f32.mrf.mxu0
    %v3881 = vadd.f32 0.0, %v3880
    %3882 = vdwg.mxu0
    %3883 = vmatpush.msra.mxu0 0.0
    %3884 = vmatpush.msra.mxu0 0.0
    %3885 = vmatpush.msra.mxu0 0.0
    %3886 = vmatpush.msra.mxu0 0.0
    %3887 = vmatpush.msra.mxu0 0.0
    %3888 = vmatpush.msra.mxu0 0.0
    %3889 = vmatpush.msra.mxu0 0.0
    %3890 = vmatpush.msra.mxu0 0.0
    %3891 = vmatpush.msra.mxu0 %v3716
    %3892 = vmatpush.msra.mxu0 %v3704
    %3893 = vmatpush.msra.mxu0 %v3692
    %3894 = vmatpush.msra.mxu0 %v3680
    %3895 = vmatpush.msra.mxu0 %v3668
    %3896 = vmatpush.msra.mxu0 %v3656
    %3897 = vmatpush.msra.mxu0 %v3644
    %3898 = vmatpush.msra.mxu0 %v3632
    %3899 = vmatmul.f32.gmra.mxu0 %v3721
    %v3900 = vpop.f32.mrf.mxu0
    %v3901 = vadd.f32 0.0, %v3900
    %3902 = vdwg.mxu0
    %3903 = vmatpush.msra.mxu0 0.0
    %3904 = vmatpush.msra.mxu0 0.0
    %3905 = vmatpush.msra.mxu0 0.0
    %3906 = vmatpush.msra.mxu0 0.0
    %3907 = vmatpush.msra.mxu0 0.0
    %3908 = vmatpush.msra.mxu0 0.0
    %3909 = vmatpush.msra.mxu0 0.0
    %3910 = vmatpush.msra.mxu0 0.0
    %3911 = vmatpush.msra.mxu0 %v3717
    %3912 = vmatpush.msra.mxu0 %v3705
    %3913 = vmatpush.msra.mxu0 %v3693
    %3914 = vmatpush.msra.mxu0 %v3681
    %3915 = vmatpush.msra.mxu0 %v3669
    %3916 = vmatpush.msra.mxu0 %v3657
    %3917 = vmatpush.msra.mxu0 %v3645
    %3918 = vmatpush.msra.mxu0 %v3633
    %3919 = vmatmul.f32.gmra.mxu0 %v3721
    %v3920 = vpop.f32.mrf.mxu0
    %v3921 = vadd.f32 0.0, %v3920
    %3922 = vdwg.mxu0
    %3923 = vmatpush.msra.mxu0 0.0
    %3924 = vmatpush.msra.mxu0 0.0
    %3925 = vmatpush.msra.mxu0 0.0
    %3926 = vmatpush.msra.mxu0 0.0
    %3927 = vmatpush.msra.mxu0 0.0
    %3928 = vmatpush.msra.mxu0 0.0
    %3929 = vmatpush.msra.mxu0 0.0
    %3930 = vmatpush.msra.mxu0 0.0
    %3931 = vmatpush.msra.mxu0 %v3718
    %3932 = vmatpush.msra.mxu0 %v3706
    %3933 = vmatpush.msra.mxu0 %v3694
    %3934 = vmatpush.msra.mxu0 %v3682
    %3935 = vmatpush.msra.mxu0 %v3670
    %3936 = vmatpush.msra.mxu0 %v3658
    %3937 = vmatpush.msra.mxu0 %v3646
    %3938 = vmatpush.msra.mxu0 %v3634
    %3939 = vmatmul.f32.gmra.mxu0 %v3721
    %v3940 = vpop.f32.mrf.mxu0
    %v3941 = vadd.f32 0.0, %v3940
    %3942 = vdwg.mxu0
    %3943 = vmatpush.msra.mxu0 0.0
    %3944 = vmatpush.msra.mxu0 0.0
    %3945 = vmatpush.msra.mxu0 0.0
    %3946 = vmatpush.msra.mxu0 0.0
    %3947 = vmatpush.msra.mxu0 0.0
    %3948 = vmatpush.msra.mxu0 0.0
    %3949 = vmatpush.msra.mxu0 0.0
    %3950 = vmatpush.msra.mxu0 0.0
    %3951 = vmatpush.msra.mxu0 %v3719
    %3952 = vmatpush.msra.mxu0 %v3707
    %3953 = vmatpush.msra.mxu0 %v3695
    %3954 = vmatpush.msra.mxu0 %v3683
    %3955 = vmatpush.msra.mxu0 %v3671
    %3956 = vmatpush.msra.mxu0 %v3659
    %3957 = vmatpush.msra.mxu0 %v3647
    %3958 = vmatpush.msra.mxu0 %v3635
    %3959 = vmatmul.f32.gmra.mxu0 %v3721
    %v3960 = vpop.f32.mrf.mxu0
    %v3961 = vadd.f32 0.0, %v3960
    %3962 = vdwg.mxu0
    %v3967 = vrot.slane %v3901, 1
    %v3968 = vrot.slane %v3921, 1
    %v3969 = vrot.slane %v3941, 1
    %v3970 = vrot.slane %v3961, 1
    %v3975 = vadd.f32 %v3821, %v3967
    %v3976 = vadd.f32 %v3841, %v3968
    %v3977 = vadd.f32 %v3861, %v3969
    %v3978 = vadd.f32 %v3881, %v3970
    %v3980 = vperm.slane %v3446, 0
    %v3981 = vperm.slane %v3446, 1
    %v3982 = vperm.slane %v3446, 2
    %v3983 = vperm.slane %v3446, 3
    %v3988 = vadd.f32 %v3975, %v3980
    %v3989 = vadd.f32 %v3976, %v3981
    %v3990 = vadd.f32 %v3977, %v3982
    %v3991 = vadd.f32 %v3978, %v3983
    %v3992 = vxor.u32 %v3988, 2147483648
    %v3993 = vmul.f32 %v3992, 1.442695
    %v3994 = vpow.pop %v3993
    %v3995 = vadd.f32 %v3994, 1.0
    %v3996 = vrcp.pop %v3995
    %v3997 = vmul.f32 %v3995, %v3996
    %v3998 = vsub.f32 1.0, %v3997
    %v3999 = vmul.f32 %v3996, %v3998
    %v4000 = vadd.f32 %v3996, %v3999
    %vm4001 = vweird.f32 %v3995
    %vm4002 = vweird.f32 %v3996
    %vm4003 = vmor %vm4001, %vm4002
    %v4004 = vsel %vm4003, %v3996, %v4000
    %v4005 = vand.u32 2147483647, %v3995
    %vm4006 = vcmp.eq.f32.partialorder %v4005, 8.507059e+37
    %v4007 = vand.u32 %v3995, 2147483648
    %v4008 = vor.u32 1.1754944e-38, %v4007
    %v4009 = vsel %vm4006, %v4008, %v4004
    %v4010 = vmul.f32 1.0, %v4009
    %v4011 = vxor.u32 %v3989, 2147483648
    %v4012 = vmul.f32 %v4011, 1.442695
    %v4013 = vpow.pop %v4012
    %v4014 = vadd.f32 %v4013, 1.0
    %v4015 = vrcp.pop %v4014
    %v4016 = vmul.f32 %v4014, %v4015
    %v4017 = vsub.f32 1.0, %v4016
    %v4018 = vmul.f32 %v4015, %v4017
    %v4019 = vadd.f32 %v4015, %v4018
    %vm4020 = vweird.f32 %v4014
    %vm4021 = vweird.f32 %v4015
    %vm4022 = vmor %vm4020, %vm4021
    %v4023 = vsel %vm4022, %v4015, %v4019
    %v4024 = vand.u32 2147483647, %v4014
    %vm4025 = vcmp.eq.f32.partialorder %v4024, 8.507059e+37
    %v4026 = vand.u32 %v4014, 2147483648
    %v4027 = vor.u32 1.1754944e-38, %v4026
    %v4028 = vsel %vm4025, %v4027, %v4023
    %v4029 = vmul.f32 1.0, %v4028
    %v4030 = vtanh.pop %v3990
    %v4031 = vxor.u32 %v3991, 2147483648
    %v4032 = vmul.f32 %v4031, 1.442695
    %v4033 = vpow.pop %v4032
    %v4034 = vadd.f32 %v4033, 1.0
    %v4035 = vrcp.pop %v4034
    %v4036 = vmul.f32 %v4034, %v4035
    %v4037 = vsub.f32 1.0, %v4036
    %v4038 = vmul.f32 %v4035, %v4037
    %v4039 = vadd.f32 %v4035, %v4038
    %vm4040 = vweird.f32 %v4034
    %vm4041 = vweird.f32 %v4035
    %vm4042 = vmor %vm4040, %vm4041
    %v4043 = vsel %vm4042, %v4035, %v4039
    %v4044 = vand.u32 2147483647, %v4034
    %vm4045 = vcmp.eq.f32.partialorder %v4044, 8.507059e+37
    %v4046 = vand.u32 %v4034, 2147483648
    %v4047 = vor.u32 1.1754944e-38, %v4046
    %v4048 = vsel %vm4045, %v4047, %v4043
    %v4049 = vmul.f32 1.0, %v4048
    %v4050 = vmul.f32 %v4029, 0.0
    %v4051 = vmul.f32 %v4010, %v4030
    %v4052 = vadd.f32 %v4050, %v4051
    %v4053 = vtanh.pop %v4052
    %v4054 = vmul.f32 %v4049, %v4053
    %4055 = vst [vmem:[#allocation3] sm:$0x1] %v4054
    %v4056 = vadd.f32 %v3494, %v3741
    %v4057 = vadd.f32 %v3514, %v3761
    %v4058 = vadd.f32 %v3534, %v3781
    %v4059 = vadd.f32 %v3554, %v3801
    %v4060 = vxor.u32 %v4056, 2147483648
    %v4061 = vmul.f32 %v4060, 1.442695
    %v4062 = vpow.pop %v4061
    %v4063 = vadd.f32 %v4062, 1.0
    %v4064 = vrcp.pop %v4063
    %v4065 = vmul.f32 %v4063, %v4064
    %v4066 = vsub.f32 1.0, %v4065
    %v4067 = vmul.f32 %v4064, %v4066
    %v4068 = vadd.f32 %v4064, %v4067
    %vm4069 = vweird.f32 %v4063
    %vm4070 = vweird.f32 %v4064
    %vm4071 = vmor %vm4069, %vm4070
    %v4072 = vsel %vm4071, %v4064, %v4068
    %v4073 = vand.u32 2147483647, %v4063
    %vm4074 = vcmp.eq.f32.partialorder %v4073, 8.507059e+37
    %v4075 = vand.u32 %v4063, 2147483648
    %v4076 = vor.u32 1.1754944e-38, %v4075
    %v4077 = vsel %vm4074, %v4076, %v4072
    %v4078 = vmul.f32 1.0, %v4077
    %v4079 = vxor.u32 %v4057, 2147483648
    %v4080 = vmul.f32 %v4079, 1.442695
    %v4081 = vpow.pop %v4080
    %v4082 = vadd.f32 %v4081, 1.0
    %v4083 = vrcp.pop %v4082
    %v4084 = vmul.f32 %v4082, %v4083
    %v4085 = vsub.f32 1.0, %v4084
    %v4086 = vmul.f32 %v4083, %v4085
    %v4087 = vadd.f32 %v4083, %v4086
    %vm4088 = vweird.f32 %v4082
    %vm4089 = vweird.f32 %v4083
    %vm4090 = vmor %vm4088, %vm4089
    %v4091 = vsel %vm4090, %v4083, %v4087
    %v4092 = vand.u32 2147483647, %v4082
    %vm4093 = vcmp.eq.f32.partialorder %v4092, 8.507059e+37
    %v4094 = vand.u32 %v4082, 2147483648
    %v4095 = vor.u32 1.1754944e-38, %v4094
    %v4096 = vsel %vm4093, %v4095, %v4091
    %v4097 = vmul.f32 1.0, %v4096
    %v4098 = vtanh.pop %v4058
    %v4099 = vxor.u32 %v4059, 2147483648
    %v4100 = vmul.f32 %v4099, 1.442695
    %v4101 = vpow.pop %v4100
    %v4102 = vadd.f32 %v4101, 1.0
    %v4103 = vrcp.pop %v4102
    %v4104 = vmul.f32 %v4102, %v4103
    %v4105 = vsub.f32 1.0, %v4104
    %v4106 = vmul.f32 %v4103, %v4105
    %v4107 = vadd.f32 %v4103, %v4106
    %vm4108 = vweird.f32 %v4102
    %vm4109 = vweird.f32 %v4103
    %vm4110 = vmor %vm4108, %vm4109
    %v4111 = vsel %vm4110, %v4103, %v4107
    %v4112 = vand.u32 2147483647, %v4102
    %vm4113 = vcmp.eq.f32.partialorder %v4112, 8.507059e+37
    %v4114 = vand.u32 %v4102, 2147483648
    %v4115 = vor.u32 1.1754944e-38, %v4114
    %v4116 = vsel %vm4113, %v4115, %v4111
    %v4117 = vmul.f32 1.0, %v4116
    %v4118 = vmul.f32 %v4097, %v3620
    %v4119 = vmul.f32 %v4078, %v4098
    %v4120 = vadd.f32 %v4118, %v4119
    %v4121 = vtanh.pop %v4120
    %v4122 = vmul.f32 %v4117, %v4121
    %v4124 = vrot.slane %v4054, 7
    %v4126 = vsel %vm174, %v4122, %v4124
    %v4127 = vld [vmem:[#allocation5] sm:$0xff]
    %v4128 = vld [vmem:[#allocation5 + $0x8] sm:$0xff]
    %v4129 = vld [vmem:[#allocation5 + $0x10] sm:$0xff]
    %v4130 = vld [vmem:[#allocation5 + $0x18] sm:$0xff]
    %v4131 = vld [vmem:[#allocation5 + $0x20] sm:$0xff]
    %v4132 = vld [vmem:[#allocation5 + $0x28] sm:$0xff]
    %v4133 = vld [vmem:[#allocation5 + $0x30] sm:$0xff]
    %v4134 = vld [vmem:[#allocation5 + $0x38] sm:$0xff]
    %v4135 = vld [vmem:[#allocation5 + $0x40] sm:$0xff]
    %v4136 = vld [vmem:[#allocation5 + $0x48] sm:$0xff]
    %v4137 = vld [vmem:[#allocation5 + $0x50] sm:$0xff]
    %v4138 = vld [vmem:[#allocation5 + $0x58] sm:$0xff]
    %v4139 = vld [vmem:[#allocation5 + $0x60] sm:$0xff]
    %v4140 = vld [vmem:[#allocation5 + $0x68] sm:$0xff]
    %v4141 = vld [vmem:[#allocation5 + $0x70] sm:$0xff]
    %v4142 = vld [vmem:[#allocation5 + $0x78] sm:$0xff]
    %v4143 = vld [vmem:[#allocation5 + $0x80] sm:$0xff]
    %v4144 = vld [vmem:[#allocation5 + $0x88] sm:$0xff]
    %v4145 = vld [vmem:[#allocation5 + $0x90] sm:$0xff]
    %v4146 = vld [vmem:[#allocation5 + $0x98] sm:$0xff]
    %v4147 = vld [vmem:[#allocation5 + $0xa0] sm:$0xff]
    %v4148 = vld [vmem:[#allocation5 + $0xa8] sm:$0xff]
    %v4149 = vld [vmem:[#allocation5 + $0xb0] sm:$0xff]
    %v4150 = vld [vmem:[#allocation5 + $0xb8] sm:$0xff]
    %v4151 = vld [vmem:[#allocation5 + $0xc0] sm:$0xff]
    %v4152 = vld [vmem:[#allocation5 + $0xc8] sm:$0xff]
    %v4153 = vld [vmem:[#allocation5 + $0xd0] sm:$0xff]
    %v4154 = vld [vmem:[#allocation5 + $0xd8] sm:$0xff]
    %v4155 = vld [vmem:[#allocation5 + $0xe0] sm:$0xff]
    %v4156 = vld [vmem:[#allocation5 + $0xe8] sm:$0xff]
    %v4157 = vld [vmem:[#allocation5 + $0xf0] sm:$0xff]
    %v4158 = vld [vmem:[#allocation5 + $0xf8] sm:$0xff]
    %v4159 = vld [vmem:[#allocation5 + $0x100] sm:$0xff]
    %v4160 = vld [vmem:[#allocation5 + $0x108] sm:$0xff]
    %v4161 = vld [vmem:[#allocation5 + $0x110] sm:$0xff]
    %v4162 = vld [vmem:[#allocation5 + $0x118] sm:$0xff]
    %v4163 = vld [vmem:[#allocation5 + $0x120] sm:$0xff]
    %v4164 = vld [vmem:[#allocation5 + $0x128] sm:$0xff]
    %v4165 = vld [vmem:[#allocation5 + $0x130] sm:$0xff]
    %v4166 = vld [vmem:[#allocation5 + $0x138] sm:$0xff]
    %v4167 = vld [vmem:[#allocation5 + $0x140] sm:$0xff]
    %v4168 = vld [vmem:[#allocation5 + $0x148] sm:$0xff]
    %v4169 = vld [vmem:[#allocation5 + $0x150] sm:$0xff]
    %v4170 = vld [vmem:[#allocation5 + $0x158] sm:$0xff]
    %v4171 = vld [vmem:[#allocation5 + $0x160] sm:$0xff]
    %v4172 = vld [vmem:[#allocation5 + $0x168] sm:$0xff]
    %v4173 = vld [vmem:[#allocation5 + $0x170] sm:$0xff]
    %v4174 = vld [vmem:[#allocation5 + $0x178] sm:$0xff]
    %v4175 = vld [vmem:[#allocation5 + $0x180] sm:$0xff]
    %v4176 = vld [vmem:[#allocation5 + $0x188] sm:$0xff]
    %v4177 = vld [vmem:[#allocation5 + $0x190] sm:$0xff]
    %v4178 = vld [vmem:[#allocation5 + $0x198] sm:$0xff]
    %v4179 = vld [vmem:[#allocation5 + $0x1a0] sm:$0xff]
    %v4180 = vld [vmem:[#allocation5 + $0x1a8] sm:$0xff]
    %v4181 = vld [vmem:[#allocation5 + $0x1b0] sm:$0xff]
    %v4182 = vld [vmem:[#allocation5 + $0x1b8] sm:$0xff]
    %v4183 = vld [vmem:[#allocation5 + $0x1c0] sm:$0xff]
    %v4184 = vld [vmem:[#allocation5 + $0x1c8] sm:$0xff]
    %v4185 = vld [vmem:[#allocation5 + $0x1d0] sm:$0xff]
    %v4186 = vld [vmem:[#allocation5 + $0x1d8] sm:$0xff]
    %v4187 = vld [vmem:[#allocation5 + $0x1e0] sm:$0xff]
    %v4188 = vld [vmem:[#allocation5 + $0x1e8] sm:$0xff]
    %v4189 = vld [vmem:[#allocation5 + $0x1f0] sm:$0xff]
    %v4190 = vld [vmem:[#allocation5 + $0x1f8] sm:$0xff]
    %v4191 = vld [vmem:[#allocation5 + $0x200] sm:$0xff]
    %v4192 = vld [vmem:[#allocation5 + $0x208] sm:$0xff]
    %v4193 = vld [vmem:[#allocation5 + $0x210] sm:$0xff]
    %v4194 = vld [vmem:[#allocation5 + $0x218] sm:$0xff]
    %v4195 = vld [vmem:[#allocation5 + $0x220] sm:$0xff]
    %v4196 = vld [vmem:[#allocation5 + $0x228] sm:$0xff]
    %v4197 = vld [vmem:[#allocation5 + $0x230] sm:$0xff]
    %v4198 = vld [vmem:[#allocation5 + $0x238] sm:$0xff]
    %v4199 = vld [vmem:[#allocation5 + $0x240] sm:$0xff]
    %v4200 = vld [vmem:[#allocation5 + $0x248] sm:$0xff]
    %v4201 = vld [vmem:[#allocation5 + $0x250] sm:$0xff]
    %v4202 = vld [vmem:[#allocation5 + $0x258] sm:$0xff]
    %v4203 = vld [vmem:[#allocation5 + $0x260] sm:$0xff]
    %v4204 = vld [vmem:[#allocation5 + $0x268] sm:$0xff]
    %v4205 = vld [vmem:[#allocation5 + $0x270] sm:$0xff]
    %v4206 = vld [vmem:[#allocation5 + $0x278] sm:$0xff]
    %v4207 = vld [vmem:[#allocation5 + $0x280] sm:$0xff]
    %v4208 = vld [vmem:[#allocation5 + $0x288] sm:$0xff]
    %v4209 = vld [vmem:[#allocation5 + $0x290] sm:$0xff]
    %v4210 = vld [vmem:[#allocation5 + $0x298] sm:$0xff]
    %v4211 = vld [vmem:[#allocation5 + $0x2a0] sm:$0xff]
    %v4212 = vld [vmem:[#allocation5 + $0x2a8] sm:$0xff]
    %v4213 = vld [vmem:[#allocation5 + $0x2b0] sm:$0xff]
    %v4214 = vld [vmem:[#allocation5 + $0x2b8] sm:$0xff]
    %v4215 = vld [vmem:[#allocation5 + $0x2c0] sm:$0xff]
    %v4216 = vld [vmem:[#allocation5 + $0x2c8] sm:$0xff]
    %v4217 = vld [vmem:[#allocation5 + $0x2d0] sm:$0xff]
    %v4218 = vld [vmem:[#allocation5 + $0x2d8] sm:$0xff]
    %v4219 = vld [vmem:[#allocation5 + $0x2e0] sm:$0xff]
    %v4220 = vld [vmem:[#allocation5 + $0x2e8] sm:$0xff]
    %v4221 = vld [vmem:[#allocation5 + $0x2f0] sm:$0xff]
    %v4222 = vld [vmem:[#allocation5 + $0x2f8] sm:$0xff]
    %v4224 = vsel %vm272, %v4126, 0
    %4226 = vmatpush.msra.mxu0 0.0
    %4227 = vmatpush.msra.mxu0 0.0
    %4228 = vmatpush.msra.mxu0 0.0
    %4229 = vmatpush.msra.mxu0 0.0
    %4230 = vmatpush.msra.mxu0 0.0
    %4231 = vmatpush.msra.mxu0 0.0
    %4232 = vmatpush.msra.mxu0 0.0
    %4233 = vmatpush.msra.mxu0 0.0
    %4234 = vmatpush.msra.mxu0 %v4211
    %4235 = vmatpush.msra.mxu0 %v4199
    %4236 = vmatpush.msra.mxu0 %v4187
    %4237 = vmatpush.msra.mxu0 %v4175
    %4238 = vmatpush.msra.mxu0 %v4163
    %4239 = vmatpush.msra.mxu0 %v4151
    %4240 = vmatpush.msra.mxu0 %v4139
    %4241 = vmatpush.msra.mxu0 %v4127
    %4242 = vmatmul.f32.gmra.mxu0 %v4224
    %v4243 = vpop.f32.mrf.mxu0
    %v4244 = vadd.f32 0.0, %v4243
    %4245 = vdwg.mxu0
    %4246 = vmatpush.msra.mxu0 0.0
    %4247 = vmatpush.msra.mxu0 0.0
    %4248 = vmatpush.msra.mxu0 0.0
    %4249 = vmatpush.msra.mxu0 0.0
    %4250 = vmatpush.msra.mxu0 0.0
    %4251 = vmatpush.msra.mxu0 0.0
    %4252 = vmatpush.msra.mxu0 0.0
    %4253 = vmatpush.msra.mxu0 0.0
    %4254 = vmatpush.msra.mxu0 %v4212
    %4255 = vmatpush.msra.mxu0 %v4200
    %4256 = vmatpush.msra.mxu0 %v4188
    %4257 = vmatpush.msra.mxu0 %v4176
    %4258 = vmatpush.msra.mxu0 %v4164
    %4259 = vmatpush.msra.mxu0 %v4152
    %4260 = vmatpush.msra.mxu0 %v4140
    %4261 = vmatpush.msra.mxu0 %v4128
    %4262 = vmatmul.f32.gmra.mxu0 %v4224
    %v4263 = vpop.f32.mrf.mxu0
    %v4264 = vadd.f32 0.0, %v4263
    %4265 = vdwg.mxu0
    %4266 = vmatpush.msra.mxu0 0.0
    %4267 = vmatpush.msra.mxu0 0.0
    %4268 = vmatpush.msra.mxu0 0.0
    %4269 = vmatpush.msra.mxu0 0.0
    %4270 = vmatpush.msra.mxu0 0.0
    %4271 = vmatpush.msra.mxu0 0.0
    %4272 = vmatpush.msra.mxu0 0.0
    %4273 = vmatpush.msra.mxu0 0.0
    %4274 = vmatpush.msra.mxu0 %v4213
    %4275 = vmatpush.msra.mxu0 %v4201
    %4276 = vmatpush.msra.mxu0 %v4189
    %4277 = vmatpush.msra.mxu0 %v4177
    %4278 = vmatpush.msra.mxu0 %v4165
    %4279 = vmatpush.msra.mxu0 %v4153
    %4280 = vmatpush.msra.mxu0 %v4141
    %4281 = vmatpush.msra.mxu0 %v4129
    %4282 = vmatmul.f32.gmra.mxu0 %v4224
    %v4283 = vpop.f32.mrf.mxu0
    %v4284 = vadd.f32 0.0, %v4283
    %4285 = vdwg.mxu0
    %4286 = vmatpush.msra.mxu0 0.0
    %4287 = vmatpush.msra.mxu0 0.0
    %4288 = vmatpush.msra.mxu0 0.0
    %4289 = vmatpush.msra.mxu0 0.0
    %4290 = vmatpush.msra.mxu0 0.0
    %4291 = vmatpush.msra.mxu0 0.0
    %4292 = vmatpush.msra.mxu0 0.0
    %4293 = vmatpush.msra.mxu0 0.0
    %4294 = vmatpush.msra.mxu0 %v4214
    %4295 = vmatpush.msra.mxu0 %v4202
    %4296 = vmatpush.msra.mxu0 %v4190
    %4297 = vmatpush.msra.mxu0 %v4178
    %4298 = vmatpush.msra.mxu0 %v4166
    %4299 = vmatpush.msra.mxu0 %v4154
    %4300 = vmatpush.msra.mxu0 %v4142
    %4301 = vmatpush.msra.mxu0 %v4130
    %4302 = vmatmul.f32.gmra.mxu0 %v4224
    %v4303 = vpop.f32.mrf.mxu0
    %v4304 = vadd.f32 0.0, %v4303
    %4305 = vdwg.mxu0
    %4306 = vmatpush.msra.mxu0 0.0
    %4307 = vmatpush.msra.mxu0 0.0
    %4308 = vmatpush.msra.mxu0 0.0
    %4309 = vmatpush.msra.mxu0 0.0
    %4310 = vmatpush.msra.mxu0 0.0
    %4311 = vmatpush.msra.mxu0 0.0
    %4312 = vmatpush.msra.mxu0 0.0
    %4313 = vmatpush.msra.mxu0 0.0
    %4314 = vmatpush.msra.mxu0 %v4215
    %4315 = vmatpush.msra.mxu0 %v4203
    %4316 = vmatpush.msra.mxu0 %v4191
    %4317 = vmatpush.msra.mxu0 %v4179
    %4318 = vmatpush.msra.mxu0 %v4167
    %4319 = vmatpush.msra.mxu0 %v4155
    %4320 = vmatpush.msra.mxu0 %v4143
    %4321 = vmatpush.msra.mxu0 %v4131
    %4322 = vmatmul.f32.gmra.mxu0 %v4224
    %v4323 = vpop.f32.mrf.mxu0
    %v4324 = vadd.f32 0.0, %v4323
    %4325 = vdwg.mxu0
    %4326 = vmatpush.msra.mxu0 0.0
    %4327 = vmatpush.msra.mxu0 0.0
    %4328 = vmatpush.msra.mxu0 0.0
    %4329 = vmatpush.msra.mxu0 0.0
    %4330 = vmatpush.msra.mxu0 0.0
    %4331 = vmatpush.msra.mxu0 0.0
    %4332 = vmatpush.msra.mxu0 0.0
    %4333 = vmatpush.msra.mxu0 0.0
    %4334 = vmatpush.msra.mxu0 %v4216
    %4335 = vmatpush.msra.mxu0 %v4204
    %4336 = vmatpush.msra.mxu0 %v4192
    %4337 = vmatpush.msra.mxu0 %v4180
    %4338 = vmatpush.msra.mxu0 %v4168
    %4339 = vmatpush.msra.mxu0 %v4156
    %4340 = vmatpush.msra.mxu0 %v4144
    %4341 = vmatpush.msra.mxu0 %v4132
    %4342 = vmatmul.f32.gmra.mxu0 %v4224
    %v4343 = vpop.f32.mrf.mxu0
    %v4344 = vadd.f32 0.0, %v4343
    %4345 = vdwg.mxu0
    %4346 = vmatpush.msra.mxu0 0.0
    %4347 = vmatpush.msra.mxu0 0.0
    %4348 = vmatpush.msra.mxu0 0.0
    %4349 = vmatpush.msra.mxu0 0.0
    %4350 = vmatpush.msra.mxu0 0.0
    %4351 = vmatpush.msra.mxu0 0.0
    %4352 = vmatpush.msra.mxu0 0.0
    %4353 = vmatpush.msra.mxu0 0.0
    %4354 = vmatpush.msra.mxu0 %v4217
    %4355 = vmatpush.msra.mxu0 %v4205
    %4356 = vmatpush.msra.mxu0 %v4193
    %4357 = vmatpush.msra.mxu0 %v4181
    %4358 = vmatpush.msra.mxu0 %v4169
    %4359 = vmatpush.msra.mxu0 %v4157
    %4360 = vmatpush.msra.mxu0 %v4145
    %4361 = vmatpush.msra.mxu0 %v4133
    %4362 = vmatmul.f32.gmra.mxu0 %v4224
    %v4363 = vpop.f32.mrf.mxu0
    %v4364 = vadd.f32 0.0, %v4363
    %4365 = vdwg.mxu0
    %4366 = vmatpush.msra.mxu0 0.0
    %4367 = vmatpush.msra.mxu0 0.0
    %4368 = vmatpush.msra.mxu0 0.0
    %4369 = vmatpush.msra.mxu0 0.0
    %4370 = vmatpush.msra.mxu0 0.0
    %4371 = vmatpush.msra.mxu0 0.0
    %4372 = vmatpush.msra.mxu0 0.0
    %4373 = vmatpush.msra.mxu0 0.0
    %4374 = vmatpush.msra.mxu0 %v4218
    %4375 = vmatpush.msra.mxu0 %v4206
    %4376 = vmatpush.msra.mxu0 %v4194
    %4377 = vmatpush.msra.mxu0 %v4182
    %4378 = vmatpush.msra.mxu0 %v4170
    %4379 = vmatpush.msra.mxu0 %v4158
    %4380 = vmatpush.msra.mxu0 %v4146
    %4381 = vmatpush.msra.mxu0 %v4134
    %4382 = vmatmul.f32.gmra.mxu0 %v4224
    %v4383 = vpop.f32.mrf.mxu0
    %v4384 = vadd.f32 0.0, %v4383
    %4385 = vdwg.mxu0
    %4386 = vmatpush.msra.mxu0 0.0
    %4387 = vmatpush.msra.mxu0 0.0
    %4388 = vmatpush.msra.mxu0 0.0
    %4389 = vmatpush.msra.mxu0 0.0
    %4390 = vmatpush.msra.mxu0 0.0
    %4391 = vmatpush.msra.mxu0 0.0
    %4392 = vmatpush.msra.mxu0 0.0
    %4393 = vmatpush.msra.mxu0 0.0
    %4394 = vmatpush.msra.mxu0 %v4219
    %4395 = vmatpush.msra.mxu0 %v4207
    %4396 = vmatpush.msra.mxu0 %v4195
    %4397 = vmatpush.msra.mxu0 %v4183
    %4398 = vmatpush.msra.mxu0 %v4171
    %4399 = vmatpush.msra.mxu0 %v4159
    %4400 = vmatpush.msra.mxu0 %v4147
    %4401 = vmatpush.msra.mxu0 %v4135
    %4402 = vmatmul.f32.gmra.mxu0 %v4224
    %v4403 = vpop.f32.mrf.mxu0
    %v4404 = vadd.f32 0.0, %v4403
    %4405 = vdwg.mxu0
    %4406 = vmatpush.msra.mxu0 0.0
    %4407 = vmatpush.msra.mxu0 0.0
    %4408 = vmatpush.msra.mxu0 0.0
    %4409 = vmatpush.msra.mxu0 0.0
    %4410 = vmatpush.msra.mxu0 0.0
    %4411 = vmatpush.msra.mxu0 0.0
    %4412 = vmatpush.msra.mxu0 0.0
    %4413 = vmatpush.msra.mxu0 0.0
    %4414 = vmatpush.msra.mxu0 %v4220
    %4415 = vmatpush.msra.mxu0 %v4208
    %4416 = vmatpush.msra.mxu0 %v4196
    %4417 = vmatpush.msra.mxu0 %v4184
    %4418 = vmatpush.msra.mxu0 %v4172
    %4419 = vmatpush.msra.mxu0 %v4160
    %4420 = vmatpush.msra.mxu0 %v4148
    %4421 = vmatpush.msra.mxu0 %v4136
    %4422 = vmatmul.f32.gmra.mxu0 %v4224
    %v4423 = vpop.f32.mrf.mxu0
    %v4424 = vadd.f32 0.0, %v4423
    %4425 = vdwg.mxu0
    %4426 = vmatpush.msra.mxu0 0.0
    %4427 = vmatpush.msra.mxu0 0.0
    %4428 = vmatpush.msra.mxu0 0.0
    %4429 = vmatpush.msra.mxu0 0.0
    %4430 = vmatpush.msra.mxu0 0.0
    %4431 = vmatpush.msra.mxu0 0.0
    %4432 = vmatpush.msra.mxu0 0.0
    %4433 = vmatpush.msra.mxu0 0.0
    %4434 = vmatpush.msra.mxu0 %v4221
    %4435 = vmatpush.msra.mxu0 %v4209
    %4436 = vmatpush.msra.mxu0 %v4197
    %4437 = vmatpush.msra.mxu0 %v4185
    %4438 = vmatpush.msra.mxu0 %v4173
    %4439 = vmatpush.msra.mxu0 %v4161
    %4440 = vmatpush.msra.mxu0 %v4149
    %4441 = vmatpush.msra.mxu0 %v4137
    %4442 = vmatmul.f32.gmra.mxu0 %v4224
    %v4443 = vpop.f32.mrf.mxu0
    %v4444 = vadd.f32 0.0, %v4443
    %4445 = vdwg.mxu0
    %4446 = vmatpush.msra.mxu0 0.0
    %4447 = vmatpush.msra.mxu0 0.0
    %4448 = vmatpush.msra.mxu0 0.0
    %4449 = vmatpush.msra.mxu0 0.0
    %4450 = vmatpush.msra.mxu0 0.0
    %4451 = vmatpush.msra.mxu0 0.0
    %4452 = vmatpush.msra.mxu0 0.0
    %4453 = vmatpush.msra.mxu0 0.0
    %4454 = vmatpush.msra.mxu0 %v4222
    %4455 = vmatpush.msra.mxu0 %v4210
    %4456 = vmatpush.msra.mxu0 %v4198
    %4457 = vmatpush.msra.mxu0 %v4186
    %4458 = vmatpush.msra.mxu0 %v4174
    %4459 = vmatpush.msra.mxu0 %v4162
    %4460 = vmatpush.msra.mxu0 %v4150
    %4461 = vmatpush.msra.mxu0 %v4138
    %4462 = vmatmul.f32.gmra.mxu0 %v4224
    %v4463 = vpop.f32.mrf.mxu0
    %v4464 = vadd.f32 0.0, %v4463
    %4465 = vdwg.mxu0
    %v4470 = vrot.slane %v4404, 1
    %v4471 = vrot.slane %v4424, 1
    %v4472 = vrot.slane %v4444, 1
    %v4473 = vrot.slane %v4464, 1
    %v4478 = vadd.f32 %v4324, %v4470
    %v4479 = vadd.f32 %v4344, %v4471
    %v4480 = vadd.f32 %v4364, %v4472
    %v4481 = vadd.f32 %v4384, %v4473
    %v4482 = vadd.f32 %v4478, %v3980
    %v4483 = vadd.f32 %v4479, %v3981
    %v4484 = vadd.f32 %v4480, %v3982
    %v4485 = vadd.f32 %v4481, %v3983
    %v4486 = vxor.u32 %v4482, 2147483648
    %v4487 = vmul.f32 %v4486, 1.442695
    %v4488 = vpow.pop %v4487
    %v4489 = vadd.f32 %v4488, 1.0
    %v4490 = vrcp.pop %v4489
    %v4491 = vmul.f32 %v4489, %v4490
    %v4492 = vsub.f32 1.0, %v4491
    %v4493 = vmul.f32 %v4490, %v4492
    %v4494 = vadd.f32 %v4490, %v4493
    %vm4495 = vweird.f32 %v4489
    %vm4496 = vweird.f32 %v4490
    %vm4497 = vmor %vm4495, %vm4496
    %v4498 = vsel %vm4497, %v4490, %v4494
    %v4499 = vand.u32 2147483647, %v4489
    %vm4500 = vcmp.eq.f32.partialorder %v4499, 8.507059e+37
    %v4501 = vand.u32 %v4489, 2147483648
    %v4502 = vor.u32 1.1754944e-38, %v4501
    %v4503 = vsel %vm4500, %v4502, %v4498
    %v4504 = vmul.f32 1.0, %v4503
    %v4505 = vxor.u32 %v4483, 2147483648
    %v4506 = vmul.f32 %v4505, 1.442695
    %v4507 = vpow.pop %v4506
    %v4508 = vadd.f32 %v4507, 1.0
    %v4509 = vrcp.pop %v4508
    %v4510 = vmul.f32 %v4508, %v4509
    %v4511 = vsub.f32 1.0, %v4510
    %v4512 = vmul.f32 %v4509, %v4511
    %v4513 = vadd.f32 %v4509, %v4512
    %vm4514 = vweird.f32 %v4508
    %vm4515 = vweird.f32 %v4509
    %vm4516 = vmor %vm4514, %vm4515
    %v4517 = vsel %vm4516, %v4509, %v4513
    %v4518 = vand.u32 2147483647, %v4508
    %vm4519 = vcmp.eq.f32.partialorder %v4518, 8.507059e+37
    %v4520 = vand.u32 %v4508, 2147483648
    %v4521 = vor.u32 1.1754944e-38, %v4520
    %v4522 = vsel %vm4519, %v4521, %v4517
    %v4523 = vmul.f32 1.0, %v4522
    %v4524 = vtanh.pop %v4484
    %v4525 = vxor.u32 %v4485, 2147483648
    %v4526 = vmul.f32 %v4525, 1.442695
    %v4527 = vpow.pop %v4526
    %v4528 = vadd.f32 %v4527, 1.0
    %v4529 = vrcp.pop %v4528
    %v4530 = vmul.f32 %v4528, %v4529
    %v4531 = vsub.f32 1.0, %v4530
    %v4532 = vmul.f32 %v4529, %v4531
    %v4533 = vadd.f32 %v4529, %v4532
    %vm4534 = vweird.f32 %v4528
    %vm4535 = vweird.f32 %v4529
    %vm4536 = vmor %vm4534, %vm4535
    %v4537 = vsel %vm4536, %v4529, %v4533
    %v4538 = vand.u32 2147483647, %v4528
    %vm4539 = vcmp.eq.f32.partialorder %v4538, 8.507059e+37
    %v4540 = vand.u32 %v4528, 2147483648
    %v4541 = vor.u32 1.1754944e-38, %v4540
    %v4542 = vsel %vm4539, %v4541, %v4537
    %v4543 = vmul.f32 1.0, %v4542
    %v4544 = vmul.f32 %v4523, %v4052
    %v4545 = vmul.f32 %v4504, %v4524
    %v4546 = vadd.f32 %v4544, %v4545
    %v4547 = vtanh.pop %v4546
    %v4548 = vmul.f32 %v4543, %v4547
    %4549 = vst [vmem:[#allocation3 + $0x1] sm:$0x1] %v4548
    %v4550 = vadd.f32 %v3494, %v4244
    %v4551 = vadd.f32 %v3514, %v4264
    %v4552 = vadd.f32 %v3534, %v4284
    %v4553 = vadd.f32 %v3554, %v4304
    %v4554 = vxor.u32 %v4550, 2147483648
    %v4555 = vmul.f32 %v4554, 1.442695
    %v4556 = vpow.pop %v4555
    %v4557 = vadd.f32 %v4556, 1.0
    %v4558 = vrcp.pop %v4557
    %v4559 = vmul.f32 %v4557, %v4558
    %v4560 = vsub.f32 1.0, %v4559
    %v4561 = vmul.f32 %v4558, %v4560
    %v4562 = vadd.f32 %v4558, %v4561
    %vm4563 = vweird.f32 %v4557
    %vm4564 = vweird.f32 %v4558
    %vm4565 = vmor %vm4563, %vm4564
    %v4566 = vsel %vm4565, %v4558, %v4562
    %v4567 = vand.u32 2147483647, %v4557
    %vm4568 = vcmp.eq.f32.partialorder %v4567, 8.507059e+37
    %v4569 = vand.u32 %v4557, 2147483648
    %v4570 = vor.u32 1.1754944e-38, %v4569
    %v4571 = vsel %vm4568, %v4570, %v4566
    %v4572 = vmul.f32 1.0, %v4571
    %v4573 = vxor.u32 %v4551, 2147483648
    %v4574 = vmul.f32 %v4573, 1.442695
    %v4575 = vpow.pop %v4574
    %v4576 = vadd.f32 %v4575, 1.0
    %v4577 = vrcp.pop %v4576
    %v4578 = vmul.f32 %v4576, %v4577
    %v4579 = vsub.f32 1.0, %v4578
    %v4580 = vmul.f32 %v4577, %v4579
    %v4581 = vadd.f32 %v4577, %v4580
    %vm4582 = vweird.f32 %v4576
    %vm4583 = vweird.f32 %v4577
    %vm4584 = vmor %vm4582, %vm4583
    %v4585 = vsel %vm4584, %v4577, %v4581
    %v4586 = vand.u32 2147483647, %v4576
    %vm4587 = vcmp.eq.f32.partialorder %v4586, 8.507059e+37
    %v4588 = vand.u32 %v4576, 2147483648
    %v4589 = vor.u32 1.1754944e-38, %v4588
    %v4590 = vsel %vm4587, %v4589, %v4585
    %v4591 = vmul.f32 1.0, %v4590
    %v4592 = vtanh.pop %v4552
    %v4593 = vxor.u32 %v4553, 2147483648
    %v4594 = vmul.f32 %v4593, 1.442695
    %v4595 = vpow.pop %v4594
    %v4596 = vadd.f32 %v4595, 1.0
    %v4597 = vrcp.pop %v4596
    %v4598 = vmul.f32 %v4596, %v4597
    %v4599 = vsub.f32 1.0, %v4598
    %v4600 = vmul.f32 %v4597, %v4599
    %v4601 = vadd.f32 %v4597, %v4600
    %vm4602 = vweird.f32 %v4596
    %vm4603 = vweird.f32 %v4597
    %vm4604 = vmor %vm4602, %vm4603
    %v4605 = vsel %vm4604, %v4597, %v4601
    %v4606 = vand.u32 2147483647, %v4596
    %vm4607 = vcmp.eq.f32.partialorder %v4606, 8.507059e+37
    %v4608 = vand.u32 %v4596, 2147483648
    %v4609 = vor.u32 1.1754944e-38, %v4608
    %v4610 = vsel %vm4607, %v4609, %v4605
    %v4611 = vmul.f32 1.0, %v4610
    %v4612 = vmul.f32 %v4591, %v4120
    %v4613 = vmul.f32 %v4572, %v4592
    %v4614 = vadd.f32 %v4612, %v4613
    %v4615 = vtanh.pop %v4614
    %v4616 = vmul.f32 %v4611, %v4615
    %v4618 = vrot.slane %v4548, 7
    %v4620 = vsel %vm174, %v4616, %v4618
    %v4621 = vld [vmem:[#allocation5] sm:$0xff]
    %v4622 = vld [vmem:[#allocation5 + $0x8] sm:$0xff]
    %v4623 = vld [vmem:[#allocation5 + $0x10] sm:$0xff]
    %v4624 = vld [vmem:[#allocation5 + $0x18] sm:$0xff]
    %v4625 = vld [vmem:[#allocation5 + $0x20] sm:$0xff]
    %v4626 = vld [vmem:[#allocation5 + $0x28] sm:$0xff]
    %v4627 = vld [vmem:[#allocation5 + $0x30] sm:$0xff]
    %v4628 = vld [vmem:[#allocation5 + $0x38] sm:$0xff]
    %v4629 = vld [vmem:[#allocation5 + $0x40] sm:$0xff]
    %v4630 = vld [vmem:[#allocation5 + $0x48] sm:$0xff]
    %v4631 = vld [vmem:[#allocation5 + $0x50] sm:$0xff]
    %v4632 = vld [vmem:[#allocation5 + $0x58] sm:$0xff]
    %v4633 = vld [vmem:[#allocation5 + $0x60] sm:$0xff]
    %v4634 = vld [vmem:[#allocation5 + $0x68] sm:$0xff]
    %v4635 = vld [vmem:[#allocation5 + $0x70] sm:$0xff]
    %v4636 = vld [vmem:[#allocation5 + $0x78] sm:$0xff]
    %v4637 = vld [vmem:[#allocation5 + $0x80] sm:$0xff]
    %v4638 = vld [vmem:[#allocation5 + $0x88] sm:$0xff]
    %v4639 = vld [vmem:[#allocation5 + $0x90] sm:$0xff]
    %v4640 = vld [vmem:[#allocation5 + $0x98] sm:$0xff]
    %v4641 = vld [vmem:[#allocation5 + $0xa0] sm:$0xff]
    %v4642 = vld [vmem:[#allocation5 + $0xa8] sm:$0xff]
    %v4643 = vld [vmem:[#allocation5 + $0xb0] sm:$0xff]
    %v4644 = vld [vmem:[#allocation5 + $0xb8] sm:$0xff]
    %v4645 = vld [vmem:[#allocation5 + $0xc0] sm:$0xff]
    %v4646 = vld [vmem:[#allocation5 + $0xc8] sm:$0xff]
    %v4647 = vld [vmem:[#allocation5 + $0xd0] sm:$0xff]
    %v4648 = vld [vmem:[#allocation5 + $0xd8] sm:$0xff]
    %v4649 = vld [vmem:[#allocation5 + $0xe0] sm:$0xff]
    %v4650 = vld [vmem:[#allocation5 + $0xe8] sm:$0xff]
    %v4651 = vld [vmem:[#allocation5 + $0xf0] sm:$0xff]
    %v4652 = vld [vmem:[#allocation5 + $0xf8] sm:$0xff]
    %v4653 = vld [vmem:[#allocation5 + $0x100] sm:$0xff]
    %v4654 = vld [vmem:[#allocation5 + $0x108] sm:$0xff]
    %v4655 = vld [vmem:[#allocation5 + $0x110] sm:$0xff]
    %v4656 = vld [vmem:[#allocation5 + $0x118] sm:$0xff]
    %v4657 = vld [vmem:[#allocation5 + $0x120] sm:$0xff]
    %v4658 = vld [vmem:[#allocation5 + $0x128] sm:$0xff]
    %v4659 = vld [vmem:[#allocation5 + $0x130] sm:$0xff]
    %v4660 = vld [vmem:[#allocation5 + $0x138] sm:$0xff]
    %v4661 = vld [vmem:[#allocation5 + $0x140] sm:$0xff]
    %v4662 = vld [vmem:[#allocation5 + $0x148] sm:$0xff]
    %v4663 = vld [vmem:[#allocation5 + $0x150] sm:$0xff]
    %v4664 = vld [vmem:[#allocation5 + $0x158] sm:$0xff]
    %v4665 = vld [vmem:[#allocation5 + $0x160] sm:$0xff]
    %v4666 = vld [vmem:[#allocation5 + $0x168] sm:$0xff]
    %v4667 = vld [vmem:[#allocation5 + $0x170] sm:$0xff]
    %v4668 = vld [vmem:[#allocation5 + $0x178] sm:$0xff]
    %v4669 = vld [vmem:[#allocation5 + $0x180] sm:$0xff]
    %v4670 = vld [vmem:[#allocation5 + $0x188] sm:$0xff]
    %v4671 = vld [vmem:[#allocation5 + $0x190] sm:$0xff]
    %v4672 = vld [vmem:[#allocation5 + $0x198] sm:$0xff]
    %v4673 = vld [vmem:[#allocation5 + $0x1a0] sm:$0xff]
    %v4674 = vld [vmem:[#allocation5 + $0x1a8] sm:$0xff]
    %v4675 = vld [vmem:[#allocation5 + $0x1b0] sm:$0xff]
    %v4676 = vld [vmem:[#allocation5 + $0x1b8] sm:$0xff]
    %v4677 = vld [vmem:[#allocation5 + $0x1c0] sm:$0xff]
    %v4678 = vld [vmem:[#allocation5 + $0x1c8] sm:$0xff]
    %v4679 = vld [vmem:[#allocation5 + $0x1d0] sm:$0xff]
    %v4680 = vld [vmem:[#allocation5 + $0x1d8] sm:$0xff]
    %v4681 = vld [vmem:[#allocation5 + $0x1e0] sm:$0xff]
    %v4682 = vld [vmem:[#allocation5 + $0x1e8] sm:$0xff]
    %v4683 = vld [vmem:[#allocation5 + $0x1f0] sm:$0xff]
    %v4684 = vld [vmem:[#allocation5 + $0x1f8] sm:$0xff]
    %v4685 = vld [vmem:[#allocation5 + $0x200] sm:$0xff]
    %v4686 = vld [vmem:[#allocation5 + $0x208] sm:$0xff]
    %v4687 = vld [vmem:[#allocation5 + $0x210] sm:$0xff]
    %v4688 = vld [vmem:[#allocation5 + $0x218] sm:$0xff]
    %v4689 = vld [vmem:[#allocation5 + $0x220] sm:$0xff]
    %v4690 = vld [vmem:[#allocation5 + $0x228] sm:$0xff]
    %v4691 = vld [vmem:[#allocation5 + $0x230] sm:$0xff]
    %v4692 = vld [vmem:[#allocation5 + $0x238] sm:$0xff]
    %v4693 = vld [vmem:[#allocation5 + $0x240] sm:$0xff]
    %v4694 = vld [vmem:[#allocation5 + $0x248] sm:$0xff]
    %v4695 = vld [vmem:[#allocation5 + $0x250] sm:$0xff]
    %v4696 = vld [vmem:[#allocation5 + $0x258] sm:$0xff]
    %v4697 = vld [vmem:[#allocation5 + $0x260] sm:$0xff]
    %v4698 = vld [vmem:[#allocation5 + $0x268] sm:$0xff]
    %v4699 = vld [vmem:[#allocation5 + $0x270] sm:$0xff]
    %v4700 = vld [vmem:[#allocation5 + $0x278] sm:$0xff]
    %v4701 = vld [vmem:[#allocation5 + $0x280] sm:$0xff]
    %v4702 = vld [vmem:[#allocation5 + $0x288] sm:$0xff]
    %v4703 = vld [vmem:[#allocation5 + $0x290] sm:$0xff]
    %v4704 = vld [vmem:[#allocation5 + $0x298] sm:$0xff]
    %v4705 = vld [vmem:[#allocation5 + $0x2a0] sm:$0xff]
    %v4706 = vld [vmem:[#allocation5 + $0x2a8] sm:$0xff]
    %v4707 = vld [vmem:[#allocation5 + $0x2b0] sm:$0xff]
    %v4708 = vld [vmem:[#allocation5 + $0x2b8] sm:$0xff]
    %v4709 = vld [vmem:[#allocation5 + $0x2c0] sm:$0xff]
    %v4710 = vld [vmem:[#allocation5 + $0x2c8] sm:$0xff]
    %v4711 = vld [vmem:[#allocation5 + $0x2d0] sm:$0xff]
    %v4712 = vld [vmem:[#allocation5 + $0x2d8] sm:$0xff]
    %v4713 = vld [vmem:[#allocation5 + $0x2e0] sm:$0xff]
    %v4714 = vld [vmem:[#allocation5 + $0x2e8] sm:$0xff]
    %v4715 = vld [vmem:[#allocation5 + $0x2f0] sm:$0xff]
    %v4716 = vld [vmem:[#allocation5 + $0x2f8] sm:$0xff]
    %v4718 = vsel %vm272, %v4620, 0
    %4720 = vmatpush.msra.mxu0 0.0
    %4721 = vmatpush.msra.mxu0 0.0
    %4722 = vmatpush.msra.mxu0 0.0
    %4723 = vmatpush.msra.mxu0 0.0
    %4724 = vmatpush.msra.mxu0 0.0
    %4725 = vmatpush.msra.mxu0 0.0
    %4726 = vmatpush.msra.mxu0 0.0
    %4727 = vmatpush.msra.mxu0 0.0
    %4728 = vmatpush.msra.mxu0 %v4705
    %4729 = vmatpush.msra.mxu0 %v4693
    %4730 = vmatpush.msra.mxu0 %v4681
    %4731 = vmatpush.msra.mxu0 %v4669
    %4732 = vmatpush.msra.mxu0 %v4657
    %4733 = vmatpush.msra.mxu0 %v4645
    %4734 = vmatpush.msra.mxu0 %v4633
    %4735 = vmatpush.msra.mxu0 %v4621
    %4736 = vmatmul.f32.gmra.mxu0 %v4718
    %v4737 = vpop.f32.mrf.mxu0
    %v4738 = vadd.f32 0.0, %v4737
    %4739 = vdwg.mxu0
    %4740 = vmatpush.msra.mxu0 0.0
    %4741 = vmatpush.msra.mxu0 0.0
    %4742 = vmatpush.msra.mxu0 0.0
    %4743 = vmatpush.msra.mxu0 0.0
    %4744 = vmatpush.msra.mxu0 0.0
    %4745 = vmatpush.msra.mxu0 0.0
    %4746 = vmatpush.msra.mxu0 0.0
    %4747 = vmatpush.msra.mxu0 0.0
    %4748 = vmatpush.msra.mxu0 %v4706
    %4749 = vmatpush.msra.mxu0 %v4694
    %4750 = vmatpush.msra.mxu0 %v4682
    %4751 = vmatpush.msra.mxu0 %v4670
    %4752 = vmatpush.msra.mxu0 %v4658
    %4753 = vmatpush.msra.mxu0 %v4646
    %4754 = vmatpush.msra.mxu0 %v4634
    %4755 = vmatpush.msra.mxu0 %v4622
    %4756 = vmatmul.f32.gmra.mxu0 %v4718
    %v4757 = vpop.f32.mrf.mxu0
    %v4758 = vadd.f32 0.0, %v4757
    %4759 = vdwg.mxu0
    %4760 = vmatpush.msra.mxu0 0.0
    %4761 = vmatpush.msra.mxu0 0.0
    %4762 = vmatpush.msra.mxu0 0.0
    %4763 = vmatpush.msra.mxu0 0.0
    %4764 = vmatpush.msra.mxu0 0.0
    %4765 = vmatpush.msra.mxu0 0.0
    %4766 = vmatpush.msra.mxu0 0.0
    %4767 = vmatpush.msra.mxu0 0.0
    %4768 = vmatpush.msra.mxu0 %v4707
    %4769 = vmatpush.msra.mxu0 %v4695
    %4770 = vmatpush.msra.mxu0 %v4683
    %4771 = vmatpush.msra.mxu0 %v4671
    %4772 = vmatpush.msra.mxu0 %v4659
    %4773 = vmatpush.msra.mxu0 %v4647
    %4774 = vmatpush.msra.mxu0 %v4635
    %4775 = vmatpush.msra.mxu0 %v4623
    %4776 = vmatmul.f32.gmra.mxu0 %v4718
    %v4777 = vpop.f32.mrf.mxu0
    %v4778 = vadd.f32 0.0, %v4777
    %4779 = vdwg.mxu0
    %4780 = vmatpush.msra.mxu0 0.0
    %4781 = vmatpush.msra.mxu0 0.0
    %4782 = vmatpush.msra.mxu0 0.0
    %4783 = vmatpush.msra.mxu0 0.0
    %4784 = vmatpush.msra.mxu0 0.0
    %4785 = vmatpush.msra.mxu0 0.0
    %4786 = vmatpush.msra.mxu0 0.0
    %4787 = vmatpush.msra.mxu0 0.0
    %4788 = vmatpush.msra.mxu0 %v4708
    %4789 = vmatpush.msra.mxu0 %v4696
    %4790 = vmatpush.msra.mxu0 %v4684
    %4791 = vmatpush.msra.mxu0 %v4672
    %4792 = vmatpush.msra.mxu0 %v4660
    %4793 = vmatpush.msra.mxu0 %v4648
    %4794 = vmatpush.msra.mxu0 %v4636
    %4795 = vmatpush.msra.mxu0 %v4624
    %4796 = vmatmul.f32.gmra.mxu0 %v4718
    %v4797 = vpop.f32.mrf.mxu0
    %v4798 = vadd.f32 0.0, %v4797
    %4799 = vdwg.mxu0
    %4800 = vmatpush.msra.mxu0 0.0
    %4801 = vmatpush.msra.mxu0 0.0
    %4802 = vmatpush.msra.mxu0 0.0
    %4803 = vmatpush.msra.mxu0 0.0
    %4804 = vmatpush.msra.mxu0 0.0
    %4805 = vmatpush.msra.mxu0 0.0
    %4806 = vmatpush.msra.mxu0 0.0
    %4807 = vmatpush.msra.mxu0 0.0
    %4808 = vmatpush.msra.mxu0 %v4709
    %4809 = vmatpush.msra.mxu0 %v4697
    %4810 = vmatpush.msra.mxu0 %v4685
    %4811 = vmatpush.msra.mxu0 %v4673
    %4812 = vmatpush.msra.mxu0 %v4661
    %4813 = vmatpush.msra.mxu0 %v4649
    %4814 = vmatpush.msra.mxu0 %v4637
    %4815 = vmatpush.msra.mxu0 %v4625
    %4816 = vmatmul.f32.gmra.mxu0 %v4718
    %v4817 = vpop.f32.mrf.mxu0
    %v4818 = vadd.f32 0.0, %v4817
    %4819 = vdwg.mxu0
    %4820 = vmatpush.msra.mxu0 0.0
    %4821 = vmatpush.msra.mxu0 0.0
    %4822 = vmatpush.msra.mxu0 0.0
    %4823 = vmatpush.msra.mxu0 0.0
    %4824 = vmatpush.msra.mxu0 0.0
    %4825 = vmatpush.msra.mxu0 0.0
    %4826 = vmatpush.msra.mxu0 0.0
    %4827 = vmatpush.msra.mxu0 0.0
    %4828 = vmatpush.msra.mxu0 %v4710
    %4829 = vmatpush.msra.mxu0 %v4698
    %4830 = vmatpush.msra.mxu0 %v4686
    %4831 = vmatpush.msra.mxu0 %v4674
    %4832 = vmatpush.msra.mxu0 %v4662
    %4833 = vmatpush.msra.mxu0 %v4650
    %4834 = vmatpush.msra.mxu0 %v4638
    %4835 = vmatpush.msra.mxu0 %v4626
    %4836 = vmatmul.f32.gmra.mxu0 %v4718
    %v4837 = vpop.f32.mrf.mxu0
    %v4838 = vadd.f32 0.0, %v4837
    %4839 = vdwg.mxu0
    %4840 = vmatpush.msra.mxu0 0.0
    %4841 = vmatpush.msra.mxu0 0.0
    %4842 = vmatpush.msra.mxu0 0.0
    %4843 = vmatpush.msra.mxu0 0.0
    %4844 = vmatpush.msra.mxu0 0.0
    %4845 = vmatpush.msra.mxu0 0.0
    %4846 = vmatpush.msra.mxu0 0.0
    %4847 = vmatpush.msra.mxu0 0.0
    %4848 = vmatpush.msra.mxu0 %v4711
    %4849 = vmatpush.msra.mxu0 %v4699
    %4850 = vmatpush.msra.mxu0 %v4687
    %4851 = vmatpush.msra.mxu0 %v4675
    %4852 = vmatpush.msra.mxu0 %v4663
    %4853 = vmatpush.msra.mxu0 %v4651
    %4854 = vmatpush.msra.mxu0 %v4639
    %4855 = vmatpush.msra.mxu0 %v4627
    %4856 = vmatmul.f32.gmra.mxu0 %v4718
    %v4857 = vpop.f32.mrf.mxu0
    %v4858 = vadd.f32 0.0, %v4857
    %4859 = vdwg.mxu0
    %4860 = vmatpush.msra.mxu0 0.0
    %4861 = vmatpush.msra.mxu0 0.0
    %4862 = vmatpush.msra.mxu0 0.0
    %4863 = vmatpush.msra.mxu0 0.0
    %4864 = vmatpush.msra.mxu0 0.0
    %4865 = vmatpush.msra.mxu0 0.0
    %4866 = vmatpush.msra.mxu0 0.0
    %4867 = vmatpush.msra.mxu0 0.0
    %4868 = vmatpush.msra.mxu0 %v4712
    %4869 = vmatpush.msra.mxu0 %v4700
    %4870 = vmatpush.msra.mxu0 %v4688
    %4871 = vmatpush.msra.mxu0 %v4676
    %4872 = vmatpush.msra.mxu0 %v4664
    %4873 = vmatpush.msra.mxu0 %v4652
    %4874 = vmatpush.msra.mxu0 %v4640
    %4875 = vmatpush.msra.mxu0 %v4628
    %4876 = vmatmul.f32.gmra.mxu0 %v4718
    %v4877 = vpop.f32.mrf.mxu0
    %v4878 = vadd.f32 0.0, %v4877
    %4879 = vdwg.mxu0
    %4880 = vmatpush.msra.mxu0 0.0
    %4881 = vmatpush.msra.mxu0 0.0
    %4882 = vmatpush.msra.mxu0 0.0
    %4883 = vmatpush.msra.mxu0 0.0
    %4884 = vmatpush.msra.mxu0 0.0
    %4885 = vmatpush.msra.mxu0 0.0
    %4886 = vmatpush.msra.mxu0 0.0
    %4887 = vmatpush.msra.mxu0 0.0
    %4888 = vmatpush.msra.mxu0 %v4713
    %4889 = vmatpush.msra.mxu0 %v4701
    %4890 = vmatpush.msra.mxu0 %v4689
    %4891 = vmatpush.msra.mxu0 %v4677
    %4892 = vmatpush.msra.mxu0 %v4665
    %4893 = vmatpush.msra.mxu0 %v4653
    %4894 = vmatpush.msra.mxu0 %v4641
    %4895 = vmatpush.msra.mxu0 %v4629
    %4896 = vmatmul.f32.gmra.mxu0 %v4718
    %v4897 = vpop.f32.mrf.mxu0
    %v4898 = vadd.f32 0.0, %v4897
    %4899 = vdwg.mxu0
    %4900 = vmatpush.msra.mxu0 0.0
    %4901 = vmatpush.msra.mxu0 0.0
    %4902 = vmatpush.msra.mxu0 0.0
    %4903 = vmatpush.msra.mxu0 0.0
    %4904 = vmatpush.msra.mxu0 0.0
    %4905 = vmatpush.msra.mxu0 0.0
    %4906 = vmatpush.msra.mxu0 0.0
    %4907 = vmatpush.msra.mxu0 0.0
    %4908 = vmatpush.msra.mxu0 %v4714
    %4909 = vmatpush.msra.mxu0 %v4702
    %4910 = vmatpush.msra.mxu0 %v4690
    %4911 = vmatpush.msra.mxu0 %v4678
    %4912 = vmatpush.msra.mxu0 %v4666
    %4913 = vmatpush.msra.mxu0 %v4654
    %4914 = vmatpush.msra.mxu0 %v4642
    %4915 = vmatpush.msra.mxu0 %v4630
    %4916 = vmatmul.f32.gmra.mxu0 %v4718
    %v4917 = vpop.f32.mrf.mxu0
    %v4918 = vadd.f32 0.0, %v4917
    %4919 = vdwg.mxu0
    %4920 = vmatpush.msra.mxu0 0.0
    %4921 = vmatpush.msra.mxu0 0.0
    %4922 = vmatpush.msra.mxu0 0.0
    %4923 = vmatpush.msra.mxu0 0.0
    %4924 = vmatpush.msra.mxu0 0.0
    %4925 = vmatpush.msra.mxu0 0.0
    %4926 = vmatpush.msra.mxu0 0.0
    %4927 = vmatpush.msra.mxu0 0.0
    %4928 = vmatpush.msra.mxu0 %v4715
    %4929 = vmatpush.msra.mxu0 %v4703
    %4930 = vmatpush.msra.mxu0 %v4691
    %4931 = vmatpush.msra.mxu0 %v4679
    %4932 = vmatpush.msra.mxu0 %v4667
    %4933 = vmatpush.msra.mxu0 %v4655
    %4934 = vmatpush.msra.mxu0 %v4643
    %4935 = vmatpush.msra.mxu0 %v4631
    %4936 = vmatmul.f32.gmra.mxu0 %v4718
    %v4937 = vpop.f32.mrf.mxu0
    %v4938 = vadd.f32 0.0, %v4937
    %4939 = vdwg.mxu0
    %4940 = vmatpush.msra.mxu0 0.0
    %4941 = vmatpush.msra.mxu0 0.0
    %4942 = vmatpush.msra.mxu0 0.0
    %4943 = vmatpush.msra.mxu0 0.0
    %4944 = vmatpush.msra.mxu0 0.0
    %4945 = vmatpush.msra.mxu0 0.0
    %4946 = vmatpush.msra.mxu0 0.0
    %4947 = vmatpush.msra.mxu0 0.0
    %4948 = vmatpush.msra.mxu0 %v4716
    %4949 = vmatpush.msra.mxu0 %v4704
    %4950 = vmatpush.msra.mxu0 %v4692
    %4951 = vmatpush.msra.mxu0 %v4680
    %4952 = vmatpush.msra.mxu0 %v4668
    %4953 = vmatpush.msra.mxu0 %v4656
    %4954 = vmatpush.msra.mxu0 %v4644
    %4955 = vmatpush.msra.mxu0 %v4632
    %4956 = vmatmul.f32.gmra.mxu0 %v4718
    %v4957 = vpop.f32.mrf.mxu0
    %v4958 = vadd.f32 0.0, %v4957
    %4959 = vdwg.mxu0
    %v4964 = vrot.slane %v4898, 1
    %v4965 = vrot.slane %v4918, 1
    %v4966 = vrot.slane %v4938, 1
    %v4967 = vrot.slane %v4958, 1
    %v4972 = vadd.f32 %v4818, %v4964
    %v4973 = vadd.f32 %v4838, %v4965
    %v4974 = vadd.f32 %v4858, %v4966
    %v4975 = vadd.f32 %v4878, %v4967
    %v4976 = vadd.f32 %v4972, %v3980
    %v4977 = vadd.f32 %v4973, %v3981
    %v4978 = vadd.f32 %v4974, %v3982
    %v4979 = vadd.f32 %v4975, %v3983
    %v4980 = vxor.u32 %v4976, 2147483648
    %v4981 = vmul.f32 %v4980, 1.442695
    %v4982 = vpow.pop %v4981
    %v4983 = vadd.f32 %v4982, 1.0
    %v4984 = vrcp.pop %v4983
    %v4985 = vmul.f32 %v4983, %v4984
    %v4986 = vsub.f32 1.0, %v4985
    %v4987 = vmul.f32 %v4984, %v4986
    %v4988 = vadd.f32 %v4984, %v4987
    %vm4989 = vweird.f32 %v4983
    %vm4990 = vweird.f32 %v4984
    %vm4991 = vmor %vm4989, %vm4990
    %v4992 = vsel %vm4991, %v4984, %v4988
    %v4993 = vand.u32 2147483647, %v4983
    %vm4994 = vcmp.eq.f32.partialorder %v4993, 8.507059e+37
    %v4995 = vand.u32 %v4983, 2147483648
    %v4996 = vor.u32 1.1754944e-38, %v4995
    %v4997 = vsel %vm4994, %v4996, %v4992
    %v4998 = vmul.f32 1.0, %v4997
    %v4999 = vxor.u32 %v4977, 2147483648
    %v5000 = vmul.f32 %v4999, 1.442695
    %v5001 = vpow.pop %v5000
    %v5002 = vadd.f32 %v5001, 1.0
    %v5003 = vrcp.pop %v5002
    %v5004 = vmul.f32 %v5002, %v5003
    %v5005 = vsub.f32 1.0, %v5004
    %v5006 = vmul.f32 %v5003, %v5005
    %v5007 = vadd.f32 %v5003, %v5006
    %vm5008 = vweird.f32 %v5002
    %vm5009 = vweird.f32 %v5003
    %vm5010 = vmor %vm5008, %vm5009
    %v5011 = vsel %vm5010, %v5003, %v5007
    %v5012 = vand.u32 2147483647, %v5002
    %vm5013 = vcmp.eq.f32.partialorder %v5012, 8.507059e+37
    %v5014 = vand.u32 %v5002, 2147483648
    %v5015 = vor.u32 1.1754944e-38, %v5014
    %v5016 = vsel %vm5013, %v5015, %v5011
    %v5017 = vmul.f32 1.0, %v5016
    %v5018 = vtanh.pop %v4978
    %v5019 = vxor.u32 %v4979, 2147483648
    %v5020 = vmul.f32 %v5019, 1.442695
    %v5021 = vpow.pop %v5020
    %v5022 = vadd.f32 %v5021, 1.0
    %v5023 = vrcp.pop %v5022
    %v5024 = vmul.f32 %v5022, %v5023
    %v5025 = vsub.f32 1.0, %v5024
    %v5026 = vmul.f32 %v5023, %v5025
    %v5027 = vadd.f32 %v5023, %v5026
    %vm5028 = vweird.f32 %v5022
    %vm5029 = vweird.f32 %v5023
    %vm5030 = vmor %vm5028, %vm5029
    %v5031 = vsel %vm5030, %v5023, %v5027
    %v5032 = vand.u32 2147483647, %v5022
    %vm5033 = vcmp.eq.f32.partialorder %v5032, 8.507059e+37
    %v5034 = vand.u32 %v5022, 2147483648
    %v5035 = vor.u32 1.1754944e-38, %v5034
    %v5036 = vsel %vm5033, %v5035, %v5031
    %v5037 = vmul.f32 1.0, %v5036
    %v5038 = vmul.f32 %v5017, %v4546
    %v5039 = vmul.f32 %v4998, %v5018
    %v5040 = vadd.f32 %v5038, %v5039
    %v5041 = vtanh.pop %v5040
    %v5042 = vmul.f32 %v5037, %v5041
    %5043 = vst [vmem:[#allocation3 + $0x2] sm:$0x1] %v5042
    %v5044 = vadd.f32 %v3494, %v4738
    %v5045 = vadd.f32 %v3514, %v4758
    %v5046 = vadd.f32 %v3534, %v4778
    %v5047 = vadd.f32 %v3554, %v4798
    %v5048 = vxor.u32 %v5044, 2147483648
    %v5049 = vmul.f32 %v5048, 1.442695
    %v5050 = vpow.pop %v5049
    %v5051 = vadd.f32 %v5050, 1.0
    %v5052 = vrcp.pop %v5051
    %v5053 = vmul.f32 %v5051, %v5052
    %v5054 = vsub.f32 1.0, %v5053
    %v5055 = vmul.f32 %v5052, %v5054
    %v5056 = vadd.f32 %v5052, %v5055
    %vm5057 = vweird.f32 %v5051
    %vm5058 = vweird.f32 %v5052
    %vm5059 = vmor %vm5057, %vm5058
    %v5060 = vsel %vm5059, %v5052, %v5056
    %v5061 = vand.u32 2147483647, %v5051
    %vm5062 = vcmp.eq.f32.partialorder %v5061, 8.507059e+37
    %v5063 = vand.u32 %v5051, 2147483648
    %v5064 = vor.u32 1.1754944e-38, %v5063
    %v5065 = vsel %vm5062, %v5064, %v5060
    %v5066 = vmul.f32 1.0, %v5065
    %v5067 = vxor.u32 %v5045, 2147483648
    %v5068 = vmul.f32 %v5067, 1.442695
    %v5069 = vpow.pop %v5068
    %v5070 = vadd.f32 %v5069, 1.0
    %v5071 = vrcp.pop %v5070
    %v5072 = vmul.f32 %v5070, %v5071
    %v5073 = vsub.f32 1.0, %v5072
    %v5074 = vmul.f32 %v5071, %v5073
    %v5075 = vadd.f32 %v5071, %v5074
    %vm5076 = vweird.f32 %v5070
    %vm5077 = vweird.f32 %v5071
    %vm5078 = vmor %vm5076, %vm5077
    %v5079 = vsel %vm5078, %v5071, %v5075
    %v5080 = vand.u32 2147483647, %v5070
    %vm5081 = vcmp.eq.f32.partialorder %v5080, 8.507059e+37
    %v5082 = vand.u32 %v5070, 2147483648
    %v5083 = vor.u32 1.1754944e-38, %v5082
    %v5084 = vsel %vm5081, %v5083, %v5079
    %v5085 = vmul.f32 1.0, %v5084
    %v5086 = vtanh.pop %v5046
    %v5087 = vxor.u32 %v5047, 2147483648
    %v5088 = vmul.f32 %v5087, 1.442695
    %v5089 = vpow.pop %v5088
    %v5090 = vadd.f32 %v5089, 1.0
    %v5091 = vrcp.pop %v5090
    %v5092 = vmul.f32 %v5090, %v5091
    %v5093 = vsub.f32 1.0, %v5092
    %v5094 = vmul.f32 %v5091, %v5093
    %v5095 = vadd.f32 %v5091, %v5094
    %vm5096 = vweird.f32 %v5090
    %vm5097 = vweird.f32 %v5091
    %vm5098 = vmor %vm5096, %vm5097
    %v5099 = vsel %vm5098, %v5091, %v5095
    %v5100 = vand.u32 2147483647, %v5090
    %vm5101 = vcmp.eq.f32.partialorder %v5100, 8.507059e+37
    %v5102 = vand.u32 %v5090, 2147483648
    %v5103 = vor.u32 1.1754944e-38, %v5102
    %v5104 = vsel %vm5101, %v5103, %v5099
    %v5105 = vmul.f32 1.0, %v5104
    %v5106 = vmul.f32 %v5085, %v4614
    %v5107 = vmul.f32 %v5066, %v5086
    %v5108 = vadd.f32 %v5106, %v5107
    %v5109 = vtanh.pop %v5108
    %v5110 = vmul.f32 %v5105, %v5109
    %v5112 = vrot.slane %v5042, 7
    %v5114 = vsel %vm174, %v5110, %v5112
    %v5115 = vld [vmem:[#allocation5] sm:$0xff]
    %v5116 = vld [vmem:[#allocation5 + $0x8] sm:$0xff]
    %v5117 = vld [vmem:[#allocation5 + $0x10] sm:$0xff]
    %v5118 = vld [vmem:[#allocation5 + $0x18] sm:$0xff]
    %v5119 = vld [vmem:[#allocation5 + $0x20] sm:$0xff]
    %v5120 = vld [vmem:[#allocation5 + $0x28] sm:$0xff]
    %v5121 = vld [vmem:[#allocation5 + $0x30] sm:$0xff]
    %v5122 = vld [vmem:[#allocation5 + $0x38] sm:$0xff]
    %v5123 = vld [vmem:[#allocation5 + $0x40] sm:$0xff]
    %v5124 = vld [vmem:[#allocation5 + $0x48] sm:$0xff]
    %v5125 = vld [vmem:[#allocation5 + $0x50] sm:$0xff]
    %v5126 = vld [vmem:[#allocation5 + $0x58] sm:$0xff]
    %v5127 = vld [vmem:[#allocation5 + $0x60] sm:$0xff]
    %v5128 = vld [vmem:[#allocation5 + $0x68] sm:$0xff]
    %v5129 = vld [vmem:[#allocation5 + $0x70] sm:$0xff]
    %v5130 = vld [vmem:[#allocation5 + $0x78] sm:$0xff]
    %v5131 = vld [vmem:[#allocation5 + $0x80] sm:$0xff]
    %v5132 = vld [vmem:[#allocation5 + $0x88] sm:$0xff]
    %v5133 = vld [vmem:[#allocation5 + $0x90] sm:$0xff]
    %v5134 = vld [vmem:[#allocation5 + $0x98] sm:$0xff]
    %v5135 = vld [vmem:[#allocation5 + $0xa0] sm:$0xff]
    %v5136 = vld [vmem:[#allocation5 + $0xa8] sm:$0xff]
    %v5137 = vld [vmem:[#allocation5 + $0xb0] sm:$0xff]
    %v5138 = vld [vmem:[#allocation5 + $0xb8] sm:$0xff]
    %v5139 = vld [vmem:[#allocation5 + $0xc0] sm:$0xff]
    %v5140 = vld [vmem:[#allocation5 + $0xc8] sm:$0xff]
    %v5141 = vld [vmem:[#allocation5 + $0xd0] sm:$0xff]
    %v5142 = vld [vmem:[#allocation5 + $0xd8] sm:$0xff]
    %v5143 = vld [vmem:[#allocation5 + $0xe0] sm:$0xff]
    %v5144 = vld [vmem:[#allocation5 + $0xe8] sm:$0xff]
    %v5145 = vld [vmem:[#allocation5 + $0xf0] sm:$0xff]
    %v5146 = vld [vmem:[#allocation5 + $0xf8] sm:$0xff]
    %v5147 = vld [vmem:[#allocation5 + $0x100] sm:$0xff]
    %v5148 = vld [vmem:[#allocation5 + $0x108] sm:$0xff]
    %v5149 = vld [vmem:[#allocation5 + $0x110] sm:$0xff]
    %v5150 = vld [vmem:[#allocation5 + $0x118] sm:$0xff]
    %v5151 = vld [vmem:[#allocation5 + $0x120] sm:$0xff]
    %v5152 = vld [vmem:[#allocation5 + $0x128] sm:$0xff]
    %v5153 = vld [vmem:[#allocation5 + $0x130] sm:$0xff]
    %v5154 = vld [vmem:[#allocation5 + $0x138] sm:$0xff]
    %v5155 = vld [vmem:[#allocation5 + $0x140] sm:$0xff]
    %v5156 = vld [vmem:[#allocation5 + $0x148] sm:$0xff]
    %v5157 = vld [vmem:[#allocation5 + $0x150] sm:$0xff]
    %v5158 = vld [vmem:[#allocation5 + $0x158] sm:$0xff]
    %v5159 = vld [vmem:[#allocation5 + $0x160] sm:$0xff]
    %v5160 = vld [vmem:[#allocation5 + $0x168] sm:$0xff]
    %v5161 = vld [vmem:[#allocation5 + $0x170] sm:$0xff]
    %v5162 = vld [vmem:[#allocation5 + $0x178] sm:$0xff]
    %v5163 = vld [vmem:[#allocation5 + $0x180] sm:$0xff]
    %v5164 = vld [vmem:[#allocation5 + $0x188] sm:$0xff]
    %v5165 = vld [vmem:[#allocation5 + $0x190] sm:$0xff]
    %v5166 = vld [vmem:[#allocation5 + $0x198] sm:$0xff]
    %v5167 = vld [vmem:[#allocation5 + $0x1a0] sm:$0xff]
    %v5168 = vld [vmem:[#allocation5 + $0x1a8] sm:$0xff]
    %v5169 = vld [vmem:[#allocation5 + $0x1b0] sm:$0xff]
    %v5170 = vld [vmem:[#allocation5 + $0x1b8] sm:$0xff]
    %v5171 = vld [vmem:[#allocation5 + $0x1c0] sm:$0xff]
    %v5172 = vld [vmem:[#allocation5 + $0x1c8] sm:$0xff]
    %v5173 = vld [vmem:[#allocation5 + $0x1d0] sm:$0xff]
    %v5174 = vld [vmem:[#allocation5 + $0x1d8] sm:$0xff]
    %v5175 = vld [vmem:[#allocation5 + $0x1e0] sm:$0xff]
    %v5176 = vld [vmem:[#allocation5 + $0x1e8] sm:$0xff]
    %v5177 = vld [vmem:[#allocation5 + $0x1f0] sm:$0xff]
    %v5178 = vld [vmem:[#allocation5 + $0x1f8] sm:$0xff]
    %v5179 = vld [vmem:[#allocation5 + $0x200] sm:$0xff]
    %v5180 = vld [vmem:[#allocation5 + $0x208] sm:$0xff]
    %v5181 = vld [vmem:[#allocation5 + $0x210] sm:$0xff]
    %v5182 = vld [vmem:[#allocation5 + $0x218] sm:$0xff]
    %v5183 = vld [vmem:[#allocation5 + $0x220] sm:$0xff]
    %v5184 = vld [vmem:[#allocation5 + $0x228] sm:$0xff]
    %v5185 = vld [vmem:[#allocation5 + $0x230] sm:$0xff]
    %v5186 = vld [vmem:[#allocation5 + $0x238] sm:$0xff]
    %v5187 = vld [vmem:[#allocation5 + $0x240] sm:$0xff]
    %v5188 = vld [vmem:[#allocation5 + $0x248] sm:$0xff]
    %v5189 = vld [vmem:[#allocation5 + $0x250] sm:$0xff]
    %v5190 = vld [vmem:[#allocation5 + $0x258] sm:$0xff]
    %v5191 = vld [vmem:[#allocation5 + $0x260] sm:$0xff]
    %v5192 = vld [vmem:[#allocation5 + $0x268] sm:$0xff]
    %v5193 = vld [vmem:[#allocation5 + $0x270] sm:$0xff]
    %v5194 = vld [vmem:[#allocation5 + $0x278] sm:$0xff]
    %v5195 = vld [vmem:[#allocation5 + $0x280] sm:$0xff]
    %v5196 = vld [vmem:[#allocation5 + $0x288] sm:$0xff]
    %v5197 = vld [vmem:[#allocation5 + $0x290] sm:$0xff]
    %v5198 = vld [vmem:[#allocation5 + $0x298] sm:$0xff]
    %v5199 = vld [vmem:[#allocation5 + $0x2a0] sm:$0xff]
    %v5200 = vld [vmem:[#allocation5 + $0x2a8] sm:$0xff]
    %v5201 = vld [vmem:[#allocation5 + $0x2b0] sm:$0xff]
    %v5202 = vld [vmem:[#allocation5 + $0x2b8] sm:$0xff]
    %v5203 = vld [vmem:[#allocation5 + $0x2c0] sm:$0xff]
    %v5204 = vld [vmem:[#allocation5 + $0x2c8] sm:$0xff]
    %v5205 = vld [vmem:[#allocation5 + $0x2d0] sm:$0xff]
    %v5206 = vld [vmem:[#allocation5 + $0x2d8] sm:$0xff]
    %v5207 = vld [vmem:[#allocation5 + $0x2e0] sm:$0xff]
    %v5208 = vld [vmem:[#allocation5 + $0x2e8] sm:$0xff]
    %v5209 = vld [vmem:[#allocation5 + $0x2f0] sm:$0xff]
    %v5210 = vld [vmem:[#allocation5 + $0x2f8] sm:$0xff]
    %v5212 = vsel %vm272, %v5114, 0
    %5214 = vmatpush.msra.mxu0 0.0
    %5215 = vmatpush.msra.mxu0 0.0
    %5216 = vmatpush.msra.mxu0 0.0
    %5217 = vmatpush.msra.mxu0 0.0
    %5218 = vmatpush.msra.mxu0 0.0
    %5219 = vmatpush.msra.mxu0 0.0
    %5220 = vmatpush.msra.mxu0 0.0
    %5221 = vmatpush.msra.mxu0 0.0
    %5222 = vmatpush.msra.mxu0 %v5199
    %5223 = vmatpush.msra.mxu0 %v5187
    %5224 = vmatpush.msra.mxu0 %v5175
    %5225 = vmatpush.msra.mxu0 %v5163
    %5226 = vmatpush.msra.mxu0 %v5151
    %5227 = vmatpush.msra.mxu0 %v5139
    %5228 = vmatpush.msra.mxu0 %v5127
    %5229 = vmatpush.msra.mxu0 %v5115
    %5230 = vmatmul.f32.gmra.mxu0 %v5212
    %v5231 = vpop.f32.mrf.mxu0
    %v5232 = vadd.f32 0.0, %v5231
    %5233 = vdwg.mxu0
    %5234 = vmatpush.msra.mxu0 0.0
    %5235 = vmatpush.msra.mxu0 0.0
    %5236 = vmatpush.msra.mxu0 0.0
    %5237 = vmatpush.msra.mxu0 0.0
    %5238 = vmatpush.msra.mxu0 0.0
    %5239 = vmatpush.msra.mxu0 0.0
    %5240 = vmatpush.msra.mxu0 0.0
    %5241 = vmatpush.msra.mxu0 0.0
    %5242 = vmatpush.msra.mxu0 %v5200
    %5243 = vmatpush.msra.mxu0 %v5188
    %5244 = vmatpush.msra.mxu0 %v5176
    %5245 = vmatpush.msra.mxu0 %v5164
    %5246 = vmatpush.msra.mxu0 %v5152
    %5247 = vmatpush.msra.mxu0 %v5140
    %5248 = vmatpush.msra.mxu0 %v5128
    %5249 = vmatpush.msra.mxu0 %v5116
    %5250 = vmatmul.f32.gmra.mxu0 %v5212
    %v5251 = vpop.f32.mrf.mxu0
    %v5252 = vadd.f32 0.0, %v5251
    %5253 = vdwg.mxu0
    %5254 = vmatpush.msra.mxu0 0.0
    %5255 = vmatpush.msra.mxu0 0.0
    %5256 = vmatpush.msra.mxu0 0.0
    %5257 = vmatpush.msra.mxu0 0.0
    %5258 = vmatpush.msra.mxu0 0.0
    %5259 = vmatpush.msra.mxu0 0.0
    %5260 = vmatpush.msra.mxu0 0.0
    %5261 = vmatpush.msra.mxu0 0.0
    %5262 = vmatpush.msra.mxu0 %v5201
    %5263 = vmatpush.msra.mxu0 %v5189
    %5264 = vmatpush.msra.mxu0 %v5177
    %5265 = vmatpush.msra.mxu0 %v5165
    %5266 = vmatpush.msra.mxu0 %v5153
    %5267 = vmatpush.msra.mxu0 %v5141
    %5268 = vmatpush.msra.mxu0 %v5129
    %5269 = vmatpush.msra.mxu0 %v5117
    %5270 = vmatmul.f32.gmra.mxu0 %v5212
    %v5271 = vpop.f32.mrf.mxu0
    %v5272 = vadd.f32 0.0, %v5271
    %5273 = vdwg.mxu0
    %5274 = vmatpush.msra.mxu0 0.0
    %5275 = vmatpush.msra.mxu0 0.0
    %5276 = vmatpush.msra.mxu0 0.0
    %5277 = vmatpush.msra.mxu0 0.0
    %5278 = vmatpush.msra.mxu0 0.0
    %5279 = vmatpush.msra.mxu0 0.0
    %5280 = vmatpush.msra.mxu0 0.0
    %5281 = vmatpush.msra.mxu0 0.0
    %5282 = vmatpush.msra.mxu0 %v5202
    %5283 = vmatpush.msra.mxu0 %v5190
    %5284 = vmatpush.msra.mxu0 %v5178
    %5285 = vmatpush.msra.mxu0 %v5166
    %5286 = vmatpush.msra.mxu0 %v5154
    %5287 = vmatpush.msra.mxu0 %v5142
    %5288 = vmatpush.msra.mxu0 %v5130
    %5289 = vmatpush.msra.mxu0 %v5118
    %5290 = vmatmul.f32.gmra.mxu0 %v5212
    %v5291 = vpop.f32.mrf.mxu0
    %v5292 = vadd.f32 0.0, %v5291
    %5293 = vdwg.mxu0
    %5294 = vmatpush.msra.mxu0 0.0
    %5295 = vmatpush.msra.mxu0 0.0
    %5296 = vmatpush.msra.mxu0 0.0
    %5297 = vmatpush.msra.mxu0 0.0
    %5298 = vmatpush.msra.mxu0 0.0
    %5299 = vmatpush.msra.mxu0 0.0
    %5300 = vmatpush.msra.mxu0 0.0
    %5301 = vmatpush.msra.mxu0 0.0
    %5302 = vmatpush.msra.mxu0 %v5203
    %5303 = vmatpush.msra.mxu0 %v5191
    %5304 = vmatpush.msra.mxu0 %v5179
    %5305 = vmatpush.msra.mxu0 %v5167
    %5306 = vmatpush.msra.mxu0 %v5155
    %5307 = vmatpush.msra.mxu0 %v5143
    %5308 = vmatpush.msra.mxu0 %v5131
    %5309 = vmatpush.msra.mxu0 %v5119
    %5310 = vmatmul.f32.gmra.mxu0 %v5212
    %v5311 = vpop.f32.mrf.mxu0
    %v5312 = vadd.f32 0.0, %v5311
    %5313 = vdwg.mxu0
    %5314 = vmatpush.msra.mxu0 0.0
    %5315 = vmatpush.msra.mxu0 0.0
    %5316 = vmatpush.msra.mxu0 0.0
    %5317 = vmatpush.msra.mxu0 0.0
    %5318 = vmatpush.msra.mxu0 0.0
    %5319 = vmatpush.msra.mxu0 0.0
    %5320 = vmatpush.msra.mxu0 0.0
    %5321 = vmatpush.msra.mxu0 0.0
    %5322 = vmatpush.msra.mxu0 %v5204
    %5323 = vmatpush.msra.mxu0 %v5192
    %5324 = vmatpush.msra.mxu0 %v5180
    %5325 = vmatpush.msra.mxu0 %v5168
    %5326 = vmatpush.msra.mxu0 %v5156
    %5327 = vmatpush.msra.mxu0 %v5144
    %5328 = vmatpush.msra.mxu0 %v5132
    %5329 = vmatpush.msra.mxu0 %v5120
    %5330 = vmatmul.f32.gmra.mxu0 %v5212
    %v5331 = vpop.f32.mrf.mxu0
    %v5332 = vadd.f32 0.0, %v5331
    %5333 = vdwg.mxu0
    %5334 = vmatpush.msra.mxu0 0.0
    %5335 = vmatpush.msra.mxu0 0.0
    %5336 = vmatpush.msra.mxu0 0.0
    %5337 = vmatpush.msra.mxu0 0.0
    %5338 = vmatpush.msra.mxu0 0.0
    %5339 = vmatpush.msra.mxu0 0.0
    %5340 = vmatpush.msra.mxu0 0.0
    %5341 = vmatpush.msra.mxu0 0.0
    %5342 = vmatpush.msra.mxu0 %v5205
    %5343 = vmatpush.msra.mxu0 %v5193
    %5344 = vmatpush.msra.mxu0 %v5181
    %5345 = vmatpush.msra.mxu0 %v5169
    %5346 = vmatpush.msra.mxu0 %v5157
    %5347 = vmatpush.msra.mxu0 %v5145
    %5348 = vmatpush.msra.mxu0 %v5133
    %5349 = vmatpush.msra.mxu0 %v5121
    %5350 = vmatmul.f32.gmra.mxu0 %v5212
    %v5351 = vpop.f32.mrf.mxu0
    %v5352 = vadd.f32 0.0, %v5351
    %5353 = vdwg.mxu0
    %5354 = vmatpush.msra.mxu0 0.0
    %5355 = vmatpush.msra.mxu0 0.0
    %5356 = vmatpush.msra.mxu0 0.0
    %5357 = vmatpush.msra.mxu0 0.0
    %5358 = vmatpush.msra.mxu0 0.0
    %5359 = vmatpush.msra.mxu0 0.0
    %5360 = vmatpush.msra.mxu0 0.0
    %5361 = vmatpush.msra.mxu0 0.0
    %5362 = vmatpush.msra.mxu0 %v5206
    %5363 = vmatpush.msra.mxu0 %v5194
    %5364 = vmatpush.msra.mxu0 %v5182
    %5365 = vmatpush.msra.mxu0 %v5170
    %5366 = vmatpush.msra.mxu0 %v5158
    %5367 = vmatpush.msra.mxu0 %v5146
    %5368 = vmatpush.msra.mxu0 %v5134
    %5369 = vmatpush.msra.mxu0 %v5122
    %5370 = vmatmul.f32.gmra.mxu0 %v5212
    %v5371 = vpop.f32.mrf.mxu0
    %v5372 = vadd.f32 0.0, %v5371
    %5373 = vdwg.mxu0
    %5374 = vmatpush.msra.mxu0 0.0
    %5375 = vmatpush.msra.mxu0 0.0
    %5376 = vmatpush.msra.mxu0 0.0
    %5377 = vmatpush.msra.mxu0 0.0
    %5378 = vmatpush.msra.mxu0 0.0
    %5379 = vmatpush.msra.mxu0 0.0
    %5380 = vmatpush.msra.mxu0 0.0
    %5381 = vmatpush.msra.mxu0 0.0
    %5382 = vmatpush.msra.mxu0 %v5207
    %5383 = vmatpush.msra.mxu0 %v5195
    %5384 = vmatpush.msra.mxu0 %v5183
    %5385 = vmatpush.msra.mxu0 %v5171
    %5386 = vmatpush.msra.mxu0 %v5159
    %5387 = vmatpush.msra.mxu0 %v5147
    %5388 = vmatpush.msra.mxu0 %v5135
    %5389 = vmatpush.msra.mxu0 %v5123
    %5390 = vmatmul.f32.gmra.mxu0 %v5212
    %v5391 = vpop.f32.mrf.mxu0
    %v5392 = vadd.f32 0.0, %v5391
    %5393 = vdwg.mxu0
    %5394 = vmatpush.msra.mxu0 0.0
    %5395 = vmatpush.msra.mxu0 0.0
    %5396 = vmatpush.msra.mxu0 0.0
    %5397 = vmatpush.msra.mxu0 0.0
    %5398 = vmatpush.msra.mxu0 0.0
    %5399 = vmatpush.msra.mxu0 0.0
    %5400 = vmatpush.msra.mxu0 0.0
    %5401 = vmatpush.msra.mxu0 0.0
    %5402 = vmatpush.msra.mxu0 %v5208
    %5403 = vmatpush.msra.mxu0 %v5196
    %5404 = vmatpush.msra.mxu0 %v5184
    %5405 = vmatpush.msra.mxu0 %v5172
    %5406 = vmatpush.msra.mxu0 %v5160
    %5407 = vmatpush.msra.mxu0 %v5148
    %5408 = vmatpush.msra.mxu0 %v5136
    %5409 = vmatpush.msra.mxu0 %v5124
    %5410 = vmatmul.f32.gmra.mxu0 %v5212
    %v5411 = vpop.f32.mrf.mxu0
    %v5412 = vadd.f32 0.0, %v5411
    %5413 = vdwg.mxu0
    %5414 = vmatpush.msra.mxu0 0.0
    %5415 = vmatpush.msra.mxu0 0.0
    %5416 = vmatpush.msra.mxu0 0.0
    %5417 = vmatpush.msra.mxu0 0.0
    %5418 = vmatpush.msra.mxu0 0.0
    %5419 = vmatpush.msra.mxu0 0.0
    %5420 = vmatpush.msra.mxu0 0.0
    %5421 = vmatpush.msra.mxu0 0.0
    %5422 = vmatpush.msra.mxu0 %v5209
    %5423 = vmatpush.msra.mxu0 %v5197
    %5424 = vmatpush.msra.mxu0 %v5185
    %5425 = vmatpush.msra.mxu0 %v5173
    %5426 = vmatpush.msra.mxu0 %v5161
    %5427 = vmatpush.msra.mxu0 %v5149
    %5428 = vmatpush.msra.mxu0 %v5137
    %5429 = vmatpush.msra.mxu0 %v5125
    %5430 = vmatmul.f32.gmra.mxu0 %v5212
    %v5431 = vpop.f32.mrf.mxu0
    %v5432 = vadd.f32 0.0, %v5431
    %5433 = vdwg.mxu0
    %5434 = vmatpush.msra.mxu0 0.0
    %5435 = vmatpush.msra.mxu0 0.0
    %5436 = vmatpush.msra.mxu0 0.0
    %5437 = vmatpush.msra.mxu0 0.0
    %5438 = vmatpush.msra.mxu0 0.0
    %5439 = vmatpush.msra.mxu0 0.0
    %5440 = vmatpush.msra.mxu0 0.0
    %5441 = vmatpush.msra.mxu0 0.0
    %5442 = vmatpush.msra.mxu0 %v5210
    %5443 = vmatpush.msra.mxu0 %v5198
    %5444 = vmatpush.msra.mxu0 %v5186
    %5445 = vmatpush.msra.mxu0 %v5174
    %5446 = vmatpush.msra.mxu0 %v5162
    %5447 = vmatpush.msra.mxu0 %v5150
    %5448 = vmatpush.msra.mxu0 %v5138
    %5449 = vmatpush.msra.mxu0 %v5126
    %5450 = vmatmul.f32.gmra.mxu0 %v5212
    %v5451 = vpop.f32.mrf.mxu0
    %v5452 = vadd.f32 0.0, %v5451
    %5453 = vdwg.mxu0
    %v5458 = vrot.slane %v5392, 1
    %v5459 = vrot.slane %v5412, 1
    %v5460 = vrot.slane %v5432, 1
    %v5461 = vrot.slane %v5452, 1
    %v5466 = vadd.f32 %v5312, %v5458
    %v5467 = vadd.f32 %v5332, %v5459
    %v5468 = vadd.f32 %v5352, %v5460
    %v5469 = vadd.f32 %v5372, %v5461
    %v5470 = vadd.f32 %v5466, %v3980
    %v5471 = vadd.f32 %v5467, %v3981
    %v5472 = vadd.f32 %v5468, %v3982
    %v5473 = vadd.f32 %v5469, %v3983
    %v5474 = vxor.u32 %v5470, 2147483648
    %v5475 = vmul.f32 %v5474, 1.442695
    %v5476 = vpow.pop %v5475
    %v5477 = vadd.f32 %v5476, 1.0
    %v5478 = vrcp.pop %v5477
    %v5479 = vmul.f32 %v5477, %v5478
    %v5480 = vsub.f32 1.0, %v5479
    %v5481 = vmul.f32 %v5478, %v5480
    %v5482 = vadd.f32 %v5478, %v5481
    %vm5483 = vweird.f32 %v5477
    %vm5484 = vweird.f32 %v5478
    %vm5485 = vmor %vm5483, %vm5484
    %v5486 = vsel %vm5485, %v5478, %v5482
    %v5487 = vand.u32 2147483647, %v5477
    %vm5488 = vcmp.eq.f32.partialorder %v5487, 8.507059e+37
    %v5489 = vand.u32 %v5477, 2147483648
    %v5490 = vor.u32 1.1754944e-38, %v5489
    %v5491 = vsel %vm5488, %v5490, %v5486
    %v5492 = vmul.f32 1.0, %v5491
    %v5493 = vxor.u32 %v5471, 2147483648
    %v5494 = vmul.f32 %v5493, 1.442695
    %v5495 = vpow.pop %v5494
    %v5496 = vadd.f32 %v5495, 1.0
    %v5497 = vrcp.pop %v5496
    %v5498 = vmul.f32 %v5496, %v5497
    %v5499 = vsub.f32 1.0, %v5498
    %v5500 = vmul.f32 %v5497, %v5499
    %v5501 = vadd.f32 %v5497, %v5500
    %vm5502 = vweird.f32 %v5496
    %vm5503 = vweird.f32 %v5497
    %vm5504 = vmor %vm5502, %vm5503
    %v5505 = vsel %vm5504, %v5497, %v5501
    %v5506 = vand.u32 2147483647, %v5496
    %vm5507 = vcmp.eq.f32.partialorder %v5506, 8.507059e+37
    %v5508 = vand.u32 %v5496, 2147483648
    %v5509 = vor.u32 1.1754944e-38, %v5508
    %v5510 = vsel %vm5507, %v5509, %v5505
    %v5511 = vmul.f32 1.0, %v5510
    %v5512 = vtanh.pop %v5472
    %v5513 = vxor.u32 %v5473, 2147483648
    %v5514 = vmul.f32 %v5513, 1.442695
    %v5515 = vpow.pop %v5514
    %v5516 = vadd.f32 %v5515, 1.0
    %v5517 = vrcp.pop %v5516
    %v5518 = vmul.f32 %v5516, %v5517
    %v5519 = vsub.f32 1.0, %v5518
    %v5520 = vmul.f32 %v5517, %v5519
    %v5521 = vadd.f32 %v5517, %v5520
    %vm5522 = vweird.f32 %v5516
    %vm5523 = vweird.f32 %v5517
    %vm5524 = vmor %vm5522, %vm5523
    %v5525 = vsel %vm5524, %v5517, %v5521
    %v5526 = vand.u32 2147483647, %v5516
    %vm5527 = vcmp.eq.f32.partialorder %v5526, 8.507059e+37
    %v5528 = vand.u32 %v5516, 2147483648
    %v5529 = vor.u32 1.1754944e-38, %v5528
    %v5530 = vsel %vm5527, %v5529, %v5525
    %v5531 = vmul.f32 1.0, %v5530
    %v5532 = vmul.f32 %v5511, %v5040
    %v5533 = vmul.f32 %v5492, %v5512
    %v5534 = vadd.f32 %v5532, %v5533
    %v5535 = vtanh.pop %v5534
    %v5536 = vmul.f32 %v5531, %v5535
    %5537 = vst [vmem:[#allocation3 + $0x3] sm:$0x1] %v5536
    %v5538 = vadd.f32 %v3494, %v5232
    %v5539 = vadd.f32 %v3514, %v5252
    %v5540 = vadd.f32 %v3534, %v5272
    %v5541 = vadd.f32 %v3554, %v5292
    %v5542 = vxor.u32 %v5538, 2147483648
    %v5543 = vmul.f32 %v5542, 1.442695
    %v5544 = vpow.pop %v5543
    %v5545 = vadd.f32 %v5544, 1.0
    %v5546 = vrcp.pop %v5545
    %v5547 = vmul.f32 %v5545, %v5546
    %v5548 = vsub.f32 1.0, %v5547
    %v5549 = vmul.f32 %v5546, %v5548
    %v5550 = vadd.f32 %v5546, %v5549
    %vm5551 = vweird.f32 %v5545
    %vm5552 = vweird.f32 %v5546
    %vm5553 = vmor %vm5551, %vm5552
    %v5554 = vsel %vm5553, %v5546, %v5550
    %v5555 = vand.u32 2147483647, %v5545
    %vm5556 = vcmp.eq.f32.partialorder %v5555, 8.507059e+37
    %v5557 = vand.u32 %v5545, 2147483648
    %v5558 = vor.u32 1.1754944e-38, %v5557
    %v5559 = vsel %vm5556, %v5558, %v5554
    %v5560 = vmul.f32 1.0, %v5559
    %v5561 = vxor.u32 %v5539, 2147483648
    %v5562 = vmul.f32 %v5561, 1.442695
    %v5563 = vpow.pop %v5562
    %v5564 = vadd.f32 %v5563, 1.0
    %v5565 = vrcp.pop %v5564
    %v5566 = vmul.f32 %v5564, %v5565
    %v5567 = vsub.f32 1.0, %v5566
    %v5568 = vmul.f32 %v5565, %v5567
    %v5569 = vadd.f32 %v5565, %v5568
    %vm5570 = vweird.f32 %v5564
    %vm5571 = vweird.f32 %v5565
    %vm5572 = vmor %vm5570, %vm5571
    %v5573 = vsel %vm5572, %v5565, %v5569
    %v5574 = vand.u32 2147483647, %v5564
    %vm5575 = vcmp.eq.f32.partialorder %v5574, 8.507059e+37
    %v5576 = vand.u32 %v5564, 2147483648
    %v5577 = vor.u32 1.1754944e-38, %v5576
    %v5578 = vsel %vm5575, %v5577, %v5573
    %v5579 = vmul.f32 1.0, %v5578
    %v5580 = vtanh.pop %v5540
    %v5581 = vxor.u32 %v5541, 2147483648
    %v5582 = vmul.f32 %v5581, 1.442695
    %v5583 = vpow.pop %v5582
    %v5584 = vadd.f32 %v5583, 1.0
    %v5585 = vrcp.pop %v5584
    %v5586 = vmul.f32 %v5584, %v5585
    %v5587 = vsub.f32 1.0, %v5586
    %v5588 = vmul.f32 %v5585, %v5587
    %v5589 = vadd.f32 %v5585, %v5588
    %vm5590 = vweird.f32 %v5584
    %vm5591 = vweird.f32 %v5585
    %vm5592 = vmor %vm5590, %vm5591
    %v5593 = vsel %vm5592, %v5585, %v5589
    %v5594 = vand.u32 2147483647, %v5584
    %vm5595 = vcmp.eq.f32.partialorder %v5594, 8.507059e+37
    %v5596 = vand.u32 %v5584, 2147483648
    %v5597 = vor.u32 1.1754944e-38, %v5596
    %v5598 = vsel %vm5595, %v5597, %v5593
    %v5599 = vmul.f32 1.0, %v5598
    %v5600 = vmul.f32 %v5579, %v5108
    %v5601 = vmul.f32 %v5560, %v5580
    %v5602 = vadd.f32 %v5600, %v5601
    %v5603 = vtanh.pop %v5602
    %v5604 = vmul.f32 %v5599, %v5603
    %v5606 = vrot.slane %v5536, 7
    %v5608 = vsel %vm174, %v5604, %v5606
    %v5609 = vld [vmem:[#allocation5] sm:$0xff]
    %v5610 = vld [vmem:[#allocation5 + $0x8] sm:$0xff]
    %v5611 = vld [vmem:[#allocation5 + $0x10] sm:$0xff]
    %v5612 = vld [vmem:[#allocation5 + $0x18] sm:$0xff]
    %v5613 = vld [vmem:[#allocation5 + $0x20] sm:$0xff]
    %v5614 = vld [vmem:[#allocation5 + $0x28] sm:$0xff]
    %v5615 = vld [vmem:[#allocation5 + $0x30] sm:$0xff]
    %v5616 = vld [vmem:[#allocation5 + $0x38] sm:$0xff]
    %v5617 = vld [vmem:[#allocation5 + $0x40] sm:$0xff]
    %v5618 = vld [vmem:[#allocation5 + $0x48] sm:$0xff]
    %v5619 = vld [vmem:[#allocation5 + $0x50] sm:$0xff]
    %v5620 = vld [vmem:[#allocation5 + $0x58] sm:$0xff]
    %v5621 = vld [vmem:[#allocation5 + $0x60] sm:$0xff]
    %v5622 = vld [vmem:[#allocation5 + $0x68] sm:$0xff]
    %v5623 = vld [vmem:[#allocation5 + $0x70] sm:$0xff]
    %v5624 = vld [vmem:[#allocation5 + $0x78] sm:$0xff]
    %v5625 = vld [vmem:[#allocation5 + $0x80] sm:$0xff]
    %v5626 = vld [vmem:[#allocation5 + $0x88] sm:$0xff]
    %v5627 = vld [vmem:[#allocation5 + $0x90] sm:$0xff]
    %v5628 = vld [vmem:[#allocation5 + $0x98] sm:$0xff]
    %v5629 = vld [vmem:[#allocation5 + $0xa0] sm:$0xff]
    %v5630 = vld [vmem:[#allocation5 + $0xa8] sm:$0xff]
    %v5631 = vld [vmem:[#allocation5 + $0xb0] sm:$0xff]
    %v5632 = vld [vmem:[#allocation5 + $0xb8] sm:$0xff]
    %v5633 = vld [vmem:[#allocation5 + $0xc0] sm:$0xff]
    %v5634 = vld [vmem:[#allocation5 + $0xc8] sm:$0xff]
    %v5635 = vld [vmem:[#allocation5 + $0xd0] sm:$0xff]
    %v5636 = vld [vmem:[#allocation5 + $0xd8] sm:$0xff]
    %v5637 = vld [vmem:[#allocation5 + $0xe0] sm:$0xff]
    %v5638 = vld [vmem:[#allocation5 + $0xe8] sm:$0xff]
    %v5639 = vld [vmem:[#allocation5 + $0xf0] sm:$0xff]
    %v5640 = vld [vmem:[#allocation5 + $0xf8] sm:$0xff]
    %v5641 = vld [vmem:[#allocation5 + $0x100] sm:$0xff]
    %v5642 = vld [vmem:[#allocation5 + $0x108] sm:$0xff]
    %v5643 = vld [vmem:[#allocation5 + $0x110] sm:$0xff]
    %v5644 = vld [vmem:[#allocation5 + $0x118] sm:$0xff]
    %v5645 = vld [vmem:[#allocation5 + $0x120] sm:$0xff]
    %v5646 = vld [vmem:[#allocation5 + $0x128] sm:$0xff]
    %v5647 = vld [vmem:[#allocation5 + $0x130] sm:$0xff]
    %v5648 = vld [vmem:[#allocation5 + $0x138] sm:$0xff]
    %v5649 = vld [vmem:[#allocation5 + $0x140] sm:$0xff]
    %v5650 = vld [vmem:[#allocation5 + $0x148] sm:$0xff]
    %v5651 = vld [vmem:[#allocation5 + $0x150] sm:$0xff]
    %v5652 = vld [vmem:[#allocation5 + $0x158] sm:$0xff]
    %v5653 = vld [vmem:[#allocation5 + $0x160] sm:$0xff]
    %v5654 = vld [vmem:[#allocation5 + $0x168] sm:$0xff]
    %v5655 = vld [vmem:[#allocation5 + $0x170] sm:$0xff]
    %v5656 = vld [vmem:[#allocation5 + $0x178] sm:$0xff]
    %v5657 = vld [vmem:[#allocation5 + $0x180] sm:$0xff]
    %v5658 = vld [vmem:[#allocation5 + $0x188] sm:$0xff]
    %v5659 = vld [vmem:[#allocation5 + $0x190] sm:$0xff]
    %v5660 = vld [vmem:[#allocation5 + $0x198] sm:$0xff]
    %v5661 = vld [vmem:[#allocation5 + $0x1a0] sm:$0xff]
    %v5662 = vld [vmem:[#allocation5 + $0x1a8] sm:$0xff]
    %v5663 = vld [vmem:[#allocation5 + $0x1b0] sm:$0xff]
    %v5664 = vld [vmem:[#allocation5 + $0x1b8] sm:$0xff]
    %v5665 = vld [vmem:[#allocation5 + $0x1c0] sm:$0xff]
    %v5666 = vld [vmem:[#allocation5 + $0x1c8] sm:$0xff]
    %v5667 = vld [vmem:[#allocation5 + $0x1d0] sm:$0xff]
    %v5668 = vld [vmem:[#allocation5 + $0x1d8] sm:$0xff]
    %v5669 = vld [vmem:[#allocation5 + $0x1e0] sm:$0xff]
    %v5670 = vld [vmem:[#allocation5 + $0x1e8] sm:$0xff]
    %v5671 = vld [vmem:[#allocation5 + $0x1f0] sm:$0xff]
    %v5672 = vld [vmem:[#allocation5 + $0x1f8] sm:$0xff]
    %v5673 = vld [vmem:[#allocation5 + $0x200] sm:$0xff]
    %v5674 = vld [vmem:[#allocation5 + $0x208] sm:$0xff]
    %v5675 = vld [vmem:[#allocation5 + $0x210] sm:$0xff]
    %v5676 = vld [vmem:[#allocation5 + $0x218] sm:$0xff]
    %v5677 = vld [vmem:[#allocation5 + $0x220] sm:$0xff]
    %v5678 = vld [vmem:[#allocation5 + $0x228] sm:$0xff]
    %v5679 = vld [vmem:[#allocation5 + $0x230] sm:$0xff]
    %v5680 = vld [vmem:[#allocation5 + $0x238] sm:$0xff]
    %v5681 = vld [vmem:[#allocation5 + $0x240] sm:$0xff]
    %v5682 = vld [vmem:[#allocation5 + $0x248] sm:$0xff]
    %v5683 = vld [vmem:[#allocation5 + $0x250] sm:$0xff]
    %v5684 = vld [vmem:[#allocation5 + $0x258] sm:$0xff]
    %v5685 = vld [vmem:[#allocation5 + $0x260] sm:$0xff]
    %v5686 = vld [vmem:[#allocation5 + $0x268] sm:$0xff]
    %v5687 = vld [vmem:[#allocation5 + $0x270] sm:$0xff]
    %v5688 = vld [vmem:[#allocation5 + $0x278] sm:$0xff]
    %v5689 = vld [vmem:[#allocation5 + $0x280] sm:$0xff]
    %v5690 = vld [vmem:[#allocation5 + $0x288] sm:$0xff]
    %v5691 = vld [vmem:[#allocation5 + $0x290] sm:$0xff]
    %v5692 = vld [vmem:[#allocation5 + $0x298] sm:$0xff]
    %v5693 = vld [vmem:[#allocation5 + $0x2a0] sm:$0xff]
    %v5694 = vld [vmem:[#allocation5 + $0x2a8] sm:$0xff]
    %v5695 = vld [vmem:[#allocation5 + $0x2b0] sm:$0xff]
    %v5696 = vld [vmem:[#allocation5 + $0x2b8] sm:$0xff]
    %v5697 = vld [vmem:[#allocation5 + $0x2c0] sm:$0xff]
    %v5698 = vld [vmem:[#allocation5 + $0x2c8] sm:$0xff]
    %v5699 = vld [vmem:[#allocation5 + $0x2d0] sm:$0xff]
    %v5700 = vld [vmem:[#allocation5 + $0x2d8] sm:$0xff]
    %v5701 = vld [vmem:[#allocation5 + $0x2e0] sm:$0xff]
    %v5702 = vld [vmem:[#allocation5 + $0x2e8] sm:$0xff]
    %v5703 = vld [vmem:[#allocation5 + $0x2f0] sm:$0xff]
    %v5704 = vld [vmem:[#allocation5 + $0x2f8] sm:$0xff]
    %v5706 = vsel %vm272, %v5608, 0
    %5708 = vmatpush.msra.mxu0 0.0
    %5709 = vmatpush.msra.mxu0 0.0
    %5710 = vmatpush.msra.mxu0 0.0
    %5711 = vmatpush.msra.mxu0 0.0
    %5712 = vmatpush.msra.mxu0 0.0
    %5713 = vmatpush.msra.mxu0 0.0
    %5714 = vmatpush.msra.mxu0 0.0
    %5715 = vmatpush.msra.mxu0 0.0
    %5716 = vmatpush.msra.mxu0 %v5693
    %5717 = vmatpush.msra.mxu0 %v5681
    %5718 = vmatpush.msra.mxu0 %v5669
    %5719 = vmatpush.msra.mxu0 %v5657
    %5720 = vmatpush.msra.mxu0 %v5645
    %5721 = vmatpush.msra.mxu0 %v5633
    %5722 = vmatpush.msra.mxu0 %v5621
    %5723 = vmatpush.msra.mxu0 %v5609
    %5724 = vmatmul.f32.gmra.mxu0 %v5706
    %v5725 = vpop.f32.mrf.mxu0
    %v5726 = vadd.f32 0.0, %v5725
    %5727 = vdwg.mxu0
    %5728 = vmatpush.msra.mxu0 0.0
    %5729 = vmatpush.msra.mxu0 0.0
    %5730 = vmatpush.msra.mxu0 0.0
    %5731 = vmatpush.msra.mxu0 0.0
    %5732 = vmatpush.msra.mxu0 0.0
    %5733 = vmatpush.msra.mxu0 0.0
    %5734 = vmatpush.msra.mxu0 0.0
    %5735 = vmatpush.msra.mxu0 0.0
    %5736 = vmatpush.msra.mxu0 %v5694
    %5737 = vmatpush.msra.mxu0 %v5682
    %5738 = vmatpush.msra.mxu0 %v5670
    %5739 = vmatpush.msra.mxu0 %v5658
    %5740 = vmatpush.msra.mxu0 %v5646
    %5741 = vmatpush.msra.mxu0 %v5634
    %5742 = vmatpush.msra.mxu0 %v5622
    %5743 = vmatpush.msra.mxu0 %v5610
    %5744 = vmatmul.f32.gmra.mxu0 %v5706
    %v5745 = vpop.f32.mrf.mxu0
    %v5746 = vadd.f32 0.0, %v5745
    %5747 = vdwg.mxu0
    %5748 = vmatpush.msra.mxu0 0.0
    %5749 = vmatpush.msra.mxu0 0.0
    %5750 = vmatpush.msra.mxu0 0.0
    %5751 = vmatpush.msra.mxu0 0.0
    %5752 = vmatpush.msra.mxu0 0.0
    %5753 = vmatpush.msra.mxu0 0.0
    %5754 = vmatpush.msra.mxu0 0.0
    %5755 = vmatpush.msra.mxu0 0.0
    %5756 = vmatpush.msra.mxu0 %v5695
    %5757 = vmatpush.msra.mxu0 %v5683
    %5758 = vmatpush.msra.mxu0 %v5671
    %5759 = vmatpush.msra.mxu0 %v5659
    %5760 = vmatpush.msra.mxu0 %v5647
    %5761 = vmatpush.msra.mxu0 %v5635
    %5762 = vmatpush.msra.mxu0 %v5623
    %5763 = vmatpush.msra.mxu0 %v5611
    %5764 = vmatmul.f32.gmra.mxu0 %v5706
    %v5765 = vpop.f32.mrf.mxu0
    %v5766 = vadd.f32 0.0, %v5765
    %5767 = vdwg.mxu0
    %5768 = vmatpush.msra.mxu0 0.0
    %5769 = vmatpush.msra.mxu0 0.0
    %5770 = vmatpush.msra.mxu0 0.0
    %5771 = vmatpush.msra.mxu0 0.0
    %5772 = vmatpush.msra.mxu0 0.0
    %5773 = vmatpush.msra.mxu0 0.0
    %5774 = vmatpush.msra.mxu0 0.0
    %5775 = vmatpush.msra.mxu0 0.0
    %5776 = vmatpush.msra.mxu0 %v5696
    %5777 = vmatpush.msra.mxu0 %v5684
    %5778 = vmatpush.msra.mxu0 %v5672
    %5779 = vmatpush.msra.mxu0 %v5660
    %5780 = vmatpush.msra.mxu0 %v5648
    %5781 = vmatpush.msra.mxu0 %v5636
    %5782 = vmatpush.msra.mxu0 %v5624
    %5783 = vmatpush.msra.mxu0 %v5612
    %5784 = vmatmul.f32.gmra.mxu0 %v5706
    %v5785 = vpop.f32.mrf.mxu0
    %v5786 = vadd.f32 0.0, %v5785
    %5787 = vdwg.mxu0
    %5788 = vmatpush.msra.mxu0 0.0
    %5789 = vmatpush.msra.mxu0 0.0
    %5790 = vmatpush.msra.mxu0 0.0
    %5791 = vmatpush.msra.mxu0 0.0
    %5792 = vmatpush.msra.mxu0 0.0
    %5793 = vmatpush.msra.mxu0 0.0
    %5794 = vmatpush.msra.mxu0 0.0
    %5795 = vmatpush.msra.mxu0 0.0
    %5796 = vmatpush.msra.mxu0 %v5697
    %5797 = vmatpush.msra.mxu0 %v5685
    %5798 = vmatpush.msra.mxu0 %v5673
    %5799 = vmatpush.msra.mxu0 %v5661
    %5800 = vmatpush.msra.mxu0 %v5649
    %5801 = vmatpush.msra.mxu0 %v5637
    %5802 = vmatpush.msra.mxu0 %v5625
    %5803 = vmatpush.msra.mxu0 %v5613
    %5804 = vmatmul.f32.gmra.mxu0 %v5706
    %v5805 = vpop.f32.mrf.mxu0
    %v5806 = vadd.f32 0.0, %v5805
    %5807 = vdwg.mxu0
    %5808 = vmatpush.msra.mxu0 0.0
    %5809 = vmatpush.msra.mxu0 0.0
    %5810 = vmatpush.msra.mxu0 0.0
    %5811 = vmatpush.msra.mxu0 0.0
    %5812 = vmatpush.msra.mxu0 0.0
    %5813 = vmatpush.msra.mxu0 0.0
    %5814 = vmatpush.msra.mxu0 0.0
    %5815 = vmatpush.msra.mxu0 0.0
    %5816 = vmatpush.msra.mxu0 %v5698
    %5817 = vmatpush.msra.mxu0 %v5686
    %5818 = vmatpush.msra.mxu0 %v5674
    %5819 = vmatpush.msra.mxu0 %v5662
    %5820 = vmatpush.msra.mxu0 %v5650
    %5821 = vmatpush.msra.mxu0 %v5638
    %5822 = vmatpush.msra.mxu0 %v5626
    %5823 = vmatpush.msra.mxu0 %v5614
    %5824 = vmatmul.f32.gmra.mxu0 %v5706
    %v5825 = vpop.f32.mrf.mxu0
    %v5826 = vadd.f32 0.0, %v5825
    %5827 = vdwg.mxu0
    %5828 = vmatpush.msra.mxu0 0.0
    %5829 = vmatpush.msra.mxu0 0.0
    %5830 = vmatpush.msra.mxu0 0.0
    %5831 = vmatpush.msra.mxu0 0.0
    %5832 = vmatpush.msra.mxu0 0.0
    %5833 = vmatpush.msra.mxu0 0.0
    %5834 = vmatpush.msra.mxu0 0.0
    %5835 = vmatpush.msra.mxu0 0.0
    %5836 = vmatpush.msra.mxu0 %v5699
    %5837 = vmatpush.msra.mxu0 %v5687
    %5838 = vmatpush.msra.mxu0 %v5675
    %5839 = vmatpush.msra.mxu0 %v5663
    %5840 = vmatpush.msra.mxu0 %v5651
    %5841 = vmatpush.msra.mxu0 %v5639
    %5842 = vmatpush.msra.mxu0 %v5627
    %5843 = vmatpush.msra.mxu0 %v5615
    %5844 = vmatmul.f32.gmra.mxu0 %v5706
    %v5845 = vpop.f32.mrf.mxu0
    %v5846 = vadd.f32 0.0, %v5845
    %5847 = vdwg.mxu0
    %5848 = vmatpush.msra.mxu0 0.0
    %5849 = vmatpush.msra.mxu0 0.0
    %5850 = vmatpush.msra.mxu0 0.0
    %5851 = vmatpush.msra.mxu0 0.0
    %5852 = vmatpush.msra.mxu0 0.0
    %5853 = vmatpush.msra.mxu0 0.0
    %5854 = vmatpush.msra.mxu0 0.0
    %5855 = vmatpush.msra.mxu0 0.0
    %5856 = vmatpush.msra.mxu0 %v5700
    %5857 = vmatpush.msra.mxu0 %v5688
    %5858 = vmatpush.msra.mxu0 %v5676
    %5859 = vmatpush.msra.mxu0 %v5664
    %5860 = vmatpush.msra.mxu0 %v5652
    %5861 = vmatpush.msra.mxu0 %v5640
    %5862 = vmatpush.msra.mxu0 %v5628
    %5863 = vmatpush.msra.mxu0 %v5616
    %5864 = vmatmul.f32.gmra.mxu0 %v5706
    %v5865 = vpop.f32.mrf.mxu0
    %v5866 = vadd.f32 0.0, %v5865
    %5867 = vdwg.mxu0
    %5868 = vmatpush.msra.mxu0 0.0
    %5869 = vmatpush.msra.mxu0 0.0
    %5870 = vmatpush.msra.mxu0 0.0
    %5871 = vmatpush.msra.mxu0 0.0
    %5872 = vmatpush.msra.mxu0 0.0
    %5873 = vmatpush.msra.mxu0 0.0
    %5874 = vmatpush.msra.mxu0 0.0
    %5875 = vmatpush.msra.mxu0 0.0
    %5876 = vmatpush.msra.mxu0 %v5701
    %5877 = vmatpush.msra.mxu0 %v5689
    %5878 = vmatpush.msra.mxu0 %v5677
    %5879 = vmatpush.msra.mxu0 %v5665
    %5880 = vmatpush.msra.mxu0 %v5653
    %5881 = vmatpush.msra.mxu0 %v5641
    %5882 = vmatpush.msra.mxu0 %v5629
    %5883 = vmatpush.msra.mxu0 %v5617
    %5884 = vmatmul.f32.gmra.mxu0 %v5706
    %v5885 = vpop.f32.mrf.mxu0
    %v5886 = vadd.f32 0.0, %v5885
    %5887 = vdwg.mxu0
    %5888 = vmatpush.msra.mxu0 0.0
    %5889 = vmatpush.msra.mxu0 0.0
    %5890 = vmatpush.msra.mxu0 0.0
    %5891 = vmatpush.msra.mxu0 0.0
    %5892 = vmatpush.msra.mxu0 0.0
    %5893 = vmatpush.msra.mxu0 0.0
    %5894 = vmatpush.msra.mxu0 0.0
    %5895 = vmatpush.msra.mxu0 0.0
    %5896 = vmatpush.msra.mxu0 %v5702
    %5897 = vmatpush.msra.mxu0 %v5690
    %5898 = vmatpush.msra.mxu0 %v5678
    %5899 = vmatpush.msra.mxu0 %v5666
    %5900 = vmatpush.msra.mxu0 %v5654
    %5901 = vmatpush.msra.mxu0 %v5642
    %5902 = vmatpush.msra.mxu0 %v5630
    %5903 = vmatpush.msra.mxu0 %v5618
    %5904 = vmatmul.f32.gmra.mxu0 %v5706
    %v5905 = vpop.f32.mrf.mxu0
    %v5906 = vadd.f32 0.0, %v5905
    %5907 = vdwg.mxu0
    %5908 = vmatpush.msra.mxu0 0.0
    %5909 = vmatpush.msra.mxu0 0.0
    %5910 = vmatpush.msra.mxu0 0.0
    %5911 = vmatpush.msra.mxu0 0.0
    %5912 = vmatpush.msra.mxu0 0.0
    %5913 = vmatpush.msra.mxu0 0.0
    %5914 = vmatpush.msra.mxu0 0.0
    %5915 = vmatpush.msra.mxu0 0.0
    %5916 = vmatpush.msra.mxu0 %v5703
    %5917 = vmatpush.msra.mxu0 %v5691
    %5918 = vmatpush.msra.mxu0 %v5679
    %5919 = vmatpush.msra.mxu0 %v5667
    %5920 = vmatpush.msra.mxu0 %v5655
    %5921 = vmatpush.msra.mxu0 %v5643
    %5922 = vmatpush.msra.mxu0 %v5631
    %5923 = vmatpush.msra.mxu0 %v5619
    %5924 = vmatmul.f32.gmra.mxu0 %v5706
    %v5925 = vpop.f32.mrf.mxu0
    %v5926 = vadd.f32 0.0, %v5925
    %5927 = vdwg.mxu0
    %5928 = vmatpush.msra.mxu0 0.0
    %5929 = vmatpush.msra.mxu0 0.0
    %5930 = vmatpush.msra.mxu0 0.0
    %5931 = vmatpush.msra.mxu0 0.0
    %5932 = vmatpush.msra.mxu0 0.0
    %5933 = vmatpush.msra.mxu0 0.0
    %5934 = vmatpush.msra.mxu0 0.0
    %5935 = vmatpush.msra.mxu0 0.0
    %5936 = vmatpush.msra.mxu0 %v5704
    %5937 = vmatpush.msra.mxu0 %v5692
    %5938 = vmatpush.msra.mxu0 %v5680
    %5939 = vmatpush.msra.mxu0 %v5668
    %5940 = vmatpush.msra.mxu0 %v5656
    %5941 = vmatpush.msra.mxu0 %v5644
    %5942 = vmatpush.msra.mxu0 %v5632
    %5943 = vmatpush.msra.mxu0 %v5620
    %5944 = vmatmul.f32.gmra.mxu0 %v5706
    %v5945 = vpop.f32.mrf.mxu0
    %v5946 = vadd.f32 0.0, %v5945
    %5947 = vdwg.mxu0
    %v5952 = vrot.slane %v5886, 1
    %v5953 = vrot.slane %v5906, 1
    %v5954 = vrot.slane %v5926, 1
    %v5955 = vrot.slane %v5946, 1
    %v5960 = vadd.f32 %v5806, %v5952
    %v5961 = vadd.f32 %v5826, %v5953
    %v5962 = vadd.f32 %v5846, %v5954
    %v5963 = vadd.f32 %v5866, %v5955
    %v5964 = vadd.f32 %v5960, %v3980
    %v5965 = vadd.f32 %v5961, %v3981
    %v5966 = vadd.f32 %v5962, %v3982
    %v5967 = vadd.f32 %v5963, %v3983
    %v5968 = vxor.u32 %v5964, 2147483648
    %v5969 = vmul.f32 %v5968, 1.442695
    %v5970 = vpow.pop %v5969
    %v5971 = vadd.f32 %v5970, 1.0
    %v5972 = vrcp.pop %v5971
    %v5973 = vmul.f32 %v5971, %v5972
    %v5974 = vsub.f32 1.0, %v5973
    %v5975 = vmul.f32 %v5972, %v5974
    %v5976 = vadd.f32 %v5972, %v5975
    %vm5977 = vweird.f32 %v5971
    %vm5978 = vweird.f32 %v5972
    %vm5979 = vmor %vm5977, %vm5978
    %v5980 = vsel %vm5979, %v5972, %v5976
    %v5981 = vand.u32 2147483647, %v5971
    %vm5982 = vcmp.eq.f32.partialorder %v5981, 8.507059e+37
    %v5983 = vand.u32 %v5971, 2147483648
    %v5984 = vor.u32 1.1754944e-38, %v5983
    %v5985 = vsel %vm5982, %v5984, %v5980
    %v5986 = vmul.f32 1.0, %v5985
    %v5987 = vxor.u32 %v5965, 2147483648
    %v5988 = vmul.f32 %v5987, 1.442695
    %v5989 = vpow.pop %v5988
    %v5990 = vadd.f32 %v5989, 1.0
    %v5991 = vrcp.pop %v5990
    %v5992 = vmul.f32 %v5990, %v5991
    %v5993 = vsub.f32 1.0, %v5992
    %v5994 = vmul.f32 %v5991, %v5993
    %v5995 = vadd.f32 %v5991, %v5994
    %vm5996 = vweird.f32 %v5990
    %vm5997 = vweird.f32 %v5991
    %vm5998 = vmor %vm5996, %vm5997
    %v5999 = vsel %vm5998, %v5991, %v5995
    %v6000 = vand.u32 2147483647, %v5990
    %vm6001 = vcmp.eq.f32.partialorder %v6000, 8.507059e+37
    %v6002 = vand.u32 %v5990, 2147483648
    %v6003 = vor.u32 1.1754944e-38, %v6002
    %v6004 = vsel %vm6001, %v6003, %v5999
    %v6005 = vmul.f32 1.0, %v6004
    %v6006 = vtanh.pop %v5966
    %v6007 = vxor.u32 %v5967, 2147483648
    %v6008 = vmul.f32 %v6007, 1.442695
    %v6009 = vpow.pop %v6008
    %v6010 = vadd.f32 %v6009, 1.0
    %v6011 = vrcp.pop %v6010
    %v6012 = vmul.f32 %v6010, %v6011
    %v6013 = vsub.f32 1.0, %v6012
    %v6014 = vmul.f32 %v6011, %v6013
    %v6015 = vadd.f32 %v6011, %v6014
    %vm6016 = vweird.f32 %v6010
    %vm6017 = vweird.f32 %v6011
    %vm6018 = vmor %vm6016, %vm6017
    %v6019 = vsel %vm6018, %v6011, %v6015
    %v6020 = vand.u32 2147483647, %v6010
    %vm6021 = vcmp.eq.f32.partialorder %v6020, 8.507059e+37
    %v6022 = vand.u32 %v6010, 2147483648
    %v6023 = vor.u32 1.1754944e-38, %v6022
    %v6024 = vsel %vm6021, %v6023, %v6019
    %v6025 = vmul.f32 1.0, %v6024
    %v6026 = vmul.f32 %v6005, %v5534
    %v6027 = vmul.f32 %v5986, %v6006
    %v6028 = vadd.f32 %v6026, %v6027
    %v6029 = vtanh.pop %v6028
    %v6030 = vmul.f32 %v6025, %v6029
    %6031 = vst [vmem:[#allocation3 + $0x4] sm:$0x1] %v6030
    %v6032 = vadd.f32 %v3494, %v5726
    %v6033 = vadd.f32 %v3514, %v5746
    %v6034 = vadd.f32 %v3534, %v5766
    %v6035 = vadd.f32 %v3554, %v5786
    %v6036 = vxor.u32 %v6032, 2147483648
    %v6037 = vmul.f32 %v6036, 1.442695
    %v6038 = vpow.pop %v6037
    %v6039 = vadd.f32 %v6038, 1.0
    %v6040 = vrcp.pop %v6039
    %v6041 = vmul.f32 %v6039, %v6040
    %v6042 = vsub.f32 1.0, %v6041
    %v6043 = vmul.f32 %v6040, %v6042
    %v6044 = vadd.f32 %v6040, %v6043
    %vm6045 = vweird.f32 %v6039
    %vm6046 = vweird.f32 %v6040
    %vm6047 = vmor %vm6045, %vm6046
    %v6048 = vsel %vm6047, %v6040, %v6044
    %v6049 = vand.u32 2147483647, %v6039
    %vm6050 = vcmp.eq.f32.partialorder %v6049, 8.507059e+37
    %v6051 = vand.u32 %v6039, 2147483648
    %v6052 = vor.u32 1.1754944e-38, %v6051
    %v6053 = vsel %vm6050, %v6052, %v6048
    %v6054 = vmul.f32 1.0, %v6053
    %v6055 = vxor.u32 %v6033, 2147483648
    %v6056 = vmul.f32 %v6055, 1.442695
    %v6057 = vpow.pop %v6056
    %v6058 = vadd.f32 %v6057, 1.0
    %v6059 = vrcp.pop %v6058
    %v6060 = vmul.f32 %v6058, %v6059
    %v6061 = vsub.f32 1.0, %v6060
    %v6062 = vmul.f32 %v6059, %v6061
    %v6063 = vadd.f32 %v6059, %v6062
    %vm6064 = vweird.f32 %v6058
    %vm6065 = vweird.f32 %v6059
    %vm6066 = vmor %vm6064, %vm6065
    %v6067 = vsel %vm6066, %v6059, %v6063
    %v6068 = vand.u32 2147483647, %v6058
    %vm6069 = vcmp.eq.f32.partialorder %v6068, 8.507059e+37
    %v6070 = vand.u32 %v6058, 2147483648
    %v6071 = vor.u32 1.1754944e-38, %v6070
    %v6072 = vsel %vm6069, %v6071, %v6067
    %v6073 = vmul.f32 1.0, %v6072
    %v6074 = vtanh.pop %v6034
    %v6075 = vxor.u32 %v6035, 2147483648
    %v6076 = vmul.f32 %v6075, 1.442695
    %v6077 = vpow.pop %v6076
    %v6078 = vadd.f32 %v6077, 1.0
    %v6079 = vrcp.pop %v6078
    %v6080 = vmul.f32 %v6078, %v6079
    %v6081 = vsub.f32 1.0, %v6080
    %v6082 = vmul.f32 %v6079, %v6081
    %v6083 = vadd.f32 %v6079, %v6082
    %vm6084 = vweird.f32 %v6078
    %vm6085 = vweird.f32 %v6079
    %vm6086 = vmor %vm6084, %vm6085
    %v6087 = vsel %vm6086, %v6079, %v6083
    %v6088 = vand.u32 2147483647, %v6078
    %vm6089 = vcmp.eq.f32.partialorder %v6088, 8.507059e+37
    %v6090 = vand.u32 %v6078, 2147483648
    %v6091 = vor.u32 1.1754944e-38, %v6090
    %v6092 = vsel %vm6089, %v6091, %v6087
    %v6093 = vmul.f32 1.0, %v6092
    %v6094 = vmul.f32 %v6073, %v5602
    %v6095 = vmul.f32 %v6054, %v6074
    %v6096 = vadd.f32 %v6094, %v6095
    %v6097 = vtanh.pop %v6096
    %v6098 = vmul.f32 %v6093, %v6097
    %v6100 = vrot.slane %v6030, 7
    %v6102 = vsel %vm174, %v6098, %v6100
    %v6103 = vld [vmem:[#allocation5] sm:$0xff]
    %v6104 = vld [vmem:[#allocation5 + $0x8] sm:$0xff]
    %v6105 = vld [vmem:[#allocation5 + $0x10] sm:$0xff]
    %v6106 = vld [vmem:[#allocation5 + $0x18] sm:$0xff]
    %v6107 = vld [vmem:[#allocation5 + $0x20] sm:$0xff]
    %v6108 = vld [vmem:[#allocation5 + $0x28] sm:$0xff]
    %v6109 = vld [vmem:[#allocation5 + $0x30] sm:$0xff]
    %v6110 = vld [vmem:[#allocation5 + $0x38] sm:$0xff]
    %v6111 = vld [vmem:[#allocation5 + $0x40] sm:$0xff]
    %v6112 = vld [vmem:[#allocation5 + $0x48] sm:$0xff]
    %v6113 = vld [vmem:[#allocation5 + $0x50] sm:$0xff]
    %v6114 = vld [vmem:[#allocation5 + $0x58] sm:$0xff]
    %v6115 = vld [vmem:[#allocation5 + $0x60] sm:$0xff]
    %v6116 = vld [vmem:[#allocation5 + $0x68] sm:$0xff]
    %v6117 = vld [vmem:[#allocation5 + $0x70] sm:$0xff]
    %v6118 = vld [vmem:[#allocation5 + $0x78] sm:$0xff]
    %v6119 = vld [vmem:[#allocation5 + $0x80] sm:$0xff]
    %v6120 = vld [vmem:[#allocation5 + $0x88] sm:$0xff]
    %v6121 = vld [vmem:[#allocation5 + $0x90] sm:$0xff]
    %v6122 = vld [vmem:[#allocation5 + $0x98] sm:$0xff]
    %v6123 = vld [vmem:[#allocation5 + $0xa0] sm:$0xff]
    %v6124 = vld [vmem:[#allocation5 + $0xa8] sm:$0xff]
    %v6125 = vld [vmem:[#allocation5 + $0xb0] sm:$0xff]
    %v6126 = vld [vmem:[#allocation5 + $0xb8] sm:$0xff]
    %v6127 = vld [vmem:[#allocation5 + $0xc0] sm:$0xff]
    %v6128 = vld [vmem:[#allocation5 + $0xc8] sm:$0xff]
    %v6129 = vld [vmem:[#allocation5 + $0xd0] sm:$0xff]
    %v6130 = vld [vmem:[#allocation5 + $0xd8] sm:$0xff]
    %v6131 = vld [vmem:[#allocation5 + $0xe0] sm:$0xff]
    %v6132 = vld [vmem:[#allocation5 + $0xe8] sm:$0xff]
    %v6133 = vld [vmem:[#allocation5 + $0xf0] sm:$0xff]
    %v6134 = vld [vmem:[#allocation5 + $0xf8] sm:$0xff]
    %v6135 = vld [vmem:[#allocation5 + $0x100] sm:$0xff]
    %v6136 = vld [vmem:[#allocation5 + $0x108] sm:$0xff]
    %v6137 = vld [vmem:[#allocation5 + $0x110] sm:$0xff]
    %v6138 = vld [vmem:[#allocation5 + $0x118] sm:$0xff]
    %v6139 = vld [vmem:[#allocation5 + $0x120] sm:$0xff]
    %v6140 = vld [vmem:[#allocation5 + $0x128] sm:$0xff]
    %v6141 = vld [vmem:[#allocation5 + $0x130] sm:$0xff]
    %v6142 = vld [vmem:[#allocation5 + $0x138] sm:$0xff]
    %v6143 = vld [vmem:[#allocation5 + $0x140] sm:$0xff]
    %v6144 = vld [vmem:[#allocation5 + $0x148] sm:$0xff]
    %v6145 = vld [vmem:[#allocation5 + $0x150] sm:$0xff]
    %v6146 = vld [vmem:[#allocation5 + $0x158] sm:$0xff]
    %v6147 = vld [vmem:[#allocation5 + $0x160] sm:$0xff]
    %v6148 = vld [vmem:[#allocation5 + $0x168] sm:$0xff]
    %v6149 = vld [vmem:[#allocation5 + $0x170] sm:$0xff]
    %v6150 = vld [vmem:[#allocation5 + $0x178] sm:$0xff]
    %v6151 = vld [vmem:[#allocation5 + $0x180] sm:$0xff]
    %v6152 = vld [vmem:[#allocation5 + $0x188] sm:$0xff]
    %v6153 = vld [vmem:[#allocation5 + $0x190] sm:$0xff]
    %v6154 = vld [vmem:[#allocation5 + $0x198] sm:$0xff]
    %v6155 = vld [vmem:[#allocation5 + $0x1a0] sm:$0xff]
    %v6156 = vld [vmem:[#allocation5 + $0x1a8] sm:$0xff]
    %v6157 = vld [vmem:[#allocation5 + $0x1b0] sm:$0xff]
    %v6158 = vld [vmem:[#allocation5 + $0x1b8] sm:$0xff]
    %v6159 = vld [vmem:[#allocation5 + $0x1c0] sm:$0xff]
    %v6160 = vld [vmem:[#allocation5 + $0x1c8] sm:$0xff]
    %v6161 = vld [vmem:[#allocation5 + $0x1d0] sm:$0xff]
    %v6162 = vld [vmem:[#allocation5 + $0x1d8] sm:$0xff]
    %v6163 = vld [vmem:[#allocation5 + $0x1e0] sm:$0xff]
    %v6164 = vld [vmem:[#allocation5 + $0x1e8] sm:$0xff]
    %v6165 = vld [vmem:[#allocation5 + $0x1f0] sm:$0xff]
    %v6166 = vld [vmem:[#allocation5 + $0x1f8] sm:$0xff]
    %v6167 = vld [vmem:[#allocation5 + $0x200] sm:$0xff]
    %v6168 = vld [vmem:[#allocation5 + $0x208] sm:$0xff]
    %v6169 = vld [vmem:[#allocation5 + $0x210] sm:$0xff]
    %v6170 = vld [vmem:[#allocation5 + $0x218] sm:$0xff]
    %v6171 = vld [vmem:[#allocation5 + $0x220] sm:$0xff]
    %v6172 = vld [vmem:[#allocation5 + $0x228] sm:$0xff]
    %v6173 = vld [vmem:[#allocation5 + $0x230] sm:$0xff]
    %v6174 = vld [vmem:[#allocation5 + $0x238] sm:$0xff]
    %v6175 = vld [vmem:[#allocation5 + $0x240] sm:$0xff]
    %v6176 = vld [vmem:[#allocation5 + $0x248] sm:$0xff]
    %v6177 = vld [vmem:[#allocation5 + $0x250] sm:$0xff]
    %v6178 = vld [vmem:[#allocation5 + $0x258] sm:$0xff]
    %v6179 = vld [vmem:[#allocation5 + $0x260] sm:$0xff]
    %v6180 = vld [vmem:[#allocation5 + $0x268] sm:$0xff]
    %v6181 = vld [vmem:[#allocation5 + $0x270] sm:$0xff]
    %v6182 = vld [vmem:[#allocation5 + $0x278] sm:$0xff]
    %v6183 = vld [vmem:[#allocation5 + $0x280] sm:$0xff]
    %v6184 = vld [vmem:[#allocation5 + $0x288] sm:$0xff]
    %v6185 = vld [vmem:[#allocation5 + $0x290] sm:$0xff]
    %v6186 = vld [vmem:[#allocation5 + $0x298] sm:$0xff]
    %v6187 = vld [vmem:[#allocation5 + $0x2a0] sm:$0xff]
    %v6188 = vld [vmem:[#allocation5 + $0x2a8] sm:$0xff]
    %v6189 = vld [vmem:[#allocation5 + $0x2b0] sm:$0xff]
    %v6190 = vld [vmem:[#allocation5 + $0x2b8] sm:$0xff]
    %v6191 = vld [vmem:[#allocation5 + $0x2c0] sm:$0xff]
    %v6192 = vld [vmem:[#allocation5 + $0x2c8] sm:$0xff]
    %v6193 = vld [vmem:[#allocation5 + $0x2d0] sm:$0xff]
    %v6194 = vld [vmem:[#allocation5 + $0x2d8] sm:$0xff]
    %v6195 = vld [vmem:[#allocation5 + $0x2e0] sm:$0xff]
    %v6196 = vld [vmem:[#allocation5 + $0x2e8] sm:$0xff]
    %v6197 = vld [vmem:[#allocation5 + $0x2f0] sm:$0xff]
    %v6198 = vld [vmem:[#allocation5 + $0x2f8] sm:$0xff]
    %v6200 = vsel %vm272, %v6102, 0
    %6202 = vmatpush.msra.mxu0 0.0
    %6203 = vmatpush.msra.mxu0 0.0
    %6204 = vmatpush.msra.mxu0 0.0
    %6205 = vmatpush.msra.mxu0 0.0
    %6206 = vmatpush.msra.mxu0 0.0
    %6207 = vmatpush.msra.mxu0 0.0
    %6208 = vmatpush.msra.mxu0 0.0
    %6209 = vmatpush.msra.mxu0 0.0
    %6210 = vmatpush.msra.mxu0 %v6187
    %6211 = vmatpush.msra.mxu0 %v6175
    %6212 = vmatpush.msra.mxu0 %v6163
    %6213 = vmatpush.msra.mxu0 %v6151
    %6214 = vmatpush.msra.mxu0 %v6139
    %6215 = vmatpush.msra.mxu0 %v6127
    %6216 = vmatpush.msra.mxu0 %v6115
    %6217 = vmatpush.msra.mxu0 %v6103
    %6218 = vmatmul.f32.gmra.mxu0 %v6200
    %v6219 = vpop.f32.mrf.mxu0
    %v6220 = vadd.f32 0.0, %v6219
    %6221 = vdwg.mxu0
    %6222 = vmatpush.msra.mxu0 0.0
    %6223 = vmatpush.msra.mxu0 0.0
    %6224 = vmatpush.msra.mxu0 0.0
    %6225 = vmatpush.msra.mxu0 0.0
    %6226 = vmatpush.msra.mxu0 0.0
    %6227 = vmatpush.msra.mxu0 0.0
    %6228 = vmatpush.msra.mxu0 0.0
    %6229 = vmatpush.msra.mxu0 0.0
    %6230 = vmatpush.msra.mxu0 %v6188
    %6231 = vmatpush.msra.mxu0 %v6176
    %6232 = vmatpush.msra.mxu0 %v6164
    %6233 = vmatpush.msra.mxu0 %v6152
    %6234 = vmatpush.msra.mxu0 %v6140
    %6235 = vmatpush.msra.mxu0 %v6128
    %6236 = vmatpush.msra.mxu0 %v6116
    %6237 = vmatpush.msra.mxu0 %v6104
    %6238 = vmatmul.f32.gmra.mxu0 %v6200
    %v6239 = vpop.f32.mrf.mxu0
    %v6240 = vadd.f32 0.0, %v6239
    %6241 = vdwg.mxu0
    %6242 = vmatpush.msra.mxu0 0.0
    %6243 = vmatpush.msra.mxu0 0.0
    %6244 = vmatpush.msra.mxu0 0.0
    %6245 = vmatpush.msra.mxu0 0.0
    %6246 = vmatpush.msra.mxu0 0.0
    %6247 = vmatpush.msra.mxu0 0.0
    %6248 = vmatpush.msra.mxu0 0.0
    %6249 = vmatpush.msra.mxu0 0.0
    %6250 = vmatpush.msra.mxu0 %v6189
    %6251 = vmatpush.msra.mxu0 %v6177
    %6252 = vmatpush.msra.mxu0 %v6165
    %6253 = vmatpush.msra.mxu0 %v6153
    %6254 = vmatpush.msra.mxu0 %v6141
    %6255 = vmatpush.msra.mxu0 %v6129
    %6256 = vmatpush.msra.mxu0 %v6117
    %6257 = vmatpush.msra.mxu0 %v6105
    %6258 = vmatmul.f32.gmra.mxu0 %v6200
    %v6259 = vpop.f32.mrf.mxu0
    %v6260 = vadd.f32 0.0, %v6259
    %6261 = vdwg.mxu0
    %6262 = vmatpush.msra.mxu0 0.0
    %6263 = vmatpush.msra.mxu0 0.0
    %6264 = vmatpush.msra.mxu0 0.0
    %6265 = vmatpush.msra.mxu0 0.0
    %6266 = vmatpush.msra.mxu0 0.0
    %6267 = vmatpush.msra.mxu0 0.0
    %6268 = vmatpush.msra.mxu0 0.0
    %6269 = vmatpush.msra.mxu0 0.0
    %6270 = vmatpush.msra.mxu0 %v6190
    %6271 = vmatpush.msra.mxu0 %v6178
    %6272 = vmatpush.msra.mxu0 %v6166
    %6273 = vmatpush.msra.mxu0 %v6154
    %6274 = vmatpush.msra.mxu0 %v6142
    %6275 = vmatpush.msra.mxu0 %v6130
    %6276 = vmatpush.msra.mxu0 %v6118
    %6277 = vmatpush.msra.mxu0 %v6106
    %6278 = vmatmul.f32.gmra.mxu0 %v6200
    %v6279 = vpop.f32.mrf.mxu0
    %v6280 = vadd.f32 0.0, %v6279
    %6281 = vdwg.mxu0
    %6282 = vmatpush.msra.mxu0 0.0
    %6283 = vmatpush.msra.mxu0 0.0
    %6284 = vmatpush.msra.mxu0 0.0
    %6285 = vmatpush.msra.mxu0 0.0
    %6286 = vmatpush.msra.mxu0 0.0
    %6287 = vmatpush.msra.mxu0 0.0
    %6288 = vmatpush.msra.mxu0 0.0
    %6289 = vmatpush.msra.mxu0 0.0
    %6290 = vmatpush.msra.mxu0 %v6191
    %6291 = vmatpush.msra.mxu0 %v6179
    %6292 = vmatpush.msra.mxu0 %v6167
    %6293 = vmatpush.msra.mxu0 %v6155
    %6294 = vmatpush.msra.mxu0 %v6143
    %6295 = vmatpush.msra.mxu0 %v6131
    %6296 = vmatpush.msra.mxu0 %v6119
    %6297 = vmatpush.msra.mxu0 %v6107
    %6298 = vmatmul.f32.gmra.mxu0 %v6200
    %v6299 = vpop.f32.mrf.mxu0
    %v6300 = vadd.f32 0.0, %v6299
    %6301 = vdwg.mxu0
    %6302 = vmatpush.msra.mxu0 0.0
    %6303 = vmatpush.msra.mxu0 0.0
    %6304 = vmatpush.msra.mxu0 0.0
    %6305 = vmatpush.msra.mxu0 0.0
    %6306 = vmatpush.msra.mxu0 0.0
    %6307 = vmatpush.msra.mxu0 0.0
    %6308 = vmatpush.msra.mxu0 0.0
    %6309 = vmatpush.msra.mxu0 0.0
    %6310 = vmatpush.msra.mxu0 %v6192
    %6311 = vmatpush.msra.mxu0 %v6180
    %6312 = vmatpush.msra.mxu0 %v6168
    %6313 = vmatpush.msra.mxu0 %v6156
    %6314 = vmatpush.msra.mxu0 %v6144
    %6315 = vmatpush.msra.mxu0 %v6132
    %6316 = vmatpush.msra.mxu0 %v6120
    %6317 = vmatpush.msra.mxu0 %v6108
    %6318 = vmatmul.f32.gmra.mxu0 %v6200
    %v6319 = vpop.f32.mrf.mxu0
    %v6320 = vadd.f32 0.0, %v6319
    %6321 = vdwg.mxu0
    %6322 = vmatpush.msra.mxu0 0.0
    %6323 = vmatpush.msra.mxu0 0.0
    %6324 = vmatpush.msra.mxu0 0.0
    %6325 = vmatpush.msra.mxu0 0.0
    %6326 = vmatpush.msra.mxu0 0.0
    %6327 = vmatpush.msra.mxu0 0.0
    %6328 = vmatpush.msra.mxu0 0.0
    %6329 = vmatpush.msra.mxu0 0.0
    %6330 = vmatpush.msra.mxu0 %v6193
    %6331 = vmatpush.msra.mxu0 %v6181
    %6332 = vmatpush.msra.mxu0 %v6169
    %6333 = vmatpush.msra.mxu0 %v6157
    %6334 = vmatpush.msra.mxu0 %v6145
    %6335 = vmatpush.msra.mxu0 %v6133
    %6336 = vmatpush.msra.mxu0 %v6121
    %6337 = vmatpush.msra.mxu0 %v6109
    %6338 = vmatmul.f32.gmra.mxu0 %v6200
    %v6339 = vpop.f32.mrf.mxu0
    %v6340 = vadd.f32 0.0, %v6339
    %6341 = vdwg.mxu0
    %6342 = vmatpush.msra.mxu0 0.0
    %6343 = vmatpush.msra.mxu0 0.0
    %6344 = vmatpush.msra.mxu0 0.0
    %6345 = vmatpush.msra.mxu0 0.0
    %6346 = vmatpush.msra.mxu0 0.0
    %6347 = vmatpush.msra.mxu0 0.0
    %6348 = vmatpush.msra.mxu0 0.0
    %6349 = vmatpush.msra.mxu0 0.0
    %6350 = vmatpush.msra.mxu0 %v6194
    %6351 = vmatpush.msra.mxu0 %v6182
    %6352 = vmatpush.msra.mxu0 %v6170
    %6353 = vmatpush.msra.mxu0 %v6158
    %6354 = vmatpush.msra.mxu0 %v6146
    %6355 = vmatpush.msra.mxu0 %v6134
    %6356 = vmatpush.msra.mxu0 %v6122
    %6357 = vmatpush.msra.mxu0 %v6110
    %6358 = vmatmul.f32.gmra.mxu0 %v6200
    %v6359 = vpop.f32.mrf.mxu0
    %v6360 = vadd.f32 0.0, %v6359
    %6361 = vdwg.mxu0
    %6362 = vmatpush.msra.mxu0 0.0
    %6363 = vmatpush.msra.mxu0 0.0
    %6364 = vmatpush.msra.mxu0 0.0
    %6365 = vmatpush.msra.mxu0 0.0
    %6366 = vmatpush.msra.mxu0 0.0
    %6367 = vmatpush.msra.mxu0 0.0
    %6368 = vmatpush.msra.mxu0 0.0
    %6369 = vmatpush.msra.mxu0 0.0
    %6370 = vmatpush.msra.mxu0 %v6195
    %6371 = vmatpush.msra.mxu0 %v6183
    %6372 = vmatpush.msra.mxu0 %v6171
    %6373 = vmatpush.msra.mxu0 %v6159
    %6374 = vmatpush.msra.mxu0 %v6147
    %6375 = vmatpush.msra.mxu0 %v6135
    %6376 = vmatpush.msra.mxu0 %v6123
    %6377 = vmatpush.msra.mxu0 %v6111
    %6378 = vmatmul.f32.gmra.mxu0 %v6200
    %v6379 = vpop.f32.mrf.mxu0
    %v6380 = vadd.f32 0.0, %v6379
    %6381 = vdwg.mxu0
    %6382 = vmatpush.msra.mxu0 0.0
    %6383 = vmatpush.msra.mxu0 0.0
    %6384 = vmatpush.msra.mxu0 0.0
    %6385 = vmatpush.msra.mxu0 0.0
    %6386 = vmatpush.msra.mxu0 0.0
    %6387 = vmatpush.msra.mxu0 0.0
    %6388 = vmatpush.msra.mxu0 0.0
    %6389 = vmatpush.msra.mxu0 0.0
    %6390 = vmatpush.msra.mxu0 %v6196
    %6391 = vmatpush.msra.mxu0 %v6184
    %6392 = vmatpush.msra.mxu0 %v6172
    %6393 = vmatpush.msra.mxu0 %v6160
    %6394 = vmatpush.msra.mxu0 %v6148
    %6395 = vmatpush.msra.mxu0 %v6136
    %6396 = vmatpush.msra.mxu0 %v6124
    %6397 = vmatpush.msra.mxu0 %v6112
    %6398 = vmatmul.f32.gmra.mxu0 %v6200
    %v6399 = vpop.f32.mrf.mxu0
    %v6400 = vadd.f32 0.0, %v6399
    %6401 = vdwg.mxu0
    %6402 = vmatpush.msra.mxu0 0.0
    %6403 = vmatpush.msra.mxu0 0.0
    %6404 = vmatpush.msra.mxu0 0.0
    %6405 = vmatpush.msra.mxu0 0.0
    %6406 = vmatpush.msra.mxu0 0.0
    %6407 = vmatpush.msra.mxu0 0.0
    %6408 = vmatpush.msra.mxu0 0.0
    %6409 = vmatpush.msra.mxu0 0.0
    %6410 = vmatpush.msra.mxu0 %v6197
    %6411 = vmatpush.msra.mxu0 %v6185
    %6412 = vmatpush.msra.mxu0 %v6173
    %6413 = vmatpush.msra.mxu0 %v6161
    %6414 = vmatpush.msra.mxu0 %v6149
    %6415 = vmatpush.msra.mxu0 %v6137
    %6416 = vmatpush.msra.mxu0 %v6125
    %6417 = vmatpush.msra.mxu0 %v6113
    %6418 = vmatmul.f32.gmra.mxu0 %v6200
    %v6419 = vpop.f32.mrf.mxu0
    %v6420 = vadd.f32 0.0, %v6419
    %6421 = vdwg.mxu0
    %6422 = vmatpush.msra.mxu0 0.0
    %6423 = vmatpush.msra.mxu0 0.0
    %6424 = vmatpush.msra.mxu0 0.0
    %6425 = vmatpush.msra.mxu0 0.0
    %6426 = vmatpush.msra.mxu0 0.0
    %6427 = vmatpush.msra.mxu0 0.0
    %6428 = vmatpush.msra.mxu0 0.0
    %6429 = vmatpush.msra.mxu0 0.0
    %6430 = vmatpush.msra.mxu0 %v6198
    %6431 = vmatpush.msra.mxu0 %v6186
    %6432 = vmatpush.msra.mxu0 %v6174
    %6433 = vmatpush.msra.mxu0 %v6162
    %6434 = vmatpush.msra.mxu0 %v6150
    %6435 = vmatpush.msra.mxu0 %v6138
    %6436 = vmatpush.msra.mxu0 %v6126
    %6437 = vmatpush.msra.mxu0 %v6114
    %6438 = vmatmul.f32.gmra.mxu0 %v6200
    %v6439 = vpop.f32.mrf.mxu0
    %v6440 = vadd.f32 0.0, %v6439
    %6441 = vdwg.mxu0
    %v6446 = vrot.slane %v6380, 1
    %v6447 = vrot.slane %v6400, 1
    %v6448 = vrot.slane %v6420, 1
    %v6449 = vrot.slane %v6440, 1
    %v6454 = vadd.f32 %v6300, %v6446
    %v6455 = vadd.f32 %v6320, %v6447
    %v6456 = vadd.f32 %v6340, %v6448
    %v6457 = vadd.f32 %v6360, %v6449
    %v6458 = vadd.f32 %v6454, %v3980
    %v6459 = vadd.f32 %v6455, %v3981
    %v6460 = vadd.f32 %v6456, %v3982
    %v6461 = vadd.f32 %v6457, %v3983
    %v6462 = vxor.u32 %v6458, 2147483648
    %v6463 = vmul.f32 %v6462, 1.442695
    %v6464 = vpow.pop %v6463
    %v6465 = vadd.f32 %v6464, 1.0
    %v6466 = vrcp.pop %v6465
    %v6467 = vmul.f32 %v6465, %v6466
    %v6468 = vsub.f32 1.0, %v6467
    %v6469 = vmul.f32 %v6466, %v6468
    %v6470 = vadd.f32 %v6466, %v6469
    %vm6471 = vweird.f32 %v6465
    %vm6472 = vweird.f32 %v6466
    %vm6473 = vmor %vm6471, %vm6472
    %v6474 = vsel %vm6473, %v6466, %v6470
    %v6475 = vand.u32 2147483647, %v6465
    %vm6476 = vcmp.eq.f32.partialorder %v6475, 8.507059e+37
    %v6477 = vand.u32 %v6465, 2147483648
    %v6478 = vor.u32 1.1754944e-38, %v6477
    %v6479 = vsel %vm6476, %v6478, %v6474
    %v6480 = vmul.f32 1.0, %v6479
    %v6481 = vxor.u32 %v6459, 2147483648
    %v6482 = vmul.f32 %v6481, 1.442695
    %v6483 = vpow.pop %v6482
    %v6484 = vadd.f32 %v6483, 1.0
    %v6485 = vrcp.pop %v6484
    %v6486 = vmul.f32 %v6484, %v6485
    %v6487 = vsub.f32 1.0, %v6486
    %v6488 = vmul.f32 %v6485, %v6487
    %v6489 = vadd.f32 %v6485, %v6488
    %vm6490 = vweird.f32 %v6484
    %vm6491 = vweird.f32 %v6485
    %vm6492 = vmor %vm6490, %vm6491
    %v6493 = vsel %vm6492, %v6485, %v6489
    %v6494 = vand.u32 2147483647, %v6484
    %vm6495 = vcmp.eq.f32.partialorder %v6494, 8.507059e+37
    %v6496 = vand.u32 %v6484, 2147483648
    %v6497 = vor.u32 1.1754944e-38, %v6496
    %v6498 = vsel %vm6495, %v6497, %v6493
    %v6499 = vmul.f32 1.0, %v6498
    %v6500 = vtanh.pop %v6460
    %v6501 = vxor.u32 %v6461, 2147483648
    %v6502 = vmul.f32 %v6501, 1.442695
    %v6503 = vpow.pop %v6502
    %v6504 = vadd.f32 %v6503, 1.0
    %v6505 = vrcp.pop %v6504
    %v6506 = vmul.f32 %v6504, %v6505
    %v6507 = vsub.f32 1.0, %v6506
    %v6508 = vmul.f32 %v6505, %v6507
    %v6509 = vadd.f32 %v6505, %v6508
    %vm6510 = vweird.f32 %v6504
    %vm6511 = vweird.f32 %v6505
    %vm6512 = vmor %vm6510, %vm6511
    %v6513 = vsel %vm6512, %v6505, %v6509
    %v6514 = vand.u32 2147483647, %v6504
    %vm6515 = vcmp.eq.f32.partialorder %v6514, 8.507059e+37
    %v6516 = vand.u32 %v6504, 2147483648
    %v6517 = vor.u32 1.1754944e-38, %v6516
    %v6518 = vsel %vm6515, %v6517, %v6513
    %v6519 = vmul.f32 1.0, %v6518
    %v6520 = vmul.f32 %v6499, %v6028
    %v6521 = vmul.f32 %v6480, %v6500
    %v6522 = vadd.f32 %v6520, %v6521
    %v6523 = vtanh.pop %v6522
    %v6524 = vmul.f32 %v6519, %v6523
    %6525 = vst [vmem:[#allocation3 + $0x5] sm:$0x1] %v6524
    %v6526 = vadd.f32 %v3494, %v6220
    %v6527 = vadd.f32 %v3514, %v6240
    %v6528 = vadd.f32 %v3534, %v6260
    %v6529 = vadd.f32 %v3554, %v6280
    %v6530 = vxor.u32 %v6526, 2147483648
    %v6531 = vmul.f32 %v6530, 1.442695
    %v6532 = vpow.pop %v6531
    %v6533 = vadd.f32 %v6532, 1.0
    %v6534 = vrcp.pop %v6533
    %v6535 = vmul.f32 %v6533, %v6534
    %v6536 = vsub.f32 1.0, %v6535
    %v6537 = vmul.f32 %v6534, %v6536
    %v6538 = vadd.f32 %v6534, %v6537
    %vm6539 = vweird.f32 %v6533
    %vm6540 = vweird.f32 %v6534
    %vm6541 = vmor %vm6539, %vm6540
    %v6542 = vsel %vm6541, %v6534, %v6538
    %v6543 = vand.u32 2147483647, %v6533
    %vm6544 = vcmp.eq.f32.partialorder %v6543, 8.507059e+37
    %v6545 = vand.u32 %v6533, 2147483648
    %v6546 = vor.u32 1.1754944e-38, %v6545
    %v6547 = vsel %vm6544, %v6546, %v6542
    %v6548 = vmul.f32 1.0, %v6547
    %v6549 = vxor.u32 %v6527, 2147483648
    %v6550 = vmul.f32 %v6549, 1.442695
    %v6551 = vpow.pop %v6550
    %v6552 = vadd.f32 %v6551, 1.0
    %v6553 = vrcp.pop %v6552
    %v6554 = vmul.f32 %v6552, %v6553
    %v6555 = vsub.f32 1.0, %v6554
    %v6556 = vmul.f32 %v6553, %v6555
    %v6557 = vadd.f32 %v6553, %v6556
    %vm6558 = vweird.f32 %v6552
    %vm6559 = vweird.f32 %v6553
    %vm6560 = vmor %vm6558, %vm6559
    %v6561 = vsel %vm6560, %v6553, %v6557
    %v6562 = vand.u32 2147483647, %v6552
    %vm6563 = vcmp.eq.f32.partialorder %v6562, 8.507059e+37
    %v6564 = vand.u32 %v6552, 2147483648
    %v6565 = vor.u32 1.1754944e-38, %v6564
    %v6566 = vsel %vm6563, %v6565, %v6561
    %v6567 = vmul.f32 1.0, %v6566
    %v6568 = vtanh.pop %v6528
    %v6569 = vxor.u32 %v6529, 2147483648
    %v6570 = vmul.f32 %v6569, 1.442695
    %v6571 = vpow.pop %v6570
    %v6572 = vadd.f32 %v6571, 1.0
    %v6573 = vrcp.pop %v6572
    %v6574 = vmul.f32 %v6572, %v6573
    %v6575 = vsub.f32 1.0, %v6574
    %v6576 = vmul.f32 %v6573, %v6575
    %v6577 = vadd.f32 %v6573, %v6576
    %vm6578 = vweird.f32 %v6572
    %vm6579 = vweird.f32 %v6573
    %vm6580 = vmor %vm6578, %vm6579
    %v6581 = vsel %vm6580, %v6573, %v6577
    %v6582 = vand.u32 2147483647, %v6572
    %vm6583 = vcmp.eq.f32.partialorder %v6582, 8.507059e+37
    %v6584 = vand.u32 %v6572, 2147483648
    %v6585 = vor.u32 1.1754944e-38, %v6584
    %v6586 = vsel %vm6583, %v6585, %v6581
    %v6587 = vmul.f32 1.0, %v6586
    %v6588 = vmul.f32 %v6567, %v6096
    %v6589 = vmul.f32 %v6548, %v6568
    %v6590 = vadd.f32 %v6588, %v6589
    %v6591 = vtanh.pop %v6590
    %v6592 = vmul.f32 %v6587, %v6591
    %v6594 = vrot.slane %v6524, 7
    %v6596 = vsel %vm174, %v6592, %v6594
    %v6597 = vld [vmem:[#allocation5] sm:$0xff]
    %v6598 = vld [vmem:[#allocation5 + $0x8] sm:$0xff]
    %v6599 = vld [vmem:[#allocation5 + $0x10] sm:$0xff]
    %v6600 = vld [vmem:[#allocation5 + $0x18] sm:$0xff]
    %v6601 = vld [vmem:[#allocation5 + $0x20] sm:$0xff]
    %v6602 = vld [vmem:[#allocation5 + $0x28] sm:$0xff]
    %v6603 = vld [vmem:[#allocation5 + $0x30] sm:$0xff]
    %v6604 = vld [vmem:[#allocation5 + $0x38] sm:$0xff]
    %v6605 = vld [vmem:[#allocation5 + $0x40] sm:$0xff]
    %v6606 = vld [vmem:[#allocation5 + $0x48] sm:$0xff]
    %v6607 = vld [vmem:[#allocation5 + $0x50] sm:$0xff]
    %v6608 = vld [vmem:[#allocation5 + $0x58] sm:$0xff]
    %v6609 = vld [vmem:[#allocation5 + $0x60] sm:$0xff]
    %v6610 = vld [vmem:[#allocation5 + $0x68] sm:$0xff]
    %v6611 = vld [vmem:[#allocation5 + $0x70] sm:$0xff]
    %v6612 = vld [vmem:[#allocation5 + $0x78] sm:$0xff]
    %v6613 = vld [vmem:[#allocation5 + $0x80] sm:$0xff]
    %v6614 = vld [vmem:[#allocation5 + $0x88] sm:$0xff]
    %v6615 = vld [vmem:[#allocation5 + $0x90] sm:$0xff]
    %v6616 = vld [vmem:[#allocation5 + $0x98] sm:$0xff]
    %v6617 = vld [vmem:[#allocation5 + $0xa0] sm:$0xff]
    %v6618 = vld [vmem:[#allocation5 + $0xa8] sm:$0xff]
    %v6619 = vld [vmem:[#allocation5 + $0xb0] sm:$0xff]
    %v6620 = vld [vmem:[#allocation5 + $0xb8] sm:$0xff]
    %v6621 = vld [vmem:[#allocation5 + $0xc0] sm:$0xff]
    %v6622 = vld [vmem:[#allocation5 + $0xc8] sm:$0xff]
    %v6623 = vld [vmem:[#allocation5 + $0xd0] sm:$0xff]
    %v6624 = vld [vmem:[#allocation5 + $0xd8] sm:$0xff]
    %v6625 = vld [vmem:[#allocation5 + $0xe0] sm:$0xff]
    %v6626 = vld [vmem:[#allocation5 + $0xe8] sm:$0xff]
    %v6627 = vld [vmem:[#allocation5 + $0xf0] sm:$0xff]
    %v6628 = vld [vmem:[#allocation5 + $0xf8] sm:$0xff]
    %v6629 = vld [vmem:[#allocation5 + $0x100] sm:$0xff]
    %v6630 = vld [vmem:[#allocation5 + $0x108] sm:$0xff]
    %v6631 = vld [vmem:[#allocation5 + $0x110] sm:$0xff]
    %v6632 = vld [vmem:[#allocation5 + $0x118] sm:$0xff]
    %v6633 = vld [vmem:[#allocation5 + $0x120] sm:$0xff]
    %v6634 = vld [vmem:[#allocation5 + $0x128] sm:$0xff]
    %v6635 = vld [vmem:[#allocation5 + $0x130] sm:$0xff]
    %v6636 = vld [vmem:[#allocation5 + $0x138] sm:$0xff]
    %v6637 = vld [vmem:[#allocation5 + $0x140] sm:$0xff]
    %v6638 = vld [vmem:[#allocation5 + $0x148] sm:$0xff]
    %v6639 = vld [vmem:[#allocation5 + $0x150] sm:$0xff]
    %v6640 = vld [vmem:[#allocation5 + $0x158] sm:$0xff]
    %v6641 = vld [vmem:[#allocation5 + $0x160] sm:$0xff]
    %v6642 = vld [vmem:[#allocation5 + $0x168] sm:$0xff]
    %v6643 = vld [vmem:[#allocation5 + $0x170] sm:$0xff]
    %v6644 = vld [vmem:[#allocation5 + $0x178] sm:$0xff]
    %v6645 = vld [vmem:[#allocation5 + $0x180] sm:$0xff]
    %v6646 = vld [vmem:[#allocation5 + $0x188] sm:$0xff]
    %v6647 = vld [vmem:[#allocation5 + $0x190] sm:$0xff]
    %v6648 = vld [vmem:[#allocation5 + $0x198] sm:$0xff]
    %v6649 = vld [vmem:[#allocation5 + $0x1a0] sm:$0xff]
    %v6650 = vld [vmem:[#allocation5 + $0x1a8] sm:$0xff]
    %v6651 = vld [vmem:[#allocation5 + $0x1b0] sm:$0xff]
    %v6652 = vld [vmem:[#allocation5 + $0x1b8] sm:$0xff]
    %v6653 = vld [vmem:[#allocation5 + $0x1c0] sm:$0xff]
    %v6654 = vld [vmem:[#allocation5 + $0x1c8] sm:$0xff]
    %v6655 = vld [vmem:[#allocation5 + $0x1d0] sm:$0xff]
    %v6656 = vld [vmem:[#allocation5 + $0x1d8] sm:$0xff]
    %v6657 = vld [vmem:[#allocation5 + $0x1e0] sm:$0xff]
    %v6658 = vld [vmem:[#allocation5 + $0x1e8] sm:$0xff]
    %v6659 = vld [vmem:[#allocation5 + $0x1f0] sm:$0xff]
    %v6660 = vld [vmem:[#allocation5 + $0x1f8] sm:$0xff]
    %v6661 = vld [vmem:[#allocation5 + $0x200] sm:$0xff]
    %v6662 = vld [vmem:[#allocation5 + $0x208] sm:$0xff]
    %v6663 = vld [vmem:[#allocation5 + $0x210] sm:$0xff]
    %v6664 = vld [vmem:[#allocation5 + $0x218] sm:$0xff]
    %v6665 = vld [vmem:[#allocation5 + $0x220] sm:$0xff]
    %v6666 = vld [vmem:[#allocation5 + $0x228] sm:$0xff]
    %v6667 = vld [vmem:[#allocation5 + $0x230] sm:$0xff]
    %v6668 = vld [vmem:[#allocation5 + $0x238] sm:$0xff]
    %v6669 = vld [vmem:[#allocation5 + $0x240] sm:$0xff]
    %v6670 = vld [vmem:[#allocation5 + $0x248] sm:$0xff]
    %v6671 = vld [vmem:[#allocation5 + $0x250] sm:$0xff]
    %v6672 = vld [vmem:[#allocation5 + $0x258] sm:$0xff]
    %v6673 = vld [vmem:[#allocation5 + $0x260] sm:$0xff]
    %v6674 = vld [vmem:[#allocation5 + $0x268] sm:$0xff]
    %v6675 = vld [vmem:[#allocation5 + $0x270] sm:$0xff]
    %v6676 = vld [vmem:[#allocation5 + $0x278] sm:$0xff]
    %v6677 = vld [vmem:[#allocation5 + $0x280] sm:$0xff]
    %v6678 = vld [vmem:[#allocation5 + $0x288] sm:$0xff]
    %v6679 = vld [vmem:[#allocation5 + $0x290] sm:$0xff]
    %v6680 = vld [vmem:[#allocation5 + $0x298] sm:$0xff]
    %v6681 = vld [vmem:[#allocation5 + $0x2a0] sm:$0xff]
    %v6682 = vld [vmem:[#allocation5 + $0x2a8] sm:$0xff]
    %v6683 = vld [vmem:[#allocation5 + $0x2b0] sm:$0xff]
    %v6684 = vld [vmem:[#allocation5 + $0x2b8] sm:$0xff]
    %v6685 = vld [vmem:[#allocation5 + $0x2c0] sm:$0xff]
    %v6686 = vld [vmem:[#allocation5 + $0x2c8] sm:$0xff]
    %v6687 = vld [vmem:[#allocation5 + $0x2d0] sm:$0xff]
    %v6688 = vld [vmem:[#allocation5 + $0x2d8] sm:$0xff]
    %v6689 = vld [vmem:[#allocation5 + $0x2e0] sm:$0xff]
    %v6690 = vld [vmem:[#allocation5 + $0x2e8] sm:$0xff]
    %v6691 = vld [vmem:[#allocation5 + $0x2f0] sm:$0xff]
    %v6692 = vld [vmem:[#allocation5 + $0x2f8] sm:$0xff]
    %v6694 = vsel %vm272, %v6596, 0
    %6696 = vmatpush.msra.mxu0 0.0
    %6697 = vmatpush.msra.mxu0 0.0
    %6698 = vmatpush.msra.mxu0 0.0
    %6699 = vmatpush.msra.mxu0 0.0
    %6700 = vmatpush.msra.mxu0 0.0
    %6701 = vmatpush.msra.mxu0 0.0
    %6702 = vmatpush.msra.mxu0 0.0
    %6703 = vmatpush.msra.mxu0 0.0
    %6704 = vmatpush.msra.mxu0 %v6681
    %6705 = vmatpush.msra.mxu0 %v6669
    %6706 = vmatpush.msra.mxu0 %v6657
    %6707 = vmatpush.msra.mxu0 %v6645
    %6708 = vmatpush.msra.mxu0 %v6633
    %6709 = vmatpush.msra.mxu0 %v6621
    %6710 = vmatpush.msra.mxu0 %v6609
    %6711 = vmatpush.msra.mxu0 %v6597
    %6712 = vmatmul.f32.gmra.mxu0 %v6694
    %v6713 = vpop.f32.mrf.mxu0
    %v6714 = vadd.f32 0.0, %v6713
    %6715 = vdwg.mxu0
    %6716 = vmatpush.msra.mxu0 0.0
    %6717 = vmatpush.msra.mxu0 0.0
    %6718 = vmatpush.msra.mxu0 0.0
    %6719 = vmatpush.msra.mxu0 0.0
    %6720 = vmatpush.msra.mxu0 0.0
    %6721 = vmatpush.msra.mxu0 0.0
    %6722 = vmatpush.msra.mxu0 0.0
    %6723 = vmatpush.msra.mxu0 0.0
    %6724 = vmatpush.msra.mxu0 %v6682
    %6725 = vmatpush.msra.mxu0 %v6670
    %6726 = vmatpush.msra.mxu0 %v6658
    %6727 = vmatpush.msra.mxu0 %v6646
    %6728 = vmatpush.msra.mxu0 %v6634
    %6729 = vmatpush.msra.mxu0 %v6622
    %6730 = vmatpush.msra.mxu0 %v6610
    %6731 = vmatpush.msra.mxu0 %v6598
    %6732 = vmatmul.f32.gmra.mxu0 %v6694
    %v6733 = vpop.f32.mrf.mxu0
    %v6734 = vadd.f32 0.0, %v6733
    %6735 = vdwg.mxu0
    %6736 = vmatpush.msra.mxu0 0.0
    %6737 = vmatpush.msra.mxu0 0.0
    %6738 = vmatpush.msra.mxu0 0.0
    %6739 = vmatpush.msra.mxu0 0.0
    %6740 = vmatpush.msra.mxu0 0.0
    %6741 = vmatpush.msra.mxu0 0.0
    %6742 = vmatpush.msra.mxu0 0.0
    %6743 = vmatpush.msra.mxu0 0.0
    %6744 = vmatpush.msra.mxu0 %v6683
    %6745 = vmatpush.msra.mxu0 %v6671
    %6746 = vmatpush.msra.mxu0 %v6659
    %6747 = vmatpush.msra.mxu0 %v6647
    %6748 = vmatpush.msra.mxu0 %v6635
    %6749 = vmatpush.msra.mxu0 %v6623
    %6750 = vmatpush.msra.mxu0 %v6611
    %6751 = vmatpush.msra.mxu0 %v6599
    %6752 = vmatmul.f32.gmra.mxu0 %v6694
    %v6753 = vpop.f32.mrf.mxu0
    %v6754 = vadd.f32 0.0, %v6753
    %6755 = vdwg.mxu0
    %6756 = vmatpush.msra.mxu0 0.0
    %6757 = vmatpush.msra.mxu0 0.0
    %6758 = vmatpush.msra.mxu0 0.0
    %6759 = vmatpush.msra.mxu0 0.0
    %6760 = vmatpush.msra.mxu0 0.0
    %6761 = vmatpush.msra.mxu0 0.0
    %6762 = vmatpush.msra.mxu0 0.0
    %6763 = vmatpush.msra.mxu0 0.0
    %6764 = vmatpush.msra.mxu0 %v6684
    %6765 = vmatpush.msra.mxu0 %v6672
    %6766 = vmatpush.msra.mxu0 %v6660
    %6767 = vmatpush.msra.mxu0 %v6648
    %6768 = vmatpush.msra.mxu0 %v6636
    %6769 = vmatpush.msra.mxu0 %v6624
    %6770 = vmatpush.msra.mxu0 %v6612
    %6771 = vmatpush.msra.mxu0 %v6600
    %6772 = vmatmul.f32.gmra.mxu0 %v6694
    %v6773 = vpop.f32.mrf.mxu0
    %v6774 = vadd.f32 0.0, %v6773
    %6775 = vdwg.mxu0
    %6776 = vmatpush.msra.mxu0 0.0
    %6777 = vmatpush.msra.mxu0 0.0
    %6778 = vmatpush.msra.mxu0 0.0
    %6779 = vmatpush.msra.mxu0 0.0
    %6780 = vmatpush.msra.mxu0 0.0
    %6781 = vmatpush.msra.mxu0 0.0
    %6782 = vmatpush.msra.mxu0 0.0
    %6783 = vmatpush.msra.mxu0 0.0
    %6784 = vmatpush.msra.mxu0 %v6685
    %6785 = vmatpush.msra.mxu0 %v6673
    %6786 = vmatpush.msra.mxu0 %v6661
    %6787 = vmatpush.msra.mxu0 %v6649
    %6788 = vmatpush.msra.mxu0 %v6637
    %6789 = vmatpush.msra.mxu0 %v6625
    %6790 = vmatpush.msra.mxu0 %v6613
    %6791 = vmatpush.msra.mxu0 %v6601
    %6792 = vmatmul.f32.gmra.mxu0 %v6694
    %v6793 = vpop.f32.mrf.mxu0
    %v6794 = vadd.f32 0.0, %v6793
    %6795 = vdwg.mxu0
    %6796 = vmatpush.msra.mxu0 0.0
    %6797 = vmatpush.msra.mxu0 0.0
    %6798 = vmatpush.msra.mxu0 0.0
    %6799 = vmatpush.msra.mxu0 0.0
    %6800 = vmatpush.msra.mxu0 0.0
    %6801 = vmatpush.msra.mxu0 0.0
    %6802 = vmatpush.msra.mxu0 0.0
    %6803 = vmatpush.msra.mxu0 0.0
    %6804 = vmatpush.msra.mxu0 %v6686
    %6805 = vmatpush.msra.mxu0 %v6674
    %6806 = vmatpush.msra.mxu0 %v6662
    %6807 = vmatpush.msra.mxu0 %v6650
    %6808 = vmatpush.msra.mxu0 %v6638
    %6809 = vmatpush.msra.mxu0 %v6626
    %6810 = vmatpush.msra.mxu0 %v6614
    %6811 = vmatpush.msra.mxu0 %v6602
    %6812 = vmatmul.f32.gmra.mxu0 %v6694
    %v6813 = vpop.f32.mrf.mxu0
    %v6814 = vadd.f32 0.0, %v6813
    %6815 = vdwg.mxu0
    %6816 = vmatpush.msra.mxu0 0.0
    %6817 = vmatpush.msra.mxu0 0.0
    %6818 = vmatpush.msra.mxu0 0.0
    %6819 = vmatpush.msra.mxu0 0.0
    %6820 = vmatpush.msra.mxu0 0.0
    %6821 = vmatpush.msra.mxu0 0.0
    %6822 = vmatpush.msra.mxu0 0.0
    %6823 = vmatpush.msra.mxu0 0.0
    %6824 = vmatpush.msra.mxu0 %v6687
    %6825 = vmatpush.msra.mxu0 %v6675
    %6826 = vmatpush.msra.mxu0 %v6663
    %6827 = vmatpush.msra.mxu0 %v6651
    %6828 = vmatpush.msra.mxu0 %v6639
    %6829 = vmatpush.msra.mxu0 %v6627
    %6830 = vmatpush.msra.mxu0 %v6615
    %6831 = vmatpush.msra.mxu0 %v6603
    %6832 = vmatmul.f32.gmra.mxu0 %v6694
    %v6833 = vpop.f32.mrf.mxu0
    %v6834 = vadd.f32 0.0, %v6833
    %6835 = vdwg.mxu0
    %6836 = vmatpush.msra.mxu0 0.0
    %6837 = vmatpush.msra.mxu0 0.0
    %6838 = vmatpush.msra.mxu0 0.0
    %6839 = vmatpush.msra.mxu0 0.0
    %6840 = vmatpush.msra.mxu0 0.0
    %6841 = vmatpush.msra.mxu0 0.0
    %6842 = vmatpush.msra.mxu0 0.0
    %6843 = vmatpush.msra.mxu0 0.0
    %6844 = vmatpush.msra.mxu0 %v6688
    %6845 = vmatpush.msra.mxu0 %v6676
    %6846 = vmatpush.msra.mxu0 %v6664
    %6847 = vmatpush.msra.mxu0 %v6652
    %6848 = vmatpush.msra.mxu0 %v6640
    %6849 = vmatpush.msra.mxu0 %v6628
    %6850 = vmatpush.msra.mxu0 %v6616
    %6851 = vmatpush.msra.mxu0 %v6604
    %6852 = vmatmul.f32.gmra.mxu0 %v6694
    %v6853 = vpop.f32.mrf.mxu0
    %v6854 = vadd.f32 0.0, %v6853
    %6855 = vdwg.mxu0
    %6856 = vmatpush.msra.mxu0 0.0
    %6857 = vmatpush.msra.mxu0 0.0
    %6858 = vmatpush.msra.mxu0 0.0
    %6859 = vmatpush.msra.mxu0 0.0
    %6860 = vmatpush.msra.mxu0 0.0
    %6861 = vmatpush.msra.mxu0 0.0
    %6862 = vmatpush.msra.mxu0 0.0
    %6863 = vmatpush.msra.mxu0 0.0
    %6864 = vmatpush.msra.mxu0 %v6689
    %6865 = vmatpush.msra.mxu0 %v6677
    %6866 = vmatpush.msra.mxu0 %v6665
    %6867 = vmatpush.msra.mxu0 %v6653
    %6868 = vmatpush.msra.mxu0 %v6641
    %6869 = vmatpush.msra.mxu0 %v6629
    %6870 = vmatpush.msra.mxu0 %v6617
    %6871 = vmatpush.msra.mxu0 %v6605
    %6872 = vmatmul.f32.gmra.mxu0 %v6694
    %v6873 = vpop.f32.mrf.mxu0
    %v6874 = vadd.f32 0.0, %v6873
    %6875 = vdwg.mxu0
    %6876 = vmatpush.msra.mxu0 0.0
    %6877 = vmatpush.msra.mxu0 0.0
    %6878 = vmatpush.msra.mxu0 0.0
    %6879 = vmatpush.msra.mxu0 0.0
    %6880 = vmatpush.msra.mxu0 0.0
    %6881 = vmatpush.msra.mxu0 0.0
    %6882 = vmatpush.msra.mxu0 0.0
    %6883 = vmatpush.msra.mxu0 0.0
    %6884 = vmatpush.msra.mxu0 %v6690
    %6885 = vmatpush.msra.mxu0 %v6678
    %6886 = vmatpush.msra.mxu0 %v6666
    %6887 = vmatpush.msra.mxu0 %v6654
    %6888 = vmatpush.msra.mxu0 %v6642
    %6889 = vmatpush.msra.mxu0 %v6630
    %6890 = vmatpush.msra.mxu0 %v6618
    %6891 = vmatpush.msra.mxu0 %v6606
    %6892 = vmatmul.f32.gmra.mxu0 %v6694
    %v6893 = vpop.f32.mrf.mxu0
    %v6894 = vadd.f32 0.0, %v6893
    %6895 = vdwg.mxu0
    %6896 = vmatpush.msra.mxu0 0.0
    %6897 = vmatpush.msra.mxu0 0.0
    %6898 = vmatpush.msra.mxu0 0.0
    %6899 = vmatpush.msra.mxu0 0.0
    %6900 = vmatpush.msra.mxu0 0.0
    %6901 = vmatpush.msra.mxu0 0.0
    %6902 = vmatpush.msra.mxu0 0.0
    %6903 = vmatpush.msra.mxu0 0.0
    %6904 = vmatpush.msra.mxu0 %v6691
    %6905 = vmatpush.msra.mxu0 %v6679
    %6906 = vmatpush.msra.mxu0 %v6667
    %6907 = vmatpush.msra.mxu0 %v6655
    %6908 = vmatpush.msra.mxu0 %v6643
    %6909 = vmatpush.msra.mxu0 %v6631
    %6910 = vmatpush.msra.mxu0 %v6619
    %6911 = vmatpush.msra.mxu0 %v6607
    %6912 = vmatmul.f32.gmra.mxu0 %v6694
    %v6913 = vpop.f32.mrf.mxu0
    %v6914 = vadd.f32 0.0, %v6913
    %6915 = vdwg.mxu0
    %6916 = vmatpush.msra.mxu0 0.0
    %6917 = vmatpush.msra.mxu0 0.0
    %6918 = vmatpush.msra.mxu0 0.0
    %6919 = vmatpush.msra.mxu0 0.0
    %6920 = vmatpush.msra.mxu0 0.0
    %6921 = vmatpush.msra.mxu0 0.0
    %6922 = vmatpush.msra.mxu0 0.0
    %6923 = vmatpush.msra.mxu0 0.0
    %6924 = vmatpush.msra.mxu0 %v6692
    %6925 = vmatpush.msra.mxu0 %v6680
    %6926 = vmatpush.msra.mxu0 %v6668
    %6927 = vmatpush.msra.mxu0 %v6656
    %6928 = vmatpush.msra.mxu0 %v6644
    %6929 = vmatpush.msra.mxu0 %v6632
    %6930 = vmatpush.msra.mxu0 %v6620
    %6931 = vmatpush.msra.mxu0 %v6608
    %6932 = vmatmul.f32.gmra.mxu0 %v6694
    %v6933 = vpop.f32.mrf.mxu0
    %v6934 = vadd.f32 0.0, %v6933
    %6935 = vdwg.mxu0
    %v6940 = vrot.slane %v6874, 1
    %v6941 = vrot.slane %v6894, 1
    %v6942 = vrot.slane %v6914, 1
    %v6943 = vrot.slane %v6934, 1
    %v6948 = vadd.f32 %v6794, %v6940
    %v6949 = vadd.f32 %v6814, %v6941
    %v6950 = vadd.f32 %v6834, %v6942
    %v6951 = vadd.f32 %v6854, %v6943
    %v6952 = vadd.f32 %v6948, %v3980
    %v6953 = vadd.f32 %v6949, %v3981
    %v6954 = vadd.f32 %v6950, %v3982
    %v6955 = vadd.f32 %v6951, %v3983
    %v6956 = vxor.u32 %v6952, 2147483648
    %v6957 = vmul.f32 %v6956, 1.442695
    %v6958 = vpow.pop %v6957
    %v6959 = vadd.f32 %v6958, 1.0
    %v6960 = vrcp.pop %v6959
    %v6961 = vmul.f32 %v6959, %v6960
    %v6962 = vsub.f32 1.0, %v6961
    %v6963 = vmul.f32 %v6960, %v6962
    %v6964 = vadd.f32 %v6960, %v6963
    %vm6965 = vweird.f32 %v6959
    %vm6966 = vweird.f32 %v6960
    %vm6967 = vmor %vm6965, %vm6966
    %v6968 = vsel %vm6967, %v6960, %v6964
    %v6969 = vand.u32 2147483647, %v6959
    %vm6970 = vcmp.eq.f32.partialorder %v6969, 8.507059e+37
    %v6971 = vand.u32 %v6959, 2147483648
    %v6972 = vor.u32 1.1754944e-38, %v6971
    %v6973 = vsel %vm6970, %v6972, %v6968
    %v6974 = vmul.f32 1.0, %v6973
    %v6975 = vxor.u32 %v6953, 2147483648
    %v6976 = vmul.f32 %v6975, 1.442695
    %v6977 = vpow.pop %v6976
    %v6978 = vadd.f32 %v6977, 1.0
    %v6979 = vrcp.pop %v6978
    %v6980 = vmul.f32 %v6978, %v6979
    %v6981 = vsub.f32 1.0, %v6980
    %v6982 = vmul.f32 %v6979, %v6981
    %v6983 = vadd.f32 %v6979, %v6982
    %vm6984 = vweird.f32 %v6978
    %vm6985 = vweird.f32 %v6979
    %vm6986 = vmor %vm6984, %vm6985
    %v6987 = vsel %vm6986, %v6979, %v6983
    %v6988 = vand.u32 2147483647, %v6978
    %vm6989 = vcmp.eq.f32.partialorder %v6988, 8.507059e+37
    %v6990 = vand.u32 %v6978, 2147483648
    %v6991 = vor.u32 1.1754944e-38, %v6990
    %v6992 = vsel %vm6989, %v6991, %v6987
    %v6993 = vmul.f32 1.0, %v6992
    %v6994 = vtanh.pop %v6954
    %v6995 = vxor.u32 %v6955, 2147483648
    %v6996 = vmul.f32 %v6995, 1.442695
    %v6997 = vpow.pop %v6996
    %v6998 = vadd.f32 %v6997, 1.0
    %v6999 = vrcp.pop %v6998
    %v7000 = vmul.f32 %v6998, %v6999
    %v7001 = vsub.f32 1.0, %v7000
    %v7002 = vmul.f32 %v6999, %v7001
    %v7003 = vadd.f32 %v6999, %v7002
    %vm7004 = vweird.f32 %v6998
    %vm7005 = vweird.f32 %v6999
    %vm7006 = vmor %vm7004, %vm7005
    %v7007 = vsel %vm7006, %v6999, %v7003
    %v7008 = vand.u32 2147483647, %v6998
    %vm7009 = vcmp.eq.f32.partialorder %v7008, 8.507059e+37
    %v7010 = vand.u32 %v6998, 2147483648
    %v7011 = vor.u32 1.1754944e-38, %v7010
    %v7012 = vsel %vm7009, %v7011, %v7007
    %v7013 = vmul.f32 1.0, %v7012
    %v7014 = vmul.f32 %v6993, %v6522
    %v7015 = vmul.f32 %v6974, %v6994
    %v7016 = vadd.f32 %v7014, %v7015
    %v7017 = vtanh.pop %v7016
    %v7018 = vmul.f32 %v7013, %v7017
    %7019 = vst [vmem:[#allocation3 + $0x6] sm:$0x1] %v7018
    %v7020 = vadd.f32 %v3494, %v6714
    %v7021 = vadd.f32 %v3514, %v6734
    %v7022 = vadd.f32 %v3534, %v6754
    %v7023 = vadd.f32 %v3554, %v6774
    %v7024 = vxor.u32 %v7020, 2147483648
    %v7025 = vmul.f32 %v7024, 1.442695
    %v7026 = vpow.pop %v7025
    %v7027 = vadd.f32 %v7026, 1.0
    %v7028 = vrcp.pop %v7027
    %v7029 = vmul.f32 %v7027, %v7028
    %v7030 = vsub.f32 1.0, %v7029
    %v7031 = vmul.f32 %v7028, %v7030
    %v7032 = vadd.f32 %v7028, %v7031
    %vm7033 = vweird.f32 %v7027
    %vm7034 = vweird.f32 %v7028
    %vm7035 = vmor %vm7033, %vm7034
    %v7036 = vsel %vm7035, %v7028, %v7032
    %v7037 = vand.u32 2147483647, %v7027
    %vm7038 = vcmp.eq.f32.partialorder %v7037, 8.507059e+37
    %v7039 = vand.u32 %v7027, 2147483648
    %v7040 = vor.u32 1.1754944e-38, %v7039
    %v7041 = vsel %vm7038, %v7040, %v7036
    %v7042 = vmul.f32 1.0, %v7041
    %v7043 = vxor.u32 %v7021, 2147483648
    %v7044 = vmul.f32 %v7043, 1.442695
    %v7045 = vpow.pop %v7044
    %v7046 = vadd.f32 %v7045, 1.0
    %v7047 = vrcp.pop %v7046
    %v7048 = vmul.f32 %v7046, %v7047
    %v7049 = vsub.f32 1.0, %v7048
    %v7050 = vmul.f32 %v7047, %v7049
    %v7051 = vadd.f32 %v7047, %v7050
    %vm7052 = vweird.f32 %v7046
    %vm7053 = vweird.f32 %v7047
    %vm7054 = vmor %vm7052, %vm7053
    %v7055 = vsel %vm7054, %v7047, %v7051
    %v7056 = vand.u32 2147483647, %v7046
    %vm7057 = vcmp.eq.f32.partialorder %v7056, 8.507059e+37
    %v7058 = vand.u32 %v7046, 2147483648
    %v7059 = vor.u32 1.1754944e-38, %v7058
    %v7060 = vsel %vm7057, %v7059, %v7055
    %v7061 = vmul.f32 1.0, %v7060
    %v7062 = vtanh.pop %v7022
    %v7063 = vxor.u32 %v7023, 2147483648
    %v7064 = vmul.f32 %v7063, 1.442695
    %v7065 = vpow.pop %v7064
    %v7066 = vadd.f32 %v7065, 1.0
    %v7067 = vrcp.pop %v7066
    %v7068 = vmul.f32 %v7066, %v7067
    %v7069 = vsub.f32 1.0, %v7068
    %v7070 = vmul.f32 %v7067, %v7069
    %v7071 = vadd.f32 %v7067, %v7070
    %vm7072 = vweird.f32 %v7066
    %vm7073 = vweird.f32 %v7067
    %vm7074 = vmor %vm7072, %vm7073
    %v7075 = vsel %vm7074, %v7067, %v7071
    %v7076 = vand.u32 2147483647, %v7066
    %vm7077 = vcmp.eq.f32.partialorder %v7076, 8.507059e+37
    %v7078 = vand.u32 %v7066, 2147483648
    %v7079 = vor.u32 1.1754944e-38, %v7078
    %v7080 = vsel %vm7077, %v7079, %v7075
    %v7081 = vmul.f32 1.0, %v7080
    %v7082 = vmul.f32 %v7061, %v6590
    %v7083 = vmul.f32 %v7042, %v7062
    %v7084 = vadd.f32 %v7082, %v7083
    %v7085 = vtanh.pop %v7084
    %v7086 = vmul.f32 %v7081, %v7085
    %v7088 = vrot.slane %v7018, 7
    %v7090 = vsel %vm174, %v7086, %v7088
    %v7091 = vld [vmem:[#allocation5 + $0x20] sm:$0xff]
    %v7092 = vld [vmem:[#allocation5 + $0x28] sm:$0xff]
    %v7093 = vld [vmem:[#allocation5 + $0x30] sm:$0xff]
    %v7094 = vld [vmem:[#allocation5 + $0x38] sm:$0xff]
    %v7095 = vld [vmem:[#allocation5 + $0x40] sm:$0xff]
    %v7096 = vld [vmem:[#allocation5 + $0x48] sm:$0xff]
    %v7097 = vld [vmem:[#allocation5 + $0x50] sm:$0xff]
    %v7098 = vld [vmem:[#allocation5 + $0x58] sm:$0xff]
    %v7099 = vld [vmem:[#allocation5 + $0x80] sm:$0xff]
    %v7100 = vld [vmem:[#allocation5 + $0x88] sm:$0xff]
    %v7101 = vld [vmem:[#allocation5 + $0x90] sm:$0xff]
    %v7102 = vld [vmem:[#allocation5 + $0x98] sm:$0xff]
    %v7103 = vld [vmem:[#allocation5 + $0xa0] sm:$0xff]
    %v7104 = vld [vmem:[#allocation5 + $0xa8] sm:$0xff]
    %v7105 = vld [vmem:[#allocation5 + $0xb0] sm:$0xff]
    %v7106 = vld [vmem:[#allocation5 + $0xb8] sm:$0xff]
    %v7107 = vld [vmem:[#allocation5 + $0xe0] sm:$0xff]
    %v7108 = vld [vmem:[#allocation5 + $0xe8] sm:$0xff]
    %v7109 = vld [vmem:[#allocation5 + $0xf0] sm:$0xff]
    %v7110 = vld [vmem:[#allocation5 + $0xf8] sm:$0xff]
    %v7111 = vld [vmem:[#allocation5 + $0x100] sm:$0xff]
    %v7112 = vld [vmem:[#allocation5 + $0x108] sm:$0xff]
    %v7113 = vld [vmem:[#allocation5 + $0x110] sm:$0xff]
    %v7114 = vld [vmem:[#allocation5 + $0x118] sm:$0xff]
    %v7115 = vld [vmem:[#allocation5 + $0x140] sm:$0xff]
    %v7116 = vld [vmem:[#allocation5 + $0x148] sm:$0xff]
    %v7117 = vld [vmem:[#allocation5 + $0x150] sm:$0xff]
    %v7118 = vld [vmem:[#allocation5 + $0x158] sm:$0xff]
    %v7119 = vld [vmem:[#allocation5 + $0x160] sm:$0xff]
    %v7120 = vld [vmem:[#allocation5 + $0x168] sm:$0xff]
    %v7121 = vld [vmem:[#allocation5 + $0x170] sm:$0xff]
    %v7122 = vld [vmem:[#allocation5 + $0x178] sm:$0xff]
    %v7123 = vld [vmem:[#allocation5 + $0x1a0] sm:$0xff]
    %v7124 = vld [vmem:[#allocation5 + $0x1a8] sm:$0xff]
    %v7125 = vld [vmem:[#allocation5 + $0x1b0] sm:$0xff]
    %v7126 = vld [vmem:[#allocation5 + $0x1b8] sm:$0xff]
    %v7127 = vld [vmem:[#allocation5 + $0x1c0] sm:$0xff]
    %v7128 = vld [vmem:[#allocation5 + $0x1c8] sm:$0xff]
    %v7129 = vld [vmem:[#allocation5 + $0x1d0] sm:$0xff]
    %v7130 = vld [vmem:[#allocation5 + $0x1d8] sm:$0xff]
    %v7131 = vld [vmem:[#allocation5 + $0x200] sm:$0xff]
    %v7132 = vld [vmem:[#allocation5 + $0x208] sm:$0xff]
    %v7133 = vld [vmem:[#allocation5 + $0x210] sm:$0xff]
    %v7134 = vld [vmem:[#allocation5 + $0x218] sm:$0xff]
    %v7135 = vld [vmem:[#allocation5 + $0x220] sm:$0xff]
    %v7136 = vld [vmem:[#allocation5 + $0x228] sm:$0xff]
    %v7137 = vld [vmem:[#allocation5 + $0x230] sm:$0xff]
    %v7138 = vld [vmem:[#allocation5 + $0x238] sm:$0xff]
    %v7139 = vld [vmem:[#allocation5 + $0x260] sm:$0xff]
    %v7140 = vld [vmem:[#allocation5 + $0x268] sm:$0xff]
    %v7141 = vld [vmem:[#allocation5 + $0x270] sm:$0xff]
    %v7142 = vld [vmem:[#allocation5 + $0x278] sm:$0xff]
    %v7143 = vld [vmem:[#allocation5 + $0x280] sm:$0xff]
    %v7144 = vld [vmem:[#allocation5 + $0x288] sm:$0xff]
    %v7145 = vld [vmem:[#allocation5 + $0x290] sm:$0xff]
    %v7146 = vld [vmem:[#allocation5 + $0x298] sm:$0xff]
    %v7147 = vld [vmem:[#allocation5 + $0x2c0] sm:$0xff]
    %v7148 = vld [vmem:[#allocation5 + $0x2c8] sm:$0xff]
    %v7149 = vld [vmem:[#allocation5 + $0x2d0] sm:$0xff]
    %v7150 = vld [vmem:[#allocation5 + $0x2d8] sm:$0xff]
    %v7151 = vld [vmem:[#allocation5 + $0x2e0] sm:$0xff]
    %v7152 = vld [vmem:[#allocation5 + $0x2e8] sm:$0xff]
    %v7153 = vld [vmem:[#allocation5 + $0x2f0] sm:$0xff]
    %v7154 = vld [vmem:[#allocation5 + $0x2f8] sm:$0xff]
    %v7156 = vsel %vm272, %v7090, 0
    %7158 = vmatpush.msra.mxu0 0.0
    %7159 = vmatpush.msra.mxu0 0.0
    %7160 = vmatpush.msra.mxu0 0.0
    %7161 = vmatpush.msra.mxu0 0.0
    %7162 = vmatpush.msra.mxu0 0.0
    %7163 = vmatpush.msra.mxu0 0.0
    %7164 = vmatpush.msra.mxu0 0.0
    %7165 = vmatpush.msra.mxu0 0.0
    %7166 = vmatpush.msra.mxu0 %v7147
    %7167 = vmatpush.msra.mxu0 %v7139
    %7168 = vmatpush.msra.mxu0 %v7131
    %7169 = vmatpush.msra.mxu0 %v7123
    %7170 = vmatpush.msra.mxu0 %v7115
    %7171 = vmatpush.msra.mxu0 %v7107
    %7172 = vmatpush.msra.mxu0 %v7099
    %7173 = vmatpush.msra.mxu0 %v7091
    %7174 = vmatmul.f32.gmra.mxu0 %v7156
    %v7175 = vpop.f32.mrf.mxu0
    %v7176 = vadd.f32 0.0, %v7175
    %7177 = vdwg.mxu0
    %7178 = vmatpush.msra.mxu0 0.0
    %7179 = vmatpush.msra.mxu0 0.0
    %7180 = vmatpush.msra.mxu0 0.0
    %7181 = vmatpush.msra.mxu0 0.0
    %7182 = vmatpush.msra.mxu0 0.0
    %7183 = vmatpush.msra.mxu0 0.0
    %7184 = vmatpush.msra.mxu0 0.0
    %7185 = vmatpush.msra.mxu0 0.0
    %7186 = vmatpush.msra.mxu0 %v7148
    %7187 = vmatpush.msra.mxu0 %v7140
    %7188 = vmatpush.msra.mxu0 %v7132
    %7189 = vmatpush.msra.mxu0 %v7124
    %7190 = vmatpush.msra.mxu0 %v7116
    %7191 = vmatpush.msra.mxu0 %v7108
    %7192 = vmatpush.msra.mxu0 %v7100
    %7193 = vmatpush.msra.mxu0 %v7092
    %7194 = vmatmul.f32.gmra.mxu0 %v7156
    %v7195 = vpop.f32.mrf.mxu0
    %v7196 = vadd.f32 0.0, %v7195
    %7197 = vdwg.mxu0
    %7198 = vmatpush.msra.mxu0 0.0
    %7199 = vmatpush.msra.mxu0 0.0
    %7200 = vmatpush.msra.mxu0 0.0
    %7201 = vmatpush.msra.mxu0 0.0
    %7202 = vmatpush.msra.mxu0 0.0
    %7203 = vmatpush.msra.mxu0 0.0
    %7204 = vmatpush.msra.mxu0 0.0
    %7205 = vmatpush.msra.mxu0 0.0
    %7206 = vmatpush.msra.mxu0 %v7149
    %7207 = vmatpush.msra.mxu0 %v7141
    %7208 = vmatpush.msra.mxu0 %v7133
    %7209 = vmatpush.msra.mxu0 %v7125
    %7210 = vmatpush.msra.mxu0 %v7117
    %7211 = vmatpush.msra.mxu0 %v7109
    %7212 = vmatpush.msra.mxu0 %v7101
    %7213 = vmatpush.msra.mxu0 %v7093
    %7214 = vmatmul.f32.gmra.mxu0 %v7156
    %v7215 = vpop.f32.mrf.mxu0
    %v7216 = vadd.f32 0.0, %v7215
    %7217 = vdwg.mxu0
    %7218 = vmatpush.msra.mxu0 0.0
    %7219 = vmatpush.msra.mxu0 0.0
    %7220 = vmatpush.msra.mxu0 0.0
    %7221 = vmatpush.msra.mxu0 0.0
    %7222 = vmatpush.msra.mxu0 0.0
    %7223 = vmatpush.msra.mxu0 0.0
    %7224 = vmatpush.msra.mxu0 0.0
    %7225 = vmatpush.msra.mxu0 0.0
    %7226 = vmatpush.msra.mxu0 %v7150
    %7227 = vmatpush.msra.mxu0 %v7142
    %7228 = vmatpush.msra.mxu0 %v7134
    %7229 = vmatpush.msra.mxu0 %v7126
    %7230 = vmatpush.msra.mxu0 %v7118
    %7231 = vmatpush.msra.mxu0 %v7110
    %7232 = vmatpush.msra.mxu0 %v7102
    %7233 = vmatpush.msra.mxu0 %v7094
    %7234 = vmatmul.f32.gmra.mxu0 %v7156
    %v7235 = vpop.f32.mrf.mxu0
    %v7236 = vadd.f32 0.0, %v7235
    %7237 = vdwg.mxu0
    %7238 = vmatpush.msra.mxu0 0.0
    %7239 = vmatpush.msra.mxu0 0.0
    %7240 = vmatpush.msra.mxu0 0.0
    %7241 = vmatpush.msra.mxu0 0.0
    %7242 = vmatpush.msra.mxu0 0.0
    %7243 = vmatpush.msra.mxu0 0.0
    %7244 = vmatpush.msra.mxu0 0.0
    %7245 = vmatpush.msra.mxu0 0.0
    %7246 = vmatpush.msra.mxu0 %v7151
    %7247 = vmatpush.msra.mxu0 %v7143
    %7248 = vmatpush.msra.mxu0 %v7135
    %7249 = vmatpush.msra.mxu0 %v7127
    %7250 = vmatpush.msra.mxu0 %v7119
    %7251 = vmatpush.msra.mxu0 %v7111
    %7252 = vmatpush.msra.mxu0 %v7103
    %7253 = vmatpush.msra.mxu0 %v7095
    %7254 = vmatmul.f32.gmra.mxu0 %v7156
    %v7255 = vpop.f32.mrf.mxu0
    %v7256 = vadd.f32 0.0, %v7255
    %7257 = vdwg.mxu0
    %7258 = vmatpush.msra.mxu0 0.0
    %7259 = vmatpush.msra.mxu0 0.0
    %7260 = vmatpush.msra.mxu0 0.0
    %7261 = vmatpush.msra.mxu0 0.0
    %7262 = vmatpush.msra.mxu0 0.0
    %7263 = vmatpush.msra.mxu0 0.0
    %7264 = vmatpush.msra.mxu0 0.0
    %7265 = vmatpush.msra.mxu0 0.0
    %7266 = vmatpush.msra.mxu0 %v7152
    %7267 = vmatpush.msra.mxu0 %v7144
    %7268 = vmatpush.msra.mxu0 %v7136
    %7269 = vmatpush.msra.mxu0 %v7128
    %7270 = vmatpush.msra.mxu0 %v7120
    %7271 = vmatpush.msra.mxu0 %v7112
    %7272 = vmatpush.msra.mxu0 %v7104
    %7273 = vmatpush.msra.mxu0 %v7096
    %7274 = vmatmul.f32.gmra.mxu0 %v7156
    %v7275 = vpop.f32.mrf.mxu0
    %v7276 = vadd.f32 0.0, %v7275
    %7277 = vdwg.mxu0
    %7278 = vmatpush.msra.mxu0 0.0
    %7279 = vmatpush.msra.mxu0 0.0
    %7280 = vmatpush.msra.mxu0 0.0
    %7281 = vmatpush.msra.mxu0 0.0
    %7282 = vmatpush.msra.mxu0 0.0
    %7283 = vmatpush.msra.mxu0 0.0
    %7284 = vmatpush.msra.mxu0 0.0
    %7285 = vmatpush.msra.mxu0 0.0
    %7286 = vmatpush.msra.mxu0 %v7153
    %7287 = vmatpush.msra.mxu0 %v7145
    %7288 = vmatpush.msra.mxu0 %v7137
    %7289 = vmatpush.msra.mxu0 %v7129
    %7290 = vmatpush.msra.mxu0 %v7121
    %7291 = vmatpush.msra.mxu0 %v7113
    %7292 = vmatpush.msra.mxu0 %v7105
    %7293 = vmatpush.msra.mxu0 %v7097
    %7294 = vmatmul.f32.gmra.mxu0 %v7156
    %v7295 = vpop.f32.mrf.mxu0
    %v7296 = vadd.f32 0.0, %v7295
    %7297 = vdwg.mxu0
    %7298 = vmatpush.msra.mxu0 0.0
    %7299 = vmatpush.msra.mxu0 0.0
    %7300 = vmatpush.msra.mxu0 0.0
    %7301 = vmatpush.msra.mxu0 0.0
    %7302 = vmatpush.msra.mxu0 0.0
    %7303 = vmatpush.msra.mxu0 0.0
    %7304 = vmatpush.msra.mxu0 0.0
    %7305 = vmatpush.msra.mxu0 0.0
    %7306 = vmatpush.msra.mxu0 %v7154
    %7307 = vmatpush.msra.mxu0 %v7146
    %7308 = vmatpush.msra.mxu0 %v7138
    %7309 = vmatpush.msra.mxu0 %v7130
    %7310 = vmatpush.msra.mxu0 %v7122
    %7311 = vmatpush.msra.mxu0 %v7114
    %7312 = vmatpush.msra.mxu0 %v7106
    %7313 = vmatpush.msra.mxu0 %v7098
    %7314 = vmatmul.f32.gmra.mxu0 %v7156
    %v7315 = vpop.f32.mrf.mxu0
    %v7316 = vadd.f32 0.0, %v7315
    %7317 = vdwg.mxu0
    %v7322 = vrot.slane %v7256, 1
    %v7323 = vrot.slane %v7276, 1
    %v7324 = vrot.slane %v7296, 1
    %v7325 = vrot.slane %v7316, 1
    %v7330 = vadd.f32 %v7176, %v7322
    %v7331 = vadd.f32 %v7196, %v7323
    %v7332 = vadd.f32 %v7216, %v7324
    %v7333 = vadd.f32 %v7236, %v7325
    %v7334 = vadd.f32 %v7330, %v3980
    %v7335 = vadd.f32 %v7331, %v3981
    %v7336 = vadd.f32 %v7332, %v3982
    %v7337 = vadd.f32 %v7333, %v3983
    %v7338 = vxor.u32 %v7334, 2147483648
    %v7339 = vmul.f32 %v7338, 1.442695
    %v7340 = vpow.pop %v7339
    %v7341 = vadd.f32 %v7340, 1.0
    %v7342 = vrcp.pop %v7341
    %v7343 = vmul.f32 %v7341, %v7342
    %v7344 = vsub.f32 1.0, %v7343
    %v7345 = vmul.f32 %v7342, %v7344
    %v7346 = vadd.f32 %v7342, %v7345
    %vm7347 = vweird.f32 %v7341
    %vm7348 = vweird.f32 %v7342
    %vm7349 = vmor %vm7347, %vm7348
    %v7350 = vsel %vm7349, %v7342, %v7346
    %v7351 = vand.u32 2147483647, %v7341
    %vm7352 = vcmp.eq.f32.partialorder %v7351, 8.507059e+37
    %v7353 = vand.u32 %v7341, 2147483648
    %v7354 = vor.u32 1.1754944e-38, %v7353
    %v7355 = vsel %vm7352, %v7354, %v7350
    %v7356 = vmul.f32 1.0, %v7355
    %v7357 = vxor.u32 %v7335, 2147483648
    %v7358 = vmul.f32 %v7357, 1.442695
    %v7359 = vpow.pop %v7358
    %v7360 = vadd.f32 %v7359, 1.0
    %v7361 = vrcp.pop %v7360
    %v7362 = vmul.f32 %v7360, %v7361
    %v7363 = vsub.f32 1.0, %v7362
    %v7364 = vmul.f32 %v7361, %v7363
    %v7365 = vadd.f32 %v7361, %v7364
    %vm7366 = vweird.f32 %v7360
    %vm7367 = vweird.f32 %v7361
    %vm7368 = vmor %vm7366, %vm7367
    %v7369 = vsel %vm7368, %v7361, %v7365
    %v7370 = vand.u32 2147483647, %v7360
    %vm7371 = vcmp.eq.f32.partialorder %v7370, 8.507059e+37
    %v7372 = vand.u32 %v7360, 2147483648
    %v7373 = vor.u32 1.1754944e-38, %v7372
    %v7374 = vsel %vm7371, %v7373, %v7369
    %v7375 = vmul.f32 1.0, %v7374
    %v7376 = vtanh.pop %v7336
    %v7377 = vxor.u32 %v7337, 2147483648
    %v7378 = vmul.f32 %v7377, 1.442695
    %v7379 = vpow.pop %v7378
    %v7380 = vadd.f32 %v7379, 1.0
    %v7381 = vrcp.pop %v7380
    %v7382 = vmul.f32 %v7380, %v7381
    %v7383 = vsub.f32 1.0, %v7382
    %v7384 = vmul.f32 %v7381, %v7383
    %v7385 = vadd.f32 %v7381, %v7384
    %vm7386 = vweird.f32 %v7380
    %vm7387 = vweird.f32 %v7381
    %vm7388 = vmor %vm7386, %vm7387
    %v7389 = vsel %vm7388, %v7381, %v7385
    %v7390 = vand.u32 2147483647, %v7380
    %vm7391 = vcmp.eq.f32.partialorder %v7390, 8.507059e+37
    %v7392 = vand.u32 %v7380, 2147483648
    %v7393 = vor.u32 1.1754944e-38, %v7392
    %v7394 = vsel %vm7391, %v7393, %v7389
    %v7395 = vmul.f32 1.0, %v7394
    %v7396 = vmul.f32 %v7375, %v7016
    %v7397 = vmul.f32 %v7356, %v7376
    %v7398 = vadd.f32 %v7396, %v7397
    %v7399 = vtanh.pop %v7398
    %v7400 = vmul.f32 %v7395, %v7399
    %7401 = vst [vmem:[#allocation3 + $0x7] sm:$0x1] %v7400
    %v7402 = vld [vmem:[#allocation7 + $0x5] ss:$0 sm:$0xff]
    %v7403 = vld [vmem:[#allocation7 + $0x6] ss:$0 sm:$0xff]
    %v7404 = vld [vmem:[#allocation3] sm:$0xff]
    %v7405 = vmul.f32 %v7404, %v7402
    %7406 = vadd.xlane.f32.xlu0 %v7405
    %v7407 = vpop.xlane.xlu0 %7406
    %v7408 = vadd.f32 %v7407, %v7403
    %vm7409 = vcmask 7168
    %7410 = vst.msk [vmem:[%s5] sm:$0xff] %vm7409, %v7408
    // Predicated region
    $region30: #{recurrent_autoencoder.1} parent=1 // pred_check
      _
    $region31: #{recurrent_autoencoder.1} parent=1 // pred_check_branch
      %7412 = sbr.rel (0) target = $region33
    $region32: #{recurrent_autoencoder.1} parent=1 // pred_region
      _
    $region33: #{recurrent_autoencoder.1} parent=1 // pred_fallthru
      _
    // Predicated region
    $region34: #{recurrent_autoencoder.1} parent=1 // pred_check
      _
    $region35: #{recurrent_autoencoder.1} parent=1 // pred_check_branch
      %7414 = sbr.rel (0) target = $region37
    $region36: #{recurrent_autoencoder.1} parent=1 // pred_region
      _
    $region37: #{recurrent_autoencoder.1} parent=1 // pred_fallthru
      _
    %7415 = vsyncpa [#allocation8], 1
    %7416 = vsyncpa [#allocation10], 1
  %7417 = vsyncmov [#allocation6]
  %s7418 = vpop.sfrf %7417
  %p7419 = scmp.eq.s32.totalorder %s7418, 0
  %p7420 = pneg %p7419
  %7422 = shalt.err (%p7420)
  %s7423 = scalar_lea.sflag [#allocation6], 1
  %7424 = vsyncmov %s7423
  %s7425 = vpop.sfrf %7424
  %p7426 = scmp.eq.s32.totalorder %s7425, 0
  %p7427 = pneg %p7426
  %7429 = shalt.err (%p7427)

</llo_original>
